<compile_context>
chip_gen: v7x
topology: tpu7x:2x2x1
jax: 0.10.0
libtpu: 0.0.40
codegen_flags: <defaults>
</compile_context>

<pallas_src>
import jax
import jax.numpy as jnp
from jax.experimental import pallas as pl
from jax.experimental.pallas import tpu as pltpu


# ----------------------------- Pallas kernel ------------------------------ #

def _fused_cond_proj_kernel(x_ref, w_head_ref, b_head_ref, w_proj_ref,
                            b_proj_ref, o_ref):
    """One (N-tile, batch-block) grid step.

    x_ref:      (BB, S, K)  bf16   point features for this batch block
    w_*_ref:    (K, BN)     bf16   projection weight tile (N-split)
    b_*_ref:    (1, BN)     f32    bias tile
    o_ref:      (BB, S, BN) f32    output embedding tile
    """
    w_proj = w_proj_ref[...]
    b_proj = b_proj_ref[...]
    w_head = w_head_ref[...]
    b_head = b_head_ref[...]

    bb = x_ref.shape[0]
    for b in range(bb):                       # static, small batch block
        x = x_ref[b]                          # (S, K) bf16
        # cond_proj over all S rows (row 0 is recomputed below with the head
        # weights; ~0.4% extra MXU work keeps the main store dense).
        y_rest = jnp.dot(x, w_proj, preferred_element_type=jnp.float32) + b_proj
        o_ref[b] = y_rest.astype(o_ref.dtype)               # dense (S, BN) store

        # cond_head_proj for token 0 only; row-0 overwrite (masked 1-row store).
        y_head = jnp.dot(x[0:1, :], w_head,
                         preferred_element_type=jnp.float32) + b_head
        o_ref[b, 0:1, :] = y_head.astype(o_ref.dtype)


def fused_point_cond_proj(point_feature, w_head, b_head, w_proj, b_proj, *,
                          bn=512):
    """pc_embeds[b, 0]  = point_feature[b, 0]  @ w_head + b_head
       pc_embeds[b, 1:] = point_feature[b, 1:] @ w_proj + b_proj

    point_feature: (B, S, K), weights: (K, N), biases: (N,) -> (B, S, N) f32.
    Weights/activations are expected pre-cast to bf16 (cast here only as a
    fallback); biases are kept in f32.
    """
    B, S, K = point_feature.shape
    Kw, N = w_proj.shape
    assert K == Kw and w_head.shape == (K, N)

    bn = min(bn, N)
    assert N % bn == 0 and bn % 128 == 0

    x = (point_feature if point_feature.dtype == jnp.bfloat16
         else point_feature.astype(jnp.bfloat16))
    wh = w_head if w_head.dtype == jnp.bfloat16 else w_head.astype(jnp.bfloat16)
    wp = w_proj if w_proj.dtype == jnp.bfloat16 else w_proj.astype(jnp.bfloat16)
    bh = b_head.reshape(1, N).astype(jnp.float32)
    bp = b_proj.reshape(1, N).astype(jnp.float32)

    # Small batches collapse into one batch block (amortize grid overhead and
    # keep x resident across the N tiles); large batches fall back to BB=1.
    BB = B if B <= 8 else 1
    assert B % BB == 0
    n_tiles = N // bn
    b_tiles = B // BB

    flops = 2 * B * (S + 1) * K * N
    x_fetches = 1 if b_tiles == 1 else n_tiles   # x re-fetched per N tile only if batch is gridded
    bytes_accessed = (x.size * 2 * x_fetches + wh.size * 2 + wp.size * 2
                      + (bh.size + bp.size) * 4 + B * S * N * 4)

    return pl.pallas_call(
        _fused_cond_proj_kernel,
        out_shape=jax.ShapeDtypeStruct((B, S, N), jnp.float32),
        grid_spec=pltpu.PrefetchScalarGridSpec(
            num_scalar_prefetch=0,
            # N-tile axis outer (weights fetched once total), batch axis inner.
            grid=(n_tiles, b_tiles),
            in_specs=[
                pl.BlockSpec((BB, S, K), lambda j, b: (b, 0, 0)),   # x
                pl.BlockSpec((K, bn), lambda j, b: (0, j)),         # w_head tile
                pl.BlockSpec((1, bn), lambda j, b: (0, j)),         # b_head tile
                pl.BlockSpec((K, bn), lambda j, b: (0, j)),         # w_proj tile
                pl.BlockSpec((1, bn), lambda j, b: (0, j)),         # b_proj tile
            ],
            out_specs=pl.BlockSpec((BB, S, bn), lambda j, b: (b, 0, j)),
        ),
        compiler_params=pltpu.CompilerParams(
            # No reduction axis: every grid point writes a distinct output
            # tile, so both axes are parallel (feeds both v7x TensorCores
            # even when B == 1).
            dimension_semantics=("parallel", "parallel"),
            vmem_limit_bytes=32 * 1024 * 1024,
        ),
        cost_estimate=pl.CostEstimate(
            flops=flops, transcendentals=0, bytes_accessed=bytes_accessed),
    )(x, wh, bh, wp, bp)


# --------------------------- PointConditioner ------------------------------ #

class PointConditionerPallas:
    def __init__(self, key, *, dim_latent=None, cond_dim=768, check_nan=False):
        self.model_name = "miche-256-feature"
        self.feature_dim = 1024
        self.cond_length = 257
        self.cond_dim = cond_dim
        self.dim_latent = dim_latent if dim_latent is not None else self.feature_dim
        self.freeze = True
        # Eager-only NaN check (mirrors the PyTorch assert); off by default so
        # the hot path stays jittable and never forces a device->host sync.
        self.check_nan = check_nan

        k1, k2, k3, k4, k5, k6 = jax.random.split(key, 6)
        bound = 1.0 / (cond_dim ** 0.5)
        # nn.Linear(cond_dim, feature_dim) params, stored transposed as (in, out).
        self.w_head = jax.random.uniform(
            k1, (cond_dim, self.feature_dim), jnp.float32, -bound, bound)
        self.b_head = jax.random.uniform(
            k2, (self.feature_dim,), jnp.float32, -bound, bound)
        self.w_proj = jax.random.uniform(
            k3, (cond_dim, self.feature_dim), jnp.float32, -bound, bound)
        self.b_proj = jax.random.uniform(
            k4, (self.feature_dim,), jnp.float32, -bound, bound)

        # Precomputed kernel-ready params (bf16 MXU inputs, f32 row biases) so
        # the hot path never re-converts the 2x3 MiB weights per call.
        self.w_head_bf16 = self.w_head.astype(jnp.bfloat16)
        self.w_proj_bf16 = self.w_proj.astype(jnp.bfloat16)
        self.b_head_row = self.b_head.reshape(1, self.feature_dim)
        self.b_proj_row = self.b_proj.reshape(1, self.feature_dim)

        # TODO(synk): the real Michelangelo point encoder (shapevae-256) is a
        # checkpoint-loaded perceiver-style VAE; here a deterministic surrogate
        # (learned query tokens + pooled point projection) stands in for
        # encode_latents so the conditioner hot path is exercised end-to-end.
        self.query_tokens = 0.02 * jax.random.normal(
            k5, (self.cond_length, cond_dim), jnp.float32)
        self.w_pc = jax.random.uniform(
            k6, (6, cond_dim), jnp.float32, -bound, bound)

    def _encode_latents(self, pc_normal):
        # Surrogate for point_encoder.encode_latents: (B, Np, 6) -> (B, 257, 768).
        # Produced directly in bf16 (cast fuses into the add epilogue) so the
        # projection kernel gets MXU-native inputs without an extra convert.
        pooled = jnp.mean(pc_normal @ self.w_pc, axis=1)           # (B, cond_dim)
        feat = self.query_tokens[None, :, :] + pooled[:, None, :]  # (B, 257, 768)
        return feat.astype(jnp.bfloat16)

    def embed_pc(self, pc_normal):
        point_feature = self._encode_latents(pc_normal)            # (B, 257, 768) bf16
        # Fused head + rest projections; one Pallas call writes the full
        # (B, 257, 1024) output (no separate M=1 matmul, no concatenate).
        return fused_point_cond_proj(
            point_feature, self.w_head_bf16, self.b_head_row,
            self.w_proj_bf16, self.b_proj_row)

    def __call__(self, pc=None, pc_embeds=None):
        if pc_embeds is None:
            pc_embeds = self.embed_pc(pc.astype(jnp.float32))
        if self.check_nan:
            # Eager-only; mirrors the PyTorch assert.
            assert not bool(jnp.any(jnp.isnan(pc_embeds))), \
                "NAN values in pc embedings"
        return pc_embeds


# --------------------------------- main ------------------------------------ #

if __name__ == "__main__":
    key = jax.random.PRNGKey(0)
    k_param, k_pc = jax.random.split(key)

    conditioner = PointConditionerPallas(k_param)

    B, N_POINTS = 2, 16
    # Point cloud with normals: (B, N_points, 6)  [xyz + normal].
    pc = jax.random.normal(k_pc, (B, N_POINTS, 6), jnp.float32)

    pc_embeds = conditioner(pc=pc)
    pc_embeds = jax.block_until_ready(pc_embeds)

    assert pc_embeds.shape == (B, conditioner.cond_length, conditioner.feature_dim)
    assert pc_embeds.dtype == jnp.float32
    assert not bool(jnp.any(jnp.isnan(pc_embeds)))

    # Reference check of the Pallas hot path against plain f32 JAX (same bf16
    # point features, f32 weights/bias -> error budget is just the bf16 weights
    # with f32 accumulation).
    pf = conditioner._encode_latents(pc).astype(jnp.float32)
    ref_head = pf[:, 0:1] @ conditioner.w_head + conditioner.b_head
    ref_rest = pf[:, 1:] @ conditioner.w_proj + conditioner.b_proj
    ref = jnp.concatenate([ref_head, ref_rest], axis=1)
    assert jnp.allclose(pc_embeds, ref, atol=1e-2, rtol=1e-2)

    print("KERNEL_OK")
</pallas_src>

<mosaic_0001>
module attributes {stable_mosaic.version = 11 : i64} {
  func.func @_fused_cond_proj_kernel(%arg0: i32, %arg1: i32, %arg2: memref<2x257x768xbf16, #tpu.memory_space<vmem>>, %arg3: memref<768x512xbf16, #tpu.memory_space<vmem>>, %arg4: memref<1x512xf32, #tpu.memory_space<vmem>>, %arg5: memref<768x512xbf16, #tpu.memory_space<vmem>>, %arg6: memref<1x512xf32, #tpu.memory_space<vmem>>, %arg7: memref<2x257x512xf32, #tpu.memory_space<vmem>>) attributes {dimension_semantics = [#tpu.dimension_semantics<parallel>, #tpu.dimension_semantics<parallel>], iteration_bounds = array<i64: 2, 1>, scalar_prefetch = 0 : i64, scratch_operands = 0 : i64, tpu.core_type = #tpu.core_type<tc>, window_params = [{transform_indices = @transform_0, window_bounds = array<i64: 2, 257, 768>}, {transform_indices = @transform_1, window_bounds = array<i64: 768, 512>}, {transform_indices = @transform_2, window_bounds = array<i64: 1, 512>}, {transform_indices = @transform_3, window_bounds = array<i64: 768, 512>}, {transform_indices = @transform_4, window_bounds = array<i64: 1, 512>}, {transform_indices = @transform_5, window_bounds = array<i64: 2, 257, 512>}]} {
    %c0 = arith.constant 0 : index
    %c0_0 = arith.constant 0 : index
    %0 = vector.load %arg5[%c0, %c0_0] : memref<768x512xbf16, #tpu.memory_space<vmem>>, vector<768x512xbf16>
    %c0_1 = arith.constant 0 : index
    %c0_2 = arith.constant 0 : index
    %1 = vector.load %arg6[%c0_1, %c0_2] : memref<1x512xf32, #tpu.memory_space<vmem>>, vector<1x512xf32>
    %c0_3 = arith.constant 0 : index
    %c0_4 = arith.constant 0 : index
    %2 = vector.load %arg3[%c0_3, %c0_4] : memref<768x512xbf16, #tpu.memory_space<vmem>>, vector<768x512xbf16>
    %c0_5 = arith.constant 0 : index
    %c0_6 = arith.constant 0 : index
    %3 = vector.load %arg4[%c0_5, %c0_6] : memref<1x512xf32, #tpu.memory_space<vmem>>, vector<1x512xf32>
    %c0_7 = arith.constant 0 : index
    %c0_8 = arith.constant 0 : index
    %c0_9 = arith.constant 0 : index
    %4 = vector.load %arg2[%c0_7, %c0_8, %c0_9] : memref<2x257x768xbf16, #tpu.memory_space<vmem>>, vector<1x257x768xbf16>
    %5 = vector.shape_cast %4 : vector<1x257x768xbf16> to vector<257x768xbf16>
    %cst = arith.constant dense<0.000000e+00> : vector<257x512xf32>
    %6 = tpu.matmul %5, %0, %cst {dimension_numbers = #tpu.dot_dimension_numbers<[1], [0], [0], [1], [0, 0, 1, 1], [], []>} : vector<257x768xbf16>, vector<768x512xbf16>, vector<257x512xf32> -> vector<257x512xf32>
    %7 = vector.broadcast %1 : vector<1x512xf32> to vector<257x512xf32>
    %8 = arith.addf %6, %7 : vector<257x512xf32>
    %c0_10 = arith.constant 0 : index
    %c0_11 = arith.constant 0 : index
    %c0_12 = arith.constant 0 : index
    %9 = vector.load %arg7[%c0_10, %c0_11, %c0_12] : memref<2x257x512xf32, #tpu.memory_space<vmem>>, vector<1x257x512xf32>
    %10 = vector.shape_cast %9 : vector<1x257x512xf32> to vector<257x512xf32>
    %11 = vector.shape_cast %8 : vector<257x512xf32> to vector<1x257x512xf32>
    tpu.vector_store %arg7[%c0_10, %c0_11, %c0_12], %11 {strides = array<i32>} : memref<2x257x512xf32, #tpu.memory_space<vmem>>, vector<1x257x512xf32>,
    %12 = vector.extract_strided_slice %5 {offsets = [0, 0], sizes = [1, 768], strides = [1, 1]} : vector<257x768xbf16> to vector<1x768xbf16>
    %cst_13 = arith.constant dense<0.000000e+00> : vector<1x512xf32>
    %13 = tpu.matmul %12, %2, %cst_13 {dimension_numbers = #tpu.dot_dimension_numbers<[1], [0], [0], [1], [0, 0, 1, 1], [], []>} : vector<1x768xbf16>, vector<768x512xbf16>, vector<1x512xf32> -> vector<1x512xf32>
    %14 = arith.addf %13, %3 : vector<1x512xf32>
    %c0_14 = arith.constant 0 : index
    %c0_15 = arith.constant 0 : index
    %c0_16 = arith.constant 0 : index
    %15 = vector.load %arg7[%c0_14, %c0_15, %c0_16] : memref<2x257x512xf32, #tpu.memory_space<vmem>>, vector<1x1x512xf32>
    %16 = vector.shape_cast %15 : vector<1x1x512xf32> to vector<1x512xf32>
    %17 = vector.shape_cast %14 : vector<1x512xf32> to vector<1x1x512xf32>
    tpu.vector_store %arg7[%c0_14, %c0_15, %c0_16], %17 {strides = array<i32>} : memref<2x257x512xf32, #tpu.memory_space<vmem>>, vector<1x1x512xf32>,
    %c1 = arith.constant 1 : index
    %c0_17 = arith.constant 0 : index
    %c0_18 = arith.constant 0 : index
    %18 = vector.load %arg2[%c1, %c0_17, %c0_18] : memref<2x257x768xbf16, #tpu.memory_space<vmem>>, vector<1x257x768xbf16>
    %19 = vector.shape_cast %18 : vector<1x257x768xbf16> to vector<257x768xbf16>
    %cst_19 = arith.constant dense<0.000000e+00> : vector<257x512xf32>
    %20 = tpu.matmul %19, %0, %cst_19 {dimension_numbers = #tpu.dot_dimension_numbers<[1], [0], [0], [1], [0, 0, 1, 1], [], []>} : vector<257x768xbf16>, vector<768x512xbf16>, vector<257x512xf32> -> vector<257x512xf32>
    %21 = vector.broadcast %1 : vector<1x512xf32> to vector<257x512xf32>
    %22 = arith.addf %20, %21 : vector<257x512xf32>
    %c1_20 = arith.constant 1 : index
    %c0_21 = arith.constant 0 : index
    %c0_22 = arith.constant 0 : index
    %23 = vector.load %arg7[%c1_20, %c0_21, %c0_22] : memref<2x257x512xf32, #tpu.memory_space<vmem>>, vector<1x257x512xf32>
    %24 = vector.shape_cast %23 : vector<1x257x512xf32> to vector<257x512xf32>
    %25 = vector.shape_cast %22 : vector<257x512xf32> to vector<1x257x512xf32>
    tpu.vector_store %arg7[%c1_20, %c0_21, %c0_22], %25 {strides = array<i32>} : memref<2x257x512xf32, #tpu.memory_space<vmem>>, vector<1x257x512xf32>,
    %26 = vector.extract_strided_slice %19 {offsets = [0, 0], sizes = [1, 768], strides = [1, 1]} : vector<257x768xbf16> to vector<1x768xbf16>
    %cst_23 = arith.constant dense<0.000000e+00> : vector<1x512xf32>
    %27 = tpu.matmul %26, %2, %cst_23 {dimension_numbers = #tpu.dot_dimension_numbers<[1], [0], [0], [1], [0, 0, 1, 1], [], []>} : vector<1x768xbf16>, vector<768x512xbf16>, vector<1x512xf32> -> vector<1x512xf32>
    %28 = arith.addf %27, %3 : vector<1x512xf32>
    %c1_24 = arith.constant 1 : index
    %c0_25 = arith.constant 0 : index
    %c0_26 = arith.constant 0 : index
    %29 = vector.load %arg7[%c1_24, %c0_25, %c0_26] : memref<2x257x512xf32, #tpu.memory_space<vmem>>, vector<1x1x512xf32>
    %30 = vector.shape_cast %29 : vector<1x1x512xf32> to vector<1x512xf32>
    %31 = vector.shape_cast %28 : vector<1x512xf32> to vector<1x1x512xf32>
    tpu.vector_store %arg7[%c1_24, %c0_25, %c0_26], %31 {strides = array<i32>} : memref<2x257x512xf32, #tpu.memory_space<vmem>>, vector<1x1x512xf32>,
    return
  }
  func.func @transform_0(%arg0: i32, %arg1: i32) -> (i32, i32, i32) {
    %c0_i32 = arith.constant 0 : i32
    %c0_i32_0 = arith.constant 0 : i32
    %c0_i32_1 = arith.constant 0 : i32
    return %arg1, %c0_i32, %c0_i32_0 : i32, i32, i32
  }
  func.func @transform_1(%arg0: i32, %arg1: i32) -> (i32, i32) {
    %c0_i32 = arith.constant 0 : i32
    %c0_i32_0 = arith.constant 0 : i32
    return %c0_i32, %arg0 : i32, i32
  }
  func.func @transform_2(%arg0: i32, %arg1: i32) -> (i32, i32) {
    %c0_i32 = arith.constant 0 : i32
    %c0_i32_0 = arith.constant 0 : i32
    return %c0_i32, %arg0 : i32, i32
  }
  func.func @transform_3(%arg0: i32, %arg1: i32) -> (i32, i32) {
    %c0_i32 = arith.constant 0 : i32
    %c0_i32_0 = arith.constant 0 : i32
    return %c0_i32, %arg0 : i32, i32
  }
  func.func @transform_4(%arg0: i32, %arg1: i32) -> (i32, i32) {
    %c0_i32 = arith.constant 0 : i32
    %c0_i32_0 = arith.constant 0 : i32
    return %c0_i32, %arg0 : i32, i32
  }
  func.func @transform_5(%arg0: i32, %arg1: i32) -> (i32, i32, i32) {
    %c0_i32 = arith.constant 0 : i32
    %c0_i32_0 = arith.constant 0 : i32
    return %arg1, %c0_i32, %arg0 : i32, i32, i32
  }
}

</mosaic_0001>

<llo_original>
// kernel: tpu_custom_call.1
$region0: #{tpu_custom_call.1}
  #allocation0 [shape = 'u32[]', space=smem, size = 0x4, offset = 0x4, fixed_abs, tag = 'smem constant byte address 0x4 - core index']
  #allocation1 [shape = 'u32[144,128]{1,0:T(1,128)}', space=vmem, size = 0x12000, scoped, tag = 'internal scratch']
  %s0 = inlined_call_operand.vmem [shape: bf16[2,257,768], index: 0, kind: input, shape index: {}]
  %s1 = inlined_call_operand.vmem [shape: bf16[768,1024], index: 1, kind: input, shape index: {}]
  %s2 = inlined_call_operand.hbm [shape: f32[1,1024], index: 2, kind: input, shape index: {}]
  %s3 = inlined_call_operand.hbm [shape: bf16[768,1024], index: 3, kind: input, shape index: {}]
  %s4 = inlined_call_operand.hbm [shape: f32[1,1024], index: 4, kind: input, shape index: {}]
  %s5 = inlined_call_operand.vmem [shape: f32[2,257,1024], index: 5, kind: output, shape index: {}]
  %s6 = sld [smem:[#allocation0]]
  $region107: #{tpu_custom_call.1} parent=0
    _
  %s8 = ssub.s32 1, %s6
  %s9 = scalar_select 0, %s8, %s6
  $region1: #{tpu_custom_call.1} parent=0
    #allocation2 [shape = 'u8[1572864]{0}', space=vmem, size = 0x180000, scoped, tag = 'input window, operand 1']
    #allocation3 [shape = 'u8[4096]{0}', space=vmem, size = 0x1000, scoped, tag = 'input window, operand 2']
    #allocation4 [shape = 's32[2]{0}', space=sflag, size = 0x8, scoped, tag = 'scoped memory for tpu_custom_call.1']
    #allocation5 [shape = 'u8[1572864]{0}', space=vmem, size = 0x180000, scoped, tag = 'input window, operand 3']
    #allocation6 [shape = 's32[2]{0}', space=sflag, size = 0x8, scoped, tag = 'scoped memory for tpu_custom_call.1']
    #allocation7 [shape = 'u8[4096]{0}', space=vmem, size = 0x1000, scoped, tag = 'input window, operand 4']
    #allocation8 [shape = 'u8[2162688]{0}', space=vmem, size = 0x210000, scoped, tag = 'output window, operand 0']
    %10 = vsyncpa [#allocation4], 0
    %s11 = scalar_lea.sflag [#allocation4], 1
    %12 = vsyncpa %s11, 0
    %13 = vsyncpa [#allocation6], 0
    %s14 = scalar_lea.sflag [#allocation6], 1
    %15 = vsyncpa %s14, 0
    loop: start=0, step=1, limit=4
    $region2: #{tpu_custom_call.1} parent=1 // loop_pre_header
      _
    $region3: #{tpu_custom_call.1} parent=1 // loop_header
      %s17 = sphi 0, %s21
      %p18 = scmp.ge.s32.totalorder %s17, 4
      %s24 = sphi 0, %s36
      %s25 = sphi 0, %s32
      %s26 = sphi 0, %s24
      %s27 = sphi 0, %s25
      %s28 = sphi 0, %s26
      %s29 = sphi 0, %s27
      %s39 = sphi 0, %s41
      %s42 = sphi 0, %s39
      %s43 = sphi 0, %s42
      %s59 = sphi 0, %s43
      %s65 = sphi 0, %s67
      %s68 = sphi 0, %s65
      %s69 = sphi 0, %s68
      %s85 = sphi 0, %s69
      %s91 = sphi 0, %s93
      %s94 = sphi 0, %s91
      %s95 = sphi 0, %s94
      %s111 = sphi 0, %s95
      %s117 = sphi 0, %s119
      %s120 = sphi 0, %s117
      %s121 = sphi 0, %s120
      %s137 = sphi 0, %s121
      %s143 = sphi 0, %s145
      %s146 = sphi 0, %s143
      %s147 = sphi 0, %s146
      %s163 = sphi 0, %s147
      %s171 = sphi 0, %s173
      %s174 = sphi 0, %s171
      %s175 = sphi 0, %s174
      %s191 = sphi 0, %s175
    $region4: #{tpu_custom_call.1} parent=1 // loop_header_branch
      %20 = sbr.rel (%p18) target = $region8
    $region5: #{tpu_custom_call.1} parent=1 // loop_body
      %s22 = ssub.s32 %s17, 1
      %s23 = ssub.s32 %s17, 2
      %s30 = sadd.s32 1, %s25
      %p31 = scmp.ge.s32.totalorder %s30, 1
      %s32 = scalar_select %p31, 0, %s30
      %s33 = sadd.s32 1, %s24
      %s34 = scalar_select %p31, %s33, %s24
      %p35 = scmp.ge.s32.totalorder %s34, 2
      %s36 = scalar_select %p35, 0, %s34
      %s37 = ssub.s32 %s25, %s32
      %p38 = scmp.eq.s32.totalorder %s37, 0
      %s40 = sadd.s32 %s39, 1
      %s41 = scalar_select %p38, %s39, %s40
      %p44 = pneg %p38
      %p45 = scmp.eq.s32.totalorder %s17, 1
      %p46 = por %p44, %p45
      %p47 = scmp.ne.s32.totalorder %s39, %s42
      %p48 = scmp.eq.s32.totalorder %s17, 0
      %p49 = por %p47, %p48
      %p50 = scmp.ne.s32.totalorder %s39, %s42
      %p51 = scmp.eq.s32.totalorder %s22, 1
      %p52 = por %p50, %p51
      %p53 = scmp.ne.s32.totalorder %s42, %s43
      %p54 = scmp.eq.s32.totalorder %s22, 0
      %p55 = por %p53, %p54
      %p56 = scmp.ne.s32.totalorder %s42, %s43
      %p57 = scmp.eq.s32.totalorder %s23, 1
      %p58 = por %p56, %p57
      %p60 = scmp.ne.s32.totalorder %s43, %s59
      %p61 = scmp.eq.s32.totalorder %s23, 0
      %p62 = por %p60, %p61
      %s63 = ssub.s32 %s24, %s36
      %p64 = scmp.eq.s32.totalorder %s63, 0
      %s66 = sadd.s32 %s65, 1
      %s67 = scalar_select %p64, %s65, %s66
      %p70 = pneg %p64
      %p71 = scmp.eq.s32.totalorder %s17, 1
      %p72 = por %p70, %p71
      %p73 = scmp.ne.s32.totalorder %s65, %s68
      %p74 = scmp.eq.s32.totalorder %s17, 0
      %p75 = por %p73, %p74
      %p76 = scmp.ne.s32.totalorder %s65, %s68
      %p77 = scmp.eq.s32.totalorder %s22, 1
      %p78 = por %p76, %p77
      %p79 = scmp.ne.s32.totalorder %s68, %s69
      %p80 = scmp.eq.s32.totalorder %s22, 0
      %p81 = por %p79, %p80
      %p82 = scmp.ne.s32.totalorder %s68, %s69
      %p83 = scmp.eq.s32.totalorder %s23, 1
      %p84 = por %p82, %p83
      %p86 = scmp.ne.s32.totalorder %s69, %s85
      %p87 = scmp.eq.s32.totalorder %s23, 0
      %p88 = por %p86, %p87
      %s89 = ssub.s32 %s24, %s36
      %p90 = scmp.eq.s32.totalorder %s89, 0
      %s92 = sadd.s32 %s91, 1
      %s93 = scalar_select %p90, %s91, %s92
      %p96 = pneg %p90
      %p97 = scmp.eq.s32.totalorder %s17, 1
      %p98 = por %p96, %p97
      %p99 = scmp.ne.s32.totalorder %s91, %s94
      %p100 = scmp.eq.s32.totalorder %s17, 0
      %p101 = por %p99, %p100
      %p102 = scmp.ne.s32.totalorder %s91, %s94
      %p103 = scmp.eq.s32.totalorder %s22, 1
      %p104 = por %p102, %p103
      %p105 = scmp.ne.s32.totalorder %s94, %s95
      %p106 = scmp.eq.s32.totalorder %s22, 0
      %p107 = por %p105, %p106
      %p108 = scmp.ne.s32.totalorder %s94, %s95
      %p109 = scmp.eq.s32.totalorder %s23, 1
      %p110 = por %p108, %p109
      %p112 = scmp.ne.s32.totalorder %s95, %s111
      %p113 = scmp.eq.s32.totalorder %s23, 0
      %p114 = por %p112, %p113
      %s115 = ssub.s32 %s24, %s36
      %p116 = scmp.eq.s32.totalorder %s115, 0
      %s118 = sadd.s32 %s117, 1
      %s119 = scalar_select %p116, %s117, %s118
      %p122 = pneg %p116
      %p123 = scmp.eq.s32.totalorder %s17, 1
      %p124 = por %p122, %p123
      %p125 = scmp.ne.s32.totalorder %s117, %s120
      %p126 = scmp.eq.s32.totalorder %s17, 0
      %p127 = por %p125, %p126
      %p128 = scmp.ne.s32.totalorder %s117, %s120
      %p129 = scmp.eq.s32.totalorder %s22, 1
      %p130 = por %p128, %p129
      %p131 = scmp.ne.s32.totalorder %s120, %s121
      %p132 = scmp.eq.s32.totalorder %s22, 0
      %p133 = por %p131, %p132
      %p134 = scmp.ne.s32.totalorder %s120, %s121
      %p135 = scmp.eq.s32.totalorder %s23, 1
      %p136 = por %p134, %p135
      %p138 = scmp.ne.s32.totalorder %s121, %s137
      %p139 = scmp.eq.s32.totalorder %s23, 0
      %p140 = por %p138, %p139
      %s141 = ssub.s32 %s24, %s36
      %p142 = scmp.eq.s32.totalorder %s141, 0
      %s144 = sadd.s32 %s143, 1
      %s145 = scalar_select %p142, %s143, %s144
      %p148 = pneg %p142
      %p149 = scmp.eq.s32.totalorder %s17, 1
      %p150 = por %p148, %p149
      %p151 = scmp.ne.s32.totalorder %s143, %s146
      %p152 = scmp.eq.s32.totalorder %s17, 0
      %p153 = por %p151, %p152
      %p154 = scmp.ne.s32.totalorder %s143, %s146
      %p155 = scmp.eq.s32.totalorder %s22, 1
      %p156 = por %p154, %p155
      %p157 = scmp.ne.s32.totalorder %s146, %s147
      %p158 = scmp.eq.s32.totalorder %s22, 0
      %p159 = por %p157, %p158
      %p160 = scmp.ne.s32.totalorder %s146, %s147
      %p161 = scmp.eq.s32.totalorder %s23, 1
      %p162 = por %p160, %p161
      %p164 = scmp.ne.s32.totalorder %s147, %s163
      %p165 = scmp.eq.s32.totalorder %s23, 0
      %p166 = por %p164, %p165
      %s167 = ssub.s32 %s25, %s32
      %s168 = ssub.s32 %s24, %s36
      %s169 = sor.u32 %s167, %s168
      %p170 = scmp.eq.s32.totalorder %s169, 0
      %s172 = sadd.s32 %s171, 1
      %s173 = scalar_select %p170, %s171, %s172
      %p176 = pneg %p170
      %p177 = scmp.eq.s32.totalorder %s17, 1
      %p178 = por %p176, %p177
      %p179 = scmp.ne.s32.totalorder %s171, %s174
      %p180 = scmp.eq.s32.totalorder %s17, 0
      %p181 = por %p179, %p180
      %p182 = scmp.ne.s32.totalorder %s171, %s174
      %p183 = scmp.eq.s32.totalorder %s22, 1
      %p184 = por %p182, %p183
      %p185 = scmp.ne.s32.totalorder %s174, %s175
      %p186 = scmp.eq.s32.totalorder %s22, 0
      %p187 = por %p185, %p186
      %p188 = scmp.ne.s32.totalorder %s174, %s175
      %p189 = scmp.eq.s32.totalorder %s23, 1
      %p190 = por %p188, %p189
      %p192 = scmp.ne.s32.totalorder %s175, %s191
      %p193 = scmp.eq.s32.totalorder %s23, 0
      %p194 = por %p192, %p193
      %p195 = scmp.le.s32.totalorder 1, %s17
      %p196 = scmp.lt.s32.totalorder %s17, 3
      %p197 = pnand %p195, %p196
      %p198 = pneg %p197
      // Predicated region
      $region9: #{tpu_custom_call.1} parent=5 // pred_check
        _
      $region10: #{tpu_custom_call.1} parent=5 // pred_check_branch
        %200 = sbr.rel (%p197) target = $region12
      $region11: #{tpu_custom_call.1} parent=5 // pred_region
        %s201 = ssub.s32 %s17, 1
        // Predicated region
        $region13: #{tpu_custom_call.1} parent=11 // pred_check
          %p202 = pneg %p55
        $region14: #{tpu_custom_call.1} parent=11 // pred_check_branch
          %204 = sbr.rel (%p202) target = $region16
        $region15: #{tpu_custom_call.1} parent=11 // pred_region
          %s205 = smul.u32 2, %s27
          %p206 = scmp.lt.s32.totalorder %s205, 1
          %s207 = scalar_select %p206, %s205, 1
          %s208 = smul.addr %s207, 198
          %s209 = smul.addr %s208, 4
          %s210 = scalar_lea.vmem %s0, %s209
          %s211 = smul.u32 2, %s27
        $region16: #{tpu_custom_call.1} parent=11 // pred_fallthru
          _
      $region12: #{tpu_custom_call.1} parent=5 // pred_fallthru
        _
      %p212 = scmp.lt.s32.totalorder %s17, 2
      // Predicated region
      $region17: #{tpu_custom_call.1} parent=5 // pred_check
        %p213 = pneg %p212
      $region18: #{tpu_custom_call.1} parent=5 // pred_check_branch
        %215 = sbr.rel (%p213) target = $region20
      $region19: #{tpu_custom_call.1} parent=5 // pred_region
        // Predicated region
        $region21: #{tpu_custom_call.1} parent=19 // pred_check
          %p216 = pneg %p75
        $region22: #{tpu_custom_call.1} parent=19 // pred_check_branch
          %218 = sbr.rel (%p216) target = $region24
        $region23: #{tpu_custom_call.1} parent=19 // pred_region
          %s219 = sand.u32 %s65, 1
          %s220 = sand.u32 %s65, 1
          %s221 = smul.addr %s220, 1536
          %s222 = scalar_lea.vmem [#allocation2], %s221
          %s223 = smul.u32 4, %s24
          %s224 = smul.addr %s223, 4
          %s225 = scalar_lea.vmem %s1, %s224
          // Predicated region
          $region25: #{tpu_custom_call.1} parent=23 // pred_check
            _
          $region26: #{tpu_custom_call.1} parent=23 // pred_check_branch
            %227 = sbr.rel (0) target = $region28
          $region27: #{tpu_custom_call.1} parent=23 // pred_region
            // Predicated region
            $region29: #{tpu_custom_call.1} parent=27 // pred_check
              _
            $region30: #{tpu_custom_call.1} parent=27 // pred_check_branch
              %229 = sbr.rel (0) target = $region32
            $region31: #{tpu_custom_call.1} parent=27 // pred_region
              loop: start=0, step=1, limit=1
              $region33: #{tpu_custom_call.1} parent=31 // loop_pre_header
                _
              $region34: #{tpu_custom_call.1} parent=31 // loop_header
                %s231 = sphi 0, %s235
                %p232 = scmp.ge.s32.totalorder %s231, 1
                %s236 = sphi %s225, %s225
                %s237 = sphi %s222, %s222
              $region35: #{tpu_custom_call.1} parent=31 // loop_header_branch
                %234 = sbr.rel (%p232) target = $region39
              $region36: #{tpu_custom_call.1} parent=31 // loop_body
                %v238 = vld [vmem:[%s236] sm:$0xff]
                %239 = vst [vmem:[%s237] sm:$0xff] %v238
                %v240 = vld [vmem:[%s236 + $0x8] sm:$0xff]
                %241 = vst [vmem:[%s237 + $0x8] sm:$0xff] %v240
                %v242 = vld [vmem:[%s236 + $0x20] sm:$0xff]
                %243 = vst [vmem:[%s237 + $0x10] sm:$0xff] %v242
                %v244 = vld [vmem:[%s236 + $0x28] sm:$0xff]
                %245 = vst [vmem:[%s237 + $0x18] sm:$0xff] %v244
                %v246 = vld [vmem:[%s236 + $0x40] sm:$0xff]
                %247 = vst [vmem:[%s237 + $0x20] sm:$0xff] %v246
                %v248 = vld [vmem:[%s236 + $0x48] sm:$0xff]
                %249 = vst [vmem:[%s237 + $0x28] sm:$0xff] %v248
                %v250 = vld [vmem:[%s236 + $0x60] sm:$0xff]
                %251 = vst [vmem:[%s237 + $0x30] sm:$0xff] %v250
                %v252 = vld [vmem:[%s236 + $0x68] sm:$0xff]
                %253 = vst [vmem:[%s237 + $0x38] sm:$0xff] %v252
                %v254 = vld [vmem:[%s236 + $0x80] sm:$0xff]
                %255 = vst [vmem:[%s237 + $0x40] sm:$0xff] %v254
                %v256 = vld [vmem:[%s236 + $0x88] sm:$0xff]
                %257 = vst [vmem:[%s237 + $0x48] sm:$0xff] %v256
                %v258 = vld [vmem:[%s236 + $0xa0] sm:$0xff]
                %259 = vst [vmem:[%s237 + $0x50] sm:$0xff] %v258
                %v260 = vld [vmem:[%s236 + $0xa8] sm:$0xff]
                %261 = vst [vmem:[%s237 + $0x58] sm:$0xff] %v260
                %v262 = vld [vmem:[%s236 + $0xc0] sm:$0xff]
                %263 = vst [vmem:[%s237 + $0x60] sm:$0xff] %v262
                %v264 = vld [vmem:[%s236 + $0xc8] sm:$0xff]
                %265 = vst [vmem:[%s237 + $0x68] sm:$0xff] %v264
                %v266 = vld [vmem:[%s236 + $0xe0] sm:$0xff]
                %267 = vst [vmem:[%s237 + $0x70] sm:$0xff] %v266
                %v268 = vld [vmem:[%s236 + $0xe8] sm:$0xff]
                %269 = vst [vmem:[%s237 + $0x78] sm:$0xff] %v268
                %v270 = vld [vmem:[%s236 + $0x100] sm:$0xff]
                %271 = vst [vmem:[%s237 + $0x80] sm:$0xff] %v270
                %v272 = vld [vmem:[%s236 + $0x108] sm:$0xff]
                %273 = vst [vmem:[%s237 + $0x88] sm:$0xff] %v272
                %v274 = vld [vmem:[%s236 + $0x120] sm:$0xff]
                %275 = vst [vmem:[%s237 + $0x90] sm:$0xff] %v274
                %v276 = vld [vmem:[%s236 + $0x128] sm:$0xff]
                %277 = vst [vmem:[%s237 + $0x98] sm:$0xff] %v276
                %v278 = vld [vmem:[%s236 + $0x140] sm:$0xff]
                %279 = vst [vmem:[%s237 + $0xa0] sm:$0xff] %v278
                %v280 = vld [vmem:[%s236 + $0x148] sm:$0xff]
                %281 = vst [vmem:[%s237 + $0xa8] sm:$0xff] %v280
                %v282 = vld [vmem:[%s236 + $0x160] sm:$0xff]
                %283 = vst [vmem:[%s237 + $0xb0] sm:$0xff] %v282
                %v284 = vld [vmem:[%s236 + $0x168] sm:$0xff]
                %285 = vst [vmem:[%s237 + $0xb8] sm:$0xff] %v284
                %v286 = vld [vmem:[%s236 + $0x180] sm:$0xff]
                %287 = vst [vmem:[%s237 + $0xc0] sm:$0xff] %v286
                %v288 = vld [vmem:[%s236 + $0x188] sm:$0xff]
                %289 = vst [vmem:[%s237 + $0xc8] sm:$0xff] %v288
                %v290 = vld [vmem:[%s236 + $0x1a0] sm:$0xff]
                %291 = vst [vmem:[%s237 + $0xd0] sm:$0xff] %v290
                %v292 = vld [vmem:[%s236 + $0x1a8] sm:$0xff]
                %293 = vst [vmem:[%s237 + $0xd8] sm:$0xff] %v292
                %v294 = vld [vmem:[%s236 + $0x1c0] sm:$0xff]
                %295 = vst [vmem:[%s237 + $0xe0] sm:$0xff] %v294
                %v296 = vld [vmem:[%s236 + $0x1c8] sm:$0xff]
                %297 = vst [vmem:[%s237 + $0xe8] sm:$0xff] %v296
                %v298 = vld [vmem:[%s236 + $0x1e0] sm:$0xff]
                %299 = vst [vmem:[%s237 + $0xf0] sm:$0xff] %v298
                %v300 = vld [vmem:[%s236 + $0x1e8] sm:$0xff]
                %301 = vst [vmem:[%s237 + $0xf8] sm:$0xff] %v300
                %v302 = vld [vmem:[%s236 + $0x200] sm:$0xff]
                %303 = vst [vmem:[%s237 + $0x100] sm:$0xff] %v302
                %v304 = vld [vmem:[%s236 + $0x208] sm:$0xff]
                %305 = vst [vmem:[%s237 + $0x108] sm:$0xff] %v304
                %v306 = vld [vmem:[%s236 + $0x220] sm:$0xff]
                %307 = vst [vmem:[%s237 + $0x110] sm:$0xff] %v306
                %v308 = vld [vmem:[%s236 + $0x228] sm:$0xff]
                %309 = vst [vmem:[%s237 + $0x118] sm:$0xff] %v308
                %v310 = vld [vmem:[%s236 + $0x240] sm:$0xff]
                %311 = vst [vmem:[%s237 + $0x120] sm:$0xff] %v310
                %v312 = vld [vmem:[%s236 + $0x248] sm:$0xff]
                %313 = vst [vmem:[%s237 + $0x128] sm:$0xff] %v312
                %v314 = vld [vmem:[%s236 + $0x260] sm:$0xff]
                %315 = vst [vmem:[%s237 + $0x130] sm:$0xff] %v314
                %v316 = vld [vmem:[%s236 + $0x268] sm:$0xff]
                %317 = vst [vmem:[%s237 + $0x138] sm:$0xff] %v316
                %v318 = vld [vmem:[%s236 + $0x280] sm:$0xff]
                %319 = vst [vmem:[%s237 + $0x140] sm:$0xff] %v318
                %v320 = vld [vmem:[%s236 + $0x288] sm:$0xff]
                %321 = vst [vmem:[%s237 + $0x148] sm:$0xff] %v320
                %v322 = vld [vmem:[%s236 + $0x2a0] sm:$0xff]
                %323 = vst [vmem:[%s237 + $0x150] sm:$0xff] %v322
                %v324 = vld [vmem:[%s236 + $0x2a8] sm:$0xff]
                %325 = vst [vmem:[%s237 + $0x158] sm:$0xff] %v324
                %v326 = vld [vmem:[%s236 + $0x2c0] sm:$0xff]
                %327 = vst [vmem:[%s237 + $0x160] sm:$0xff] %v326
                %v328 = vld [vmem:[%s236 + $0x2c8] sm:$0xff]
                %329 = vst [vmem:[%s237 + $0x168] sm:$0xff] %v328
                %v330 = vld [vmem:[%s236 + $0x2e0] sm:$0xff]
                %331 = vst [vmem:[%s237 + $0x170] sm:$0xff] %v330
                %v332 = vld [vmem:[%s236 + $0x2e8] sm:$0xff]
                %333 = vst [vmem:[%s237 + $0x178] sm:$0xff] %v332
                %v334 = vld [vmem:[%s236 + $0x300] sm:$0xff]
                %335 = vst [vmem:[%s237 + $0x180] sm:$0xff] %v334
                %v336 = vld [vmem:[%s236 + $0x308] sm:$0xff]
                %337 = vst [vmem:[%s237 + $0x188] sm:$0xff] %v336
                %v338 = vld [vmem:[%s236 + $0x320] sm:$0xff]
                %339 = vst [vmem:[%s237 + $0x190] sm:$0xff] %v338
                %v340 = vld [vmem:[%s236 + $0x328] sm:$0xff]
                %341 = vst [vmem:[%s237 + $0x198] sm:$0xff] %v340
                %v342 = vld [vmem:[%s236 + $0x340] sm:$0xff]
                %343 = vst [vmem:[%s237 + $0x1a0] sm:$0xff] %v342
                %v344 = vld [vmem:[%s236 + $0x348] sm:$0xff]
                %345 = vst [vmem:[%s237 + $0x1a8] sm:$0xff] %v344
                %v346 = vld [vmem:[%s236 + $0x360] sm:$0xff]
                %347 = vst [vmem:[%s237 + $0x1b0] sm:$0xff] %v346
                %v348 = vld [vmem:[%s236 + $0x368] sm:$0xff]
                %349 = vst [vmem:[%s237 + $0x1b8] sm:$0xff] %v348
                %v350 = vld [vmem:[%s236 + $0x380] sm:$0xff]
                %351 = vst [vmem:[%s237 + $0x1c0] sm:$0xff] %v350
                %v352 = vld [vmem:[%s236 + $0x388] sm:$0xff]
                %353 = vst [vmem:[%s237 + $0x1c8] sm:$0xff] %v352
                %v354 = vld [vmem:[%s236 + $0x3a0] sm:$0xff]
                %355 = vst [vmem:[%s237 + $0x1d0] sm:$0xff] %v354
                %v356 = vld [vmem:[%s236 + $0x3a8] sm:$0xff]
                %357 = vst [vmem:[%s237 + $0x1d8] sm:$0xff] %v356
                %v358 = vld [vmem:[%s236 + $0x3c0] sm:$0xff]
                %359 = vst [vmem:[%s237 + $0x1e0] sm:$0xff] %v358
                %v360 = vld [vmem:[%s236 + $0x3c8] sm:$0xff]
                %361 = vst [vmem:[%s237 + $0x1e8] sm:$0xff] %v360
                %v362 = vld [vmem:[%s236 + $0x3e0] sm:$0xff]
                %363 = vst [vmem:[%s237 + $0x1f0] sm:$0xff] %v362
                %v364 = vld [vmem:[%s236 + $0x3e8] sm:$0xff]
                %365 = vst [vmem:[%s237 + $0x1f8] sm:$0xff] %v364
                %v366 = vld [vmem:[%s236 + $0x400] sm:$0xff]
                %367 = vst [vmem:[%s237 + $0x200] sm:$0xff] %v366
                %v368 = vld [vmem:[%s236 + $0x408] sm:$0xff]
                %369 = vst [vmem:[%s237 + $0x208] sm:$0xff] %v368
                %v370 = vld [vmem:[%s236 + $0x420] sm:$0xff]
                %371 = vst [vmem:[%s237 + $0x210] sm:$0xff] %v370
                %v372 = vld [vmem:[%s236 + $0x428] sm:$0xff]
                %373 = vst [vmem:[%s237 + $0x218] sm:$0xff] %v372
                %v374 = vld [vmem:[%s236 + $0x440] sm:$0xff]
                %375 = vst [vmem:[%s237 + $0x220] sm:$0xff] %v374
                %v376 = vld [vmem:[%s236 + $0x448] sm:$0xff]
                %377 = vst [vmem:[%s237 + $0x228] sm:$0xff] %v376
                %v378 = vld [vmem:[%s236 + $0x460] sm:$0xff]
                %379 = vst [vmem:[%s237 + $0x230] sm:$0xff] %v378
                %v380 = vld [vmem:[%s236 + $0x468] sm:$0xff]
                %381 = vst [vmem:[%s237 + $0x238] sm:$0xff] %v380
                %v382 = vld [vmem:[%s236 + $0x480] sm:$0xff]
                %383 = vst [vmem:[%s237 + $0x240] sm:$0xff] %v382
                %v384 = vld [vmem:[%s236 + $0x488] sm:$0xff]
                %385 = vst [vmem:[%s237 + $0x248] sm:$0xff] %v384
                %v386 = vld [vmem:[%s236 + $0x4a0] sm:$0xff]
                %387 = vst [vmem:[%s237 + $0x250] sm:$0xff] %v386
                %v388 = vld [vmem:[%s236 + $0x4a8] sm:$0xff]
                %389 = vst [vmem:[%s237 + $0x258] sm:$0xff] %v388
                %v390 = vld [vmem:[%s236 + $0x4c0] sm:$0xff]
                %391 = vst [vmem:[%s237 + $0x260] sm:$0xff] %v390
                %v392 = vld [vmem:[%s236 + $0x4c8] sm:$0xff]
                %393 = vst [vmem:[%s237 + $0x268] sm:$0xff] %v392
                %v394 = vld [vmem:[%s236 + $0x4e0] sm:$0xff]
                %395 = vst [vmem:[%s237 + $0x270] sm:$0xff] %v394
                %v396 = vld [vmem:[%s236 + $0x4e8] sm:$0xff]
                %397 = vst [vmem:[%s237 + $0x278] sm:$0xff] %v396
                %v398 = vld [vmem:[%s236 + $0x500] sm:$0xff]
                %399 = vst [vmem:[%s237 + $0x280] sm:$0xff] %v398
                %v400 = vld [vmem:[%s236 + $0x508] sm:$0xff]
                %401 = vst [vmem:[%s237 + $0x288] sm:$0xff] %v400
                %v402 = vld [vmem:[%s236 + $0x520] sm:$0xff]
                %403 = vst [vmem:[%s237 + $0x290] sm:$0xff] %v402
                %v404 = vld [vmem:[%s236 + $0x528] sm:$0xff]
                %405 = vst [vmem:[%s237 + $0x298] sm:$0xff] %v404
                %v406 = vld [vmem:[%s236 + $0x540] sm:$0xff]
                %407 = vst [vmem:[%s237 + $0x2a0] sm:$0xff] %v406
                %v408 = vld [vmem:[%s236 + $0x548] sm:$0xff]
                %409 = vst [vmem:[%s237 + $0x2a8] sm:$0xff] %v408
                %v410 = vld [vmem:[%s236 + $0x560] sm:$0xff]
                %411 = vst [vmem:[%s237 + $0x2b0] sm:$0xff] %v410
                %v412 = vld [vmem:[%s236 + $0x568] sm:$0xff]
                %413 = vst [vmem:[%s237 + $0x2b8] sm:$0xff] %v412
                %v414 = vld [vmem:[%s236 + $0x580] sm:$0xff]
                %415 = vst [vmem:[%s237 + $0x2c0] sm:$0xff] %v414
                %v416 = vld [vmem:[%s236 + $0x588] sm:$0xff]
                %417 = vst [vmem:[%s237 + $0x2c8] sm:$0xff] %v416
                %v418 = vld [vmem:[%s236 + $0x5a0] sm:$0xff]
                %419 = vst [vmem:[%s237 + $0x2d0] sm:$0xff] %v418
                %v420 = vld [vmem:[%s236 + $0x5a8] sm:$0xff]
                %421 = vst [vmem:[%s237 + $0x2d8] sm:$0xff] %v420
                %v422 = vld [vmem:[%s236 + $0x5c0] sm:$0xff]
                %423 = vst [vmem:[%s237 + $0x2e0] sm:$0xff] %v422
                %v424 = vld [vmem:[%s236 + $0x5c8] sm:$0xff]
                %425 = vst [vmem:[%s237 + $0x2e8] sm:$0xff] %v424
                %v426 = vld [vmem:[%s236 + $0x5e0] sm:$0xff]
                %427 = vst [vmem:[%s237 + $0x2f0] sm:$0xff] %v426
                %v428 = vld [vmem:[%s236 + $0x5e8] sm:$0xff]
                %429 = vst [vmem:[%s237 + $0x2f8] sm:$0xff] %v428
                %v430 = vld [vmem:[%s236 + $0x600] sm:$0xff]
                %431 = vst [vmem:[%s237 + $0x300] sm:$0xff] %v430
                %v432 = vld [vmem:[%s236 + $0x608] sm:$0xff]
                %433 = vst [vmem:[%s237 + $0x308] sm:$0xff] %v432
                %v434 = vld [vmem:[%s236 + $0x620] sm:$0xff]
                %435 = vst [vmem:[%s237 + $0x310] sm:$0xff] %v434
                %v436 = vld [vmem:[%s236 + $0x628] sm:$0xff]
                %437 = vst [vmem:[%s237 + $0x318] sm:$0xff] %v436
                %v438 = vld [vmem:[%s236 + $0x640] sm:$0xff]
                %439 = vst [vmem:[%s237 + $0x320] sm:$0xff] %v438
                %v440 = vld [vmem:[%s236 + $0x648] sm:$0xff]
                %441 = vst [vmem:[%s237 + $0x328] sm:$0xff] %v440
                %v442 = vld [vmem:[%s236 + $0x660] sm:$0xff]
                %443 = vst [vmem:[%s237 + $0x330] sm:$0xff] %v442
                %v444 = vld [vmem:[%s236 + $0x668] sm:$0xff]
                %445 = vst [vmem:[%s237 + $0x338] sm:$0xff] %v444
                %v446 = vld [vmem:[%s236 + $0x680] sm:$0xff]
                %447 = vst [vmem:[%s237 + $0x340] sm:$0xff] %v446
                %v448 = vld [vmem:[%s236 + $0x688] sm:$0xff]
                %449 = vst [vmem:[%s237 + $0x348] sm:$0xff] %v448
                %v450 = vld [vmem:[%s236 + $0x6a0] sm:$0xff]
                %451 = vst [vmem:[%s237 + $0x350] sm:$0xff] %v450
                %v452 = vld [vmem:[%s236 + $0x6a8] sm:$0xff]
                %453 = vst [vmem:[%s237 + $0x358] sm:$0xff] %v452
                %v454 = vld [vmem:[%s236 + $0x6c0] sm:$0xff]
                %455 = vst [vmem:[%s237 + $0x360] sm:$0xff] %v454
                %v456 = vld [vmem:[%s236 + $0x6c8] sm:$0xff]
                %457 = vst [vmem:[%s237 + $0x368] sm:$0xff] %v456
                %v458 = vld [vmem:[%s236 + $0x6e0] sm:$0xff]
                %459 = vst [vmem:[%s237 + $0x370] sm:$0xff] %v458
                %v460 = vld [vmem:[%s236 + $0x6e8] sm:$0xff]
                %461 = vst [vmem:[%s237 + $0x378] sm:$0xff] %v460
                %v462 = vld [vmem:[%s236 + $0x700] sm:$0xff]
                %463 = vst [vmem:[%s237 + $0x380] sm:$0xff] %v462
                %v464 = vld [vmem:[%s236 + $0x708] sm:$0xff]
                %465 = vst [vmem:[%s237 + $0x388] sm:$0xff] %v464
                %v466 = vld [vmem:[%s236 + $0x720] sm:$0xff]
                %467 = vst [vmem:[%s237 + $0x390] sm:$0xff] %v466
                %v468 = vld [vmem:[%s236 + $0x728] sm:$0xff]
                %469 = vst [vmem:[%s237 + $0x398] sm:$0xff] %v468
                %v470 = vld [vmem:[%s236 + $0x740] sm:$0xff]
                %471 = vst [vmem:[%s237 + $0x3a0] sm:$0xff] %v470
                %v472 = vld [vmem:[%s236 + $0x748] sm:$0xff]
                %473 = vst [vmem:[%s237 + $0x3a8] sm:$0xff] %v472
                %v474 = vld [vmem:[%s236 + $0x760] sm:$0xff]
                %475 = vst [vmem:[%s237 + $0x3b0] sm:$0xff] %v474
                %v476 = vld [vmem:[%s236 + $0x768] sm:$0xff]
                %477 = vst [vmem:[%s237 + $0x3b8] sm:$0xff] %v476
                %v478 = vld [vmem:[%s236 + $0x780] sm:$0xff]
                %479 = vst [vmem:[%s237 + $0x3c0] sm:$0xff] %v478
                %v480 = vld [vmem:[%s236 + $0x788] sm:$0xff]
                %481 = vst [vmem:[%s237 + $0x3c8] sm:$0xff] %v480
                %v482 = vld [vmem:[%s236 + $0x7a0] sm:$0xff]
                %483 = vst [vmem:[%s237 + $0x3d0] sm:$0xff] %v482
                %v484 = vld [vmem:[%s236 + $0x7a8] sm:$0xff]
                %485 = vst [vmem:[%s237 + $0x3d8] sm:$0xff] %v484
                %v486 = vld [vmem:[%s236 + $0x7c0] sm:$0xff]
                %487 = vst [vmem:[%s237 + $0x3e0] sm:$0xff] %v486
                %v488 = vld [vmem:[%s236 + $0x7c8] sm:$0xff]
                %489 = vst [vmem:[%s237 + $0x3e8] sm:$0xff] %v488
                %v490 = vld [vmem:[%s236 + $0x7e0] sm:$0xff]
                %491 = vst [vmem:[%s237 + $0x3f0] sm:$0xff] %v490
                %v492 = vld [vmem:[%s236 + $0x7e8] sm:$0xff]
                %493 = vst [vmem:[%s237 + $0x3f8] sm:$0xff] %v492
                %v494 = vld [vmem:[%s236 + $0x800] sm:$0xff]
                %495 = vst [vmem:[%s237 + $0x400] sm:$0xff] %v494
                %v496 = vld [vmem:[%s236 + $0x808] sm:$0xff]
                %497 = vst [vmem:[%s237 + $0x408] sm:$0xff] %v496
                %v498 = vld [vmem:[%s236 + $0x820] sm:$0xff]
                %499 = vst [vmem:[%s237 + $0x410] sm:$0xff] %v498
                %v500 = vld [vmem:[%s236 + $0x828] sm:$0xff]
                %501 = vst [vmem:[%s237 + $0x418] sm:$0xff] %v500
                %v502 = vld [vmem:[%s236 + $0x840] sm:$0xff]
                %503 = vst [vmem:[%s237 + $0x420] sm:$0xff] %v502
                %v504 = vld [vmem:[%s236 + $0x848] sm:$0xff]
                %505 = vst [vmem:[%s237 + $0x428] sm:$0xff] %v504
                %v506 = vld [vmem:[%s236 + $0x860] sm:$0xff]
                %507 = vst [vmem:[%s237 + $0x430] sm:$0xff] %v506
                %v508 = vld [vmem:[%s236 + $0x868] sm:$0xff]
                %509 = vst [vmem:[%s237 + $0x438] sm:$0xff] %v508
                %v510 = vld [vmem:[%s236 + $0x880] sm:$0xff]
                %511 = vst [vmem:[%s237 + $0x440] sm:$0xff] %v510
                %v512 = vld [vmem:[%s236 + $0x888] sm:$0xff]
                %513 = vst [vmem:[%s237 + $0x448] sm:$0xff] %v512
                %v514 = vld [vmem:[%s236 + $0x8a0] sm:$0xff]
                %515 = vst [vmem:[%s237 + $0x450] sm:$0xff] %v514
                %v516 = vld [vmem:[%s236 + $0x8a8] sm:$0xff]
                %517 = vst [vmem:[%s237 + $0x458] sm:$0xff] %v516
                %v518 = vld [vmem:[%s236 + $0x8c0] sm:$0xff]
                %519 = vst [vmem:[%s237 + $0x460] sm:$0xff] %v518
                %v520 = vld [vmem:[%s236 + $0x8c8] sm:$0xff]
                %521 = vst [vmem:[%s237 + $0x468] sm:$0xff] %v520
                %v522 = vld [vmem:[%s236 + $0x8e0] sm:$0xff]
                %523 = vst [vmem:[%s237 + $0x470] sm:$0xff] %v522
                %v524 = vld [vmem:[%s236 + $0x8e8] sm:$0xff]
                %525 = vst [vmem:[%s237 + $0x478] sm:$0xff] %v524
                %v526 = vld [vmem:[%s236 + $0x900] sm:$0xff]
                %527 = vst [vmem:[%s237 + $0x480] sm:$0xff] %v526
                %v528 = vld [vmem:[%s236 + $0x908] sm:$0xff]
                %529 = vst [vmem:[%s237 + $0x488] sm:$0xff] %v528
                %v530 = vld [vmem:[%s236 + $0x920] sm:$0xff]
                %531 = vst [vmem:[%s237 + $0x490] sm:$0xff] %v530
                %v532 = vld [vmem:[%s236 + $0x928] sm:$0xff]
                %533 = vst [vmem:[%s237 + $0x498] sm:$0xff] %v532
                %v534 = vld [vmem:[%s236 + $0x940] sm:$0xff]
                %535 = vst [vmem:[%s237 + $0x4a0] sm:$0xff] %v534
                %v536 = vld [vmem:[%s236 + $0x948] sm:$0xff]
                %537 = vst [vmem:[%s237 + $0x4a8] sm:$0xff] %v536
                %v538 = vld [vmem:[%s236 + $0x960] sm:$0xff]
                %539 = vst [vmem:[%s237 + $0x4b0] sm:$0xff] %v538
                %v540 = vld [vmem:[%s236 + $0x968] sm:$0xff]
                %541 = vst [vmem:[%s237 + $0x4b8] sm:$0xff] %v540
                %v542 = vld [vmem:[%s236 + $0x980] sm:$0xff]
                %543 = vst [vmem:[%s237 + $0x4c0] sm:$0xff] %v542
                %v544 = vld [vmem:[%s236 + $0x988] sm:$0xff]
                %545 = vst [vmem:[%s237 + $0x4c8] sm:$0xff] %v544
                %v546 = vld [vmem:[%s236 + $0x9a0] sm:$0xff]
                %547 = vst [vmem:[%s237 + $0x4d0] sm:$0xff] %v546
                %v548 = vld [vmem:[%s236 + $0x9a8] sm:$0xff]
                %549 = vst [vmem:[%s237 + $0x4d8] sm:$0xff] %v548
                %v550 = vld [vmem:[%s236 + $0x9c0] sm:$0xff]
                %551 = vst [vmem:[%s237 + $0x4e0] sm:$0xff] %v550
                %v552 = vld [vmem:[%s236 + $0x9c8] sm:$0xff]
                %553 = vst [vmem:[%s237 + $0x4e8] sm:$0xff] %v552
                %v554 = vld [vmem:[%s236 + $0x9e0] sm:$0xff]
                %555 = vst [vmem:[%s237 + $0x4f0] sm:$0xff] %v554
                %v556 = vld [vmem:[%s236 + $0x9e8] sm:$0xff]
                %557 = vst [vmem:[%s237 + $0x4f8] sm:$0xff] %v556
                %v558 = vld [vmem:[%s236 + $0xa00] sm:$0xff]
                %559 = vst [vmem:[%s237 + $0x500] sm:$0xff] %v558
                %v560 = vld [vmem:[%s236 + $0xa08] sm:$0xff]
                %561 = vst [vmem:[%s237 + $0x508] sm:$0xff] %v560
                %v562 = vld [vmem:[%s236 + $0xa20] sm:$0xff]
                %563 = vst [vmem:[%s237 + $0x510] sm:$0xff] %v562
                %v564 = vld [vmem:[%s236 + $0xa28] sm:$0xff]
                %565 = vst [vmem:[%s237 + $0x518] sm:$0xff] %v564
                %v566 = vld [vmem:[%s236 + $0xa40] sm:$0xff]
                %567 = vst [vmem:[%s237 + $0x520] sm:$0xff] %v566
                %v568 = vld [vmem:[%s236 + $0xa48] sm:$0xff]
                %569 = vst [vmem:[%s237 + $0x528] sm:$0xff] %v568
                %v570 = vld [vmem:[%s236 + $0xa60] sm:$0xff]
                %571 = vst [vmem:[%s237 + $0x530] sm:$0xff] %v570
                %v572 = vld [vmem:[%s236 + $0xa68] sm:$0xff]
                %573 = vst [vmem:[%s237 + $0x538] sm:$0xff] %v572
                %v574 = vld [vmem:[%s236 + $0xa80] sm:$0xff]
                %575 = vst [vmem:[%s237 + $0x540] sm:$0xff] %v574
                %v576 = vld [vmem:[%s236 + $0xa88] sm:$0xff]
                %577 = vst [vmem:[%s237 + $0x548] sm:$0xff] %v576
                %v578 = vld [vmem:[%s236 + $0xaa0] sm:$0xff]
                %579 = vst [vmem:[%s237 + $0x550] sm:$0xff] %v578
                %v580 = vld [vmem:[%s236 + $0xaa8] sm:$0xff]
                %581 = vst [vmem:[%s237 + $0x558] sm:$0xff] %v580
                %v582 = vld [vmem:[%s236 + $0xac0] sm:$0xff]
                %583 = vst [vmem:[%s237 + $0x560] sm:$0xff] %v582
                %v584 = vld [vmem:[%s236 + $0xac8] sm:$0xff]
                %585 = vst [vmem:[%s237 + $0x568] sm:$0xff] %v584
                %v586 = vld [vmem:[%s236 + $0xae0] sm:$0xff]
                %587 = vst [vmem:[%s237 + $0x570] sm:$0xff] %v586
                %v588 = vld [vmem:[%s236 + $0xae8] sm:$0xff]
                %589 = vst [vmem:[%s237 + $0x578] sm:$0xff] %v588
                %v590 = vld [vmem:[%s236 + $0xb00] sm:$0xff]
                %591 = vst [vmem:[%s237 + $0x580] sm:$0xff] %v590
                %v592 = vld [vmem:[%s236 + $0xb08] sm:$0xff]
                %593 = vst [vmem:[%s237 + $0x588] sm:$0xff] %v592
                %v594 = vld [vmem:[%s236 + $0xb20] sm:$0xff]
                %595 = vst [vmem:[%s237 + $0x590] sm:$0xff] %v594
                %v596 = vld [vmem:[%s236 + $0xb28] sm:$0xff]
                %597 = vst [vmem:[%s237 + $0x598] sm:$0xff] %v596
                %v598 = vld [vmem:[%s236 + $0xb40] sm:$0xff]
                %599 = vst [vmem:[%s237 + $0x5a0] sm:$0xff] %v598
                %v600 = vld [vmem:[%s236 + $0xb48] sm:$0xff]
                %601 = vst [vmem:[%s237 + $0x5a8] sm:$0xff] %v600
                %v602 = vld [vmem:[%s236 + $0xb60] sm:$0xff]
                %603 = vst [vmem:[%s237 + $0x5b0] sm:$0xff] %v602
                %v604 = vld [vmem:[%s236 + $0xb68] sm:$0xff]
                %605 = vst [vmem:[%s237 + $0x5b8] sm:$0xff] %v604
                %v606 = vld [vmem:[%s236 + $0xb80] sm:$0xff]
                %607 = vst [vmem:[%s237 + $0x5c0] sm:$0xff] %v606
                %v608 = vld [vmem:[%s236 + $0xb88] sm:$0xff]
                %609 = vst [vmem:[%s237 + $0x5c8] sm:$0xff] %v608
                %v610 = vld [vmem:[%s236 + $0xba0] sm:$0xff]
                %611 = vst [vmem:[%s237 + $0x5d0] sm:$0xff] %v610
                %v612 = vld [vmem:[%s236 + $0xba8] sm:$0xff]
                %613 = vst [vmem:[%s237 + $0x5d8] sm:$0xff] %v612
                %v614 = vld [vmem:[%s236 + $0xbc0] sm:$0xff]
                %615 = vst [vmem:[%s237 + $0x5e0] sm:$0xff] %v614
                %v616 = vld [vmem:[%s236 + $0xbc8] sm:$0xff]
                %617 = vst [vmem:[%s237 + $0x5e8] sm:$0xff] %v616
                %v618 = vld [vmem:[%s236 + $0xbe0] sm:$0xff]
                %619 = vst [vmem:[%s237 + $0x5f0] sm:$0xff] %v618
                %v620 = vld [vmem:[%s236 + $0xbe8] sm:$0xff]
                %621 = vst [vmem:[%s237 + $0x5f8] sm:$0xff] %v620
              $region37: #{tpu_custom_call.1} parent=31 // loop_footer
                %s235 = sadd.s32 1, %s231
              $region38: #{tpu_custom_call.1} parent=31 // loop_footer_branch
                %230 = sbr.rel target = $region34
              $region39: #{tpu_custom_call.1} parent=31 // loop_exit
                _
            $region32: #{tpu_custom_call.1} parent=27 // pred_fallthru
              _
            // Predicated region
            $region40: #{tpu_custom_call.1} parent=27 // pred_check
              _
            $region41: #{tpu_custom_call.1} parent=27 // pred_check_branch
              %623 = sbr.rel target = $region43
            $region42: #{tpu_custom_call.1} parent=27 // pred_region
              _
            $region43: #{tpu_custom_call.1} parent=27 // pred_fallthru
              _
          $region28: #{tpu_custom_call.1} parent=23 // pred_fallthru
            _
          %624 = vnop
        $region24: #{tpu_custom_call.1} parent=19 // pred_fallthru
          _
        // Predicated region
        $region44: #{tpu_custom_call.1} parent=19 // pred_check
          %p625 = pneg %p101
        $region45: #{tpu_custom_call.1} parent=19 // pred_check_branch
          %627 = sbr.rel (%p625) target = $region47
        $region46: #{tpu_custom_call.1} parent=19 // pred_region
          %s628 = sand.u32 %s91, 1
          %s629 = scalar_lea.sflag [#allocation4], %s628
          %s630 = sand.u32 %s91, 1
          %s631 = smul.addr %s630, 4
          %s632 = scalar_lea.vmem [#allocation3], %s631
          %s633 = smul.u32 4, %s24
          %s635 = ssub.s32 64, 64
          %636 = vsyncadd %s629, %s635
          %s637 = smul.addr %s633, 16
          %s638 = scalar_lea.hbm %s2, %s637
          %s640 = sshll.u32 %s632, 4
          %s641 = int_to_ptr.vmem [resolvable:$true] %s640
          %643 = dma.hbm_to_vmem [thread:$0]  %s638, 64, %s641, %s629
        $region47: #{tpu_custom_call.1} parent=19 // pred_fallthru
          _
        // Predicated region
        $region48: #{tpu_custom_call.1} parent=19 // pred_check
          %p644 = pneg %p127
        $region49: #{tpu_custom_call.1} parent=19 // pred_check_branch
          %646 = sbr.rel (%p644) target = $region51
        $region50: #{tpu_custom_call.1} parent=19 // pred_region
          %s647 = sand.u32 %s17, 1
          %s648 = scalar_lea.sflag [#allocation6], %s647
          %s649 = sand.u32 %s117, 1
          %s650 = smul.addr %s649, 1536
          %s651 = scalar_lea.vmem [#allocation5], %s650
          %s652 = smul.u32 4, %s24
          %s654 = ssub.s32 24576, 24576
          %655 = vsyncadd %s648, %s654
          %s656 = smul.addr %s652, 64
          %s657 = scalar_lea.hbm %s3, %s656
          %s658 = sshll.u32 %s651, 4
          %s659 = int_to_ptr.vmem [resolvable:$true] %s658
          %664 = dma.hbm_to_vmem [thread:$0]  %s657, 24576, %s659, %s648, 512, 256, 16
        $region51: #{tpu_custom_call.1} parent=19 // pred_fallthru
          _
        // Predicated region
        $region52: #{tpu_custom_call.1} parent=19 // pred_check
          %p665 = pneg %p153
        $region53: #{tpu_custom_call.1} parent=19 // pred_check_branch
          %667 = sbr.rel (%p665) target = $region55
        $region54: #{tpu_custom_call.1} parent=19 // pred_region
          %s668 = sand.u32 %s17, 1
          %s669 = scalar_lea.sflag [#allocation6], %s668
          %s670 = sand.u32 %s143, 1
          %s671 = smul.addr %s670, 4
          %s672 = scalar_lea.vmem [#allocation7], %s671
          %s673 = smul.u32 4, %s24
          %s675 = ssub.s32 64, 64
          %676 = vsyncadd %s669, %s675
          %s677 = smul.addr %s673, 16
          %s678 = scalar_lea.hbm %s4, %s677
          %s680 = sshll.u32 %s672, 4
          %s681 = int_to_ptr.vmem [resolvable:$true] %s680
          %683 = dma.hbm_to_vmem [thread:$0]  %s678, 64, %s681, %s669
        $region55: #{tpu_custom_call.1} parent=19 // pred_fallthru
          _
      $region20: #{tpu_custom_call.1} parent=5 // pred_fallthru
        _
      %p684 = scmp.le.s32.totalorder 1, %s17
      %p685 = scmp.lt.s32.totalorder %s17, 3
      %p686 = pnand %p684, %p685
      %p687 = pneg %p686
      // Predicated region
      $region56: #{tpu_custom_call.1} parent=5 // pred_check
        _
      $region57: #{tpu_custom_call.1} parent=5 // pred_check_branch
        %689 = sbr.rel (%p686) target = $region59
      $region58: #{tpu_custom_call.1} parent=5 // pred_region
        %s690 = ssub.s32 %s17, 1
        %s691 = sand.u32 %s68, 1
        %s692 = sand.u32 %s68, 1
        %s693 = smul.addr %s692, 1536
        %s694 = scalar_lea.vmem [#allocation2], %s693
        // Predicated region
        $region60: #{tpu_custom_call.1} parent=58 // pred_check
          %p695 = pneg %p81
        $region61: #{tpu_custom_call.1} parent=58 // pred_check_branch
          %697 = sbr.rel (%p695) target = $region63
        $region62: #{tpu_custom_call.1} parent=58 // pred_region
          _
        $region63: #{tpu_custom_call.1} parent=58 // pred_fallthru
          _
        %s698 = sand.u32 %s94, 1
        %s699 = scalar_lea.sflag [#allocation4], %s698
        %s700 = sand.u32 %s94, 1
        %s701 = smul.addr %s700, 4
        %s702 = scalar_lea.vmem [#allocation3], %s701
        // Predicated region
        $region64: #{tpu_custom_call.1} parent=58 // pred_check
          %p703 = pneg %p107
        $region65: #{tpu_custom_call.1} parent=58 // pred_check_branch
          %705 = sbr.rel (%p703) target = $region67
        $region66: #{tpu_custom_call.1} parent=58 // pred_region
          %706 = dma.done %s699, 64
        $region67: #{tpu_custom_call.1} parent=58 // pred_fallthru
          _
        %s707 = sand.u32 %s22, 1
        %s708 = scalar_lea.sflag [#allocation6], %s707
        %s709 = sand.u32 %s120, 1
        %s710 = smul.addr %s709, 1536
        %s711 = scalar_lea.vmem [#allocation5], %s710
        // Predicated region
        $region68: #{tpu_custom_call.1} parent=58 // pred_check
          %p712 = pneg %p133
        $region69: #{tpu_custom_call.1} parent=58 // pred_check_branch
          %714 = sbr.rel (%p712) target = $region71
        $region70: #{tpu_custom_call.1} parent=58 // pred_region
          %715 = dma.done %s708, 24576
        $region71: #{tpu_custom_call.1} parent=58 // pred_fallthru
          _
        %s716 = sand.u32 %s22, 1
        %s717 = scalar_lea.sflag [#allocation6], %s716
        %s718 = sand.u32 %s146, 1
        %s719 = smul.addr %s718, 4
        %s720 = scalar_lea.vmem [#allocation7], %s719
        // Predicated region
        $region72: #{tpu_custom_call.1} parent=58 // pred_check
          %p721 = pneg %p159
        $region73: #{tpu_custom_call.1} parent=58 // pred_check_branch
          %723 = sbr.rel (%p721) target = $region75
        $region74: #{tpu_custom_call.1} parent=58 // pred_region
          %724 = dma.done %s717, 64
        $region75: #{tpu_custom_call.1} parent=58 // pred_fallthru
          _
        %s725 = smul.u32 2, %s27
        %p726 = scmp.lt.s32.totalorder %s725, 1
        %s727 = scalar_select %p726, %s725, 1
        %s728 = smul.addr %s727, 198
        %s729 = smul.addr %s728, 4
        %s730 = scalar_lea.vmem %s0, %s729
        %p731 = pneg %p55
        %p732 = pneg %p52
        %s733 = sand.u32 %s68, 1
        %s734 = sand.u32 %s68, 1
        %s735 = smul.addr %s734, 1536
        %s736 = scalar_lea.vmem [#allocation2], %s735
        %p737 = pneg %p81
        %p738 = pneg %p78
        %s739 = sand.u32 %s94, 1
        %s740 = scalar_lea.sflag [#allocation4], %s739
        %s741 = sand.u32 %s94, 1
        %s742 = smul.addr %s741, 4
        %s743 = scalar_lea.vmem [#allocation3], %s742
        %p744 = pneg %p107
        %p745 = pneg %p104
        %s746 = sand.u32 %s22, 1
        %s747 = scalar_lea.sflag [#allocation6], %s746
        %s748 = sand.u32 %s120, 1
        %s749 = smul.addr %s748, 1536
        %s750 = scalar_lea.vmem [#allocation5], %s749
        %p751 = pneg %p133
        %p752 = pneg %p130
        %s753 = sand.u32 %s22, 1
        %s754 = scalar_lea.sflag [#allocation6], %s753
        %s755 = sand.u32 %s146, 1
        %s756 = smul.addr %s755, 4
        %s757 = scalar_lea.vmem [#allocation7], %s756
        %p758 = pneg %p159
        %p759 = pneg %p156
        %p760 = pneg %p187
        %p761 = pneg %p184
        %s762 = sand.u32 %s174, 1
        %s763 = sand.u32 %s174, 1
        %s764 = smul.addr %s763, 2112
        %s765 = scalar_lea.vmem [#allocation8], %s764
        %s766 = smul.u32 2, %s27
        %p767 = scmp.lt.s32.totalorder %s766, 1
        %s768 = scalar_select %p767, %s766, 1
        %s769 = smul.addr %s768, 198
        %s770 = smul.addr %s769, 4
        %s771 = scalar_lea.vmem %s0, %s770
        %s772 = smul.u32 2, %s27
        %s773 = smul.u32 4, %s26
        %s774 = smul.u32 4, %s26
        %s775 = smul.u32 4, %s26
        %s776 = smul.u32 4, %s26
        %s777 = smul.u32 2, %s27
        %s778 = smul.u32 4, %s26
        %v779 = vld [vmem:[%s711] sm:$0xff]
        %v780 = vld [vmem:[%s711 + $0x8] sm:$0xff]
        %v781 = vld [vmem:[%s711 + $0x10] sm:$0xff]
        %v782 = vld [vmem:[%s711 + $0x18] sm:$0xff]
        %v783 = vld [vmem:[%s711 + $0x20] sm:$0xff]
        %v784 = vld [vmem:[%s711 + $0x28] sm:$0xff]
        %v785 = vld [vmem:[%s711 + $0x30] sm:$0xff]
        %v786 = vld [vmem:[%s711 + $0x38] sm:$0xff]
        %v787 = vld [vmem:[%s711 + $0x40] sm:$0xff]
        %v788 = vld [vmem:[%s711 + $0x48] sm:$0xff]
        %v789 = vld [vmem:[%s711 + $0x50] sm:$0xff]
        %v790 = vld [vmem:[%s711 + $0x58] sm:$0xff]
        %v791 = vld [vmem:[%s711 + $0x60] sm:$0xff]
        %v792 = vld [vmem:[%s711 + $0x68] sm:$0xff]
        %v793 = vld [vmem:[%s711 + $0x70] sm:$0xff]
        %v794 = vld [vmem:[%s711 + $0x78] sm:$0xff]
        %v795 = vld [vmem:[%s711 + $0x80] sm:$0xff]
        %v796 = vld [vmem:[%s711 + $0x88] sm:$0xff]
        %v797 = vld [vmem:[%s711 + $0x90] sm:$0xff]
        %v798 = vld [vmem:[%s711 + $0x98] sm:$0xff]
        %v799 = vld [vmem:[%s711 + $0xa0] sm:$0xff]
        %v800 = vld [vmem:[%s711 + $0xa8] sm:$0xff]
        %v801 = vld [vmem:[%s711 + $0xb0] sm:$0xff]
        %v802 = vld [vmem:[%s711 + $0xb8] sm:$0xff]
        %v803 = vld [vmem:[%s711 + $0xc0] sm:$0xff]
        %v804 = vld [vmem:[%s711 + $0xc8] sm:$0xff]
        %v805 = vld [vmem:[%s711 + $0xd0] sm:$0xff]
        %v806 = vld [vmem:[%s711 + $0xd8] sm:$0xff]
        %v807 = vld [vmem:[%s711 + $0xe0] sm:$0xff]
        %v808 = vld [vmem:[%s711 + $0xe8] sm:$0xff]
        %v809 = vld [vmem:[%s711 + $0xf0] sm:$0xff]
        %v810 = vld [vmem:[%s711 + $0xf8] sm:$0xff]
        %v811 = vld [vmem:[%s711 + $0x100] sm:$0xff]
        %v812 = vld [vmem:[%s711 + $0x108] sm:$0xff]
        %v813 = vld [vmem:[%s711 + $0x110] sm:$0xff]
        %v814 = vld [vmem:[%s711 + $0x118] sm:$0xff]
        %v815 = vld [vmem:[%s711 + $0x120] sm:$0xff]
        %v816 = vld [vmem:[%s711 + $0x128] sm:$0xff]
        %v817 = vld [vmem:[%s711 + $0x130] sm:$0xff]
        %v818 = vld [vmem:[%s711 + $0x138] sm:$0xff]
        %v819 = vld [vmem:[%s711 + $0x140] sm:$0xff]
        %v820 = vld [vmem:[%s711 + $0x148] sm:$0xff]
        %v821 = vld [vmem:[%s711 + $0x150] sm:$0xff]
        %v822 = vld [vmem:[%s711 + $0x158] sm:$0xff]
        %v823 = vld [vmem:[%s711 + $0x160] sm:$0xff]
        %v824 = vld [vmem:[%s711 + $0x168] sm:$0xff]
        %v825 = vld [vmem:[%s711 + $0x170] sm:$0xff]
        %v826 = vld [vmem:[%s711 + $0x178] sm:$0xff]
        %v827 = vld [vmem:[%s711 + $0x180] sm:$0xff]
        %v828 = vld [vmem:[%s711 + $0x188] sm:$0xff]
        %v829 = vld [vmem:[%s711 + $0x190] sm:$0xff]
        %v830 = vld [vmem:[%s711 + $0x198] sm:$0xff]
        %v831 = vld [vmem:[%s711 + $0x1a0] sm:$0xff]
        %v832 = vld [vmem:[%s711 + $0x1a8] sm:$0xff]
        %v833 = vld [vmem:[%s711 + $0x1b0] sm:$0xff]
        %v834 = vld [vmem:[%s711 + $0x1b8] sm:$0xff]
        %v835 = vld [vmem:[%s711 + $0x1c0] sm:$0xff]
        %v836 = vld [vmem:[%s711 + $0x1c8] sm:$0xff]
        %v837 = vld [vmem:[%s711 + $0x1d0] sm:$0xff]
        %v838 = vld [vmem:[%s711 + $0x1d8] sm:$0xff]
        %v839 = vld [vmem:[%s711 + $0x1e0] sm:$0xff]
        %v840 = vld [vmem:[%s711 + $0x1e8] sm:$0xff]
        %v841 = vld [vmem:[%s711 + $0x1f0] sm:$0xff]
        %v842 = vld [vmem:[%s711 + $0x1f8] sm:$0xff]
        %v843 = vld [vmem:[%s711 + $0x200] sm:$0xff]
        %v844 = vld [vmem:[%s711 + $0x208] sm:$0xff]
        %v845 = vld [vmem:[%s711 + $0x210] sm:$0xff]
        %v846 = vld [vmem:[%s711 + $0x218] sm:$0xff]
        %v847 = vld [vmem:[%s711 + $0x220] sm:$0xff]
        %v848 = vld [vmem:[%s711 + $0x228] sm:$0xff]
        %v849 = vld [vmem:[%s711 + $0x230] sm:$0xff]
        %v850 = vld [vmem:[%s711 + $0x238] sm:$0xff]
        %v851 = vld [vmem:[%s711 + $0x240] sm:$0xff]
        %v852 = vld [vmem:[%s711 + $0x248] sm:$0xff]
        %v853 = vld [vmem:[%s711 + $0x250] sm:$0xff]
        %v854 = vld [vmem:[%s711 + $0x258] sm:$0xff]
        %v855 = vld [vmem:[%s711 + $0x260] sm:$0xff]
        %v856 = vld [vmem:[%s711 + $0x268] sm:$0xff]
        %v857 = vld [vmem:[%s711 + $0x270] sm:$0xff]
        %v858 = vld [vmem:[%s711 + $0x278] sm:$0xff]
        %v859 = vld [vmem:[%s711 + $0x280] sm:$0xff]
        %v860 = vld [vmem:[%s711 + $0x288] sm:$0xff]
        %v861 = vld [vmem:[%s711 + $0x290] sm:$0xff]
        %v862 = vld [vmem:[%s711 + $0x298] sm:$0xff]
        %v863 = vld [vmem:[%s711 + $0x2a0] sm:$0xff]
        %v864 = vld [vmem:[%s711 + $0x2a8] sm:$0xff]
        %v865 = vld [vmem:[%s711 + $0x2b0] sm:$0xff]
        %v866 = vld [vmem:[%s711 + $0x2b8] sm:$0xff]
        %v867 = vld [vmem:[%s711 + $0x2c0] sm:$0xff]
        %v868 = vld [vmem:[%s711 + $0x2c8] sm:$0xff]
        %v869 = vld [vmem:[%s711 + $0x2d0] sm:$0xff]
        %v870 = vld [vmem:[%s711 + $0x2d8] sm:$0xff]
        %v871 = vld [vmem:[%s711 + $0x2e0] sm:$0xff]
        %v872 = vld [vmem:[%s711 + $0x2e8] sm:$0xff]
        %v873 = vld [vmem:[%s711 + $0x2f0] sm:$0xff]
        %v874 = vld [vmem:[%s711 + $0x2f8] sm:$0xff]
        %v875 = vld [vmem:[%s711 + $0x300] sm:$0xff]
        %v876 = vld [vmem:[%s711 + $0x308] sm:$0xff]
        %v877 = vld [vmem:[%s711 + $0x310] sm:$0xff]
        %v878 = vld [vmem:[%s711 + $0x318] sm:$0xff]
        %v879 = vld [vmem:[%s711 + $0x320] sm:$0xff]
        %v880 = vld [vmem:[%s711 + $0x328] sm:$0xff]
        %v881 = vld [vmem:[%s711 + $0x330] sm:$0xff]
        %v882 = vld [vmem:[%s711 + $0x338] sm:$0xff]
        %v883 = vld [vmem:[%s711 + $0x340] sm:$0xff]
        %v884 = vld [vmem:[%s711 + $0x348] sm:$0xff]
        %v885 = vld [vmem:[%s711 + $0x350] sm:$0xff]
        %v886 = vld [vmem:[%s711 + $0x358] sm:$0xff]
        %v887 = vld [vmem:[%s711 + $0x360] sm:$0xff]
        %v888 = vld [vmem:[%s711 + $0x368] sm:$0xff]
        %v889 = vld [vmem:[%s711 + $0x370] sm:$0xff]
        %v890 = vld [vmem:[%s711 + $0x378] sm:$0xff]
        %v891 = vld [vmem:[%s711 + $0x380] sm:$0xff]
        %v892 = vld [vmem:[%s711 + $0x388] sm:$0xff]
        %v893 = vld [vmem:[%s711 + $0x390] sm:$0xff]
        %v894 = vld [vmem:[%s711 + $0x398] sm:$0xff]
        %v895 = vld [vmem:[%s711 + $0x3a0] sm:$0xff]
        %v896 = vld [vmem:[%s711 + $0x3a8] sm:$0xff]
        %v897 = vld [vmem:[%s711 + $0x3b0] sm:$0xff]
        %v898 = vld [vmem:[%s711 + $0x3b8] sm:$0xff]
        %v899 = vld [vmem:[%s711 + $0x3c0] sm:$0xff]
        %v900 = vld [vmem:[%s711 + $0x3c8] sm:$0xff]
        %v901 = vld [vmem:[%s711 + $0x3d0] sm:$0xff]
        %v902 = vld [vmem:[%s711 + $0x3d8] sm:$0xff]
        %v903 = vld [vmem:[%s711 + $0x3e0] sm:$0xff]
        %v904 = vld [vmem:[%s711 + $0x3e8] sm:$0xff]
        %v905 = vld [vmem:[%s711 + $0x3f0] sm:$0xff]
        %v906 = vld [vmem:[%s711 + $0x3f8] sm:$0xff]
        %v907 = vld [vmem:[%s711 + $0x400] sm:$0xff]
        %v908 = vld [vmem:[%s711 + $0x408] sm:$0xff]
        %v909 = vld [vmem:[%s711 + $0x410] sm:$0xff]
        %v910 = vld [vmem:[%s711 + $0x418] sm:$0xff]
        %v911 = vld [vmem:[%s711 + $0x420] sm:$0xff]
        %v912 = vld [vmem:[%s711 + $0x428] sm:$0xff]
        %v913 = vld [vmem:[%s711 + $0x430] sm:$0xff]
        %v914 = vld [vmem:[%s711 + $0x438] sm:$0xff]
        %v915 = vld [vmem:[%s711 + $0x440] sm:$0xff]
        %v916 = vld [vmem:[%s711 + $0x448] sm:$0xff]
        %v917 = vld [vmem:[%s711 + $0x450] sm:$0xff]
        %v918 = vld [vmem:[%s711 + $0x458] sm:$0xff]
        %v919 = vld [vmem:[%s711 + $0x460] sm:$0xff]
        %v920 = vld [vmem:[%s711 + $0x468] sm:$0xff]
        %v921 = vld [vmem:[%s711 + $0x470] sm:$0xff]
        %v922 = vld [vmem:[%s711 + $0x478] sm:$0xff]
        %v923 = vld [vmem:[%s711 + $0x480] sm:$0xff]
        %v924 = vld [vmem:[%s711 + $0x488] sm:$0xff]
        %v925 = vld [vmem:[%s711 + $0x490] sm:$0xff]
        %v926 = vld [vmem:[%s711 + $0x498] sm:$0xff]
        %v927 = vld [vmem:[%s711 + $0x4a0] sm:$0xff]
        %v928 = vld [vmem:[%s711 + $0x4a8] sm:$0xff]
        %v929 = vld [vmem:[%s711 + $0x4b0] sm:$0xff]
        %v930 = vld [vmem:[%s711 + $0x4b8] sm:$0xff]
        %v931 = vld [vmem:[%s711 + $0x4c0] sm:$0xff]
        %v932 = vld [vmem:[%s711 + $0x4c8] sm:$0xff]
        %v933 = vld [vmem:[%s711 + $0x4d0] sm:$0xff]
        %v934 = vld [vmem:[%s711 + $0x4d8] sm:$0xff]
        %v935 = vld [vmem:[%s711 + $0x4e0] sm:$0xff]
        %v936 = vld [vmem:[%s711 + $0x4e8] sm:$0xff]
        %v937 = vld [vmem:[%s711 + $0x4f0] sm:$0xff]
        %v938 = vld [vmem:[%s711 + $0x4f8] sm:$0xff]
        %v939 = vld [vmem:[%s711 + $0x500] sm:$0xff]
        %v940 = vld [vmem:[%s711 + $0x508] sm:$0xff]
        %v941 = vld [vmem:[%s711 + $0x510] sm:$0xff]
        %v942 = vld [vmem:[%s711 + $0x518] sm:$0xff]
        %v943 = vld [vmem:[%s711 + $0x520] sm:$0xff]
        %v944 = vld [vmem:[%s711 + $0x528] sm:$0xff]
        %v945 = vld [vmem:[%s711 + $0x530] sm:$0xff]
        %v946 = vld [vmem:[%s711 + $0x538] sm:$0xff]
        %v947 = vld [vmem:[%s711 + $0x540] sm:$0xff]
        %v948 = vld [vmem:[%s711 + $0x548] sm:$0xff]
        %v949 = vld [vmem:[%s711 + $0x550] sm:$0xff]
        %v950 = vld [vmem:[%s711 + $0x558] sm:$0xff]
        %v951 = vld [vmem:[%s711 + $0x560] sm:$0xff]
        %v952 = vld [vmem:[%s711 + $0x568] sm:$0xff]
        %v953 = vld [vmem:[%s711 + $0x570] sm:$0xff]
        %v954 = vld [vmem:[%s711 + $0x578] sm:$0xff]
        %v955 = vld [vmem:[%s711 + $0x580] sm:$0xff]
        %v956 = vld [vmem:[%s711 + $0x588] sm:$0xff]
        %v957 = vld [vmem:[%s711 + $0x590] sm:$0xff]
        %v958 = vld [vmem:[%s711 + $0x598] sm:$0xff]
        %v959 = vld [vmem:[%s711 + $0x5a0] sm:$0xff]
        %v960 = vld [vmem:[%s711 + $0x5a8] sm:$0xff]
        %v961 = vld [vmem:[%s711 + $0x5b0] sm:$0xff]
        %v962 = vld [vmem:[%s711 + $0x5b8] sm:$0xff]
        %v963 = vld [vmem:[%s711 + $0x5c0] sm:$0xff]
        %v964 = vld [vmem:[%s711 + $0x5c8] sm:$0xff]
        %v965 = vld [vmem:[%s711 + $0x5d0] sm:$0xff]
        %v966 = vld [vmem:[%s711 + $0x5d8] sm:$0xff]
        %v967 = vld [vmem:[%s711 + $0x5e0] sm:$0xff]
        %v968 = vld [vmem:[%s711 + $0x5e8] sm:$0xff]
        %v969 = vld [vmem:[%s711 + $0x5f0] sm:$0xff]
        %v970 = vld [vmem:[%s711 + $0x5f8] sm:$0xff]
        %v971 = vld [vmem:[%s720] sm:$0xf]
        %v972 = vld [vmem:[%s694] sm:$0xff]
        %v973 = vld [vmem:[%s694 + $0x8] sm:$0xff]
        %v974 = vld [vmem:[%s694 + $0x10] sm:$0xff]
        %v975 = vld [vmem:[%s694 + $0x18] sm:$0xff]
        %v976 = vld [vmem:[%s694 + $0x20] sm:$0xff]
        %v977 = vld [vmem:[%s694 + $0x28] sm:$0xff]
        %v978 = vld [vmem:[%s694 + $0x30] sm:$0xff]
        %v979 = vld [vmem:[%s694 + $0x38] sm:$0xff]
        %v980 = vld [vmem:[%s694 + $0x40] sm:$0xff]
        %v981 = vld [vmem:[%s694 + $0x48] sm:$0xff]
        %v982 = vld [vmem:[%s694 + $0x50] sm:$0xff]
        %v983 = vld [vmem:[%s694 + $0x58] sm:$0xff]
        %v984 = vld [vmem:[%s694 + $0x60] sm:$0xff]
        %v985 = vld [vmem:[%s694 + $0x68] sm:$0xff]
        %v986 = vld [vmem:[%s694 + $0x70] sm:$0xff]
        %v987 = vld [vmem:[%s694 + $0x78] sm:$0xff]
        %v988 = vld [vmem:[%s694 + $0x80] sm:$0xff]
        %v989 = vld [vmem:[%s694 + $0x88] sm:$0xff]
        %v990 = vld [vmem:[%s694 + $0x90] sm:$0xff]
        %v991 = vld [vmem:[%s694 + $0x98] sm:$0xff]
        %v992 = vld [vmem:[%s694 + $0xa0] sm:$0xff]
        %v993 = vld [vmem:[%s694 + $0xa8] sm:$0xff]
        %v994 = vld [vmem:[%s694 + $0xb0] sm:$0xff]
        %v995 = vld [vmem:[%s694 + $0xb8] sm:$0xff]
        %v996 = vld [vmem:[%s694 + $0xc0] sm:$0xff]
        %v997 = vld [vmem:[%s694 + $0xc8] sm:$0xff]
        %v998 = vld [vmem:[%s694 + $0xd0] sm:$0xff]
        %v999 = vld [vmem:[%s694 + $0xd8] sm:$0xff]
        %v1000 = vld [vmem:[%s694 + $0xe0] sm:$0xff]
        %v1001 = vld [vmem:[%s694 + $0xe8] sm:$0xff]
        %v1002 = vld [vmem:[%s694 + $0xf0] sm:$0xff]
        %v1003 = vld [vmem:[%s694 + $0xf8] sm:$0xff]
        %v1004 = vld [vmem:[%s694 + $0x100] sm:$0xff]
        %v1005 = vld [vmem:[%s694 + $0x108] sm:$0xff]
        %v1006 = vld [vmem:[%s694 + $0x110] sm:$0xff]
        %v1007 = vld [vmem:[%s694 + $0x118] sm:$0xff]
        %v1008 = vld [vmem:[%s694 + $0x120] sm:$0xff]
        %v1009 = vld [vmem:[%s694 + $0x128] sm:$0xff]
        %v1010 = vld [vmem:[%s694 + $0x130] sm:$0xff]
        %v1011 = vld [vmem:[%s694 + $0x138] sm:$0xff]
        %v1012 = vld [vmem:[%s694 + $0x140] sm:$0xff]
        %v1013 = vld [vmem:[%s694 + $0x148] sm:$0xff]
        %v1014 = vld [vmem:[%s694 + $0x150] sm:$0xff]
        %v1015 = vld [vmem:[%s694 + $0x158] sm:$0xff]
        %v1016 = vld [vmem:[%s694 + $0x160] sm:$0xff]
        %v1017 = vld [vmem:[%s694 + $0x168] sm:$0xff]
        %v1018 = vld [vmem:[%s694 + $0x170] sm:$0xff]
        %v1019 = vld [vmem:[%s694 + $0x178] sm:$0xff]
        %v1020 = vld [vmem:[%s694 + $0x180] sm:$0xff]
        %v1021 = vld [vmem:[%s694 + $0x188] sm:$0xff]
        %v1022 = vld [vmem:[%s694 + $0x190] sm:$0xff]
        %v1023 = vld [vmem:[%s694 + $0x198] sm:$0xff]
        %v1024 = vld [vmem:[%s694 + $0x1a0] sm:$0xff]
        %v1025 = vld [vmem:[%s694 + $0x1a8] sm:$0xff]
        %v1026 = vld [vmem:[%s694 + $0x1b0] sm:$0xff]
        %v1027 = vld [vmem:[%s694 + $0x1b8] sm:$0xff]
        %v1028 = vld [vmem:[%s694 + $0x1c0] sm:$0xff]
        %v1029 = vld [vmem:[%s694 + $0x1c8] sm:$0xff]
        %v1030 = vld [vmem:[%s694 + $0x1d0] sm:$0xff]
        %v1031 = vld [vmem:[%s694 + $0x1d8] sm:$0xff]
        %v1032 = vld [vmem:[%s694 + $0x1e0] sm:$0xff]
        %v1033 = vld [vmem:[%s694 + $0x1e8] sm:$0xff]
        %v1034 = vld [vmem:[%s694 + $0x1f0] sm:$0xff]
        %v1035 = vld [vmem:[%s694 + $0x1f8] sm:$0xff]
        %v1036 = vld [vmem:[%s694 + $0x200] sm:$0xff]
        %v1037 = vld [vmem:[%s694 + $0x208] sm:$0xff]
        %v1038 = vld [vmem:[%s694 + $0x210] sm:$0xff]
        %v1039 = vld [vmem:[%s694 + $0x218] sm:$0xff]
        %v1040 = vld [vmem:[%s694 + $0x220] sm:$0xff]
        %v1041 = vld [vmem:[%s694 + $0x228] sm:$0xff]
        %v1042 = vld [vmem:[%s694 + $0x230] sm:$0xff]
        %v1043 = vld [vmem:[%s694 + $0x238] sm:$0xff]
        %v1044 = vld [vmem:[%s694 + $0x240] sm:$0xff]
        %v1045 = vld [vmem:[%s694 + $0x248] sm:$0xff]
        %v1046 = vld [vmem:[%s694 + $0x250] sm:$0xff]
        %v1047 = vld [vmem:[%s694 + $0x258] sm:$0xff]
        %v1048 = vld [vmem:[%s694 + $0x260] sm:$0xff]
        %v1049 = vld [vmem:[%s694 + $0x268] sm:$0xff]
        %v1050 = vld [vmem:[%s694 + $0x270] sm:$0xff]
        %v1051 = vld [vmem:[%s694 + $0x278] sm:$0xff]
        %v1052 = vld [vmem:[%s694 + $0x280] sm:$0xff]
        %v1053 = vld [vmem:[%s694 + $0x288] sm:$0xff]
        %v1054 = vld [vmem:[%s694 + $0x290] sm:$0xff]
        %v1055 = vld [vmem:[%s694 + $0x298] sm:$0xff]
        %v1056 = vld [vmem:[%s694 + $0x2a0] sm:$0xff]
        %v1057 = vld [vmem:[%s694 + $0x2a8] sm:$0xff]
        %v1058 = vld [vmem:[%s694 + $0x2b0] sm:$0xff]
        %v1059 = vld [vmem:[%s694 + $0x2b8] sm:$0xff]
        %v1060 = vld [vmem:[%s694 + $0x2c0] sm:$0xff]
        %v1061 = vld [vmem:[%s694 + $0x2c8] sm:$0xff]
        %v1062 = vld [vmem:[%s694 + $0x2d0] sm:$0xff]
        %v1063 = vld [vmem:[%s694 + $0x2d8] sm:$0xff]
        %v1064 = vld [vmem:[%s694 + $0x2e0] sm:$0xff]
        %v1065 = vld [vmem:[%s694 + $0x2e8] sm:$0xff]
        %v1066 = vld [vmem:[%s694 + $0x2f0] sm:$0xff]
        %v1067 = vld [vmem:[%s694 + $0x2f8] sm:$0xff]
        %v1068 = vld [vmem:[%s694 + $0x300] sm:$0xff]
        %v1069 = vld [vmem:[%s694 + $0x308] sm:$0xff]
        %v1070 = vld [vmem:[%s694 + $0x310] sm:$0xff]
        %v1071 = vld [vmem:[%s694 + $0x318] sm:$0xff]
        %v1072 = vld [vmem:[%s694 + $0x320] sm:$0xff]
        %v1073 = vld [vmem:[%s694 + $0x328] sm:$0xff]
        %v1074 = vld [vmem:[%s694 + $0x330] sm:$0xff]
        %v1075 = vld [vmem:[%s694 + $0x338] sm:$0xff]
        %v1076 = vld [vmem:[%s694 + $0x340] sm:$0xff]
        %v1077 = vld [vmem:[%s694 + $0x348] sm:$0xff]
        %v1078 = vld [vmem:[%s694 + $0x350] sm:$0xff]
        %v1079 = vld [vmem:[%s694 + $0x358] sm:$0xff]
        %v1080 = vld [vmem:[%s694 + $0x360] sm:$0xff]
        %v1081 = vld [vmem:[%s694 + $0x368] sm:$0xff]
        %v1082 = vld [vmem:[%s694 + $0x370] sm:$0xff]
        %v1083 = vld [vmem:[%s694 + $0x378] sm:$0xff]
        %v1084 = vld [vmem:[%s694 + $0x380] sm:$0xff]
        %v1085 = vld [vmem:[%s694 + $0x388] sm:$0xff]
        %v1086 = vld [vmem:[%s694 + $0x390] sm:$0xff]
        %v1087 = vld [vmem:[%s694 + $0x398] sm:$0xff]
        %v1088 = vld [vmem:[%s694 + $0x3a0] sm:$0xff]
        %v1089 = vld [vmem:[%s694 + $0x3a8] sm:$0xff]
        %v1090 = vld [vmem:[%s694 + $0x3b0] sm:$0xff]
        %v1091 = vld [vmem:[%s694 + $0x3b8] sm:$0xff]
        %v1092 = vld [vmem:[%s694 + $0x3c0] sm:$0xff]
        %v1093 = vld [vmem:[%s694 + $0x3c8] sm:$0xff]
        %v1094 = vld [vmem:[%s694 + $0x3d0] sm:$0xff]
        %v1095 = vld [vmem:[%s694 + $0x3d8] sm:$0xff]
        %v1096 = vld [vmem:[%s694 + $0x3e0] sm:$0xff]
        %v1097 = vld [vmem:[%s694 + $0x3e8] sm:$0xff]
        %v1098 = vld [vmem:[%s694 + $0x3f0] sm:$0xff]
        %v1099 = vld [vmem:[%s694 + $0x3f8] sm:$0xff]
        %v1100 = vld [vmem:[%s694 + $0x400] sm:$0xff]
        %v1101 = vld [vmem:[%s694 + $0x408] sm:$0xff]
        %v1102 = vld [vmem:[%s694 + $0x410] sm:$0xff]
        %v1103 = vld [vmem:[%s694 + $0x418] sm:$0xff]
        %v1104 = vld [vmem:[%s694 + $0x420] sm:$0xff]
        %v1105 = vld [vmem:[%s694 + $0x428] sm:$0xff]
        %v1106 = vld [vmem:[%s694 + $0x430] sm:$0xff]
        %v1107 = vld [vmem:[%s694 + $0x438] sm:$0xff]
        %v1108 = vld [vmem:[%s694 + $0x440] sm:$0xff]
        %v1109 = vld [vmem:[%s694 + $0x448] sm:$0xff]
        %v1110 = vld [vmem:[%s694 + $0x450] sm:$0xff]
        %v1111 = vld [vmem:[%s694 + $0x458] sm:$0xff]
        %v1112 = vld [vmem:[%s694 + $0x460] sm:$0xff]
        %v1113 = vld [vmem:[%s694 + $0x468] sm:$0xff]
        %v1114 = vld [vmem:[%s694 + $0x470] sm:$0xff]
        %v1115 = vld [vmem:[%s694 + $0x478] sm:$0xff]
        %v1116 = vld [vmem:[%s694 + $0x480] sm:$0xff]
        %v1117 = vld [vmem:[%s694 + $0x488] sm:$0xff]
        %v1118 = vld [vmem:[%s694 + $0x490] sm:$0xff]
        %v1119 = vld [vmem:[%s694 + $0x498] sm:$0xff]
        %v1120 = vld [vmem:[%s694 + $0x4a0] sm:$0xff]
        %v1121 = vld [vmem:[%s694 + $0x4a8] sm:$0xff]
        %v1122 = vld [vmem:[%s694 + $0x4b0] sm:$0xff]
        %v1123 = vld [vmem:[%s694 + $0x4b8] sm:$0xff]
        %v1124 = vld [vmem:[%s694 + $0x4c0] sm:$0xff]
        %v1125 = vld [vmem:[%s694 + $0x4c8] sm:$0xff]
        %v1126 = vld [vmem:[%s694 + $0x4d0] sm:$0xff]
        %v1127 = vld [vmem:[%s694 + $0x4d8] sm:$0xff]
        %v1128 = vld [vmem:[%s694 + $0x4e0] sm:$0xff]
        %v1129 = vld [vmem:[%s694 + $0x4e8] sm:$0xff]
        %v1130 = vld [vmem:[%s694 + $0x4f0] sm:$0xff]
        %v1131 = vld [vmem:[%s694 + $0x4f8] sm:$0xff]
        %v1132 = vld [vmem:[%s694 + $0x500] sm:$0xff]
        %v1133 = vld [vmem:[%s694 + $0x508] sm:$0xff]
        %v1134 = vld [vmem:[%s694 + $0x510] sm:$0xff]
        %v1135 = vld [vmem:[%s694 + $0x518] sm:$0xff]
        %v1136 = vld [vmem:[%s694 + $0x520] sm:$0xff]
        %v1137 = vld [vmem:[%s694 + $0x528] sm:$0xff]
        %v1138 = vld [vmem:[%s694 + $0x530] sm:$0xff]
        %v1139 = vld [vmem:[%s694 + $0x538] sm:$0xff]
        %v1140 = vld [vmem:[%s694 + $0x540] sm:$0xff]
        %v1141 = vld [vmem:[%s694 + $0x548] sm:$0xff]
        %v1142 = vld [vmem:[%s694 + $0x550] sm:$0xff]
        %v1143 = vld [vmem:[%s694 + $0x558] sm:$0xff]
        %v1144 = vld [vmem:[%s694 + $0x560] sm:$0xff]
        %v1145 = vld [vmem:[%s694 + $0x568] sm:$0xff]
        %v1146 = vld [vmem:[%s694 + $0x570] sm:$0xff]
        %v1147 = vld [vmem:[%s694 + $0x578] sm:$0xff]
        %v1148 = vld [vmem:[%s694 + $0x580] sm:$0xff]
        %v1149 = vld [vmem:[%s694 + $0x588] sm:$0xff]
        %v1150 = vld [vmem:[%s694 + $0x590] sm:$0xff]
        %v1151 = vld [vmem:[%s694 + $0x598] sm:$0xff]
        %v1152 = vld [vmem:[%s694 + $0x5a0] sm:$0xff]
        %v1153 = vld [vmem:[%s694 + $0x5a8] sm:$0xff]
        %v1154 = vld [vmem:[%s694 + $0x5b0] sm:$0xff]
        %v1155 = vld [vmem:[%s694 + $0x5b8] sm:$0xff]
        %v1156 = vld [vmem:[%s694 + $0x5c0] sm:$0xff]
        %v1157 = vld [vmem:[%s694 + $0x5c8] sm:$0xff]
        %v1158 = vld [vmem:[%s694 + $0x5d0] sm:$0xff]
        %v1159 = vld [vmem:[%s694 + $0x5d8] sm:$0xff]
        %v1160 = vld [vmem:[%s694 + $0x5e0] sm:$0xff]
        %v1161 = vld [vmem:[%s694 + $0x5e8] sm:$0xff]
        %v1162 = vld [vmem:[%s694 + $0x5f0] sm:$0xff]
        %v1163 = vld [vmem:[%s694 + $0x5f8] sm:$0xff]
        %v1164 = vld [vmem:[%s702] sm:$0xf]
        %v1165 = vld [vmem:[%s771] sm:$0xff]
        %v1166 = vld [vmem:[%s771 + $0x8] sm:$0xff]
        %v1167 = vld [vmem:[%s771 + $0x10] sm:$0xff]
        %v1168 = vld [vmem:[%s771 + $0x18] sm:$0xff]
        %v1169 = vld [vmem:[%s771 + $0x20] sm:$0xff]
        %v1170 = vld [vmem:[%s771 + $0x28] sm:$0xff]
        %v1171 = vld [vmem:[%s771 + $0x30] sm:$0xff]
        %v1172 = vld [vmem:[%s771 + $0x38] sm:$0xff]
        %v1173 = vld [vmem:[%s771 + $0x40] sm:$0xff]
        %v1174 = vld [vmem:[%s771 + $0x48] sm:$0xff]
        %v1175 = vld [vmem:[%s771 + $0x50] sm:$0xff]
        %v1176 = vld [vmem:[%s771 + $0x58] sm:$0xff]
        %v1177 = vld [vmem:[%s771 + $0x60] sm:$0xff]
        %v1178 = vld [vmem:[%s771 + $0x68] sm:$0xff]
        %v1179 = vld [vmem:[%s771 + $0x70] sm:$0xff]
        %v1180 = vld [vmem:[%s771 + $0x78] sm:$0xff]
        %v1181 = vld [vmem:[%s771 + $0x80] sm:$0xff]
        %v1182 = vld [vmem:[%s771 + $0x88] sm:$0xff]
        %v1183 = vld [vmem:[%s771 + $0x90] sm:$0xff]
        %v1184 = vld [vmem:[%s771 + $0x98] sm:$0xff]
        %v1185 = vld [vmem:[%s771 + $0xa0] sm:$0xff]
        %v1186 = vld [vmem:[%s771 + $0xa8] sm:$0xff]
        %v1187 = vld [vmem:[%s771 + $0xb0] sm:$0xff]
        %v1188 = vld [vmem:[%s771 + $0xb8] sm:$0xff]
        %v1189 = vld [vmem:[%s771 + $0xc0] sm:$0xff]
        %v1190 = vld [vmem:[%s771 + $0xc8] sm:$0xff]
        %v1191 = vld [vmem:[%s771 + $0xd0] sm:$0xff]
        %v1192 = vld [vmem:[%s771 + $0xd8] sm:$0xff]
        %v1193 = vld [vmem:[%s771 + $0xe0] sm:$0xff]
        %v1194 = vld [vmem:[%s771 + $0xe8] sm:$0xff]
        %v1195 = vld [vmem:[%s771 + $0xf0] sm:$0xff]
        %v1196 = vld [vmem:[%s771 + $0xf8] sm:$0xff]
        %v1197 = vld [vmem:[%s771 + $0x100] sm:$0xff]
        %v1198 = vld [vmem:[%s771 + $0x108] sm:$0xff]
        %v1199 = vld [vmem:[%s771 + $0x110] sm:$0xff]
        %v1200 = vld [vmem:[%s771 + $0x118] sm:$0xff]
        %v1201 = vld [vmem:[%s771 + $0x120] sm:$0xff]
        %v1202 = vld [vmem:[%s771 + $0x128] sm:$0xff]
        %v1203 = vld [vmem:[%s771 + $0x130] sm:$0xff]
        %v1204 = vld [vmem:[%s771 + $0x138] sm:$0xff]
        %v1205 = vld [vmem:[%s771 + $0x140] sm:$0xff]
        %v1206 = vld [vmem:[%s771 + $0x148] sm:$0xff]
        %v1207 = vld [vmem:[%s771 + $0x150] sm:$0xff]
        %v1208 = vld [vmem:[%s771 + $0x158] sm:$0xff]
        %v1209 = vld [vmem:[%s771 + $0x160] sm:$0xff]
        %v1210 = vld [vmem:[%s771 + $0x168] sm:$0xff]
        %v1211 = vld [vmem:[%s771 + $0x170] sm:$0xff]
        %v1212 = vld [vmem:[%s771 + $0x178] sm:$0xff]
        %v1213 = vld [vmem:[%s771 + $0x180] sm:$0xff]
        %v1214 = vld [vmem:[%s771 + $0x188] sm:$0xff]
        %v1215 = vld [vmem:[%s771 + $0x190] sm:$0xff]
        %v1216 = vld [vmem:[%s771 + $0x198] sm:$0xff]
        %v1217 = vld [vmem:[%s771 + $0x1a0] sm:$0xff]
        %v1218 = vld [vmem:[%s771 + $0x1a8] sm:$0xff]
        %v1219 = vld [vmem:[%s771 + $0x1b0] sm:$0xff]
        %v1220 = vld [vmem:[%s771 + $0x1b8] sm:$0xff]
        %v1221 = vld [vmem:[%s771 + $0x1c0] sm:$0xff]
        %v1222 = vld [vmem:[%s771 + $0x1c8] sm:$0xff]
        %v1223 = vld [vmem:[%s771 + $0x1d0] sm:$0xff]
        %v1224 = vld [vmem:[%s771 + $0x1d8] sm:$0xff]
        %v1225 = vld [vmem:[%s771 + $0x1e0] sm:$0xff]
        %v1226 = vld [vmem:[%s771 + $0x1e8] sm:$0xff]
        %v1227 = vld [vmem:[%s771 + $0x1f0] sm:$0xff]
        %v1228 = vld [vmem:[%s771 + $0x1f8] sm:$0xff]
        %v1229 = vld [vmem:[%s771 + $0x200] sm:$0xff]
        %v1230 = vld [vmem:[%s771 + $0x208] sm:$0xff]
        %v1231 = vld [vmem:[%s771 + $0x210] sm:$0xff]
        %v1232 = vld [vmem:[%s771 + $0x218] sm:$0xff]
        %v1233 = vld [vmem:[%s771 + $0x220] sm:$0xff]
        %v1234 = vld [vmem:[%s771 + $0x228] sm:$0xff]
        %v1235 = vld [vmem:[%s771 + $0x230] sm:$0xff]
        %v1236 = vld [vmem:[%s771 + $0x238] sm:$0xff]
        %v1237 = vld [vmem:[%s771 + $0x240] sm:$0xff]
        %v1238 = vld [vmem:[%s771 + $0x248] sm:$0xff]
        %v1239 = vld [vmem:[%s771 + $0x250] sm:$0xff]
        %v1240 = vld [vmem:[%s771 + $0x258] sm:$0xff]
        %v1241 = vld [vmem:[%s771 + $0x260] sm:$0xff]
        %v1242 = vld [vmem:[%s771 + $0x268] sm:$0xff]
        %v1243 = vld [vmem:[%s771 + $0x270] sm:$0xff]
        %v1244 = vld [vmem:[%s771 + $0x278] sm:$0xff]
        %v1245 = vld [vmem:[%s771 + $0x280] sm:$0xff]
        %v1246 = vld [vmem:[%s771 + $0x288] sm:$0xff]
        %v1247 = vld [vmem:[%s771 + $0x290] sm:$0xff]
        %v1248 = vld [vmem:[%s771 + $0x298] sm:$0xff]
        %v1249 = vld [vmem:[%s771 + $0x2a0] sm:$0xff]
        %v1250 = vld [vmem:[%s771 + $0x2a8] sm:$0xff]
        %v1251 = vld [vmem:[%s771 + $0x2b0] sm:$0xff]
        %v1252 = vld [vmem:[%s771 + $0x2b8] sm:$0xff]
        %v1253 = vld [vmem:[%s771 + $0x2c0] sm:$0xff]
        %v1254 = vld [vmem:[%s771 + $0x2c8] sm:$0xff]
        %v1255 = vld [vmem:[%s771 + $0x2d0] sm:$0xff]
        %v1256 = vld [vmem:[%s771 + $0x2d8] sm:$0xff]
        %v1257 = vld [vmem:[%s771 + $0x2e0] sm:$0xff]
        %v1258 = vld [vmem:[%s771 + $0x2e8] sm:$0xff]
        %v1259 = vld [vmem:[%s771 + $0x2f0] sm:$0xff]
        %v1260 = vld [vmem:[%s771 + $0x2f8] sm:$0xff]
        %v1261 = vld [vmem:[%s771 + $0x300] sm:$0x11]
        %v1262 = vld [vmem:[%s771 + $0x308] sm:$0x11]
        %v1263 = vld [vmem:[%s771 + $0x310] sm:$0x11]
        %v1265 = vlaneseq
        %v1266 = vshrl.u32 %v1265, 7
        %v1267 = vsub.s32 0, %v1266
        %v1268 = vrot.slane %v971, %v1267
        %v1269 = vlaneseq
        %v1270 = vshrl.u32 %v1269, 7
        %v1271 = vsub.s32 1, %v1270
        %v1272 = vrot.slane %v971, %v1271
        %v1273 = vlaneseq
        %v1274 = vshrl.u32 %v1273, 7
        %v1275 = vsub.s32 2, %v1274
        %v1276 = vrot.slane %v971, %v1275
        %v1277 = vlaneseq
        %v1278 = vshrl.u32 %v1277, 7
        %v1279 = vsub.s32 3, %v1278
        %v1280 = vrot.slane %v971, %v1279
        %v1384 = vunpack.c.l.b16 %v1165
        %v1385 = vunpack.c.h.b16 %v1165
        %v1386 = vunpack.c.l.b16 %v1166
        %v1387 = vunpack.c.h.b16 %v1166
        %v1388 = vunpack.c.l.b16 %v1167
        %v1389 = vunpack.c.h.b16 %v1167
        %v1390 = vunpack.c.l.b16 %v1168
        %v1391 = vunpack.c.h.b16 %v1168
        %v1392 = vunpack.c.l.b16 %v1169
        %v1393 = vunpack.c.h.b16 %v1169
        %v1394 = vunpack.c.l.b16 %v1170
        %v1395 = vunpack.c.h.b16 %v1170
        %v1396 = vunpack.c.l.b16 %v1171
        %v1397 = vunpack.c.h.b16 %v1171
        %v1398 = vunpack.c.l.b16 %v1172
        %v1399 = vunpack.c.h.b16 %v1172
        %v1400 = vunpack.c.l.b16 %v1173
        %v1401 = vunpack.c.h.b16 %v1173
        %v1402 = vunpack.c.l.b16 %v1174
        %v1403 = vunpack.c.h.b16 %v1174
        %v1404 = vunpack.c.l.b16 %v1175
        %v1405 = vunpack.c.h.b16 %v1175
        %v1406 = vunpack.c.l.b16 %v1176
        %v1407 = vunpack.c.h.b16 %v1176
        %v1408 = vunpack.c.l.b16 %v1177
        %v1409 = vunpack.c.h.b16 %v1177
        %v1410 = vunpack.c.l.b16 %v1178
        %v1411 = vunpack.c.h.b16 %v1178
        %v1412 = vunpack.c.l.b16 %v1179
        %v1413 = vunpack.c.h.b16 %v1179
        %v1414 = vunpack.c.l.b16 %v1180
        %v1415 = vunpack.c.h.b16 %v1180
        %v1416 = vunpack.c.l.b16 %v1181
        %v1417 = vunpack.c.h.b16 %v1181
        %v1418 = vunpack.c.l.b16 %v1182
        %v1419 = vunpack.c.h.b16 %v1182
        %v1420 = vunpack.c.l.b16 %v1183
        %v1421 = vunpack.c.h.b16 %v1183
        %v1422 = vunpack.c.l.b16 %v1184
        %v1423 = vunpack.c.h.b16 %v1184
        %v1424 = vunpack.c.l.b16 %v1185
        %v1425 = vunpack.c.h.b16 %v1185
        %v1426 = vunpack.c.l.b16 %v1186
        %v1427 = vunpack.c.h.b16 %v1186
        %v1428 = vunpack.c.l.b16 %v1187
        %v1429 = vunpack.c.h.b16 %v1187
        %v1430 = vunpack.c.l.b16 %v1188
        %v1431 = vunpack.c.h.b16 %v1188
        %v1432 = vunpack.c.l.b16 %v1189
        %v1433 = vunpack.c.h.b16 %v1189
        %v1434 = vunpack.c.l.b16 %v1190
        %v1435 = vunpack.c.h.b16 %v1190
        %v1436 = vunpack.c.l.b16 %v1191
        %v1437 = vunpack.c.h.b16 %v1191
        %v1438 = vunpack.c.l.b16 %v1192
        %v1439 = vunpack.c.h.b16 %v1192
        %v1440 = vunpack.c.l.b16 %v1193
        %v1441 = vunpack.c.h.b16 %v1193
        %v1442 = vunpack.c.l.b16 %v1194
        %v1443 = vunpack.c.h.b16 %v1194
        %v1444 = vunpack.c.l.b16 %v1195
        %v1445 = vunpack.c.h.b16 %v1195
        %v1446 = vunpack.c.l.b16 %v1196
        %v1447 = vunpack.c.h.b16 %v1196
        %v1448 = vunpack.c.l.b16 %v1197
        %v1449 = vunpack.c.h.b16 %v1197
        %v1450 = vunpack.c.l.b16 %v1198
        %v1451 = vunpack.c.h.b16 %v1198
        %v1452 = vunpack.c.l.b16 %v1199
        %v1453 = vunpack.c.h.b16 %v1199
        %v1454 = vunpack.c.l.b16 %v1200
        %v1455 = vunpack.c.h.b16 %v1200
        %v1456 = vunpack.c.l.b16 %v1201
        %v1457 = vunpack.c.h.b16 %v1201
        %v1458 = vunpack.c.l.b16 %v1202
        %v1459 = vunpack.c.h.b16 %v1202
        %v1460 = vunpack.c.l.b16 %v1203
        %v1461 = vunpack.c.h.b16 %v1203
        %v1462 = vunpack.c.l.b16 %v1204
        %v1463 = vunpack.c.h.b16 %v1204
        %v1464 = vunpack.c.l.b16 %v1205
        %v1465 = vunpack.c.h.b16 %v1205
        %v1466 = vunpack.c.l.b16 %v1206
        %v1467 = vunpack.c.h.b16 %v1206
        %v1468 = vunpack.c.l.b16 %v1207
        %v1469 = vunpack.c.h.b16 %v1207
        %v1470 = vunpack.c.l.b16 %v1208
        %v1471 = vunpack.c.h.b16 %v1208
        %v1472 = vunpack.c.l.b16 %v1209
        %v1473 = vunpack.c.h.b16 %v1209
        %v1474 = vunpack.c.l.b16 %v1210
        %v1475 = vunpack.c.h.b16 %v1210
        %v1476 = vunpack.c.l.b16 %v1211
        %v1477 = vunpack.c.h.b16 %v1211
        %v1478 = vunpack.c.l.b16 %v1212
        %v1479 = vunpack.c.h.b16 %v1212
        %v1480 = vunpack.c.l.b16 %v1213
        %v1481 = vunpack.c.h.b16 %v1213
        %v1482 = vunpack.c.l.b16 %v1214
        %v1483 = vunpack.c.h.b16 %v1214
        %v1484 = vunpack.c.l.b16 %v1215
        %v1485 = vunpack.c.h.b16 %v1215
        %v1486 = vunpack.c.l.b16 %v1216
        %v1487 = vunpack.c.h.b16 %v1216
        %v1488 = vunpack.c.l.b16 %v1217
        %v1489 = vunpack.c.h.b16 %v1217
        %v1490 = vunpack.c.l.b16 %v1218
        %v1491 = vunpack.c.h.b16 %v1218
        %v1492 = vunpack.c.l.b16 %v1219
        %v1493 = vunpack.c.h.b16 %v1219
        %v1494 = vunpack.c.l.b16 %v1220
        %v1495 = vunpack.c.h.b16 %v1220
        %v1496 = vunpack.c.l.b16 %v1221
        %v1497 = vunpack.c.h.b16 %v1221
        %v1498 = vunpack.c.l.b16 %v1222
        %v1499 = vunpack.c.h.b16 %v1222
        %v1500 = vunpack.c.l.b16 %v1223
        %v1501 = vunpack.c.h.b16 %v1223
        %v1502 = vunpack.c.l.b16 %v1224
        %v1503 = vunpack.c.h.b16 %v1224
        %v1504 = vunpack.c.l.b16 %v1225
        %v1505 = vunpack.c.h.b16 %v1225
        %v1506 = vunpack.c.l.b16 %v1226
        %v1507 = vunpack.c.h.b16 %v1226
        %v1508 = vunpack.c.l.b16 %v1227
        %v1509 = vunpack.c.h.b16 %v1227
        %v1510 = vunpack.c.l.b16 %v1228
        %v1511 = vunpack.c.h.b16 %v1228
        %v1512 = vunpack.c.l.b16 %v1229
        %v1513 = vunpack.c.h.b16 %v1229
        %v1514 = vunpack.c.l.b16 %v1230
        %v1515 = vunpack.c.h.b16 %v1230
        %v1516 = vunpack.c.l.b16 %v1231
        %v1517 = vunpack.c.h.b16 %v1231
        %v1518 = vunpack.c.l.b16 %v1232
        %v1519 = vunpack.c.h.b16 %v1232
        %v1520 = vunpack.c.l.b16 %v1233
        %v1521 = vunpack.c.h.b16 %v1233
        %v1522 = vunpack.c.l.b16 %v1234
        %v1523 = vunpack.c.h.b16 %v1234
        %v1524 = vunpack.c.l.b16 %v1235
        %v1525 = vunpack.c.h.b16 %v1235
        %v1526 = vunpack.c.l.b16 %v1236
        %v1527 = vunpack.c.h.b16 %v1236
        %v1528 = vunpack.c.l.b16 %v1237
        %v1529 = vunpack.c.h.b16 %v1237
        %v1530 = vunpack.c.l.b16 %v1238
        %v1531 = vunpack.c.h.b16 %v1238
        %v1532 = vunpack.c.l.b16 %v1239
        %v1533 = vunpack.c.h.b16 %v1239
        %v1534 = vunpack.c.l.b16 %v1240
        %v1535 = vunpack.c.h.b16 %v1240
        %v1536 = vunpack.c.l.b16 %v1241
        %v1537 = vunpack.c.h.b16 %v1241
        %v1538 = vunpack.c.l.b16 %v1242
        %v1539 = vunpack.c.h.b16 %v1242
        %v1540 = vunpack.c.l.b16 %v1243
        %v1541 = vunpack.c.h.b16 %v1243
        %v1542 = vunpack.c.l.b16 %v1244
        %v1543 = vunpack.c.h.b16 %v1244
        %v1544 = vunpack.c.l.b16 %v1245
        %v1545 = vunpack.c.h.b16 %v1245
        %v1546 = vunpack.c.l.b16 %v1246
        %v1547 = vunpack.c.h.b16 %v1246
        %v1548 = vunpack.c.l.b16 %v1247
        %v1549 = vunpack.c.h.b16 %v1247
        %v1550 = vunpack.c.l.b16 %v1248
        %v1551 = vunpack.c.h.b16 %v1248
        %v1552 = vunpack.c.l.b16 %v1249
        %v1553 = vunpack.c.h.b16 %v1249
        %v1554 = vunpack.c.l.b16 %v1250
        %v1555 = vunpack.c.h.b16 %v1250
        %v1556 = vunpack.c.l.b16 %v1251
        %v1557 = vunpack.c.h.b16 %v1251
        %v1558 = vunpack.c.l.b16 %v1252
        %v1559 = vunpack.c.h.b16 %v1252
        %v1560 = vunpack.c.l.b16 %v1253
        %v1561 = vunpack.c.h.b16 %v1253
        %v1562 = vunpack.c.l.b16 %v1254
        %v1563 = vunpack.c.h.b16 %v1254
        %v1564 = vunpack.c.l.b16 %v1255
        %v1565 = vunpack.c.h.b16 %v1255
        %v1566 = vunpack.c.l.b16 %v1256
        %v1567 = vunpack.c.h.b16 %v1256
        %v1568 = vunpack.c.l.b16 %v1257
        %v1569 = vunpack.c.h.b16 %v1257
        %v1570 = vunpack.c.l.b16 %v1258
        %v1571 = vunpack.c.h.b16 %v1258
        %v1572 = vunpack.c.l.b16 %v1259
        %v1573 = vunpack.c.h.b16 %v1259
        %v1574 = vunpack.c.l.b16 %v1260
        %v1575 = vunpack.c.h.b16 %v1260
        %v1576 = vunpack.c.l.b16 %v1261
        %v1577 = vunpack.c.h.b16 %v1261
        %v1578 = vunpack.c.l.b16 %v1262
        %v1579 = vunpack.c.h.b16 %v1262
        %v1580 = vunpack.c.l.b16 %v1263
        %v1581 = vunpack.c.h.b16 %v1263
        %v1582 = vpack.c.b16 %v1390, %v1384
        %v1583 = vpack.c.b16 %v1391, %v1385
        %v1584 = vpack.c.b16 %v1392, %v1386
        %v1585 = vpack.c.b16 %v1393, %v1387
        %v1586 = vpack.c.b16 %v1394, %v1388
        %v1587 = vpack.c.b16 %v1395, %v1389
        %v1588 = vpack.c.b16 %v1402, %v1396
        %v1589 = vpack.c.b16 %v1403, %v1397
        %v1590 = vpack.c.b16 %v1404, %v1398
        %v1591 = vpack.c.b16 %v1405, %v1399
        %v1592 = vpack.c.b16 %v1406, %v1400
        %v1593 = vpack.c.b16 %v1407, %v1401
        %v1594 = vpack.c.b16 %v1414, %v1408
        %v1595 = vpack.c.b16 %v1415, %v1409
        %v1596 = vpack.c.b16 %v1416, %v1410
        %v1597 = vpack.c.b16 %v1417, %v1411
        %v1598 = vpack.c.b16 %v1418, %v1412
        %v1599 = vpack.c.b16 %v1419, %v1413
        %v1600 = vpack.c.b16 %v1426, %v1420
        %v1601 = vpack.c.b16 %v1427, %v1421
        %v1602 = vpack.c.b16 %v1428, %v1422
        %v1603 = vpack.c.b16 %v1429, %v1423
        %v1604 = vpack.c.b16 %v1430, %v1424
        %v1605 = vpack.c.b16 %v1431, %v1425
        %v1606 = vpack.c.b16 %v1438, %v1432
        %v1607 = vpack.c.b16 %v1439, %v1433
        %v1608 = vpack.c.b16 %v1440, %v1434
        %v1609 = vpack.c.b16 %v1441, %v1435
        %v1610 = vpack.c.b16 %v1442, %v1436
        %v1611 = vpack.c.b16 %v1443, %v1437
        %v1612 = vpack.c.b16 %v1450, %v1444
        %v1613 = vpack.c.b16 %v1451, %v1445
        %v1614 = vpack.c.b16 %v1452, %v1446
        %v1615 = vpack.c.b16 %v1453, %v1447
        %v1616 = vpack.c.b16 %v1454, %v1448
        %v1617 = vpack.c.b16 %v1455, %v1449
        %v1618 = vpack.c.b16 %v1462, %v1456
        %v1619 = vpack.c.b16 %v1463, %v1457
        %v1620 = vpack.c.b16 %v1464, %v1458
        %v1621 = vpack.c.b16 %v1465, %v1459
        %v1622 = vpack.c.b16 %v1466, %v1460
        %v1623 = vpack.c.b16 %v1467, %v1461
        %v1624 = vpack.c.b16 %v1474, %v1468
        %v1625 = vpack.c.b16 %v1475, %v1469
        %v1626 = vpack.c.b16 %v1476, %v1470
        %v1627 = vpack.c.b16 %v1477, %v1471
        %v1628 = vpack.c.b16 %v1478, %v1472
        %v1629 = vpack.c.b16 %v1479, %v1473
        %v1630 = vpack.c.b16 %v1486, %v1480
        %v1631 = vpack.c.b16 %v1487, %v1481
        %v1632 = vpack.c.b16 %v1488, %v1482
        %v1633 = vpack.c.b16 %v1489, %v1483
        %v1634 = vpack.c.b16 %v1490, %v1484
        %v1635 = vpack.c.b16 %v1491, %v1485
        %v1636 = vpack.c.b16 %v1498, %v1492
        %v1637 = vpack.c.b16 %v1499, %v1493
        %v1638 = vpack.c.b16 %v1500, %v1494
        %v1639 = vpack.c.b16 %v1501, %v1495
        %v1640 = vpack.c.b16 %v1502, %v1496
        %v1641 = vpack.c.b16 %v1503, %v1497
        %v1642 = vpack.c.b16 %v1510, %v1504
        %v1643 = vpack.c.b16 %v1511, %v1505
        %v1644 = vpack.c.b16 %v1512, %v1506
        %v1645 = vpack.c.b16 %v1513, %v1507
        %v1646 = vpack.c.b16 %v1514, %v1508
        %v1647 = vpack.c.b16 %v1515, %v1509
        %v1648 = vpack.c.b16 %v1522, %v1516
        %v1649 = vpack.c.b16 %v1523, %v1517
        %v1650 = vpack.c.b16 %v1524, %v1518
        %v1651 = vpack.c.b16 %v1525, %v1519
        %v1652 = vpack.c.b16 %v1526, %v1520
        %v1653 = vpack.c.b16 %v1527, %v1521
        %v1654 = vpack.c.b16 %v1534, %v1528
        %v1655 = vpack.c.b16 %v1535, %v1529
        %v1656 = vpack.c.b16 %v1536, %v1530
        %v1657 = vpack.c.b16 %v1537, %v1531
        %v1658 = vpack.c.b16 %v1538, %v1532
        %v1659 = vpack.c.b16 %v1539, %v1533
        %v1660 = vpack.c.b16 %v1546, %v1540
        %v1661 = vpack.c.b16 %v1547, %v1541
        %v1662 = vpack.c.b16 %v1548, %v1542
        %v1663 = vpack.c.b16 %v1549, %v1543
        %v1664 = vpack.c.b16 %v1550, %v1544
        %v1665 = vpack.c.b16 %v1551, %v1545
        %v1666 = vpack.c.b16 %v1558, %v1552
        %v1667 = vpack.c.b16 %v1559, %v1553
        %v1668 = vpack.c.b16 %v1560, %v1554
        %v1669 = vpack.c.b16 %v1561, %v1555
        %v1670 = vpack.c.b16 %v1562, %v1556
        %v1671 = vpack.c.b16 %v1563, %v1557
        %v1672 = vpack.c.b16 %v1570, %v1564
        %v1673 = vpack.c.b16 %v1571, %v1565
        %v1674 = vpack.c.b16 %v1572, %v1566
        %v1675 = vpack.c.b16 %v1573, %v1567
        %v1676 = vpack.c.b16 %v1574, %v1568
        %v1677 = vpack.c.b16 %v1575, %v1569
        %v1678 = vpack.c.b16 %v1576, %v1576
        %v1679 = vpack.c.b16 %v1577, %v1577
        %v1680 = vpack.c.b16 %v1578, %v1578
        %v1681 = vpack.c.b16 %v1579, %v1579
        %v1682 = vpack.c.b16 %v1580, %v1580
        %v1683 = vpack.c.b16 %v1581, %v1581
        %v1978 = vunpack.c.l.b16 %v779
        %v1979 = vunpack.c.h.b16 %v779
        %v1980 = vunpack.c.l.b16 %v780
        %v1981 = vunpack.c.h.b16 %v780
        %v1982 = vunpack.c.l.b16 %v781
        %v1983 = vunpack.c.h.b16 %v781
        %v1984 = vunpack.c.l.b16 %v782
        %v1985 = vunpack.c.h.b16 %v782
        %v1986 = vunpack.c.l.b16 %v783
        %v1987 = vunpack.c.h.b16 %v783
        %v1988 = vunpack.c.l.b16 %v784
        %v1989 = vunpack.c.h.b16 %v784
        %v1990 = vunpack.c.l.b16 %v785
        %v1991 = vunpack.c.h.b16 %v785
        %v1992 = vunpack.c.l.b16 %v786
        %v1993 = vunpack.c.h.b16 %v786
        %v1994 = vunpack.c.l.b16 %v787
        %v1995 = vunpack.c.h.b16 %v787
        %v1996 = vunpack.c.l.b16 %v788
        %v1997 = vunpack.c.h.b16 %v788
        %v1998 = vunpack.c.l.b16 %v789
        %v1999 = vunpack.c.h.b16 %v789
        %v2000 = vunpack.c.l.b16 %v790
        %v2001 = vunpack.c.h.b16 %v790
        %v2002 = vunpack.c.l.b16 %v791
        %v2003 = vunpack.c.h.b16 %v791
        %v2004 = vunpack.c.l.b16 %v792
        %v2005 = vunpack.c.h.b16 %v792
        %v2006 = vunpack.c.l.b16 %v793
        %v2007 = vunpack.c.h.b16 %v793
        %v2008 = vunpack.c.l.b16 %v794
        %v2009 = vunpack.c.h.b16 %v794
        %v2010 = vunpack.c.l.b16 %v795
        %v2011 = vunpack.c.h.b16 %v795
        %v2012 = vunpack.c.l.b16 %v796
        %v2013 = vunpack.c.h.b16 %v796
        %v2014 = vunpack.c.l.b16 %v797
        %v2015 = vunpack.c.h.b16 %v797
        %v2016 = vunpack.c.l.b16 %v798
        %v2017 = vunpack.c.h.b16 %v798
        %v2018 = vunpack.c.l.b16 %v799
        %v2019 = vunpack.c.h.b16 %v799
        %v2020 = vunpack.c.l.b16 %v800
        %v2021 = vunpack.c.h.b16 %v800
        %v2022 = vunpack.c.l.b16 %v801
        %v2023 = vunpack.c.h.b16 %v801
        %v2024 = vunpack.c.l.b16 %v802
        %v2025 = vunpack.c.h.b16 %v802
        %v2026 = vunpack.c.l.b16 %v803
        %v2027 = vunpack.c.h.b16 %v803
        %v2028 = vunpack.c.l.b16 %v804
        %v2029 = vunpack.c.h.b16 %v804
        %v2030 = vunpack.c.l.b16 %v805
        %v2031 = vunpack.c.h.b16 %v805
        %v2032 = vunpack.c.l.b16 %v806
        %v2033 = vunpack.c.h.b16 %v806
        %v2034 = vunpack.c.l.b16 %v807
        %v2035 = vunpack.c.h.b16 %v807
        %v2036 = vunpack.c.l.b16 %v808
        %v2037 = vunpack.c.h.b16 %v808
        %v2038 = vunpack.c.l.b16 %v809
        %v2039 = vunpack.c.h.b16 %v809
        %v2040 = vunpack.c.l.b16 %v810
        %v2041 = vunpack.c.h.b16 %v810
        %v2042 = vunpack.c.l.b16 %v811
        %v2043 = vunpack.c.h.b16 %v811
        %v2044 = vunpack.c.l.b16 %v812
        %v2045 = vunpack.c.h.b16 %v812
        %v2046 = vunpack.c.l.b16 %v813
        %v2047 = vunpack.c.h.b16 %v813
        %v2048 = vunpack.c.l.b16 %v814
        %v2049 = vunpack.c.h.b16 %v814
        %v2050 = vunpack.c.l.b16 %v815
        %v2051 = vunpack.c.h.b16 %v815
        %v2052 = vunpack.c.l.b16 %v816
        %v2053 = vunpack.c.h.b16 %v816
        %v2054 = vunpack.c.l.b16 %v817
        %v2055 = vunpack.c.h.b16 %v817
        %v2056 = vunpack.c.l.b16 %v818
        %v2057 = vunpack.c.h.b16 %v818
        %v2058 = vunpack.c.l.b16 %v819
        %v2059 = vunpack.c.h.b16 %v819
        %v2060 = vunpack.c.l.b16 %v820
        %v2061 = vunpack.c.h.b16 %v820
        %v2062 = vunpack.c.l.b16 %v821
        %v2063 = vunpack.c.h.b16 %v821
        %v2064 = vunpack.c.l.b16 %v822
        %v2065 = vunpack.c.h.b16 %v822
        %v2066 = vunpack.c.l.b16 %v823
        %v2067 = vunpack.c.h.b16 %v823
        %v2068 = vunpack.c.l.b16 %v824
        %v2069 = vunpack.c.h.b16 %v824
        %v2070 = vunpack.c.l.b16 %v825
        %v2071 = vunpack.c.h.b16 %v825
        %v2072 = vunpack.c.l.b16 %v826
        %v2073 = vunpack.c.h.b16 %v826
        %v2074 = vunpack.c.l.b16 %v827
        %v2075 = vunpack.c.h.b16 %v827
        %v2076 = vunpack.c.l.b16 %v828
        %v2077 = vunpack.c.h.b16 %v828
        %v2078 = vunpack.c.l.b16 %v829
        %v2079 = vunpack.c.h.b16 %v829
        %v2080 = vunpack.c.l.b16 %v830
        %v2081 = vunpack.c.h.b16 %v830
        %v2082 = vunpack.c.l.b16 %v831
        %v2083 = vunpack.c.h.b16 %v831
        %v2084 = vunpack.c.l.b16 %v832
        %v2085 = vunpack.c.h.b16 %v832
        %v2086 = vunpack.c.l.b16 %v833
        %v2087 = vunpack.c.h.b16 %v833
        %v2088 = vunpack.c.l.b16 %v834
        %v2089 = vunpack.c.h.b16 %v834
        %v2090 = vunpack.c.l.b16 %v835
        %v2091 = vunpack.c.h.b16 %v835
        %v2092 = vunpack.c.l.b16 %v836
        %v2093 = vunpack.c.h.b16 %v836
        %v2094 = vunpack.c.l.b16 %v837
        %v2095 = vunpack.c.h.b16 %v837
        %v2096 = vunpack.c.l.b16 %v838
        %v2097 = vunpack.c.h.b16 %v838
        %v2098 = vunpack.c.l.b16 %v839
        %v2099 = vunpack.c.h.b16 %v839
        %v2100 = vunpack.c.l.b16 %v840
        %v2101 = vunpack.c.h.b16 %v840
        %v2102 = vunpack.c.l.b16 %v841
        %v2103 = vunpack.c.h.b16 %v841
        %v2104 = vunpack.c.l.b16 %v842
        %v2105 = vunpack.c.h.b16 %v842
        %v2106 = vunpack.c.l.b16 %v843
        %v2107 = vunpack.c.h.b16 %v843
        %v2108 = vunpack.c.l.b16 %v844
        %v2109 = vunpack.c.h.b16 %v844
        %v2110 = vunpack.c.l.b16 %v845
        %v2111 = vunpack.c.h.b16 %v845
        %v2112 = vunpack.c.l.b16 %v846
        %v2113 = vunpack.c.h.b16 %v846
        %v2114 = vunpack.c.l.b16 %v847
        %v2115 = vunpack.c.h.b16 %v847
        %v2116 = vunpack.c.l.b16 %v848
        %v2117 = vunpack.c.h.b16 %v848
        %v2118 = vunpack.c.l.b16 %v849
        %v2119 = vunpack.c.h.b16 %v849
        %v2120 = vunpack.c.l.b16 %v850
        %v2121 = vunpack.c.h.b16 %v850
        %v2122 = vunpack.c.l.b16 %v851
        %v2123 = vunpack.c.h.b16 %v851
        %v2124 = vunpack.c.l.b16 %v852
        %v2125 = vunpack.c.h.b16 %v852
        %v2126 = vunpack.c.l.b16 %v853
        %v2127 = vunpack.c.h.b16 %v853
        %v2128 = vunpack.c.l.b16 %v854
        %v2129 = vunpack.c.h.b16 %v854
        %v2130 = vunpack.c.l.b16 %v855
        %v2131 = vunpack.c.h.b16 %v855
        %v2132 = vunpack.c.l.b16 %v856
        %v2133 = vunpack.c.h.b16 %v856
        %v2134 = vunpack.c.l.b16 %v857
        %v2135 = vunpack.c.h.b16 %v857
        %v2136 = vunpack.c.l.b16 %v858
        %v2137 = vunpack.c.h.b16 %v858
        %v2138 = vunpack.c.l.b16 %v859
        %v2139 = vunpack.c.h.b16 %v859
        %v2140 = vunpack.c.l.b16 %v860
        %v2141 = vunpack.c.h.b16 %v860
        %v2142 = vunpack.c.l.b16 %v861
        %v2143 = vunpack.c.h.b16 %v861
        %v2144 = vunpack.c.l.b16 %v862
        %v2145 = vunpack.c.h.b16 %v862
        %v2146 = vunpack.c.l.b16 %v863
        %v2147 = vunpack.c.h.b16 %v863
        %v2148 = vunpack.c.l.b16 %v864
        %v2149 = vunpack.c.h.b16 %v864
        %v2150 = vunpack.c.l.b16 %v865
        %v2151 = vunpack.c.h.b16 %v865
        %v2152 = vunpack.c.l.b16 %v866
        %v2153 = vunpack.c.h.b16 %v866
        %v2154 = vunpack.c.l.b16 %v867
        %v2155 = vunpack.c.h.b16 %v867
        %v2156 = vunpack.c.l.b16 %v868
        %v2157 = vunpack.c.h.b16 %v868
        %v2158 = vunpack.c.l.b16 %v869
        %v2159 = vunpack.c.h.b16 %v869
        %v2160 = vunpack.c.l.b16 %v870
        %v2161 = vunpack.c.h.b16 %v870
        %v2162 = vunpack.c.l.b16 %v871
        %v2163 = vunpack.c.h.b16 %v871
        %v2164 = vunpack.c.l.b16 %v872
        %v2165 = vunpack.c.h.b16 %v872
        %v2166 = vunpack.c.l.b16 %v873
        %v2167 = vunpack.c.h.b16 %v873
        %v2168 = vunpack.c.l.b16 %v874
        %v2169 = vunpack.c.h.b16 %v874
        %v2170 = vunpack.c.l.b16 %v875
        %v2171 = vunpack.c.h.b16 %v875
        %v2172 = vunpack.c.l.b16 %v876
        %v2173 = vunpack.c.h.b16 %v876
        %v2174 = vunpack.c.l.b16 %v877
        %v2175 = vunpack.c.h.b16 %v877
        %v2176 = vunpack.c.l.b16 %v878
        %v2177 = vunpack.c.h.b16 %v878
        %v2178 = vunpack.c.l.b16 %v879
        %v2179 = vunpack.c.h.b16 %v879
        %v2180 = vunpack.c.l.b16 %v880
        %v2181 = vunpack.c.h.b16 %v880
        %v2182 = vunpack.c.l.b16 %v881
        %v2183 = vunpack.c.h.b16 %v881
        %v2184 = vunpack.c.l.b16 %v882
        %v2185 = vunpack.c.h.b16 %v882
        %v2186 = vunpack.c.l.b16 %v883
        %v2187 = vunpack.c.h.b16 %v883
        %v2188 = vunpack.c.l.b16 %v884
        %v2189 = vunpack.c.h.b16 %v884
        %v2190 = vunpack.c.l.b16 %v885
        %v2191 = vunpack.c.h.b16 %v885
        %v2192 = vunpack.c.l.b16 %v886
        %v2193 = vunpack.c.h.b16 %v886
        %v2194 = vunpack.c.l.b16 %v887
        %v2195 = vunpack.c.h.b16 %v887
        %v2196 = vunpack.c.l.b16 %v888
        %v2197 = vunpack.c.h.b16 %v888
        %v2198 = vunpack.c.l.b16 %v889
        %v2199 = vunpack.c.h.b16 %v889
        %v2200 = vunpack.c.l.b16 %v890
        %v2201 = vunpack.c.h.b16 %v890
        %v2202 = vunpack.c.l.b16 %v891
        %v2203 = vunpack.c.h.b16 %v891
        %v2204 = vunpack.c.l.b16 %v892
        %v2205 = vunpack.c.h.b16 %v892
        %v2206 = vunpack.c.l.b16 %v893
        %v2207 = vunpack.c.h.b16 %v893
        %v2208 = vunpack.c.l.b16 %v894
        %v2209 = vunpack.c.h.b16 %v894
        %v2210 = vunpack.c.l.b16 %v895
        %v2211 = vunpack.c.h.b16 %v895
        %v2212 = vunpack.c.l.b16 %v896
        %v2213 = vunpack.c.h.b16 %v896
        %v2214 = vunpack.c.l.b16 %v897
        %v2215 = vunpack.c.h.b16 %v897
        %v2216 = vunpack.c.l.b16 %v898
        %v2217 = vunpack.c.h.b16 %v898
        %v2218 = vunpack.c.l.b16 %v899
        %v2219 = vunpack.c.h.b16 %v899
        %v2220 = vunpack.c.l.b16 %v900
        %v2221 = vunpack.c.h.b16 %v900
        %v2222 = vunpack.c.l.b16 %v901
        %v2223 = vunpack.c.h.b16 %v901
        %v2224 = vunpack.c.l.b16 %v902
        %v2225 = vunpack.c.h.b16 %v902
        %v2226 = vunpack.c.l.b16 %v903
        %v2227 = vunpack.c.h.b16 %v903
        %v2228 = vunpack.c.l.b16 %v904
        %v2229 = vunpack.c.h.b16 %v904
        %v2230 = vunpack.c.l.b16 %v905
        %v2231 = vunpack.c.h.b16 %v905
        %v2232 = vunpack.c.l.b16 %v906
        %v2233 = vunpack.c.h.b16 %v906
        %v2234 = vunpack.c.l.b16 %v907
        %v2235 = vunpack.c.h.b16 %v907
        %v2236 = vunpack.c.l.b16 %v908
        %v2237 = vunpack.c.h.b16 %v908
        %v2238 = vunpack.c.l.b16 %v909
        %v2239 = vunpack.c.h.b16 %v909
        %v2240 = vunpack.c.l.b16 %v910
        %v2241 = vunpack.c.h.b16 %v910
        %v2242 = vunpack.c.l.b16 %v911
        %v2243 = vunpack.c.h.b16 %v911
        %v2244 = vunpack.c.l.b16 %v912
        %v2245 = vunpack.c.h.b16 %v912
        %v2246 = vunpack.c.l.b16 %v913
        %v2247 = vunpack.c.h.b16 %v913
        %v2248 = vunpack.c.l.b16 %v914
        %v2249 = vunpack.c.h.b16 %v914
        %v2250 = vunpack.c.l.b16 %v915
        %v2251 = vunpack.c.h.b16 %v915
        %v2252 = vunpack.c.l.b16 %v916
        %v2253 = vunpack.c.h.b16 %v916
        %v2254 = vunpack.c.l.b16 %v917
        %v2255 = vunpack.c.h.b16 %v917
        %v2256 = vunpack.c.l.b16 %v918
        %v2257 = vunpack.c.h.b16 %v918
        %v2258 = vunpack.c.l.b16 %v919
        %v2259 = vunpack.c.h.b16 %v919
        %v2260 = vunpack.c.l.b16 %v920
        %v2261 = vunpack.c.h.b16 %v920
        %v2262 = vunpack.c.l.b16 %v921
        %v2263 = vunpack.c.h.b16 %v921
        %v2264 = vunpack.c.l.b16 %v922
        %v2265 = vunpack.c.h.b16 %v922
        %v2266 = vunpack.c.l.b16 %v923
        %v2267 = vunpack.c.h.b16 %v923
        %v2268 = vunpack.c.l.b16 %v924
        %v2269 = vunpack.c.h.b16 %v924
        %v2270 = vunpack.c.l.b16 %v925
        %v2271 = vunpack.c.h.b16 %v925
        %v2272 = vunpack.c.l.b16 %v926
        %v2273 = vunpack.c.h.b16 %v926
        %v2274 = vunpack.c.l.b16 %v927
        %v2275 = vunpack.c.h.b16 %v927
        %v2276 = vunpack.c.l.b16 %v928
        %v2277 = vunpack.c.h.b16 %v928
        %v2278 = vunpack.c.l.b16 %v929
        %v2279 = vunpack.c.h.b16 %v929
        %v2280 = vunpack.c.l.b16 %v930
        %v2281 = vunpack.c.h.b16 %v930
        %v2282 = vunpack.c.l.b16 %v931
        %v2283 = vunpack.c.h.b16 %v931
        %v2284 = vunpack.c.l.b16 %v932
        %v2285 = vunpack.c.h.b16 %v932
        %v2286 = vunpack.c.l.b16 %v933
        %v2287 = vunpack.c.h.b16 %v933
        %v2288 = vunpack.c.l.b16 %v934
        %v2289 = vunpack.c.h.b16 %v934
        %v2290 = vunpack.c.l.b16 %v935
        %v2291 = vunpack.c.h.b16 %v935
        %v2292 = vunpack.c.l.b16 %v936
        %v2293 = vunpack.c.h.b16 %v936
        %v2294 = vunpack.c.l.b16 %v937
        %v2295 = vunpack.c.h.b16 %v937
        %v2296 = vunpack.c.l.b16 %v938
        %v2297 = vunpack.c.h.b16 %v938
        %v2298 = vunpack.c.l.b16 %v939
        %v2299 = vunpack.c.h.b16 %v939
        %v2300 = vunpack.c.l.b16 %v940
        %v2301 = vunpack.c.h.b16 %v940
        %v2302 = vunpack.c.l.b16 %v941
        %v2303 = vunpack.c.h.b16 %v941
        %v2304 = vunpack.c.l.b16 %v942
        %v2305 = vunpack.c.h.b16 %v942
        %v2306 = vunpack.c.l.b16 %v943
        %v2307 = vunpack.c.h.b16 %v943
        %v2308 = vunpack.c.l.b16 %v944
        %v2309 = vunpack.c.h.b16 %v944
        %v2310 = vunpack.c.l.b16 %v945
        %v2311 = vunpack.c.h.b16 %v945
        %v2312 = vunpack.c.l.b16 %v946
        %v2313 = vunpack.c.h.b16 %v946
        %v2314 = vunpack.c.l.b16 %v947
        %v2315 = vunpack.c.h.b16 %v947
        %v2316 = vunpack.c.l.b16 %v948
        %v2317 = vunpack.c.h.b16 %v948
        %v2318 = vunpack.c.l.b16 %v949
        %v2319 = vunpack.c.h.b16 %v949
        %v2320 = vunpack.c.l.b16 %v950
        %v2321 = vunpack.c.h.b16 %v950
        %v2322 = vunpack.c.l.b16 %v951
        %v2323 = vunpack.c.h.b16 %v951
        %v2324 = vunpack.c.l.b16 %v952
        %v2325 = vunpack.c.h.b16 %v952
        %v2326 = vunpack.c.l.b16 %v953
        %v2327 = vunpack.c.h.b16 %v953
        %v2328 = vunpack.c.l.b16 %v954
        %v2329 = vunpack.c.h.b16 %v954
        %v2330 = vunpack.c.l.b16 %v955
        %v2331 = vunpack.c.h.b16 %v955
        %v2332 = vunpack.c.l.b16 %v956
        %v2333 = vunpack.c.h.b16 %v956
        %v2334 = vunpack.c.l.b16 %v957
        %v2335 = vunpack.c.h.b16 %v957
        %v2336 = vunpack.c.l.b16 %v958
        %v2337 = vunpack.c.h.b16 %v958
        %v2338 = vunpack.c.l.b16 %v959
        %v2339 = vunpack.c.h.b16 %v959
        %v2340 = vunpack.c.l.b16 %v960
        %v2341 = vunpack.c.h.b16 %v960
        %v2342 = vunpack.c.l.b16 %v961
        %v2343 = vunpack.c.h.b16 %v961
        %v2344 = vunpack.c.l.b16 %v962
        %v2345 = vunpack.c.h.b16 %v962
        %v2346 = vunpack.c.l.b16 %v963
        %v2347 = vunpack.c.h.b16 %v963
        %v2348 = vunpack.c.l.b16 %v964
        %v2349 = vunpack.c.h.b16 %v964
        %v2350 = vunpack.c.l.b16 %v965
        %v2351 = vunpack.c.h.b16 %v965
        %v2352 = vunpack.c.l.b16 %v966
        %v2353 = vunpack.c.h.b16 %v966
        %v2354 = vunpack.c.l.b16 %v967
        %v2355 = vunpack.c.h.b16 %v967
        %v2356 = vunpack.c.l.b16 %v968
        %v2357 = vunpack.c.h.b16 %v968
        %v2358 = vunpack.c.l.b16 %v969
        %v2359 = vunpack.c.h.b16 %v969
        %v2360 = vunpack.c.l.b16 %v970
        %v2361 = vunpack.c.h.b16 %v970
        %v2362 = vpack.c.b16 %v1982, %v1978
        %v2363 = vpack.c.b16 %v1983, %v1979
        %v2364 = vpack.c.b16 %v1984, %v1980
        %v2365 = vpack.c.b16 %v1985, %v1981
        %v2366 = vpack.c.b16 %v1990, %v1986
        %v2367 = vpack.c.b16 %v1991, %v1987
        %v2368 = vpack.c.b16 %v1992, %v1988
        %v2369 = vpack.c.b16 %v1993, %v1989
        %v2370 = vpack.c.b16 %v1998, %v1994
        %v2371 = vpack.c.b16 %v1999, %v1995
        %v2372 = vpack.c.b16 %v2000, %v1996
        %v2373 = vpack.c.b16 %v2001, %v1997
        %v2374 = vpack.c.b16 %v2006, %v2002
        %v2375 = vpack.c.b16 %v2007, %v2003
        %v2376 = vpack.c.b16 %v2008, %v2004
        %v2377 = vpack.c.b16 %v2009, %v2005
        %v2378 = vpack.c.b16 %v2014, %v2010
        %v2379 = vpack.c.b16 %v2015, %v2011
        %v2380 = vpack.c.b16 %v2016, %v2012
        %v2381 = vpack.c.b16 %v2017, %v2013
        %v2382 = vpack.c.b16 %v2022, %v2018
        %v2383 = vpack.c.b16 %v2023, %v2019
        %v2384 = vpack.c.b16 %v2024, %v2020
        %v2385 = vpack.c.b16 %v2025, %v2021
        %v2386 = vpack.c.b16 %v2030, %v2026
        %v2387 = vpack.c.b16 %v2031, %v2027
        %v2388 = vpack.c.b16 %v2032, %v2028
        %v2389 = vpack.c.b16 %v2033, %v2029
        %v2390 = vpack.c.b16 %v2038, %v2034
        %v2391 = vpack.c.b16 %v2039, %v2035
        %v2392 = vpack.c.b16 %v2040, %v2036
        %v2393 = vpack.c.b16 %v2041, %v2037
        %v2394 = vpack.c.b16 %v2046, %v2042
        %v2395 = vpack.c.b16 %v2047, %v2043
        %v2396 = vpack.c.b16 %v2048, %v2044
        %v2397 = vpack.c.b16 %v2049, %v2045
        %v2398 = vpack.c.b16 %v2054, %v2050
        %v2399 = vpack.c.b16 %v2055, %v2051
        %v2400 = vpack.c.b16 %v2056, %v2052
        %v2401 = vpack.c.b16 %v2057, %v2053
        %v2402 = vpack.c.b16 %v2062, %v2058
        %v2403 = vpack.c.b16 %v2063, %v2059
        %v2404 = vpack.c.b16 %v2064, %v2060
        %v2405 = vpack.c.b16 %v2065, %v2061
        %v2406 = vpack.c.b16 %v2070, %v2066
        %v2407 = vpack.c.b16 %v2071, %v2067
        %v2408 = vpack.c.b16 %v2072, %v2068
        %v2409 = vpack.c.b16 %v2073, %v2069
        %v2410 = vpack.c.b16 %v2078, %v2074
        %v2411 = vpack.c.b16 %v2079, %v2075
        %v2412 = vpack.c.b16 %v2080, %v2076
        %v2413 = vpack.c.b16 %v2081, %v2077
        %v2414 = vpack.c.b16 %v2086, %v2082
        %v2415 = vpack.c.b16 %v2087, %v2083
        %v2416 = vpack.c.b16 %v2088, %v2084
        %v2417 = vpack.c.b16 %v2089, %v2085
        %v2418 = vpack.c.b16 %v2094, %v2090
        %v2419 = vpack.c.b16 %v2095, %v2091
        %v2420 = vpack.c.b16 %v2096, %v2092
        %v2421 = vpack.c.b16 %v2097, %v2093
        %v2422 = vpack.c.b16 %v2102, %v2098
        %v2423 = vpack.c.b16 %v2103, %v2099
        %v2424 = vpack.c.b16 %v2104, %v2100
        %v2425 = vpack.c.b16 %v2105, %v2101
        %v2426 = vpack.c.b16 %v2110, %v2106
        %v2427 = vpack.c.b16 %v2111, %v2107
        %v2428 = vpack.c.b16 %v2112, %v2108
        %v2429 = vpack.c.b16 %v2113, %v2109
        %v2430 = vpack.c.b16 %v2118, %v2114
        %v2431 = vpack.c.b16 %v2119, %v2115
        %v2432 = vpack.c.b16 %v2120, %v2116
        %v2433 = vpack.c.b16 %v2121, %v2117
        %v2434 = vpack.c.b16 %v2126, %v2122
        %v2435 = vpack.c.b16 %v2127, %v2123
        %v2436 = vpack.c.b16 %v2128, %v2124
        %v2437 = vpack.c.b16 %v2129, %v2125
        %v2438 = vpack.c.b16 %v2134, %v2130
        %v2439 = vpack.c.b16 %v2135, %v2131
        %v2440 = vpack.c.b16 %v2136, %v2132
        %v2441 = vpack.c.b16 %v2137, %v2133
        %v2442 = vpack.c.b16 %v2142, %v2138
        %v2443 = vpack.c.b16 %v2143, %v2139
        %v2444 = vpack.c.b16 %v2144, %v2140
        %v2445 = vpack.c.b16 %v2145, %v2141
        %v2446 = vpack.c.b16 %v2150, %v2146
        %v2447 = vpack.c.b16 %v2151, %v2147
        %v2448 = vpack.c.b16 %v2152, %v2148
        %v2449 = vpack.c.b16 %v2153, %v2149
        %v2450 = vpack.c.b16 %v2158, %v2154
        %v2451 = vpack.c.b16 %v2159, %v2155
        %v2452 = vpack.c.b16 %v2160, %v2156
        %v2453 = vpack.c.b16 %v2161, %v2157
        %v2454 = vpack.c.b16 %v2166, %v2162
        %v2455 = vpack.c.b16 %v2167, %v2163
        %v2456 = vpack.c.b16 %v2168, %v2164
        %v2457 = vpack.c.b16 %v2169, %v2165
        %v2458 = vpack.c.b16 %v2174, %v2170
        %v2459 = vpack.c.b16 %v2175, %v2171
        %v2460 = vpack.c.b16 %v2176, %v2172
        %v2461 = vpack.c.b16 %v2177, %v2173
        %v2462 = vpack.c.b16 %v2182, %v2178
        %v2463 = vpack.c.b16 %v2183, %v2179
        %v2464 = vpack.c.b16 %v2184, %v2180
        %v2465 = vpack.c.b16 %v2185, %v2181
        %v2466 = vpack.c.b16 %v2190, %v2186
        %v2467 = vpack.c.b16 %v2191, %v2187
        %v2468 = vpack.c.b16 %v2192, %v2188
        %v2469 = vpack.c.b16 %v2193, %v2189
        %v2470 = vpack.c.b16 %v2198, %v2194
        %v2471 = vpack.c.b16 %v2199, %v2195
        %v2472 = vpack.c.b16 %v2200, %v2196
        %v2473 = vpack.c.b16 %v2201, %v2197
        %v2474 = vpack.c.b16 %v2206, %v2202
        %v2475 = vpack.c.b16 %v2207, %v2203
        %v2476 = vpack.c.b16 %v2208, %v2204
        %v2477 = vpack.c.b16 %v2209, %v2205
        %v2478 = vpack.c.b16 %v2214, %v2210
        %v2479 = vpack.c.b16 %v2215, %v2211
        %v2480 = vpack.c.b16 %v2216, %v2212
        %v2481 = vpack.c.b16 %v2217, %v2213
        %v2482 = vpack.c.b16 %v2222, %v2218
        %v2483 = vpack.c.b16 %v2223, %v2219
        %v2484 = vpack.c.b16 %v2224, %v2220
        %v2485 = vpack.c.b16 %v2225, %v2221
        %v2486 = vpack.c.b16 %v2230, %v2226
        %v2487 = vpack.c.b16 %v2231, %v2227
        %v2488 = vpack.c.b16 %v2232, %v2228
        %v2489 = vpack.c.b16 %v2233, %v2229
        %v2490 = vpack.c.b16 %v2238, %v2234
        %v2491 = vpack.c.b16 %v2239, %v2235
        %v2492 = vpack.c.b16 %v2240, %v2236
        %v2493 = vpack.c.b16 %v2241, %v2237
        %v2494 = vpack.c.b16 %v2246, %v2242
        %v2495 = vpack.c.b16 %v2247, %v2243
        %v2496 = vpack.c.b16 %v2248, %v2244
        %v2497 = vpack.c.b16 %v2249, %v2245
        %v2498 = vpack.c.b16 %v2254, %v2250
        %v2499 = vpack.c.b16 %v2255, %v2251
        %v2500 = vpack.c.b16 %v2256, %v2252
        %v2501 = vpack.c.b16 %v2257, %v2253
        %v2502 = vpack.c.b16 %v2262, %v2258
        %v2503 = vpack.c.b16 %v2263, %v2259
        %v2504 = vpack.c.b16 %v2264, %v2260
        %v2505 = vpack.c.b16 %v2265, %v2261
        %v2506 = vpack.c.b16 %v2270, %v2266
        %v2507 = vpack.c.b16 %v2271, %v2267
        %v2508 = vpack.c.b16 %v2272, %v2268
        %v2509 = vpack.c.b16 %v2273, %v2269
        %v2510 = vpack.c.b16 %v2278, %v2274
        %v2511 = vpack.c.b16 %v2279, %v2275
        %v2512 = vpack.c.b16 %v2280, %v2276
        %v2513 = vpack.c.b16 %v2281, %v2277
        %v2514 = vpack.c.b16 %v2286, %v2282
        %v2515 = vpack.c.b16 %v2287, %v2283
        %v2516 = vpack.c.b16 %v2288, %v2284
        %v2517 = vpack.c.b16 %v2289, %v2285
        %v2518 = vpack.c.b16 %v2294, %v2290
        %v2519 = vpack.c.b16 %v2295, %v2291
        %v2520 = vpack.c.b16 %v2296, %v2292
        %v2521 = vpack.c.b16 %v2297, %v2293
        %v2522 = vpack.c.b16 %v2302, %v2298
        %v2523 = vpack.c.b16 %v2303, %v2299
        %v2524 = vpack.c.b16 %v2304, %v2300
        %v2525 = vpack.c.b16 %v2305, %v2301
        %v2526 = vpack.c.b16 %v2310, %v2306
        %v2527 = vpack.c.b16 %v2311, %v2307
        %v2528 = vpack.c.b16 %v2312, %v2308
        %v2529 = vpack.c.b16 %v2313, %v2309
        %v2530 = vpack.c.b16 %v2318, %v2314
        %v2531 = vpack.c.b16 %v2319, %v2315
        %v2532 = vpack.c.b16 %v2320, %v2316
        %v2533 = vpack.c.b16 %v2321, %v2317
        %v2534 = vpack.c.b16 %v2326, %v2322
        %v2535 = vpack.c.b16 %v2327, %v2323
        %v2536 = vpack.c.b16 %v2328, %v2324
        %v2537 = vpack.c.b16 %v2329, %v2325
        %v2538 = vpack.c.b16 %v2334, %v2330
        %v2539 = vpack.c.b16 %v2335, %v2331
        %v2540 = vpack.c.b16 %v2336, %v2332
        %v2541 = vpack.c.b16 %v2337, %v2333
        %v2542 = vpack.c.b16 %v2342, %v2338
        %v2543 = vpack.c.b16 %v2343, %v2339
        %v2544 = vpack.c.b16 %v2344, %v2340
        %v2545 = vpack.c.b16 %v2345, %v2341
        %v2546 = vpack.c.b16 %v2350, %v2346
        %v2547 = vpack.c.b16 %v2351, %v2347
        %v2548 = vpack.c.b16 %v2352, %v2348
        %v2549 = vpack.c.b16 %v2353, %v2349
        %v2550 = vpack.c.b16 %v2358, %v2354
        %v2551 = vpack.c.b16 %v2359, %v2355
        %v2552 = vpack.c.b16 %v2360, %v2356
        %v2553 = vpack.c.b16 %v2361, %v2357
        %2746 = vmatprep.subr.bf16.mxu0 %v2363
        %2747 = vmatpush1.bf16.msra.mxu0 %v2362
        %2748 = vmatprep.subr.bf16.mxu0 %v2367
        %2749 = vmatpush1.bf16.msra.mxu0 %v2366
        %2750 = vmatprep.subr.bf16.mxu0 %v2371
        %2751 = vmatpush1.bf16.msra.mxu0 %v2370
        %2752 = vmatprep.subr.bf16.mxu0 %v2375
        %2753 = vmatpush1.bf16.msra.mxu0 %v2374
        %2754 = vmatprep.subr.bf16.mxu0 %v2379
        %2755 = vmatpush1.bf16.msra.mxu0 %v2378
        %2756 = vmatprep.subr.bf16.mxu0 %v2383
        %2757 = vmatpush1.bf16.msra.mxu0 %v2382
        %2758 = vmatprep.subr.bf16.mxu0 %v2387
        %2759 = vmatpush1.bf16.msra.mxu0 %v2386
        %2760 = vmatprep.subr.bf16.mxu0 %v2391
        %2761 = vmatpush1.bf16.msra.mxu0 %v2390
        %2762 = vmatprep.subr.bf16.mxu0 %v2395
        %2763 = vmatpush1.bf16.msra.mxu0 %v2394
        %2764 = vmatprep.subr.bf16.mxu0 %v2399
        %2765 = vmatpush1.bf16.msra.mxu0 %v2398
        %2766 = vmatprep.subr.bf16.mxu0 %v2403
        %2767 = vmatpush1.bf16.msra.mxu0 %v2402
        %2768 = vmatprep.subr.bf16.mxu0 %v2407
        %2769 = vmatpush1.bf16.msra.mxu0 %v2406
        %2770 = vmatprep.subr.bf16.mxu0 %v2411
        %2771 = vmatpush1.bf16.msra.mxu0 %v2410
        %2772 = vmatprep.subr.bf16.mxu0 %v2415
        %2773 = vmatpush1.bf16.msra.mxu0 %v2414
        %2774 = vmatprep.subr.bf16.mxu0 %v2419
        %2775 = vmatpush1.bf16.msra.mxu0 %v2418
        %2776 = vmatprep.subr.bf16.mxu0 %v2423
        %2777 = vmatpush1.bf16.msra.mxu0 %v2422
        %2778 = vmatprep.mubr.bf16.mxu0 %v1583
        %2779 = vmatmul.mubr.bf16.gmra.mrb[0].mxu0 %v1582
        %v2780 = vpop.f32.mrb[0].mxu0
        %v2781 = vadd.f32 %v1268, %v2780
        %v2782 = vpop.f32.mrb[0].mxu0
        %v2783 = vadd.f32 %v1272, %v2782
        %v2784 = vpop.f32.mrb[0].mxu0
        %v2785 = vadd.f32 %v1268, %v2784
        %v2786 = vpop.f32.mrb[0].mxu0
        %v2787 = vadd.f32 %v1272, %v2786
        %2788 = vmatprep.mubr.bf16.mxu0 %v1589
        %2789 = vmatmul.mubr.bf16.gmra.mrb[0].mxu0 %v1588
        %v2790 = vpop.f32.mrb[0].mxu0
        %v2791 = vadd.f32 %v1268, %v2790
        %v2792 = vpop.f32.mrb[0].mxu0
        %v2793 = vadd.f32 %v1272, %v2792
        %v2794 = vpop.f32.mrb[0].mxu0
        %v2795 = vadd.f32 %v1268, %v2794
        %v2796 = vpop.f32.mrb[0].mxu0
        %v2797 = vadd.f32 %v1272, %v2796
        %2798 = vmatprep.mubr.bf16.mxu0 %v1595
        %2799 = vmatmul.mubr.bf16.gmra.mrb[0].mxu0 %v1594
        %v2800 = vpop.f32.mrb[0].mxu0
        %v2801 = vadd.f32 %v1268, %v2800
        %v2802 = vpop.f32.mrb[0].mxu0
        %v2803 = vadd.f32 %v1272, %v2802
        %v2804 = vpop.f32.mrb[0].mxu0
        %v2805 = vadd.f32 %v1268, %v2804
        %v2806 = vpop.f32.mrb[0].mxu0
        %v2807 = vadd.f32 %v1272, %v2806
        %2808 = vmatprep.mubr.bf16.mxu0 %v1601
        %2809 = vmatmul.mubr.bf16.gmra.mrb[0].mxu0 %v1600
        %v2810 = vpop.f32.mrb[0].mxu0
        %v2811 = vadd.f32 %v1268, %v2810
        %v2812 = vpop.f32.mrb[0].mxu0
        %v2813 = vadd.f32 %v1272, %v2812
        %v2814 = vpop.f32.mrb[0].mxu0
        %v2815 = vadd.f32 %v1268, %v2814
        %v2816 = vpop.f32.mrb[0].mxu0
        %v2817 = vadd.f32 %v1272, %v2816
        %2818 = vmatprep.mubr.bf16.mxu0 %v1607
        %2819 = vmatmul.mubr.bf16.gmra.mrb[0].mxu0 %v1606
        %v2820 = vpop.f32.mrb[0].mxu0
        %v2821 = vadd.f32 %v1268, %v2820
        %v2822 = vpop.f32.mrb[0].mxu0
        %v2823 = vadd.f32 %v1272, %v2822
        %v2824 = vpop.f32.mrb[0].mxu0
        %v2825 = vadd.f32 %v1268, %v2824
        %v2826 = vpop.f32.mrb[0].mxu0
        %v2827 = vadd.f32 %v1272, %v2826
        %2828 = vmatprep.mubr.bf16.mxu0 %v1613
        %2829 = vmatmul.mubr.bf16.gmra.mrb[0].mxu0 %v1612
        %v2830 = vpop.f32.mrb[0].mxu0
        %v2831 = vadd.f32 %v1268, %v2830
        %v2832 = vpop.f32.mrb[0].mxu0
        %v2833 = vadd.f32 %v1272, %v2832
        %v2834 = vpop.f32.mrb[0].mxu0
        %v2835 = vadd.f32 %v1268, %v2834
        %v2836 = vpop.f32.mrb[0].mxu0
        %v2837 = vadd.f32 %v1272, %v2836
        %2838 = vmatprep.mubr.bf16.mxu0 %v1619
        %2839 = vmatmul.mubr.bf16.gmra.mrb[0].mxu0 %v1618
        %v2840 = vpop.f32.mrb[0].mxu0
        %v2841 = vadd.f32 %v1268, %v2840
        %v2842 = vpop.f32.mrb[0].mxu0
        %v2843 = vadd.f32 %v1272, %v2842
        %v2844 = vpop.f32.mrb[0].mxu0
        %v2845 = vadd.f32 %v1268, %v2844
        %v2846 = vpop.f32.mrb[0].mxu0
        %v2847 = vadd.f32 %v1272, %v2846
        %2848 = vmatprep.mubr.bf16.mxu0 %v1625
        %2849 = vmatmul.mubr.bf16.gmra.mrb[0].mxu0 %v1624
        %v2850 = vpop.f32.mrb[0].mxu0
        %v2851 = vadd.f32 %v1268, %v2850
        %v2852 = vpop.f32.mrb[0].mxu0
        %v2853 = vadd.f32 %v1272, %v2852
        %v2854 = vpop.f32.mrb[0].mxu0
        %v2855 = vadd.f32 %v1268, %v2854
        %v2856 = vpop.f32.mrb[0].mxu0
        %v2857 = vadd.f32 %v1272, %v2856
        %2858 = vmatprep.mubr.bf16.mxu0 %v1631
        %2859 = vmatmul.mubr.bf16.gmra.mrb[0].mxu0 %v1630
        %v2860 = vpop.f32.mrb[0].mxu0
        %v2861 = vadd.f32 %v1268, %v2860
        %v2862 = vpop.f32.mrb[0].mxu0
        %v2863 = vadd.f32 %v1272, %v2862
        %v2864 = vpop.f32.mrb[0].mxu0
        %v2865 = vadd.f32 %v1268, %v2864
        %v2866 = vpop.f32.mrb[0].mxu0
        %v2867 = vadd.f32 %v1272, %v2866
        %2868 = vmatprep.mubr.bf16.mxu0 %v1637
        %2869 = vmatmul.mubr.bf16.gmra.mrb[0].mxu0 %v1636
        %v2870 = vpop.f32.mrb[0].mxu0
        %v2871 = vadd.f32 %v1268, %v2870
        %v2872 = vpop.f32.mrb[0].mxu0
        %v2873 = vadd.f32 %v1272, %v2872
        %v2874 = vpop.f32.mrb[0].mxu0
        %v2875 = vadd.f32 %v1268, %v2874
        %v2876 = vpop.f32.mrb[0].mxu0
        %v2877 = vadd.f32 %v1272, %v2876
        %2878 = vmatprep.mubr.bf16.mxu0 %v1643
        %2879 = vmatmul.mubr.bf16.gmra.mrb[0].mxu0 %v1642
        %v2880 = vpop.f32.mrb[0].mxu0
        %v2881 = vadd.f32 %v1268, %v2880
        %v2882 = vpop.f32.mrb[0].mxu0
        %v2883 = vadd.f32 %v1272, %v2882
        %v2884 = vpop.f32.mrb[0].mxu0
        %v2885 = vadd.f32 %v1268, %v2884
        %v2886 = vpop.f32.mrb[0].mxu0
        %v2887 = vadd.f32 %v1272, %v2886
        %2888 = vmatprep.mubr.bf16.mxu0 %v1649
        %2889 = vmatmul.mubr.bf16.gmra.mrb[0].mxu0 %v1648
        %v2890 = vpop.f32.mrb[0].mxu0
        %v2891 = vadd.f32 %v1268, %v2890
        %v2892 = vpop.f32.mrb[0].mxu0
        %v2893 = vadd.f32 %v1272, %v2892
        %v2894 = vpop.f32.mrb[0].mxu0
        %v2895 = vadd.f32 %v1268, %v2894
        %v2896 = vpop.f32.mrb[0].mxu0
        %v2897 = vadd.f32 %v1272, %v2896
        %2898 = vmatprep.mubr.bf16.mxu0 %v1655
        %2899 = vmatmul.mubr.bf16.gmra.mrb[0].mxu0 %v1654
        %v2900 = vpop.f32.mrb[0].mxu0
        %v2901 = vadd.f32 %v1268, %v2900
        %v2902 = vpop.f32.mrb[0].mxu0
        %v2903 = vadd.f32 %v1272, %v2902
        %v2904 = vpop.f32.mrb[0].mxu0
        %v2905 = vadd.f32 %v1268, %v2904
        %v2906 = vpop.f32.mrb[0].mxu0
        %v2907 = vadd.f32 %v1272, %v2906
        %2908 = vmatprep.mubr.bf16.mxu0 %v1661
        %2909 = vmatmul.mubr.bf16.gmra.mrb[0].mxu0 %v1660
        %v2910 = vpop.f32.mrb[0].mxu0
        %v2911 = vadd.f32 %v1268, %v2910
        %v2912 = vpop.f32.mrb[0].mxu0
        %v2913 = vadd.f32 %v1272, %v2912
        %v2914 = vpop.f32.mrb[0].mxu0
        %v2915 = vadd.f32 %v1268, %v2914
        %v2916 = vpop.f32.mrb[0].mxu0
        %v2917 = vadd.f32 %v1272, %v2916
        %2918 = vmatprep.mubr.bf16.mxu0 %v1667
        %2919 = vmatmul.mubr.bf16.gmra.mrb[0].mxu0 %v1666
        %v2920 = vpop.f32.mrb[0].mxu0
        %v2921 = vadd.f32 %v1268, %v2920
        %v2922 = vpop.f32.mrb[0].mxu0
        %v2923 = vadd.f32 %v1272, %v2922
        %v2924 = vpop.f32.mrb[0].mxu0
        %v2925 = vadd.f32 %v1268, %v2924
        %v2926 = vpop.f32.mrb[0].mxu0
        %v2927 = vadd.f32 %v1272, %v2926
        %2928 = vmatprep.mubr.bf16.mxu0 %v1673
        %2929 = vmatmul.mubr.bf16.gmra.mrb[0].mxu0 %v1672
        %v2930 = vpop.f32.mrb[0].mxu0
        %v2931 = vadd.f32 %v1268, %v2930
        %v2932 = vpop.f32.mrb[0].mxu0
        %v2933 = vadd.f32 %v1272, %v2932
        %v2934 = vpop.f32.mrb[0].mxu0
        %v2935 = vadd.f32 %v1268, %v2934
        %v2936 = vpop.f32.mrb[0].mxu0
        %v2937 = vadd.f32 %v1272, %v2936
        %2938 = vmatprep.mubr.bf16.mxu0 %v1679
        %2939 = vmatmul.mubr.bf16.gmra.mrb[0].mxu0 %v1678
        %v2940 = vpop.f32.mrb[0].mxu0
        %v2941 = vadd.f32 %v1268, %v2940
        %v2942 = vpop.f32.mrb[0].mxu0
        %v2943 = vadd.f32 %v1272, %v2942
        %v2944 = vpop.f32.mrb[0].mxu0
        %v2945 = vpop.f32.mrb[0].mxu0
        %2946 = vdwg.mxu0
        %2947 = vmatprep.subr.bf16.mxu0 %v2427
        %2948 = vmatpush1.bf16.msra.mxu0 %v2426
        %2949 = vmatprep.subr.bf16.mxu0 %v2431
        %2950 = vmatpush1.bf16.msra.mxu0 %v2430
        %2951 = vmatprep.subr.bf16.mxu0 %v2435
        %2952 = vmatpush1.bf16.msra.mxu0 %v2434
        %2953 = vmatprep.subr.bf16.mxu0 %v2439
        %2954 = vmatpush1.bf16.msra.mxu0 %v2438
        %2955 = vmatprep.subr.bf16.mxu0 %v2443
        %2956 = vmatpush1.bf16.msra.mxu0 %v2442
        %2957 = vmatprep.subr.bf16.mxu0 %v2447
        %2958 = vmatpush1.bf16.msra.mxu0 %v2446
        %2959 = vmatprep.subr.bf16.mxu0 %v2451
        %2960 = vmatpush1.bf16.msra.mxu0 %v2450
        %2961 = vmatprep.subr.bf16.mxu0 %v2455
        %2962 = vmatpush1.bf16.msra.mxu0 %v2454
        %2963 = vmatprep.subr.bf16.mxu0 %v2459
        %2964 = vmatpush1.bf16.msra.mxu0 %v2458
        %2965 = vmatprep.subr.bf16.mxu0 %v2463
        %2966 = vmatpush1.bf16.msra.mxu0 %v2462
        %2967 = vmatprep.subr.bf16.mxu0 %v2467
        %2968 = vmatpush1.bf16.msra.mxu0 %v2466
        %2969 = vmatprep.subr.bf16.mxu0 %v2471
        %2970 = vmatpush1.bf16.msra.mxu0 %v2470
        %2971 = vmatprep.subr.bf16.mxu0 %v2475
        %2972 = vmatpush1.bf16.msra.mxu0 %v2474
        %2973 = vmatprep.subr.bf16.mxu0 %v2479
        %2974 = vmatpush1.bf16.msra.mxu0 %v2478
        %2975 = vmatprep.subr.bf16.mxu0 %v2483
        %2976 = vmatpush1.bf16.msra.mxu0 %v2482
        %2977 = vmatprep.subr.bf16.mxu0 %v2487
        %2978 = vmatpush1.bf16.msra.mxu0 %v2486
        %2979 = vmatprep.mubr.bf16.mxu0 %v1585
        %2980 = vmatmul.mubr.bf16.gmra.mrb[0].mxu0 %v1584
        %v2981 = vpop.f32.mrb[0].mxu0
        %v2982 = vadd.f32 %v2781, %v2981
        %v2983 = vpop.f32.mrb[0].mxu0
        %v2984 = vadd.f32 %v2783, %v2983
        %v2985 = vpop.f32.mrb[0].mxu0
        %v2986 = vadd.f32 %v2785, %v2985
        %v2987 = vpop.f32.mrb[0].mxu0
        %v2988 = vadd.f32 %v2787, %v2987
        %2989 = vmatprep.mubr.bf16.mxu0 %v1591
        %2990 = vmatmul.mubr.bf16.gmra.mrb[0].mxu0 %v1590
        %v2991 = vpop.f32.mrb[0].mxu0
        %v2992 = vadd.f32 %v2791, %v2991
        %v2993 = vpop.f32.mrb[0].mxu0
        %v2994 = vadd.f32 %v2793, %v2993
        %v2995 = vpop.f32.mrb[0].mxu0
        %v2996 = vadd.f32 %v2795, %v2995
        %v2997 = vpop.f32.mrb[0].mxu0
        %v2998 = vadd.f32 %v2797, %v2997
        %2999 = vmatprep.mubr.bf16.mxu0 %v1597
        %3000 = vmatmul.mubr.bf16.gmra.mrb[0].mxu0 %v1596
        %v3001 = vpop.f32.mrb[0].mxu0
        %v3002 = vadd.f32 %v2801, %v3001
        %v3003 = vpop.f32.mrb[0].mxu0
        %v3004 = vadd.f32 %v2803, %v3003
        %v3005 = vpop.f32.mrb[0].mxu0
        %v3006 = vadd.f32 %v2805, %v3005
        %v3007 = vpop.f32.mrb[0].mxu0
        %v3008 = vadd.f32 %v2807, %v3007
        %3009 = vmatprep.mubr.bf16.mxu0 %v1603
        %3010 = vmatmul.mubr.bf16.gmra.mrb[0].mxu0 %v1602
        %v3011 = vpop.f32.mrb[0].mxu0
        %v3012 = vadd.f32 %v2811, %v3011
        %v3013 = vpop.f32.mrb[0].mxu0
        %v3014 = vadd.f32 %v2813, %v3013
        %v3015 = vpop.f32.mrb[0].mxu0
        %v3016 = vadd.f32 %v2815, %v3015
        %v3017 = vpop.f32.mrb[0].mxu0
        %v3018 = vadd.f32 %v2817, %v3017
        %3019 = vmatprep.mubr.bf16.mxu0 %v1609
        %3020 = vmatmul.mubr.bf16.gmra.mrb[0].mxu0 %v1608
        %v3021 = vpop.f32.mrb[0].mxu0
        %v3022 = vadd.f32 %v2821, %v3021
        %v3023 = vpop.f32.mrb[0].mxu0
        %v3024 = vadd.f32 %v2823, %v3023
        %v3025 = vpop.f32.mrb[0].mxu0
        %v3026 = vadd.f32 %v2825, %v3025
        %v3027 = vpop.f32.mrb[0].mxu0
        %v3028 = vadd.f32 %v2827, %v3027
        %3029 = vmatprep.mubr.bf16.mxu0 %v1615
        %3030 = vmatmul.mubr.bf16.gmra.mrb[0].mxu0 %v1614
        %v3031 = vpop.f32.mrb[0].mxu0
        %v3032 = vadd.f32 %v2831, %v3031
        %v3033 = vpop.f32.mrb[0].mxu0
        %v3034 = vadd.f32 %v2833, %v3033
        %v3035 = vpop.f32.mrb[0].mxu0
        %v3036 = vadd.f32 %v2835, %v3035
        %v3037 = vpop.f32.mrb[0].mxu0
        %v3038 = vadd.f32 %v2837, %v3037
        %3039 = vmatprep.mubr.bf16.mxu0 %v1621
        %3040 = vmatmul.mubr.bf16.gmra.mrb[0].mxu0 %v1620
        %v3041 = vpop.f32.mrb[0].mxu0
        %v3042 = vadd.f32 %v2841, %v3041
        %v3043 = vpop.f32.mrb[0].mxu0
        %v3044 = vadd.f32 %v2843, %v3043
        %v3045 = vpop.f32.mrb[0].mxu0
        %v3046 = vadd.f32 %v2845, %v3045
        %v3047 = vpop.f32.mrb[0].mxu0
        %v3048 = vadd.f32 %v2847, %v3047
        %3049 = vmatprep.mubr.bf16.mxu0 %v1627
        %3050 = vmatmul.mubr.bf16.gmra.mrb[0].mxu0 %v1626
        %v3051 = vpop.f32.mrb[0].mxu0
        %v3052 = vadd.f32 %v2851, %v3051
        %v3053 = vpop.f32.mrb[0].mxu0
        %v3054 = vadd.f32 %v2853, %v3053
        %v3055 = vpop.f32.mrb[0].mxu0
        %v3056 = vadd.f32 %v2855, %v3055
        %v3057 = vpop.f32.mrb[0].mxu0
        %v3058 = vadd.f32 %v2857, %v3057
        %3059 = vmatprep.mubr.bf16.mxu0 %v1633
        %3060 = vmatmul.mubr.bf16.gmra.mrb[0].mxu0 %v1632
        %v3061 = vpop.f32.mrb[0].mxu0
        %v3062 = vadd.f32 %v2861, %v3061
        %v3063 = vpop.f32.mrb[0].mxu0
        %v3064 = vadd.f32 %v2863, %v3063
        %v3065 = vpop.f32.mrb[0].mxu0
        %v3066 = vadd.f32 %v2865, %v3065
        %v3067 = vpop.f32.mrb[0].mxu0
        %v3068 = vadd.f32 %v2867, %v3067
        %3069 = vmatprep.mubr.bf16.mxu0 %v1639
        %3070 = vmatmul.mubr.bf16.gmra.mrb[0].mxu0 %v1638
        %v3071 = vpop.f32.mrb[0].mxu0
        %v3072 = vadd.f32 %v2871, %v3071
        %v3073 = vpop.f32.mrb[0].mxu0
        %v3074 = vadd.f32 %v2873, %v3073
        %v3075 = vpop.f32.mrb[0].mxu0
        %v3076 = vadd.f32 %v2875, %v3075
        %v3077 = vpop.f32.mrb[0].mxu0
        %v3078 = vadd.f32 %v2877, %v3077
        %3079 = vmatprep.mubr.bf16.mxu0 %v1645
        %3080 = vmatmul.mubr.bf16.gmra.mrb[0].mxu0 %v1644
        %v3081 = vpop.f32.mrb[0].mxu0
        %v3082 = vadd.f32 %v2881, %v3081
        %v3083 = vpop.f32.mrb[0].mxu0
        %v3084 = vadd.f32 %v2883, %v3083
        %v3085 = vpop.f32.mrb[0].mxu0
        %v3086 = vadd.f32 %v2885, %v3085
        %v3087 = vpop.f32.mrb[0].mxu0
        %v3088 = vadd.f32 %v2887, %v3087
        %3089 = vmatprep.mubr.bf16.mxu0 %v1651
        %3090 = vmatmul.mubr.bf16.gmra.mrb[0].mxu0 %v1650
        %v3091 = vpop.f32.mrb[0].mxu0
        %v3092 = vadd.f32 %v2891, %v3091
        %v3093 = vpop.f32.mrb[0].mxu0
        %v3094 = vadd.f32 %v2893, %v3093
        %v3095 = vpop.f32.mrb[0].mxu0
        %v3096 = vadd.f32 %v2895, %v3095
        %v3097 = vpop.f32.mrb[0].mxu0
        %v3098 = vadd.f32 %v2897, %v3097
        %3099 = vmatprep.mubr.bf16.mxu0 %v1657
        %3100 = vmatmul.mubr.bf16.gmra.mrb[0].mxu0 %v1656
        %v3101 = vpop.f32.mrb[0].mxu0
        %v3102 = vadd.f32 %v2901, %v3101
        %v3103 = vpop.f32.mrb[0].mxu0
        %v3104 = vadd.f32 %v2903, %v3103
        %v3105 = vpop.f32.mrb[0].mxu0
        %v3106 = vadd.f32 %v2905, %v3105
        %v3107 = vpop.f32.mrb[0].mxu0
        %v3108 = vadd.f32 %v2907, %v3107
        %3109 = vmatprep.mubr.bf16.mxu0 %v1663
        %3110 = vmatmul.mubr.bf16.gmra.mrb[0].mxu0 %v1662
        %v3111 = vpop.f32.mrb[0].mxu0
        %v3112 = vadd.f32 %v2911, %v3111
        %v3113 = vpop.f32.mrb[0].mxu0
        %v3114 = vadd.f32 %v2913, %v3113
        %v3115 = vpop.f32.mrb[0].mxu0
        %v3116 = vadd.f32 %v2915, %v3115
        %v3117 = vpop.f32.mrb[0].mxu0
        %v3118 = vadd.f32 %v2917, %v3117
        %3119 = vmatprep.mubr.bf16.mxu0 %v1669
        %3120 = vmatmul.mubr.bf16.gmra.mrb[0].mxu0 %v1668
        %v3121 = vpop.f32.mrb[0].mxu0
        %v3122 = vadd.f32 %v2921, %v3121
        %v3123 = vpop.f32.mrb[0].mxu0
        %v3124 = vadd.f32 %v2923, %v3123
        %v3125 = vpop.f32.mrb[0].mxu0
        %v3126 = vadd.f32 %v2925, %v3125
        %v3127 = vpop.f32.mrb[0].mxu0
        %v3128 = vadd.f32 %v2927, %v3127
        %3129 = vmatprep.mubr.bf16.mxu0 %v1675
        %3130 = vmatmul.mubr.bf16.gmra.mrb[0].mxu0 %v1674
        %v3131 = vpop.f32.mrb[0].mxu0
        %v3132 = vadd.f32 %v2931, %v3131
        %v3133 = vpop.f32.mrb[0].mxu0
        %v3134 = vadd.f32 %v2933, %v3133
        %v3135 = vpop.f32.mrb[0].mxu0
        %v3136 = vadd.f32 %v2935, %v3135
        %v3137 = vpop.f32.mrb[0].mxu0
        %v3138 = vadd.f32 %v2937, %v3137
        %3139 = vmatprep.mubr.bf16.mxu0 %v1681
        %3140 = vmatmul.mubr.bf16.gmra.mrb[0].mxu0 %v1680
        %v3141 = vpop.f32.mrb[0].mxu0
        %v3142 = vadd.f32 %v2941, %v3141
        %v3143 = vpop.f32.mrb[0].mxu0
        %v3144 = vadd.f32 %v2943, %v3143
        %v3145 = vpop.f32.mrb[0].mxu0
        %v3146 = vpop.f32.mrb[0].mxu0
        %3147 = vdwg.mxu0
        %3148 = vmatprep.subr.bf16.mxu0 %v2491
        %3149 = vmatpush1.bf16.msra.mxu0 %v2490
        %3150 = vmatprep.subr.bf16.mxu0 %v2495
        %3151 = vmatpush1.bf16.msra.mxu0 %v2494
        %3152 = vmatprep.subr.bf16.mxu0 %v2499
        %3153 = vmatpush1.bf16.msra.mxu0 %v2498
        %3154 = vmatprep.subr.bf16.mxu0 %v2503
        %3155 = vmatpush1.bf16.msra.mxu0 %v2502
        %3156 = vmatprep.subr.bf16.mxu0 %v2507
        %3157 = vmatpush1.bf16.msra.mxu0 %v2506
        %3158 = vmatprep.subr.bf16.mxu0 %v2511
        %3159 = vmatpush1.bf16.msra.mxu0 %v2510
        %3160 = vmatprep.subr.bf16.mxu0 %v2515
        %3161 = vmatpush1.bf16.msra.mxu0 %v2514
        %3162 = vmatprep.subr.bf16.mxu0 %v2519
        %3163 = vmatpush1.bf16.msra.mxu0 %v2518
        %3164 = vmatprep.subr.bf16.mxu0 %v2523
        %3165 = vmatpush1.bf16.msra.mxu0 %v2522
        %3166 = vmatprep.subr.bf16.mxu0 %v2527
        %3167 = vmatpush1.bf16.msra.mxu0 %v2526
        %3168 = vmatprep.subr.bf16.mxu0 %v2531
        %3169 = vmatpush1.bf16.msra.mxu0 %v2530
        %3170 = vmatprep.subr.bf16.mxu0 %v2535
        %3171 = vmatpush1.bf16.msra.mxu0 %v2534
        %3172 = vmatprep.subr.bf16.mxu0 %v2539
        %3173 = vmatpush1.bf16.msra.mxu0 %v2538
        %3174 = vmatprep.subr.bf16.mxu0 %v2543
        %3175 = vmatpush1.bf16.msra.mxu0 %v2542
        %3176 = vmatprep.subr.bf16.mxu0 %v2547
        %3177 = vmatpush1.bf16.msra.mxu0 %v2546
        %3178 = vmatprep.subr.bf16.mxu0 %v2551
        %3179 = vmatpush1.bf16.msra.mxu0 %v2550
        %3180 = vmatprep.mubr.bf16.mxu0 %v1587
        %3181 = vmatmul.mubr.bf16.gmra.mrb[0].mxu0 %v1586
        %v3182 = vpop.f32.mrb[0].mxu0
        %v3183 = vadd.f32 %v2982, %v3182
        %v3184 = vpop.f32.mrb[0].mxu0
        %v3185 = vadd.f32 %v2984, %v3184
        %v3186 = vpop.f32.mrb[0].mxu0
        %v3187 = vadd.f32 %v2986, %v3186
        %v3188 = vpop.f32.mrb[0].mxu0
        %v3189 = vadd.f32 %v2988, %v3188
        %3190 = vmatprep.mubr.bf16.mxu0 %v1593
        %3191 = vmatmul.mubr.bf16.gmra.mrb[0].mxu0 %v1592
        %v3192 = vpop.f32.mrb[0].mxu0
        %v3193 = vadd.f32 %v2992, %v3192
        %v3194 = vpop.f32.mrb[0].mxu0
        %v3195 = vadd.f32 %v2994, %v3194
        %v3196 = vpop.f32.mrb[0].mxu0
        %v3197 = vadd.f32 %v2996, %v3196
        %v3198 = vpop.f32.mrb[0].mxu0
        %v3199 = vadd.f32 %v2998, %v3198
        %3200 = vmatprep.mubr.bf16.mxu0 %v1599
        %3201 = vmatmul.mubr.bf16.gmra.mrb[0].mxu0 %v1598
        %v3202 = vpop.f32.mrb[0].mxu0
        %v3203 = vadd.f32 %v3002, %v3202
        %v3204 = vpop.f32.mrb[0].mxu0
        %v3205 = vadd.f32 %v3004, %v3204
        %v3206 = vpop.f32.mrb[0].mxu0
        %v3207 = vadd.f32 %v3006, %v3206
        %v3208 = vpop.f32.mrb[0].mxu0
        %v3209 = vadd.f32 %v3008, %v3208
        %3210 = vmatprep.mubr.bf16.mxu0 %v1605
        %3211 = vmatmul.mubr.bf16.gmra.mrb[0].mxu0 %v1604
        %v3212 = vpop.f32.mrb[0].mxu0
        %v3213 = vadd.f32 %v3012, %v3212
        %v3214 = vpop.f32.mrb[0].mxu0
        %v3215 = vadd.f32 %v3014, %v3214
        %v3216 = vpop.f32.mrb[0].mxu0
        %v3217 = vadd.f32 %v3016, %v3216
        %v3218 = vpop.f32.mrb[0].mxu0
        %v3219 = vadd.f32 %v3018, %v3218
        %3220 = vmatprep.mubr.bf16.mxu0 %v1611
        %3221 = vmatmul.mubr.bf16.gmra.mrb[0].mxu0 %v1610
        %v3222 = vpop.f32.mrb[0].mxu0
        %v3223 = vadd.f32 %v3022, %v3222
        %v3224 = vpop.f32.mrb[0].mxu0
        %v3225 = vadd.f32 %v3024, %v3224
        %v3226 = vpop.f32.mrb[0].mxu0
        %v3227 = vadd.f32 %v3026, %v3226
        %v3228 = vpop.f32.mrb[0].mxu0
        %v3229 = vadd.f32 %v3028, %v3228
        %3230 = vmatprep.mubr.bf16.mxu0 %v1617
        %3231 = vmatmul.mubr.bf16.gmra.mrb[0].mxu0 %v1616
        %v3232 = vpop.f32.mrb[0].mxu0
        %v3233 = vadd.f32 %v3032, %v3232
        %v3234 = vpop.f32.mrb[0].mxu0
        %v3235 = vadd.f32 %v3034, %v3234
        %v3236 = vpop.f32.mrb[0].mxu0
        %v3237 = vadd.f32 %v3036, %v3236
        %v3238 = vpop.f32.mrb[0].mxu0
        %v3239 = vadd.f32 %v3038, %v3238
        %3240 = vmatprep.mubr.bf16.mxu0 %v1623
        %3241 = vmatmul.mubr.bf16.gmra.mrb[0].mxu0 %v1622
        %v3242 = vpop.f32.mrb[0].mxu0
        %v3243 = vadd.f32 %v3042, %v3242
        %v3244 = vpop.f32.mrb[0].mxu0
        %v3245 = vadd.f32 %v3044, %v3244
        %v3246 = vpop.f32.mrb[0].mxu0
        %v3247 = vadd.f32 %v3046, %v3246
        %v3248 = vpop.f32.mrb[0].mxu0
        %v3249 = vadd.f32 %v3048, %v3248
        %3250 = vmatprep.mubr.bf16.mxu0 %v1629
        %3251 = vmatmul.mubr.bf16.gmra.mrb[0].mxu0 %v1628
        %v3252 = vpop.f32.mrb[0].mxu0
        %v3253 = vadd.f32 %v3052, %v3252
        %v3254 = vpop.f32.mrb[0].mxu0
        %v3255 = vadd.f32 %v3054, %v3254
        %v3256 = vpop.f32.mrb[0].mxu0
        %v3257 = vadd.f32 %v3056, %v3256
        %v3258 = vpop.f32.mrb[0].mxu0
        %v3259 = vadd.f32 %v3058, %v3258
        %3260 = vmatprep.mubr.bf16.mxu0 %v1635
        %3261 = vmatmul.mubr.bf16.gmra.mrb[0].mxu0 %v1634
        %v3262 = vpop.f32.mrb[0].mxu0
        %v3263 = vadd.f32 %v3062, %v3262
        %v3264 = vpop.f32.mrb[0].mxu0
        %v3265 = vadd.f32 %v3064, %v3264
        %v3266 = vpop.f32.mrb[0].mxu0
        %v3267 = vadd.f32 %v3066, %v3266
        %v3268 = vpop.f32.mrb[0].mxu0
        %v3269 = vadd.f32 %v3068, %v3268
        %3270 = vmatprep.mubr.bf16.mxu0 %v1641
        %3271 = vmatmul.mubr.bf16.gmra.mrb[0].mxu0 %v1640
        %v3272 = vpop.f32.mrb[0].mxu0
        %v3273 = vadd.f32 %v3072, %v3272
        %v3274 = vpop.f32.mrb[0].mxu0
        %v3275 = vadd.f32 %v3074, %v3274
        %v3276 = vpop.f32.mrb[0].mxu0
        %v3277 = vadd.f32 %v3076, %v3276
        %v3278 = vpop.f32.mrb[0].mxu0
        %v3279 = vadd.f32 %v3078, %v3278
        %3280 = vmatprep.mubr.bf16.mxu0 %v1647
        %3281 = vmatmul.mubr.bf16.gmra.mrb[0].mxu0 %v1646
        %v3282 = vpop.f32.mrb[0].mxu0
        %v3283 = vadd.f32 %v3082, %v3282
        %v3284 = vpop.f32.mrb[0].mxu0
        %v3285 = vadd.f32 %v3084, %v3284
        %v3286 = vpop.f32.mrb[0].mxu0
        %v3287 = vadd.f32 %v3086, %v3286
        %v3288 = vpop.f32.mrb[0].mxu0
        %v3289 = vadd.f32 %v3088, %v3288
        %3290 = vmatprep.mubr.bf16.mxu0 %v1653
        %3291 = vmatmul.mubr.bf16.gmra.mrb[0].mxu0 %v1652
        %v3292 = vpop.f32.mrb[0].mxu0
        %v3293 = vadd.f32 %v3092, %v3292
        %v3294 = vpop.f32.mrb[0].mxu0
        %v3295 = vadd.f32 %v3094, %v3294
        %v3296 = vpop.f32.mrb[0].mxu0
        %v3297 = vadd.f32 %v3096, %v3296
        %v3298 = vpop.f32.mrb[0].mxu0
        %v3299 = vadd.f32 %v3098, %v3298
        %3300 = vmatprep.mubr.bf16.mxu0 %v1659
        %3301 = vmatmul.mubr.bf16.gmra.mrb[0].mxu0 %v1658
        %v3302 = vpop.f32.mrb[0].mxu0
        %v3303 = vadd.f32 %v3102, %v3302
        %v3304 = vpop.f32.mrb[0].mxu0
        %v3305 = vadd.f32 %v3104, %v3304
        %v3306 = vpop.f32.mrb[0].mxu0
        %v3307 = vadd.f32 %v3106, %v3306
        %v3308 = vpop.f32.mrb[0].mxu0
        %v3309 = vadd.f32 %v3108, %v3308
        %3310 = vmatprep.mubr.bf16.mxu0 %v1665
        %3311 = vmatmul.mubr.bf16.gmra.mrb[0].mxu0 %v1664
        %v3312 = vpop.f32.mrb[0].mxu0
        %v3313 = vadd.f32 %v3112, %v3312
        %v3314 = vpop.f32.mrb[0].mxu0
        %v3315 = vadd.f32 %v3114, %v3314
        %v3316 = vpop.f32.mrb[0].mxu0
        %v3317 = vadd.f32 %v3116, %v3316
        %v3318 = vpop.f32.mrb[0].mxu0
        %v3319 = vadd.f32 %v3118, %v3318
        %3320 = vmatprep.mubr.bf16.mxu0 %v1671
        %3321 = vmatmul.mubr.bf16.gmra.mrb[0].mxu0 %v1670
        %v3322 = vpop.f32.mrb[0].mxu0
        %v3323 = vadd.f32 %v3122, %v3322
        %v3324 = vpop.f32.mrb[0].mxu0
        %v3325 = vadd.f32 %v3124, %v3324
        %v3326 = vpop.f32.mrb[0].mxu0
        %v3327 = vadd.f32 %v3126, %v3326
        %v3328 = vpop.f32.mrb[0].mxu0
        %v3329 = vadd.f32 %v3128, %v3328
        %3330 = vmatprep.mubr.bf16.mxu0 %v1677
        %3331 = vmatmul.mubr.bf16.gmra.mrb[0].mxu0 %v1676
        %v3332 = vpop.f32.mrb[0].mxu0
        %v3333 = vadd.f32 %v3132, %v3332
        %v3334 = vpop.f32.mrb[0].mxu0
        %v3335 = vadd.f32 %v3134, %v3334
        %v3336 = vpop.f32.mrb[0].mxu0
        %v3337 = vadd.f32 %v3136, %v3336
        %v3338 = vpop.f32.mrb[0].mxu0
        %v3339 = vadd.f32 %v3138, %v3338
        %3340 = vmatprep.mubr.bf16.mxu0 %v1683
        %3341 = vmatmul.mubr.bf16.gmra.mrb[0].mxu0 %v1682
        %v3342 = vpop.f32.mrb[0].mxu0
        %v3343 = vadd.f32 %v3142, %v3342
        %v3344 = vpop.f32.mrb[0].mxu0
        %v3345 = vadd.f32 %v3144, %v3344
        %v3346 = vpop.f32.mrb[0].mxu0
        %v3347 = vpop.f32.mrb[0].mxu0
        %3348 = vdwg.mxu0
        %3349 = vmatprep.subr.bf16.mxu0 %v2365
        %3350 = vmatpush1.bf16.msra.mxu0 %v2364
        %3351 = vmatprep.subr.bf16.mxu0 %v2369
        %3352 = vmatpush1.bf16.msra.mxu0 %v2368
        %3353 = vmatprep.subr.bf16.mxu0 %v2373
        %3354 = vmatpush1.bf16.msra.mxu0 %v2372
        %3355 = vmatprep.subr.bf16.mxu0 %v2377
        %3356 = vmatpush1.bf16.msra.mxu0 %v2376
        %3357 = vmatprep.subr.bf16.mxu0 %v2381
        %3358 = vmatpush1.bf16.msra.mxu0 %v2380
        %3359 = vmatprep.subr.bf16.mxu0 %v2385
        %3360 = vmatpush1.bf16.msra.mxu0 %v2384
        %3361 = vmatprep.subr.bf16.mxu0 %v2389
        %3362 = vmatpush1.bf16.msra.mxu0 %v2388
        %3363 = vmatprep.subr.bf16.mxu0 %v2393
        %3364 = vmatpush1.bf16.msra.mxu0 %v2392
        %3365 = vmatprep.subr.bf16.mxu0 %v2397
        %3366 = vmatpush1.bf16.msra.mxu0 %v2396
        %3367 = vmatprep.subr.bf16.mxu0 %v2401
        %3368 = vmatpush1.bf16.msra.mxu0 %v2400
        %3369 = vmatprep.subr.bf16.mxu0 %v2405
        %3370 = vmatpush1.bf16.msra.mxu0 %v2404
        %3371 = vmatprep.subr.bf16.mxu0 %v2409
        %3372 = vmatpush1.bf16.msra.mxu0 %v2408
        %3373 = vmatprep.subr.bf16.mxu0 %v2413
        %3374 = vmatpush1.bf16.msra.mxu0 %v2412
        %3375 = vmatprep.subr.bf16.mxu0 %v2417
        %3376 = vmatpush1.bf16.msra.mxu0 %v2416
        %3377 = vmatprep.subr.bf16.mxu0 %v2421
        %3378 = vmatpush1.bf16.msra.mxu0 %v2420
        %3379 = vmatprep.subr.bf16.mxu0 %v2425
        %3380 = vmatpush1.bf16.msra.mxu0 %v2424
        %3381 = vmatprep.mubr.bf16.mxu0 %v1583
        %3382 = vmatmul.mubr.bf16.gmra.mrb[0].mxu0 %v1582
        %v3383 = vpop.f32.mrb[0].mxu0
        %v3384 = vadd.f32 %v1276, %v3383
        %v3385 = vpop.f32.mrb[0].mxu0
        %v3386 = vadd.f32 %v1280, %v3385
        %v3387 = vpop.f32.mrb[0].mxu0
        %v3388 = vadd.f32 %v1276, %v3387
        %v3389 = vpop.f32.mrb[0].mxu0
        %v3390 = vadd.f32 %v1280, %v3389
        %3391 = vmatprep.mubr.bf16.mxu0 %v1589
        %3392 = vmatmul.mubr.bf16.gmra.mrb[0].mxu0 %v1588
        %v3393 = vpop.f32.mrb[0].mxu0
        %v3394 = vadd.f32 %v1276, %v3393
        %v3395 = vpop.f32.mrb[0].mxu0
        %v3396 = vadd.f32 %v1280, %v3395
        %v3397 = vpop.f32.mrb[0].mxu0
        %v3398 = vadd.f32 %v1276, %v3397
        %v3399 = vpop.f32.mrb[0].mxu0
        %v3400 = vadd.f32 %v1280, %v3399
        %3401 = vmatprep.mubr.bf16.mxu0 %v1595
        %3402 = vmatmul.mubr.bf16.gmra.mrb[0].mxu0 %v1594
        %v3403 = vpop.f32.mrb[0].mxu0
        %v3404 = vadd.f32 %v1276, %v3403
        %v3405 = vpop.f32.mrb[0].mxu0
        %v3406 = vadd.f32 %v1280, %v3405
        %v3407 = vpop.f32.mrb[0].mxu0
        %v3408 = vadd.f32 %v1276, %v3407
        %v3409 = vpop.f32.mrb[0].mxu0
        %v3410 = vadd.f32 %v1280, %v3409
        %3411 = vmatprep.mubr.bf16.mxu0 %v1601
        %3412 = vmatmul.mubr.bf16.gmra.mrb[0].mxu0 %v1600
        %v3413 = vpop.f32.mrb[0].mxu0
        %v3414 = vadd.f32 %v1276, %v3413
        %v3415 = vpop.f32.mrb[0].mxu0
        %v3416 = vadd.f32 %v1280, %v3415
        %v3417 = vpop.f32.mrb[0].mxu0
        %v3418 = vadd.f32 %v1276, %v3417
        %v3419 = vpop.f32.mrb[0].mxu0
        %v3420 = vadd.f32 %v1280, %v3419
        %3421 = vmatprep.mubr.bf16.mxu0 %v1607
        %3422 = vmatmul.mubr.bf16.gmra.mrb[0].mxu0 %v1606
        %v3423 = vpop.f32.mrb[0].mxu0
        %v3424 = vadd.f32 %v1276, %v3423
        %v3425 = vpop.f32.mrb[0].mxu0
        %v3426 = vadd.f32 %v1280, %v3425
        %v3427 = vpop.f32.mrb[0].mxu0
        %v3428 = vadd.f32 %v1276, %v3427
        %v3429 = vpop.f32.mrb[0].mxu0
        %v3430 = vadd.f32 %v1280, %v3429
        %3431 = vmatprep.mubr.bf16.mxu0 %v1613
        %3432 = vmatmul.mubr.bf16.gmra.mrb[0].mxu0 %v1612
        %v3433 = vpop.f32.mrb[0].mxu0
        %v3434 = vadd.f32 %v1276, %v3433
        %v3435 = vpop.f32.mrb[0].mxu0
        %v3436 = vadd.f32 %v1280, %v3435
        %v3437 = vpop.f32.mrb[0].mxu0
        %v3438 = vadd.f32 %v1276, %v3437
        %v3439 = vpop.f32.mrb[0].mxu0
        %v3440 = vadd.f32 %v1280, %v3439
        %3441 = vmatprep.mubr.bf16.mxu0 %v1619
        %3442 = vmatmul.mubr.bf16.gmra.mrb[0].mxu0 %v1618
        %v3443 = vpop.f32.mrb[0].mxu0
        %v3444 = vadd.f32 %v1276, %v3443
        %v3445 = vpop.f32.mrb[0].mxu0
        %v3446 = vadd.f32 %v1280, %v3445
        %v3447 = vpop.f32.mrb[0].mxu0
        %v3448 = vadd.f32 %v1276, %v3447
        %v3449 = vpop.f32.mrb[0].mxu0
        %v3450 = vadd.f32 %v1280, %v3449
        %3451 = vmatprep.mubr.bf16.mxu0 %v1625
        %3452 = vmatmul.mubr.bf16.gmra.mrb[0].mxu0 %v1624
        %v3453 = vpop.f32.mrb[0].mxu0
        %v3454 = vadd.f32 %v1276, %v3453
        %v3455 = vpop.f32.mrb[0].mxu0
        %v3456 = vadd.f32 %v1280, %v3455
        %v3457 = vpop.f32.mrb[0].mxu0
        %v3458 = vadd.f32 %v1276, %v3457
        %v3459 = vpop.f32.mrb[0].mxu0
        %v3460 = vadd.f32 %v1280, %v3459
        %3461 = vmatprep.mubr.bf16.mxu0 %v1631
        %3462 = vmatmul.mubr.bf16.gmra.mrb[0].mxu0 %v1630
        %v3463 = vpop.f32.mrb[0].mxu0
        %v3464 = vadd.f32 %v1276, %v3463
        %v3465 = vpop.f32.mrb[0].mxu0
        %v3466 = vadd.f32 %v1280, %v3465
        %v3467 = vpop.f32.mrb[0].mxu0
        %v3468 = vadd.f32 %v1276, %v3467
        %v3469 = vpop.f32.mrb[0].mxu0
        %v3470 = vadd.f32 %v1280, %v3469
        %3471 = vmatprep.mubr.bf16.mxu0 %v1637
        %3472 = vmatmul.mubr.bf16.gmra.mrb[0].mxu0 %v1636
        %v3473 = vpop.f32.mrb[0].mxu0
        %v3474 = vadd.f32 %v1276, %v3473
        %v3475 = vpop.f32.mrb[0].mxu0
        %v3476 = vadd.f32 %v1280, %v3475
        %v3477 = vpop.f32.mrb[0].mxu0
        %v3478 = vadd.f32 %v1276, %v3477
        %v3479 = vpop.f32.mrb[0].mxu0
        %v3480 = vadd.f32 %v1280, %v3479
        %3481 = vmatprep.mubr.bf16.mxu0 %v1643
        %3482 = vmatmul.mubr.bf16.gmra.mrb[0].mxu0 %v1642
        %v3483 = vpop.f32.mrb[0].mxu0
        %v3484 = vadd.f32 %v1276, %v3483
        %v3485 = vpop.f32.mrb[0].mxu0
        %v3486 = vadd.f32 %v1280, %v3485
        %v3487 = vpop.f32.mrb[0].mxu0
        %v3488 = vadd.f32 %v1276, %v3487
        %v3489 = vpop.f32.mrb[0].mxu0
        %v3490 = vadd.f32 %v1280, %v3489
        %3491 = vmatprep.mubr.bf16.mxu0 %v1649
        %3492 = vmatmul.mubr.bf16.gmra.mrb[0].mxu0 %v1648
        %v3493 = vpop.f32.mrb[0].mxu0
        %v3494 = vadd.f32 %v1276, %v3493
        %v3495 = vpop.f32.mrb[0].mxu0
        %v3496 = vadd.f32 %v1280, %v3495
        %v3497 = vpop.f32.mrb[0].mxu0
        %v3498 = vadd.f32 %v1276, %v3497
        %v3499 = vpop.f32.mrb[0].mxu0
        %v3500 = vadd.f32 %v1280, %v3499
        %3501 = vmatprep.mubr.bf16.mxu0 %v1655
        %3502 = vmatmul.mubr.bf16.gmra.mrb[0].mxu0 %v1654
        %v3503 = vpop.f32.mrb[0].mxu0
        %v3504 = vadd.f32 %v1276, %v3503
        %v3505 = vpop.f32.mrb[0].mxu0
        %v3506 = vadd.f32 %v1280, %v3505
        %v3507 = vpop.f32.mrb[0].mxu0
        %v3508 = vadd.f32 %v1276, %v3507
        %v3509 = vpop.f32.mrb[0].mxu0
        %v3510 = vadd.f32 %v1280, %v3509
        %3511 = vmatprep.mubr.bf16.mxu0 %v1661
        %3512 = vmatmul.mubr.bf16.gmra.mrb[0].mxu0 %v1660
        %v3513 = vpop.f32.mrb[0].mxu0
        %v3514 = vadd.f32 %v1276, %v3513
        %v3515 = vpop.f32.mrb[0].mxu0
        %v3516 = vadd.f32 %v1280, %v3515
        %v3517 = vpop.f32.mrb[0].mxu0
        %v3518 = vadd.f32 %v1276, %v3517
        %v3519 = vpop.f32.mrb[0].mxu0
        %v3520 = vadd.f32 %v1280, %v3519
        %3521 = vmatprep.mubr.bf16.mxu0 %v1667
        %3522 = vmatmul.mubr.bf16.gmra.mrb[0].mxu0 %v1666
        %v3523 = vpop.f32.mrb[0].mxu0
        %v3524 = vadd.f32 %v1276, %v3523
        %v3525 = vpop.f32.mrb[0].mxu0
        %v3526 = vadd.f32 %v1280, %v3525
        %v3527 = vpop.f32.mrb[0].mxu0
        %v3528 = vadd.f32 %v1276, %v3527
        %v3529 = vpop.f32.mrb[0].mxu0
        %v3530 = vadd.f32 %v1280, %v3529
        %3531 = vmatprep.mubr.bf16.mxu0 %v1673
        %3532 = vmatmul.mubr.bf16.gmra.mrb[0].mxu0 %v1672
        %v3533 = vpop.f32.mrb[0].mxu0
        %v3534 = vadd.f32 %v1276, %v3533
        %v3535 = vpop.f32.mrb[0].mxu0
        %v3536 = vadd.f32 %v1280, %v3535
        %v3537 = vpop.f32.mrb[0].mxu0
        %v3538 = vadd.f32 %v1276, %v3537
        %v3539 = vpop.f32.mrb[0].mxu0
        %v3540 = vadd.f32 %v1280, %v3539
        %3541 = vmatprep.mubr.bf16.mxu0 %v1679
        %3542 = vmatmul.mubr.bf16.gmra.mrb[0].mxu0 %v1678
        %v3543 = vpop.f32.mrb[0].mxu0
        %v3544 = vadd.f32 %v1276, %v3543
        %v3545 = vpop.f32.mrb[0].mxu0
        %v3546 = vadd.f32 %v1280, %v3545
        %v3547 = vpop.f32.mrb[0].mxu0
        %v3548 = vpop.f32.mrb[0].mxu0
        %3549 = vdwg.mxu0
        %3550 = vmatprep.subr.bf16.mxu0 %v2429
        %3551 = vmatpush1.bf16.msra.mxu0 %v2428
        %3552 = vmatprep.subr.bf16.mxu0 %v2433
        %3553 = vmatpush1.bf16.msra.mxu0 %v2432
        %3554 = vmatprep.subr.bf16.mxu0 %v2437
        %3555 = vmatpush1.bf16.msra.mxu0 %v2436
        %3556 = vmatprep.subr.bf16.mxu0 %v2441
        %3557 = vmatpush1.bf16.msra.mxu0 %v2440
        %3558 = vmatprep.subr.bf16.mxu0 %v2445
        %3559 = vmatpush1.bf16.msra.mxu0 %v2444
        %3560 = vmatprep.subr.bf16.mxu0 %v2449
        %3561 = vmatpush1.bf16.msra.mxu0 %v2448
        %3562 = vmatprep.subr.bf16.mxu0 %v2453
        %3563 = vmatpush1.bf16.msra.mxu0 %v2452
        %3564 = vmatprep.subr.bf16.mxu0 %v2457
        %3565 = vmatpush1.bf16.msra.mxu0 %v2456
        %3566 = vmatprep.subr.bf16.mxu0 %v2461
        %3567 = vmatpush1.bf16.msra.mxu0 %v2460
        %3568 = vmatprep.subr.bf16.mxu0 %v2465
        %3569 = vmatpush1.bf16.msra.mxu0 %v2464
        %3570 = vmatprep.subr.bf16.mxu0 %v2469
        %3571 = vmatpush1.bf16.msra.mxu0 %v2468
        %3572 = vmatprep.subr.bf16.mxu0 %v2473
        %3573 = vmatpush1.bf16.msra.mxu0 %v2472
        %3574 = vmatprep.subr.bf16.mxu0 %v2477
        %3575 = vmatpush1.bf16.msra.mxu0 %v2476
        %3576 = vmatprep.subr.bf16.mxu0 %v2481
        %3577 = vmatpush1.bf16.msra.mxu0 %v2480
        %3578 = vmatprep.subr.bf16.mxu0 %v2485
        %3579 = vmatpush1.bf16.msra.mxu0 %v2484
        %3580 = vmatprep.subr.bf16.mxu0 %v2489
        %3581 = vmatpush1.bf16.msra.mxu0 %v2488
        %3582 = vmatprep.mubr.bf16.mxu0 %v1585
        %3583 = vmatmul.mubr.bf16.gmra.mrb[0].mxu0 %v1584
        %v3584 = vpop.f32.mrb[0].mxu0
        %v3585 = vadd.f32 %v3384, %v3584
        %v3586 = vpop.f32.mrb[0].mxu0
        %v3587 = vadd.f32 %v3386, %v3586
        %v3588 = vpop.f32.mrb[0].mxu0
        %v3589 = vadd.f32 %v3388, %v3588
        %v3590 = vpop.f32.mrb[0].mxu0
        %v3591 = vadd.f32 %v3390, %v3590
        %3592 = vmatprep.mubr.bf16.mxu0 %v1591
        %3593 = vmatmul.mubr.bf16.gmra.mrb[0].mxu0 %v1590
        %v3594 = vpop.f32.mrb[0].mxu0
        %v3595 = vadd.f32 %v3394, %v3594
        %v3596 = vpop.f32.mrb[0].mxu0
        %v3597 = vadd.f32 %v3396, %v3596
        %v3598 = vpop.f32.mrb[0].mxu0
        %v3599 = vadd.f32 %v3398, %v3598
        %v3600 = vpop.f32.mrb[0].mxu0
        %v3601 = vadd.f32 %v3400, %v3600
        %3602 = vmatprep.mubr.bf16.mxu0 %v1597
        %3603 = vmatmul.mubr.bf16.gmra.mrb[0].mxu0 %v1596
        %v3604 = vpop.f32.mrb[0].mxu0
        %v3605 = vadd.f32 %v3404, %v3604
        %v3606 = vpop.f32.mrb[0].mxu0
        %v3607 = vadd.f32 %v3406, %v3606
        %v3608 = vpop.f32.mrb[0].mxu0
        %v3609 = vadd.f32 %v3408, %v3608
        %v3610 = vpop.f32.mrb[0].mxu0
        %v3611 = vadd.f32 %v3410, %v3610
        %3612 = vmatprep.mubr.bf16.mxu0 %v1603
        %3613 = vmatmul.mubr.bf16.gmra.mrb[0].mxu0 %v1602
        %v3614 = vpop.f32.mrb[0].mxu0
        %v3615 = vadd.f32 %v3414, %v3614
        %v3616 = vpop.f32.mrb[0].mxu0
        %v3617 = vadd.f32 %v3416, %v3616
        %v3618 = vpop.f32.mrb[0].mxu0
        %v3619 = vadd.f32 %v3418, %v3618
        %v3620 = vpop.f32.mrb[0].mxu0
        %v3621 = vadd.f32 %v3420, %v3620
        %3622 = vmatprep.mubr.bf16.mxu0 %v1609
        %3623 = vmatmul.mubr.bf16.gmra.mrb[0].mxu0 %v1608
        %v3624 = vpop.f32.mrb[0].mxu0
        %v3625 = vadd.f32 %v3424, %v3624
        %v3626 = vpop.f32.mrb[0].mxu0
        %v3627 = vadd.f32 %v3426, %v3626
        %v3628 = vpop.f32.mrb[0].mxu0
        %v3629 = vadd.f32 %v3428, %v3628
        %v3630 = vpop.f32.mrb[0].mxu0
        %v3631 = vadd.f32 %v3430, %v3630
        %3632 = vmatprep.mubr.bf16.mxu0 %v1615
        %3633 = vmatmul.mubr.bf16.gmra.mrb[0].mxu0 %v1614
        %v3634 = vpop.f32.mrb[0].mxu0
        %v3635 = vadd.f32 %v3434, %v3634
        %v3636 = vpop.f32.mrb[0].mxu0
        %v3637 = vadd.f32 %v3436, %v3636
        %v3638 = vpop.f32.mrb[0].mxu0
        %v3639 = vadd.f32 %v3438, %v3638
        %v3640 = vpop.f32.mrb[0].mxu0
        %v3641 = vadd.f32 %v3440, %v3640
        %3642 = vmatprep.mubr.bf16.mxu0 %v1621
        %3643 = vmatmul.mubr.bf16.gmra.mrb[0].mxu0 %v1620
        %v3644 = vpop.f32.mrb[0].mxu0
        %v3645 = vadd.f32 %v3444, %v3644
        %v3646 = vpop.f32.mrb[0].mxu0
        %v3647 = vadd.f32 %v3446, %v3646
        %v3648 = vpop.f32.mrb[0].mxu0
        %v3649 = vadd.f32 %v3448, %v3648
        %v3650 = vpop.f32.mrb[0].mxu0
        %v3651 = vadd.f32 %v3450, %v3650
        %3652 = vmatprep.mubr.bf16.mxu0 %v1627
        %3653 = vmatmul.mubr.bf16.gmra.mrb[0].mxu0 %v1626
        %v3654 = vpop.f32.mrb[0].mxu0
        %v3655 = vadd.f32 %v3454, %v3654
        %v3656 = vpop.f32.mrb[0].mxu0
        %v3657 = vadd.f32 %v3456, %v3656
        %v3658 = vpop.f32.mrb[0].mxu0
        %v3659 = vadd.f32 %v3458, %v3658
        %v3660 = vpop.f32.mrb[0].mxu0
        %v3661 = vadd.f32 %v3460, %v3660
        %3662 = vmatprep.mubr.bf16.mxu0 %v1633
        %3663 = vmatmul.mubr.bf16.gmra.mrb[0].mxu0 %v1632
        %v3664 = vpop.f32.mrb[0].mxu0
        %v3665 = vadd.f32 %v3464, %v3664
        %v3666 = vpop.f32.mrb[0].mxu0
        %v3667 = vadd.f32 %v3466, %v3666
        %v3668 = vpop.f32.mrb[0].mxu0
        %v3669 = vadd.f32 %v3468, %v3668
        %v3670 = vpop.f32.mrb[0].mxu0
        %v3671 = vadd.f32 %v3470, %v3670
        %3672 = vmatprep.mubr.bf16.mxu0 %v1639
        %3673 = vmatmul.mubr.bf16.gmra.mrb[0].mxu0 %v1638
        %v3674 = vpop.f32.mrb[0].mxu0
        %v3675 = vadd.f32 %v3474, %v3674
        %v3676 = vpop.f32.mrb[0].mxu0
        %v3677 = vadd.f32 %v3476, %v3676
        %v3678 = vpop.f32.mrb[0].mxu0
        %v3679 = vadd.f32 %v3478, %v3678
        %v3680 = vpop.f32.mrb[0].mxu0
        %v3681 = vadd.f32 %v3480, %v3680
        %3682 = vmatprep.mubr.bf16.mxu0 %v1645
        %3683 = vmatmul.mubr.bf16.gmra.mrb[0].mxu0 %v1644
        %v3684 = vpop.f32.mrb[0].mxu0
        %v3685 = vadd.f32 %v3484, %v3684
        %v3686 = vpop.f32.mrb[0].mxu0
        %v3687 = vadd.f32 %v3486, %v3686
        %v3688 = vpop.f32.mrb[0].mxu0
        %v3689 = vadd.f32 %v3488, %v3688
        %v3690 = vpop.f32.mrb[0].mxu0
        %v3691 = vadd.f32 %v3490, %v3690
        %3692 = vmatprep.mubr.bf16.mxu0 %v1651
        %3693 = vmatmul.mubr.bf16.gmra.mrb[0].mxu0 %v1650
        %v3694 = vpop.f32.mrb[0].mxu0
        %v3695 = vadd.f32 %v3494, %v3694
        %v3696 = vpop.f32.mrb[0].mxu0
        %v3697 = vadd.f32 %v3496, %v3696
        %v3698 = vpop.f32.mrb[0].mxu0
        %v3699 = vadd.f32 %v3498, %v3698
        %v3700 = vpop.f32.mrb[0].mxu0
        %v3701 = vadd.f32 %v3500, %v3700
        %3702 = vmatprep.mubr.bf16.mxu0 %v1657
        %3703 = vmatmul.mubr.bf16.gmra.mrb[0].mxu0 %v1656
        %v3704 = vpop.f32.mrb[0].mxu0
        %v3705 = vadd.f32 %v3504, %v3704
        %v3706 = vpop.f32.mrb[0].mxu0
        %v3707 = vadd.f32 %v3506, %v3706
        %v3708 = vpop.f32.mrb[0].mxu0
        %v3709 = vadd.f32 %v3508, %v3708
        %v3710 = vpop.f32.mrb[0].mxu0
        %v3711 = vadd.f32 %v3510, %v3710
        %3712 = vmatprep.mubr.bf16.mxu0 %v1663
        %3713 = vmatmul.mubr.bf16.gmra.mrb[0].mxu0 %v1662
        %v3714 = vpop.f32.mrb[0].mxu0
        %v3715 = vadd.f32 %v3514, %v3714
        %v3716 = vpop.f32.mrb[0].mxu0
        %v3717 = vadd.f32 %v3516, %v3716
        %v3718 = vpop.f32.mrb[0].mxu0
        %v3719 = vadd.f32 %v3518, %v3718
        %v3720 = vpop.f32.mrb[0].mxu0
        %v3721 = vadd.f32 %v3520, %v3720
        %3722 = vmatprep.mubr.bf16.mxu0 %v1669
        %3723 = vmatmul.mubr.bf16.gmra.mrb[0].mxu0 %v1668
        %v3724 = vpop.f32.mrb[0].mxu0
        %v3725 = vadd.f32 %v3524, %v3724
        %v3726 = vpop.f32.mrb[0].mxu0
        %v3727 = vadd.f32 %v3526, %v3726
        %v3728 = vpop.f32.mrb[0].mxu0
        %v3729 = vadd.f32 %v3528, %v3728
        %v3730 = vpop.f32.mrb[0].mxu0
        %v3731 = vadd.f32 %v3530, %v3730
        %3732 = vmatprep.mubr.bf16.mxu0 %v1675
        %3733 = vmatmul.mubr.bf16.gmra.mrb[0].mxu0 %v1674
        %v3734 = vpop.f32.mrb[0].mxu0
        %v3735 = vadd.f32 %v3534, %v3734
        %v3736 = vpop.f32.mrb[0].mxu0
        %v3737 = vadd.f32 %v3536, %v3736
        %v3738 = vpop.f32.mrb[0].mxu0
        %v3739 = vadd.f32 %v3538, %v3738
        %v3740 = vpop.f32.mrb[0].mxu0
        %v3741 = vadd.f32 %v3540, %v3740
        %3742 = vmatprep.mubr.bf16.mxu0 %v1681
        %3743 = vmatmul.mubr.bf16.gmra.mrb[0].mxu0 %v1680
        %v3744 = vpop.f32.mrb[0].mxu0
        %v3745 = vadd.f32 %v3544, %v3744
        %v3746 = vpop.f32.mrb[0].mxu0
        %v3747 = vadd.f32 %v3546, %v3746
        %v3748 = vpop.f32.mrb[0].mxu0
        %v3749 = vpop.f32.mrb[0].mxu0
        %3750 = vdwg.mxu0
        %3751 = vmatprep.subr.bf16.mxu0 %v2493
        %3752 = vmatpush1.bf16.msra.mxu0 %v2492
        %3753 = vmatprep.subr.bf16.mxu0 %v2497
        %3754 = vmatpush1.bf16.msra.mxu0 %v2496
        %3755 = vmatprep.subr.bf16.mxu0 %v2501
        %3756 = vmatpush1.bf16.msra.mxu0 %v2500
        %3757 = vmatprep.subr.bf16.mxu0 %v2505
        %3758 = vmatpush1.bf16.msra.mxu0 %v2504
        %3759 = vmatprep.subr.bf16.mxu0 %v2509
        %3760 = vmatpush1.bf16.msra.mxu0 %v2508
        %3761 = vmatprep.subr.bf16.mxu0 %v2513
        %3762 = vmatpush1.bf16.msra.mxu0 %v2512
        %3763 = vmatprep.subr.bf16.mxu0 %v2517
        %3764 = vmatpush1.bf16.msra.mxu0 %v2516
        %3765 = vmatprep.subr.bf16.mxu0 %v2521
        %3766 = vmatpush1.bf16.msra.mxu0 %v2520
        %3767 = vmatprep.subr.bf16.mxu0 %v2525
        %3768 = vmatpush1.bf16.msra.mxu0 %v2524
        %3769 = vmatprep.subr.bf16.mxu0 %v2529
        %3770 = vmatpush1.bf16.msra.mxu0 %v2528
        %3771 = vmatprep.subr.bf16.mxu0 %v2533
        %3772 = vmatpush1.bf16.msra.mxu0 %v2532
        %3773 = vmatprep.subr.bf16.mxu0 %v2537
        %3774 = vmatpush1.bf16.msra.mxu0 %v2536
        %3775 = vmatprep.subr.bf16.mxu0 %v2541
        %3776 = vmatpush1.bf16.msra.mxu0 %v2540
        %3777 = vmatprep.subr.bf16.mxu0 %v2545
        %3778 = vmatpush1.bf16.msra.mxu0 %v2544
        %3779 = vmatprep.subr.bf16.mxu0 %v2549
        %3780 = vmatpush1.bf16.msra.mxu0 %v2548
        %3781 = vmatprep.subr.bf16.mxu0 %v2553
        %3782 = vmatpush1.bf16.msra.mxu0 %v2552
        %3783 = vmatprep.mubr.bf16.mxu0 %v1587
        %3784 = vmatmul.mubr.bf16.gmra.mrb[0].mxu0 %v1586
        %v3785 = vpop.f32.mrb[0].mxu0
        %v3786 = vadd.f32 %v3585, %v3785
        %v3787 = vpop.f32.mrb[0].mxu0
        %v3788 = vadd.f32 %v3587, %v3787
        %v3789 = vpop.f32.mrb[0].mxu0
        %v3790 = vadd.f32 %v3589, %v3789
        %v3791 = vpop.f32.mrb[0].mxu0
        %v3792 = vadd.f32 %v3591, %v3791
        %3793 = vmatprep.mubr.bf16.mxu0 %v1593
        %3794 = vmatmul.mubr.bf16.gmra.mrb[0].mxu0 %v1592
        %v3795 = vpop.f32.mrb[0].mxu0
        %v3796 = vadd.f32 %v3595, %v3795
        %v3797 = vpop.f32.mrb[0].mxu0
        %v3798 = vadd.f32 %v3597, %v3797
        %v3799 = vpop.f32.mrb[0].mxu0
        %v3800 = vadd.f32 %v3599, %v3799
        %v3801 = vpop.f32.mrb[0].mxu0
        %v3802 = vadd.f32 %v3601, %v3801
        %3803 = vmatprep.mubr.bf16.mxu0 %v1599
        %3804 = vmatmul.mubr.bf16.gmra.mrb[0].mxu0 %v1598
        %v3805 = vpop.f32.mrb[0].mxu0
        %v3806 = vadd.f32 %v3605, %v3805
        %v3807 = vpop.f32.mrb[0].mxu0
        %v3808 = vadd.f32 %v3607, %v3807
        %v3809 = vpop.f32.mrb[0].mxu0
        %v3810 = vadd.f32 %v3609, %v3809
        %v3811 = vpop.f32.mrb[0].mxu0
        %v3812 = vadd.f32 %v3611, %v3811
        %3813 = vmatprep.mubr.bf16.mxu0 %v1605
        %3814 = vmatmul.mubr.bf16.gmra.mrb[0].mxu0 %v1604
        %v3815 = vpop.f32.mrb[0].mxu0
        %v3816 = vadd.f32 %v3615, %v3815
        %v3817 = vpop.f32.mrb[0].mxu0
        %v3818 = vadd.f32 %v3617, %v3817
        %v3819 = vpop.f32.mrb[0].mxu0
        %v3820 = vadd.f32 %v3619, %v3819
        %v3821 = vpop.f32.mrb[0].mxu0
        %v3822 = vadd.f32 %v3621, %v3821
        %3823 = vmatprep.mubr.bf16.mxu0 %v1611
        %3824 = vmatmul.mubr.bf16.gmra.mrb[0].mxu0 %v1610
        %v3825 = vpop.f32.mrb[0].mxu0
        %v3826 = vadd.f32 %v3625, %v3825
        %v3827 = vpop.f32.mrb[0].mxu0
        %v3828 = vadd.f32 %v3627, %v3827
        %v3829 = vpop.f32.mrb[0].mxu0
        %v3830 = vadd.f32 %v3629, %v3829
        %v3831 = vpop.f32.mrb[0].mxu0
        %v3832 = vadd.f32 %v3631, %v3831
        %3833 = vmatprep.mubr.bf16.mxu0 %v1617
        %3834 = vmatmul.mubr.bf16.gmra.mrb[0].mxu0 %v1616
        %v3835 = vpop.f32.mrb[0].mxu0
        %v3836 = vadd.f32 %v3635, %v3835
        %v3837 = vpop.f32.mrb[0].mxu0
        %v3838 = vadd.f32 %v3637, %v3837
        %v3839 = vpop.f32.mrb[0].mxu0
        %v3840 = vadd.f32 %v3639, %v3839
        %v3841 = vpop.f32.mrb[0].mxu0
        %v3842 = vadd.f32 %v3641, %v3841
        %3843 = vmatprep.mubr.bf16.mxu0 %v1623
        %3844 = vmatmul.mubr.bf16.gmra.mrb[0].mxu0 %v1622
        %v3845 = vpop.f32.mrb[0].mxu0
        %v3846 = vadd.f32 %v3645, %v3845
        %v3847 = vpop.f32.mrb[0].mxu0
        %v3848 = vadd.f32 %v3647, %v3847
        %v3849 = vpop.f32.mrb[0].mxu0
        %v3850 = vadd.f32 %v3649, %v3849
        %v3851 = vpop.f32.mrb[0].mxu0
        %v3852 = vadd.f32 %v3651, %v3851
        %3853 = vmatprep.mubr.bf16.mxu0 %v1629
        %3854 = vmatmul.mubr.bf16.gmra.mrb[0].mxu0 %v1628
        %v3855 = vpop.f32.mrb[0].mxu0
        %v3856 = vadd.f32 %v3655, %v3855
        %v3857 = vpop.f32.mrb[0].mxu0
        %v3858 = vadd.f32 %v3657, %v3857
        %v3859 = vpop.f32.mrb[0].mxu0
        %v3860 = vadd.f32 %v3659, %v3859
        %v3861 = vpop.f32.mrb[0].mxu0
        %v3862 = vadd.f32 %v3661, %v3861
        %3863 = vmatprep.mubr.bf16.mxu0 %v1635
        %3864 = vmatmul.mubr.bf16.gmra.mrb[0].mxu0 %v1634
        %v3865 = vpop.f32.mrb[0].mxu0
        %v3866 = vadd.f32 %v3665, %v3865
        %v3867 = vpop.f32.mrb[0].mxu0
        %v3868 = vadd.f32 %v3667, %v3867
        %v3869 = vpop.f32.mrb[0].mxu0
        %v3870 = vadd.f32 %v3669, %v3869
        %v3871 = vpop.f32.mrb[0].mxu0
        %v3872 = vadd.f32 %v3671, %v3871
        %3873 = vmatprep.mubr.bf16.mxu0 %v1641
        %3874 = vmatmul.mubr.bf16.gmra.mrb[0].mxu0 %v1640
        %v3875 = vpop.f32.mrb[0].mxu0
        %v3876 = vadd.f32 %v3675, %v3875
        %v3877 = vpop.f32.mrb[0].mxu0
        %v3878 = vadd.f32 %v3677, %v3877
        %v3879 = vpop.f32.mrb[0].mxu0
        %v3880 = vadd.f32 %v3679, %v3879
        %v3881 = vpop.f32.mrb[0].mxu0
        %v3882 = vadd.f32 %v3681, %v3881
        %3883 = vmatprep.mubr.bf16.mxu0 %v1647
        %3884 = vmatmul.mubr.bf16.gmra.mrb[0].mxu0 %v1646
        %v3885 = vpop.f32.mrb[0].mxu0
        %v3886 = vadd.f32 %v3685, %v3885
        %v3887 = vpop.f32.mrb[0].mxu0
        %v3888 = vadd.f32 %v3687, %v3887
        %v3889 = vpop.f32.mrb[0].mxu0
        %v3890 = vadd.f32 %v3689, %v3889
        %v3891 = vpop.f32.mrb[0].mxu0
        %v3892 = vadd.f32 %v3691, %v3891
        %3893 = vmatprep.mubr.bf16.mxu0 %v1653
        %3894 = vmatmul.mubr.bf16.gmra.mrb[0].mxu0 %v1652
        %v3895 = vpop.f32.mrb[0].mxu0
        %v3896 = vadd.f32 %v3695, %v3895
        %v3897 = vpop.f32.mrb[0].mxu0
        %v3898 = vadd.f32 %v3697, %v3897
        %v3899 = vpop.f32.mrb[0].mxu0
        %v3900 = vadd.f32 %v3699, %v3899
        %v3901 = vpop.f32.mrb[0].mxu0
        %v3902 = vadd.f32 %v3701, %v3901
        %3903 = vmatprep.mubr.bf16.mxu0 %v1659
        %3904 = vmatmul.mubr.bf16.gmra.mrb[0].mxu0 %v1658
        %v3905 = vpop.f32.mrb[0].mxu0
        %v3906 = vadd.f32 %v3705, %v3905
        %v3907 = vpop.f32.mrb[0].mxu0
        %v3908 = vadd.f32 %v3707, %v3907
        %v3909 = vpop.f32.mrb[0].mxu0
        %v3910 = vadd.f32 %v3709, %v3909
        %v3911 = vpop.f32.mrb[0].mxu0
        %v3912 = vadd.f32 %v3711, %v3911
        %3913 = vmatprep.mubr.bf16.mxu0 %v1665
        %3914 = vmatmul.mubr.bf16.gmra.mrb[0].mxu0 %v1664
        %v3915 = vpop.f32.mrb[0].mxu0
        %v3916 = vadd.f32 %v3715, %v3915
        %v3917 = vpop.f32.mrb[0].mxu0
        %v3918 = vadd.f32 %v3717, %v3917
        %v3919 = vpop.f32.mrb[0].mxu0
        %v3920 = vadd.f32 %v3719, %v3919
        %v3921 = vpop.f32.mrb[0].mxu0
        %v3922 = vadd.f32 %v3721, %v3921
        %3923 = vmatprep.mubr.bf16.mxu0 %v1671
        %3924 = vmatmul.mubr.bf16.gmra.mrb[0].mxu0 %v1670
        %v3925 = vpop.f32.mrb[0].mxu0
        %v3926 = vadd.f32 %v3725, %v3925
        %v3927 = vpop.f32.mrb[0].mxu0
        %v3928 = vadd.f32 %v3727, %v3927
        %v3929 = vpop.f32.mrb[0].mxu0
        %v3930 = vadd.f32 %v3729, %v3929
        %v3931 = vpop.f32.mrb[0].mxu0
        %v3932 = vadd.f32 %v3731, %v3931
        %3933 = vmatprep.mubr.bf16.mxu0 %v1677
        %3934 = vmatmul.mubr.bf16.gmra.mrb[0].mxu0 %v1676
        %v3935 = vpop.f32.mrb[0].mxu0
        %v3936 = vadd.f32 %v3735, %v3935
        %v3937 = vpop.f32.mrb[0].mxu0
        %v3938 = vadd.f32 %v3737, %v3937
        %v3939 = vpop.f32.mrb[0].mxu0
        %v3940 = vadd.f32 %v3739, %v3939
        %v3941 = vpop.f32.mrb[0].mxu0
        %v3942 = vadd.f32 %v3741, %v3941
        %3943 = vmatprep.mubr.bf16.mxu0 %v1683
        %3944 = vmatmul.mubr.bf16.gmra.mrb[0].mxu0 %v1682
        %v3945 = vpop.f32.mrb[0].mxu0
        %v3946 = vadd.f32 %v3745, %v3945
        %v3947 = vpop.f32.mrb[0].mxu0
        %v3948 = vadd.f32 %v3747, %v3947
        %v3949 = vpop.f32.mrb[0].mxu0
        %v3950 = vpop.f32.mrb[0].mxu0
        %3951 = vdwg.mxu0
        %3952 = vst [vmem:[%s765] sm:$0xff] %v3183
        %3953 = vst [vmem:[%s765 + $0x8] sm:$0xff] %v3185
        %3954 = vst [vmem:[%s765 + $0x10] sm:$0xff] %v3786
        %3955 = vst [vmem:[%s765 + $0x18] sm:$0xff] %v3788
        %3956 = vst [vmem:[%s765 + $0x20] sm:$0xff] %v3187
        %3957 = vst [vmem:[%s765 + $0x28] sm:$0xff] %v3189
        %3958 = vst [vmem:[%s765 + $0x30] sm:$0xff] %v3790
        %3959 = vst [vmem:[%s765 + $0x38] sm:$0xff] %v3792
        %3960 = vst [vmem:[%s765 + $0x40] sm:$0xff] %v3193
        %3961 = vst [vmem:[%s765 + $0x48] sm:$0xff] %v3195
        %3962 = vst [vmem:[%s765 + $0x50] sm:$0xff] %v3796
        %3963 = vst [vmem:[%s765 + $0x58] sm:$0xff] %v3798
        %3964 = vst [vmem:[%s765 + $0x60] sm:$0xff] %v3197
        %3965 = vst [vmem:[%s765 + $0x68] sm:$0xff] %v3199
        %3966 = vst [vmem:[%s765 + $0x70] sm:$0xff] %v3800
        %3967 = vst [vmem:[%s765 + $0x78] sm:$0xff] %v3802
        %3968 = vst [vmem:[%s765 + $0x80] sm:$0xff] %v3203
        %3969 = vst [vmem:[%s765 + $0x88] sm:$0xff] %v3205
        %3970 = vst [vmem:[%s765 + $0x90] sm:$0xff] %v3806
        %3971 = vst [vmem:[%s765 + $0x98] sm:$0xff] %v3808
        %3972 = vst [vmem:[%s765 + $0xa0] sm:$0xff] %v3207
        %3973 = vst [vmem:[%s765 + $0xa8] sm:$0xff] %v3209
        %3974 = vst [vmem:[%s765 + $0xb0] sm:$0xff] %v3810
        %3975 = vst [vmem:[%s765 + $0xb8] sm:$0xff] %v3812
        %3976 = vst [vmem:[%s765 + $0xc0] sm:$0xff] %v3213
        %3977 = vst [vmem:[%s765 + $0xc8] sm:$0xff] %v3215
        %3978 = vst [vmem:[%s765 + $0xd0] sm:$0xff] %v3816
        %3979 = vst [vmem:[%s765 + $0xd8] sm:$0xff] %v3818
        %3980 = vst [vmem:[%s765 + $0xe0] sm:$0xff] %v3217
        %3981 = vst [vmem:[%s765 + $0xe8] sm:$0xff] %v3219
        %3982 = vst [vmem:[%s765 + $0xf0] sm:$0xff] %v3820
        %3983 = vst [vmem:[%s765 + $0xf8] sm:$0xff] %v3822
        %3984 = vst [vmem:[%s765 + $0x100] sm:$0xff] %v3223
        %3985 = vst [vmem:[%s765 + $0x108] sm:$0xff] %v3225
        %3986 = vst [vmem:[%s765 + $0x110] sm:$0xff] %v3826
        %3987 = vst [vmem:[%s765 + $0x118] sm:$0xff] %v3828
        %3988 = vst [vmem:[%s765 + $0x120] sm:$0xff] %v3227
        %3989 = vst [vmem:[%s765 + $0x128] sm:$0xff] %v3229
        %3990 = vst [vmem:[%s765 + $0x130] sm:$0xff] %v3830
        %3991 = vst [vmem:[%s765 + $0x138] sm:$0xff] %v3832
        %3992 = vst [vmem:[%s765 + $0x140] sm:$0xff] %v3233
        %3993 = vst [vmem:[%s765 + $0x148] sm:$0xff] %v3235
        %3994 = vst [vmem:[%s765 + $0x150] sm:$0xff] %v3836
        %3995 = vst [vmem:[%s765 + $0x158] sm:$0xff] %v3838
        %3996 = vst [vmem:[%s765 + $0x160] sm:$0xff] %v3237
        %3997 = vst [vmem:[%s765 + $0x168] sm:$0xff] %v3239
        %3998 = vst [vmem:[%s765 + $0x170] sm:$0xff] %v3840
        %3999 = vst [vmem:[%s765 + $0x178] sm:$0xff] %v3842
        %4000 = vst [vmem:[%s765 + $0x180] sm:$0xff] %v3243
        %4001 = vst [vmem:[%s765 + $0x188] sm:$0xff] %v3245
        %4002 = vst [vmem:[%s765 + $0x190] sm:$0xff] %v3846
        %4003 = vst [vmem:[%s765 + $0x198] sm:$0xff] %v3848
        %4004 = vst [vmem:[%s765 + $0x1a0] sm:$0xff] %v3247
        %4005 = vst [vmem:[%s765 + $0x1a8] sm:$0xff] %v3249
        %4006 = vst [vmem:[%s765 + $0x1b0] sm:$0xff] %v3850
        %4007 = vst [vmem:[%s765 + $0x1b8] sm:$0xff] %v3852
        %4008 = vst [vmem:[%s765 + $0x1c0] sm:$0xff] %v3253
        %4009 = vst [vmem:[%s765 + $0x1c8] sm:$0xff] %v3255
        %4010 = vst [vmem:[%s765 + $0x1d0] sm:$0xff] %v3856
        %4011 = vst [vmem:[%s765 + $0x1d8] sm:$0xff] %v3858
        %4012 = vst [vmem:[%s765 + $0x1e0] sm:$0xff] %v3257
        %4013 = vst [vmem:[%s765 + $0x1e8] sm:$0xff] %v3259
        %4014 = vst [vmem:[%s765 + $0x1f0] sm:$0xff] %v3860
        %4015 = vst [vmem:[%s765 + $0x1f8] sm:$0xff] %v3862
        %4016 = vst [vmem:[%s765 + $0x200] sm:$0xff] %v3263
        %4017 = vst [vmem:[%s765 + $0x208] sm:$0xff] %v3265
        %4018 = vst [vmem:[%s765 + $0x210] sm:$0xff] %v3866
        %4019 = vst [vmem:[%s765 + $0x218] sm:$0xff] %v3868
        %4020 = vst [vmem:[%s765 + $0x220] sm:$0xff] %v3267
        %4021 = vst [vmem:[%s765 + $0x228] sm:$0xff] %v3269
        %4022 = vst [vmem:[%s765 + $0x230] sm:$0xff] %v3870
        %4023 = vst [vmem:[%s765 + $0x238] sm:$0xff] %v3872
        %4024 = vst [vmem:[%s765 + $0x240] sm:$0xff] %v3273
        %4025 = vst [vmem:[%s765 + $0x248] sm:$0xff] %v3275
        %4026 = vst [vmem:[%s765 + $0x250] sm:$0xff] %v3876
        %4027 = vst [vmem:[%s765 + $0x258] sm:$0xff] %v3878
        %4028 = vst [vmem:[%s765 + $0x260] sm:$0xff] %v3277
        %4029 = vst [vmem:[%s765 + $0x268] sm:$0xff] %v3279
        %4030 = vst [vmem:[%s765 + $0x270] sm:$0xff] %v3880
        %4031 = vst [vmem:[%s765 + $0x278] sm:$0xff] %v3882
        %4032 = vst [vmem:[%s765 + $0x280] sm:$0xff] %v3283
        %4033 = vst [vmem:[%s765 + $0x288] sm:$0xff] %v3285
        %4034 = vst [vmem:[%s765 + $0x290] sm:$0xff] %v3886
        %4035 = vst [vmem:[%s765 + $0x298] sm:$0xff] %v3888
        %4036 = vst [vmem:[%s765 + $0x2a0] sm:$0xff] %v3287
        %4037 = vst [vmem:[%s765 + $0x2a8] sm:$0xff] %v3289
        %4038 = vst [vmem:[%s765 + $0x2b0] sm:$0xff] %v3890
        %4039 = vst [vmem:[%s765 + $0x2b8] sm:$0xff] %v3892
        %4040 = vst [vmem:[%s765 + $0x2c0] sm:$0xff] %v3293
        %4041 = vst [vmem:[%s765 + $0x2c8] sm:$0xff] %v3295
        %4042 = vst [vmem:[%s765 + $0x2d0] sm:$0xff] %v3896
        %4043 = vst [vmem:[%s765 + $0x2d8] sm:$0xff] %v3898
        %4044 = vst [vmem:[%s765 + $0x2e0] sm:$0xff] %v3297
        %4045 = vst [vmem:[%s765 + $0x2e8] sm:$0xff] %v3299
        %4046 = vst [vmem:[%s765 + $0x2f0] sm:$0xff] %v3900
        %4047 = vst [vmem:[%s765 + $0x2f8] sm:$0xff] %v3902
        %4048 = vst [vmem:[%s765 + $0x300] sm:$0xff] %v3303
        %4049 = vst [vmem:[%s765 + $0x308] sm:$0xff] %v3305
        %4050 = vst [vmem:[%s765 + $0x310] sm:$0xff] %v3906
        %4051 = vst [vmem:[%s765 + $0x318] sm:$0xff] %v3908
        %4052 = vst [vmem:[%s765 + $0x320] sm:$0xff] %v3307
        %4053 = vst [vmem:[%s765 + $0x328] sm:$0xff] %v3309
        %4054 = vst [vmem:[%s765 + $0x330] sm:$0xff] %v3910
        %4055 = vst [vmem:[%s765 + $0x338] sm:$0xff] %v3912
        %4056 = vst [vmem:[%s765 + $0x340] sm:$0xff] %v3313
        %4057 = vst [vmem:[%s765 + $0x348] sm:$0xff] %v3315
        %4058 = vst [vmem:[%s765 + $0x350] sm:$0xff] %v3916
        %4059 = vst [vmem:[%s765 + $0x358] sm:$0xff] %v3918
        %4060 = vst [vmem:[%s765 + $0x360] sm:$0xff] %v3317
        %4061 = vst [vmem:[%s765 + $0x368] sm:$0xff] %v3319
        %4062 = vst [vmem:[%s765 + $0x370] sm:$0xff] %v3920
        %4063 = vst [vmem:[%s765 + $0x378] sm:$0xff] %v3922
        %4064 = vst [vmem:[%s765 + $0x380] sm:$0xff] %v3323
        %4065 = vst [vmem:[%s765 + $0x388] sm:$0xff] %v3325
        %4066 = vst [vmem:[%s765 + $0x390] sm:$0xff] %v3926
        %4067 = vst [vmem:[%s765 + $0x398] sm:$0xff] %v3928
        %4068 = vst [vmem:[%s765 + $0x3a0] sm:$0xff] %v3327
        %4069 = vst [vmem:[%s765 + $0x3a8] sm:$0xff] %v3329
        %4070 = vst [vmem:[%s765 + $0x3b0] sm:$0xff] %v3930
        %4071 = vst [vmem:[%s765 + $0x3b8] sm:$0xff] %v3932
        %4072 = vst [vmem:[%s765 + $0x3c0] sm:$0xff] %v3333
        %4073 = vst [vmem:[%s765 + $0x3c8] sm:$0xff] %v3335
        %4074 = vst [vmem:[%s765 + $0x3d0] sm:$0xff] %v3936
        %4075 = vst [vmem:[%s765 + $0x3d8] sm:$0xff] %v3938
        %4076 = vst [vmem:[%s765 + $0x3e0] sm:$0xff] %v3337
        %4077 = vst [vmem:[%s765 + $0x3e8] sm:$0xff] %v3339
        %4078 = vst [vmem:[%s765 + $0x3f0] sm:$0xff] %v3940
        %4079 = vst [vmem:[%s765 + $0x3f8] sm:$0xff] %v3942
        %4080 = vst [vmem:[%s765 + $0x400] sm:$0x1] %v3343
        %4081 = vst [vmem:[%s765 + $0x408] sm:$0x1] %v3345
        %4082 = vst [vmem:[%s765 + $0x410] sm:$0x1] %v3946
        %4083 = vst [vmem:[%s765 + $0x418] sm:$0x1] %v3948
        %v4084 = vpack.c.b16 %v1384, %v1384
        %v4085 = vpack.c.b16 %v1385, %v1385
        %v4086 = vpack.c.b16 %v1386, %v1386
        %v4087 = vpack.c.b16 %v1387, %v1387
        %v4088 = vpack.c.b16 %v1388, %v1388
        %v4089 = vpack.c.b16 %v1389, %v1389
        %v4288 = vunpack.c.l.b16 %v972
        %v4289 = vunpack.c.h.b16 %v972
        %v4290 = vunpack.c.l.b16 %v973
        %v4291 = vunpack.c.h.b16 %v973
        %v4292 = vunpack.c.l.b16 %v974
        %v4293 = vunpack.c.h.b16 %v974
        %v4294 = vunpack.c.l.b16 %v975
        %v4295 = vunpack.c.h.b16 %v975
        %v4296 = vunpack.c.l.b16 %v976
        %v4297 = vunpack.c.h.b16 %v976
        %v4298 = vunpack.c.l.b16 %v977
        %v4299 = vunpack.c.h.b16 %v977
        %v4300 = vunpack.c.l.b16 %v978
        %v4301 = vunpack.c.h.b16 %v978
        %v4302 = vunpack.c.l.b16 %v979
        %v4303 = vunpack.c.h.b16 %v979
        %v4304 = vunpack.c.l.b16 %v980
        %v4305 = vunpack.c.h.b16 %v980
        %v4306 = vunpack.c.l.b16 %v981
        %v4307 = vunpack.c.h.b16 %v981
        %v4308 = vunpack.c.l.b16 %v982
        %v4309 = vunpack.c.h.b16 %v982
        %v4310 = vunpack.c.l.b16 %v983
        %v4311 = vunpack.c.h.b16 %v983
        %v4312 = vunpack.c.l.b16 %v984
        %v4313 = vunpack.c.h.b16 %v984
        %v4314 = vunpack.c.l.b16 %v985
        %v4315 = vunpack.c.h.b16 %v985
        %v4316 = vunpack.c.l.b16 %v986
        %v4317 = vunpack.c.h.b16 %v986
        %v4318 = vunpack.c.l.b16 %v987
        %v4319 = vunpack.c.h.b16 %v987
        %v4320 = vunpack.c.l.b16 %v988
        %v4321 = vunpack.c.h.b16 %v988
        %v4322 = vunpack.c.l.b16 %v989
        %v4323 = vunpack.c.h.b16 %v989
        %v4324 = vunpack.c.l.b16 %v990
        %v4325 = vunpack.c.h.b16 %v990
        %v4326 = vunpack.c.l.b16 %v991
        %v4327 = vunpack.c.h.b16 %v991
        %v4328 = vunpack.c.l.b16 %v992
        %v4329 = vunpack.c.h.b16 %v992
        %v4330 = vunpack.c.l.b16 %v993
        %v4331 = vunpack.c.h.b16 %v993
        %v4332 = vunpack.c.l.b16 %v994
        %v4333 = vunpack.c.h.b16 %v994
        %v4334 = vunpack.c.l.b16 %v995
        %v4335 = vunpack.c.h.b16 %v995
        %v4336 = vunpack.c.l.b16 %v996
        %v4337 = vunpack.c.h.b16 %v996
        %v4338 = vunpack.c.l.b16 %v997
        %v4339 = vunpack.c.h.b16 %v997
        %v4340 = vunpack.c.l.b16 %v998
        %v4341 = vunpack.c.h.b16 %v998
        %v4342 = vunpack.c.l.b16 %v999
        %v4343 = vunpack.c.h.b16 %v999
        %v4344 = vunpack.c.l.b16 %v1000
        %v4345 = vunpack.c.h.b16 %v1000
        %v4346 = vunpack.c.l.b16 %v1001
        %v4347 = vunpack.c.h.b16 %v1001
        %v4348 = vunpack.c.l.b16 %v1002
        %v4349 = vunpack.c.h.b16 %v1002
        %v4350 = vunpack.c.l.b16 %v1003
        %v4351 = vunpack.c.h.b16 %v1003
        %v4352 = vunpack.c.l.b16 %v1004
        %v4353 = vunpack.c.h.b16 %v1004
        %v4354 = vunpack.c.l.b16 %v1005
        %v4355 = vunpack.c.h.b16 %v1005
        %v4356 = vunpack.c.l.b16 %v1006
        %v4357 = vunpack.c.h.b16 %v1006
        %v4358 = vunpack.c.l.b16 %v1007
        %v4359 = vunpack.c.h.b16 %v1007
        %v4360 = vunpack.c.l.b16 %v1008
        %v4361 = vunpack.c.h.b16 %v1008
        %v4362 = vunpack.c.l.b16 %v1009
        %v4363 = vunpack.c.h.b16 %v1009
        %v4364 = vunpack.c.l.b16 %v1010
        %v4365 = vunpack.c.h.b16 %v1010
        %v4366 = vunpack.c.l.b16 %v1011
        %v4367 = vunpack.c.h.b16 %v1011
        %v4368 = vunpack.c.l.b16 %v1012
        %v4369 = vunpack.c.h.b16 %v1012
        %v4370 = vunpack.c.l.b16 %v1013
        %v4371 = vunpack.c.h.b16 %v1013
        %v4372 = vunpack.c.l.b16 %v1014
        %v4373 = vunpack.c.h.b16 %v1014
        %v4374 = vunpack.c.l.b16 %v1015
        %v4375 = vunpack.c.h.b16 %v1015
        %v4376 = vunpack.c.l.b16 %v1016
        %v4377 = vunpack.c.h.b16 %v1016
        %v4378 = vunpack.c.l.b16 %v1017
        %v4379 = vunpack.c.h.b16 %v1017
        %v4380 = vunpack.c.l.b16 %v1018
        %v4381 = vunpack.c.h.b16 %v1018
        %v4382 = vunpack.c.l.b16 %v1019
        %v4383 = vunpack.c.h.b16 %v1019
        %v4384 = vunpack.c.l.b16 %v1020
        %v4385 = vunpack.c.h.b16 %v1020
        %v4386 = vunpack.c.l.b16 %v1021
        %v4387 = vunpack.c.h.b16 %v1021
        %v4388 = vunpack.c.l.b16 %v1022
        %v4389 = vunpack.c.h.b16 %v1022
        %v4390 = vunpack.c.l.b16 %v1023
        %v4391 = vunpack.c.h.b16 %v1023
        %v4392 = vunpack.c.l.b16 %v1024
        %v4393 = vunpack.c.h.b16 %v1024
        %v4394 = vunpack.c.l.b16 %v1025
        %v4395 = vunpack.c.h.b16 %v1025
        %v4396 = vunpack.c.l.b16 %v1026
        %v4397 = vunpack.c.h.b16 %v1026
        %v4398 = vunpack.c.l.b16 %v1027
        %v4399 = vunpack.c.h.b16 %v1027
        %v4400 = vunpack.c.l.b16 %v1028
        %v4401 = vunpack.c.h.b16 %v1028
        %v4402 = vunpack.c.l.b16 %v1029
        %v4403 = vunpack.c.h.b16 %v1029
        %v4404 = vunpack.c.l.b16 %v1030
        %v4405 = vunpack.c.h.b16 %v1030
        %v4406 = vunpack.c.l.b16 %v1031
        %v4407 = vunpack.c.h.b16 %v1031
        %v4408 = vunpack.c.l.b16 %v1032
        %v4409 = vunpack.c.h.b16 %v1032
        %v4410 = vunpack.c.l.b16 %v1033
        %v4411 = vunpack.c.h.b16 %v1033
        %v4412 = vunpack.c.l.b16 %v1034
        %v4413 = vunpack.c.h.b16 %v1034
        %v4414 = vunpack.c.l.b16 %v1035
        %v4415 = vunpack.c.h.b16 %v1035
        %v4416 = vunpack.c.l.b16 %v1036
        %v4417 = vunpack.c.h.b16 %v1036
        %v4418 = vunpack.c.l.b16 %v1037
        %v4419 = vunpack.c.h.b16 %v1037
        %v4420 = vunpack.c.l.b16 %v1038
        %v4421 = vunpack.c.h.b16 %v1038
        %v4422 = vunpack.c.l.b16 %v1039
        %v4423 = vunpack.c.h.b16 %v1039
        %v4424 = vunpack.c.l.b16 %v1040
        %v4425 = vunpack.c.h.b16 %v1040
        %v4426 = vunpack.c.l.b16 %v1041
        %v4427 = vunpack.c.h.b16 %v1041
        %v4428 = vunpack.c.l.b16 %v1042
        %v4429 = vunpack.c.h.b16 %v1042
        %v4430 = vunpack.c.l.b16 %v1043
        %v4431 = vunpack.c.h.b16 %v1043
        %v4432 = vunpack.c.l.b16 %v1044
        %v4433 = vunpack.c.h.b16 %v1044
        %v4434 = vunpack.c.l.b16 %v1045
        %v4435 = vunpack.c.h.b16 %v1045
        %v4436 = vunpack.c.l.b16 %v1046
        %v4437 = vunpack.c.h.b16 %v1046
        %v4438 = vunpack.c.l.b16 %v1047
        %v4439 = vunpack.c.h.b16 %v1047
        %v4440 = vunpack.c.l.b16 %v1048
        %v4441 = vunpack.c.h.b16 %v1048
        %v4442 = vunpack.c.l.b16 %v1049
        %v4443 = vunpack.c.h.b16 %v1049
        %v4444 = vunpack.c.l.b16 %v1050
        %v4445 = vunpack.c.h.b16 %v1050
        %v4446 = vunpack.c.l.b16 %v1051
        %v4447 = vunpack.c.h.b16 %v1051
        %v4448 = vunpack.c.l.b16 %v1052
        %v4449 = vunpack.c.h.b16 %v1052
        %v4450 = vunpack.c.l.b16 %v1053
        %v4451 = vunpack.c.h.b16 %v1053
        %v4452 = vunpack.c.l.b16 %v1054
        %v4453 = vunpack.c.h.b16 %v1054
        %v4454 = vunpack.c.l.b16 %v1055
        %v4455 = vunpack.c.h.b16 %v1055
        %v4456 = vunpack.c.l.b16 %v1056
        %v4457 = vunpack.c.h.b16 %v1056
        %v4458 = vunpack.c.l.b16 %v1057
        %v4459 = vunpack.c.h.b16 %v1057
        %v4460 = vunpack.c.l.b16 %v1058
        %v4461 = vunpack.c.h.b16 %v1058
        %v4462 = vunpack.c.l.b16 %v1059
        %v4463 = vunpack.c.h.b16 %v1059
        %v4464 = vunpack.c.l.b16 %v1060
        %v4465 = vunpack.c.h.b16 %v1060
        %v4466 = vunpack.c.l.b16 %v1061
        %v4467 = vunpack.c.h.b16 %v1061
        %v4468 = vunpack.c.l.b16 %v1062
        %v4469 = vunpack.c.h.b16 %v1062
        %v4470 = vunpack.c.l.b16 %v1063
        %v4471 = vunpack.c.h.b16 %v1063
        %v4472 = vunpack.c.l.b16 %v1064
        %v4473 = vunpack.c.h.b16 %v1064
        %v4474 = vunpack.c.l.b16 %v1065
        %v4475 = vunpack.c.h.b16 %v1065
        %v4476 = vunpack.c.l.b16 %v1066
        %v4477 = vunpack.c.h.b16 %v1066
        %v4478 = vunpack.c.l.b16 %v1067
        %v4479 = vunpack.c.h.b16 %v1067
        %v4480 = vunpack.c.l.b16 %v1068
        %v4481 = vunpack.c.h.b16 %v1068
        %v4482 = vunpack.c.l.b16 %v1069
        %v4483 = vunpack.c.h.b16 %v1069
        %v4484 = vunpack.c.l.b16 %v1070
        %v4485 = vunpack.c.h.b16 %v1070
        %v4486 = vunpack.c.l.b16 %v1071
        %v4487 = vunpack.c.h.b16 %v1071
        %v4488 = vunpack.c.l.b16 %v1072
        %v4489 = vunpack.c.h.b16 %v1072
        %v4490 = vunpack.c.l.b16 %v1073
        %v4491 = vunpack.c.h.b16 %v1073
        %v4492 = vunpack.c.l.b16 %v1074
        %v4493 = vunpack.c.h.b16 %v1074
        %v4494 = vunpack.c.l.b16 %v1075
        %v4495 = vunpack.c.h.b16 %v1075
        %v4496 = vunpack.c.l.b16 %v1076
        %v4497 = vunpack.c.h.b16 %v1076
        %v4498 = vunpack.c.l.b16 %v1077
        %v4499 = vunpack.c.h.b16 %v1077
        %v4500 = vunpack.c.l.b16 %v1078
        %v4501 = vunpack.c.h.b16 %v1078
        %v4502 = vunpack.c.l.b16 %v1079
        %v4503 = vunpack.c.h.b16 %v1079
        %v4504 = vunpack.c.l.b16 %v1080
        %v4505 = vunpack.c.h.b16 %v1080
        %v4506 = vunpack.c.l.b16 %v1081
        %v4507 = vunpack.c.h.b16 %v1081
        %v4508 = vunpack.c.l.b16 %v1082
        %v4509 = vunpack.c.h.b16 %v1082
        %v4510 = vunpack.c.l.b16 %v1083
        %v4511 = vunpack.c.h.b16 %v1083
        %v4512 = vunpack.c.l.b16 %v1084
        %v4513 = vunpack.c.h.b16 %v1084
        %v4514 = vunpack.c.l.b16 %v1085
        %v4515 = vunpack.c.h.b16 %v1085
        %v4516 = vunpack.c.l.b16 %v1086
        %v4517 = vunpack.c.h.b16 %v1086
        %v4518 = vunpack.c.l.b16 %v1087
        %v4519 = vunpack.c.h.b16 %v1087
        %v4520 = vunpack.c.l.b16 %v1088
        %v4521 = vunpack.c.h.b16 %v1088
        %v4522 = vunpack.c.l.b16 %v1089
        %v4523 = vunpack.c.h.b16 %v1089
        %v4524 = vunpack.c.l.b16 %v1090
        %v4525 = vunpack.c.h.b16 %v1090
        %v4526 = vunpack.c.l.b16 %v1091
        %v4527 = vunpack.c.h.b16 %v1091
        %v4528 = vunpack.c.l.b16 %v1092
        %v4529 = vunpack.c.h.b16 %v1092
        %v4530 = vunpack.c.l.b16 %v1093
        %v4531 = vunpack.c.h.b16 %v1093
        %v4532 = vunpack.c.l.b16 %v1094
        %v4533 = vunpack.c.h.b16 %v1094
        %v4534 = vunpack.c.l.b16 %v1095
        %v4535 = vunpack.c.h.b16 %v1095
        %v4536 = vunpack.c.l.b16 %v1096
        %v4537 = vunpack.c.h.b16 %v1096
        %v4538 = vunpack.c.l.b16 %v1097
        %v4539 = vunpack.c.h.b16 %v1097
        %v4540 = vunpack.c.l.b16 %v1098
        %v4541 = vunpack.c.h.b16 %v1098
        %v4542 = vunpack.c.l.b16 %v1099
        %v4543 = vunpack.c.h.b16 %v1099
        %v4544 = vunpack.c.l.b16 %v1100
        %v4545 = vunpack.c.h.b16 %v1100
        %v4546 = vunpack.c.l.b16 %v1101
        %v4547 = vunpack.c.h.b16 %v1101
        %v4548 = vunpack.c.l.b16 %v1102
        %v4549 = vunpack.c.h.b16 %v1102
        %v4550 = vunpack.c.l.b16 %v1103
        %v4551 = vunpack.c.h.b16 %v1103
        %v4552 = vunpack.c.l.b16 %v1104
        %v4553 = vunpack.c.h.b16 %v1104
        %v4554 = vunpack.c.l.b16 %v1105
        %v4555 = vunpack.c.h.b16 %v1105
        %v4556 = vunpack.c.l.b16 %v1106
        %v4557 = vunpack.c.h.b16 %v1106
        %v4558 = vunpack.c.l.b16 %v1107
        %v4559 = vunpack.c.h.b16 %v1107
        %v4560 = vunpack.c.l.b16 %v1108
        %v4561 = vunpack.c.h.b16 %v1108
        %v4562 = vunpack.c.l.b16 %v1109
        %v4563 = vunpack.c.h.b16 %v1109
        %v4564 = vunpack.c.l.b16 %v1110
        %v4565 = vunpack.c.h.b16 %v1110
        %v4566 = vunpack.c.l.b16 %v1111
        %v4567 = vunpack.c.h.b16 %v1111
        %v4568 = vunpack.c.l.b16 %v1112
        %v4569 = vunpack.c.h.b16 %v1112
        %v4570 = vunpack.c.l.b16 %v1113
        %v4571 = vunpack.c.h.b16 %v1113
        %v4572 = vunpack.c.l.b16 %v1114
        %v4573 = vunpack.c.h.b16 %v1114
        %v4574 = vunpack.c.l.b16 %v1115
        %v4575 = vunpack.c.h.b16 %v1115
        %v4576 = vunpack.c.l.b16 %v1116
        %v4577 = vunpack.c.h.b16 %v1116
        %v4578 = vunpack.c.l.b16 %v1117
        %v4579 = vunpack.c.h.b16 %v1117
        %v4580 = vunpack.c.l.b16 %v1118
        %v4581 = vunpack.c.h.b16 %v1118
        %v4582 = vunpack.c.l.b16 %v1119
        %v4583 = vunpack.c.h.b16 %v1119
        %v4584 = vunpack.c.l.b16 %v1120
        %v4585 = vunpack.c.h.b16 %v1120
        %v4586 = vunpack.c.l.b16 %v1121
        %v4587 = vunpack.c.h.b16 %v1121
        %v4588 = vunpack.c.l.b16 %v1122
        %v4589 = vunpack.c.h.b16 %v1122
        %v4590 = vunpack.c.l.b16 %v1123
        %v4591 = vunpack.c.h.b16 %v1123
        %v4592 = vunpack.c.l.b16 %v1124
        %v4593 = vunpack.c.h.b16 %v1124
        %v4594 = vunpack.c.l.b16 %v1125
        %v4595 = vunpack.c.h.b16 %v1125
        %v4596 = vunpack.c.l.b16 %v1126
        %v4597 = vunpack.c.h.b16 %v1126
        %v4598 = vunpack.c.l.b16 %v1127
        %v4599 = vunpack.c.h.b16 %v1127
        %v4600 = vunpack.c.l.b16 %v1128
        %v4601 = vunpack.c.h.b16 %v1128
        %v4602 = vunpack.c.l.b16 %v1129
        %v4603 = vunpack.c.h.b16 %v1129
        %v4604 = vunpack.c.l.b16 %v1130
        %v4605 = vunpack.c.h.b16 %v1130
        %v4606 = vunpack.c.l.b16 %v1131
        %v4607 = vunpack.c.h.b16 %v1131
        %v4608 = vunpack.c.l.b16 %v1132
        %v4609 = vunpack.c.h.b16 %v1132
        %v4610 = vunpack.c.l.b16 %v1133
        %v4611 = vunpack.c.h.b16 %v1133
        %v4612 = vunpack.c.l.b16 %v1134
        %v4613 = vunpack.c.h.b16 %v1134
        %v4614 = vunpack.c.l.b16 %v1135
        %v4615 = vunpack.c.h.b16 %v1135
        %v4616 = vunpack.c.l.b16 %v1136
        %v4617 = vunpack.c.h.b16 %v1136
        %v4618 = vunpack.c.l.b16 %v1137
        %v4619 = vunpack.c.h.b16 %v1137
        %v4620 = vunpack.c.l.b16 %v1138
        %v4621 = vunpack.c.h.b16 %v1138
        %v4622 = vunpack.c.l.b16 %v1139
        %v4623 = vunpack.c.h.b16 %v1139
        %v4624 = vunpack.c.l.b16 %v1140
        %v4625 = vunpack.c.h.b16 %v1140
        %v4626 = vunpack.c.l.b16 %v1141
        %v4627 = vunpack.c.h.b16 %v1141
        %v4628 = vunpack.c.l.b16 %v1142
        %v4629 = vunpack.c.h.b16 %v1142
        %v4630 = vunpack.c.l.b16 %v1143
        %v4631 = vunpack.c.h.b16 %v1143
        %v4632 = vunpack.c.l.b16 %v1144
        %v4633 = vunpack.c.h.b16 %v1144
        %v4634 = vunpack.c.l.b16 %v1145
        %v4635 = vunpack.c.h.b16 %v1145
        %v4636 = vunpack.c.l.b16 %v1146
        %v4637 = vunpack.c.h.b16 %v1146
        %v4638 = vunpack.c.l.b16 %v1147
        %v4639 = vunpack.c.h.b16 %v1147
        %v4640 = vunpack.c.l.b16 %v1148
        %v4641 = vunpack.c.h.b16 %v1148
        %v4642 = vunpack.c.l.b16 %v1149
        %v4643 = vunpack.c.h.b16 %v1149
        %v4644 = vunpack.c.l.b16 %v1150
        %v4645 = vunpack.c.h.b16 %v1150
        %v4646 = vunpack.c.l.b16 %v1151
        %v4647 = vunpack.c.h.b16 %v1151
        %v4648 = vunpack.c.l.b16 %v1152
        %v4649 = vunpack.c.h.b16 %v1152
        %v4650 = vunpack.c.l.b16 %v1153
        %v4651 = vunpack.c.h.b16 %v1153
        %v4652 = vunpack.c.l.b16 %v1154
        %v4653 = vunpack.c.h.b16 %v1154
        %v4654 = vunpack.c.l.b16 %v1155
        %v4655 = vunpack.c.h.b16 %v1155
        %v4656 = vunpack.c.l.b16 %v1156
        %v4657 = vunpack.c.h.b16 %v1156
        %v4658 = vunpack.c.l.b16 %v1157
        %v4659 = vunpack.c.h.b16 %v1157
        %v4660 = vunpack.c.l.b16 %v1158
        %v4661 = vunpack.c.h.b16 %v1158
        %v4662 = vunpack.c.l.b16 %v1159
        %v4663 = vunpack.c.h.b16 %v1159
        %v4664 = vunpack.c.l.b16 %v1160
        %v4665 = vunpack.c.h.b16 %v1160
        %v4666 = vunpack.c.l.b16 %v1161
        %v4667 = vunpack.c.h.b16 %v1161
        %v4668 = vunpack.c.l.b16 %v1162
        %v4669 = vunpack.c.h.b16 %v1162
        %v4670 = vunpack.c.l.b16 %v1163
        %v4671 = vunpack.c.h.b16 %v1163
        %v4672 = vpack.c.b16 %v4292, %v4288
        %v4673 = vpack.c.b16 %v4293, %v4289
        %v4674 = vpack.c.b16 %v4294, %v4290
        %v4675 = vpack.c.b16 %v4295, %v4291
        %v4676 = vpack.c.b16 %v4300, %v4296
        %v4677 = vpack.c.b16 %v4301, %v4297
        %v4678 = vpack.c.b16 %v4302, %v4298
        %v4679 = vpack.c.b16 %v4303, %v4299
        %v4680 = vpack.c.b16 %v4308, %v4304
        %v4681 = vpack.c.b16 %v4309, %v4305
        %v4682 = vpack.c.b16 %v4310, %v4306
        %v4683 = vpack.c.b16 %v4311, %v4307
        %v4684 = vpack.c.b16 %v4316, %v4312
        %v4685 = vpack.c.b16 %v4317, %v4313
        %v4686 = vpack.c.b16 %v4318, %v4314
        %v4687 = vpack.c.b16 %v4319, %v4315
        %v4688 = vpack.c.b16 %v4324, %v4320
        %v4689 = vpack.c.b16 %v4325, %v4321
        %v4690 = vpack.c.b16 %v4326, %v4322
        %v4691 = vpack.c.b16 %v4327, %v4323
        %v4692 = vpack.c.b16 %v4332, %v4328
        %v4693 = vpack.c.b16 %v4333, %v4329
        %v4694 = vpack.c.b16 %v4334, %v4330
        %v4695 = vpack.c.b16 %v4335, %v4331
        %v4696 = vpack.c.b16 %v4340, %v4336
        %v4697 = vpack.c.b16 %v4341, %v4337
        %v4698 = vpack.c.b16 %v4342, %v4338
        %v4699 = vpack.c.b16 %v4343, %v4339
        %v4700 = vpack.c.b16 %v4348, %v4344
        %v4701 = vpack.c.b16 %v4349, %v4345
        %v4702 = vpack.c.b16 %v4350, %v4346
        %v4703 = vpack.c.b16 %v4351, %v4347
        %v4704 = vpack.c.b16 %v4356, %v4352
        %v4705 = vpack.c.b16 %v4357, %v4353
        %v4706 = vpack.c.b16 %v4358, %v4354
        %v4707 = vpack.c.b16 %v4359, %v4355
        %v4708 = vpack.c.b16 %v4364, %v4360
        %v4709 = vpack.c.b16 %v4365, %v4361
        %v4710 = vpack.c.b16 %v4366, %v4362
        %v4711 = vpack.c.b16 %v4367, %v4363
        %v4712 = vpack.c.b16 %v4372, %v4368
        %v4713 = vpack.c.b16 %v4373, %v4369
        %v4714 = vpack.c.b16 %v4374, %v4370
        %v4715 = vpack.c.b16 %v4375, %v4371
        %v4716 = vpack.c.b16 %v4380, %v4376
        %v4717 = vpack.c.b16 %v4381, %v4377
        %v4718 = vpack.c.b16 %v4382, %v4378
        %v4719 = vpack.c.b16 %v4383, %v4379
        %v4720 = vpack.c.b16 %v4388, %v4384
        %v4721 = vpack.c.b16 %v4389, %v4385
        %v4722 = vpack.c.b16 %v4390, %v4386
        %v4723 = vpack.c.b16 %v4391, %v4387
        %v4724 = vpack.c.b16 %v4396, %v4392
        %v4725 = vpack.c.b16 %v4397, %v4393
        %v4726 = vpack.c.b16 %v4398, %v4394
        %v4727 = vpack.c.b16 %v4399, %v4395
        %v4728 = vpack.c.b16 %v4404, %v4400
        %v4729 = vpack.c.b16 %v4405, %v4401
        %v4730 = vpack.c.b16 %v4406, %v4402
        %v4731 = vpack.c.b16 %v4407, %v4403
        %v4732 = vpack.c.b16 %v4412, %v4408
        %v4733 = vpack.c.b16 %v4413, %v4409
        %v4734 = vpack.c.b16 %v4414, %v4410
        %v4735 = vpack.c.b16 %v4415, %v4411
        %v4736 = vpack.c.b16 %v4420, %v4416
        %v4737 = vpack.c.b16 %v4421, %v4417
        %v4738 = vpack.c.b16 %v4422, %v4418
        %v4739 = vpack.c.b16 %v4423, %v4419
        %v4740 = vpack.c.b16 %v4428, %v4424
        %v4741 = vpack.c.b16 %v4429, %v4425
        %v4742 = vpack.c.b16 %v4430, %v4426
        %v4743 = vpack.c.b16 %v4431, %v4427
        %v4744 = vpack.c.b16 %v4436, %v4432
        %v4745 = vpack.c.b16 %v4437, %v4433
        %v4746 = vpack.c.b16 %v4438, %v4434
        %v4747 = vpack.c.b16 %v4439, %v4435
        %v4748 = vpack.c.b16 %v4444, %v4440
        %v4749 = vpack.c.b16 %v4445, %v4441
        %v4750 = vpack.c.b16 %v4446, %v4442
        %v4751 = vpack.c.b16 %v4447, %v4443
        %v4752 = vpack.c.b16 %v4452, %v4448
        %v4753 = vpack.c.b16 %v4453, %v4449
        %v4754 = vpack.c.b16 %v4454, %v4450
        %v4755 = vpack.c.b16 %v4455, %v4451
        %v4756 = vpack.c.b16 %v4460, %v4456
        %v4757 = vpack.c.b16 %v4461, %v4457
        %v4758 = vpack.c.b16 %v4462, %v4458
        %v4759 = vpack.c.b16 %v4463, %v4459
        %v4760 = vpack.c.b16 %v4468, %v4464
        %v4761 = vpack.c.b16 %v4469, %v4465
        %v4762 = vpack.c.b16 %v4470, %v4466
        %v4763 = vpack.c.b16 %v4471, %v4467
        %v4764 = vpack.c.b16 %v4476, %v4472
        %v4765 = vpack.c.b16 %v4477, %v4473
        %v4766 = vpack.c.b16 %v4478, %v4474
        %v4767 = vpack.c.b16 %v4479, %v4475
        %v4768 = vpack.c.b16 %v4484, %v4480
        %v4769 = vpack.c.b16 %v4485, %v4481
        %v4770 = vpack.c.b16 %v4486, %v4482
        %v4771 = vpack.c.b16 %v4487, %v4483
        %v4772 = vpack.c.b16 %v4492, %v4488
        %v4773 = vpack.c.b16 %v4493, %v4489
        %v4774 = vpack.c.b16 %v4494, %v4490
        %v4775 = vpack.c.b16 %v4495, %v4491
        %v4776 = vpack.c.b16 %v4500, %v4496
        %v4777 = vpack.c.b16 %v4501, %v4497
        %v4778 = vpack.c.b16 %v4502, %v4498
        %v4779 = vpack.c.b16 %v4503, %v4499
        %v4780 = vpack.c.b16 %v4508, %v4504
        %v4781 = vpack.c.b16 %v4509, %v4505
        %v4782 = vpack.c.b16 %v4510, %v4506
        %v4783 = vpack.c.b16 %v4511, %v4507
        %v4784 = vpack.c.b16 %v4516, %v4512
        %v4785 = vpack.c.b16 %v4517, %v4513
        %v4786 = vpack.c.b16 %v4518, %v4514
        %v4787 = vpack.c.b16 %v4519, %v4515
        %v4788 = vpack.c.b16 %v4524, %v4520
        %v4789 = vpack.c.b16 %v4525, %v4521
        %v4790 = vpack.c.b16 %v4526, %v4522
        %v4791 = vpack.c.b16 %v4527, %v4523
        %v4792 = vpack.c.b16 %v4532, %v4528
        %v4793 = vpack.c.b16 %v4533, %v4529
        %v4794 = vpack.c.b16 %v4534, %v4530
        %v4795 = vpack.c.b16 %v4535, %v4531
        %v4796 = vpack.c.b16 %v4540, %v4536
        %v4797 = vpack.c.b16 %v4541, %v4537
        %v4798 = vpack.c.b16 %v4542, %v4538
        %v4799 = vpack.c.b16 %v4543, %v4539
        %v4800 = vpack.c.b16 %v4548, %v4544
        %v4801 = vpack.c.b16 %v4549, %v4545
        %v4802 = vpack.c.b16 %v4550, %v4546
        %v4803 = vpack.c.b16 %v4551, %v4547
        %v4804 = vpack.c.b16 %v4556, %v4552
        %v4805 = vpack.c.b16 %v4557, %v4553
        %v4806 = vpack.c.b16 %v4558, %v4554
        %v4807 = vpack.c.b16 %v4559, %v4555
        %v4808 = vpack.c.b16 %v4564, %v4560
        %v4809 = vpack.c.b16 %v4565, %v4561
        %v4810 = vpack.c.b16 %v4566, %v4562
        %v4811 = vpack.c.b16 %v4567, %v4563
        %v4812 = vpack.c.b16 %v4572, %v4568
        %v4813 = vpack.c.b16 %v4573, %v4569
        %v4814 = vpack.c.b16 %v4574, %v4570
        %v4815 = vpack.c.b16 %v4575, %v4571
        %v4816 = vpack.c.b16 %v4580, %v4576
        %v4817 = vpack.c.b16 %v4581, %v4577
        %v4818 = vpack.c.b16 %v4582, %v4578
        %v4819 = vpack.c.b16 %v4583, %v4579
        %v4820 = vpack.c.b16 %v4588, %v4584
        %v4821 = vpack.c.b16 %v4589, %v4585
        %v4822 = vpack.c.b16 %v4590, %v4586
        %v4823 = vpack.c.b16 %v4591, %v4587
        %v4824 = vpack.c.b16 %v4596, %v4592
        %v4825 = vpack.c.b16 %v4597, %v4593
        %v4826 = vpack.c.b16 %v4598, %v4594
        %v4827 = vpack.c.b16 %v4599, %v4595
        %v4828 = vpack.c.b16 %v4604, %v4600
        %v4829 = vpack.c.b16 %v4605, %v4601
        %v4830 = vpack.c.b16 %v4606, %v4602
        %v4831 = vpack.c.b16 %v4607, %v4603
        %v4832 = vpack.c.b16 %v4612, %v4608
        %v4833 = vpack.c.b16 %v4613, %v4609
        %v4834 = vpack.c.b16 %v4614, %v4610
        %v4835 = vpack.c.b16 %v4615, %v4611
        %v4836 = vpack.c.b16 %v4620, %v4616
        %v4837 = vpack.c.b16 %v4621, %v4617
        %v4838 = vpack.c.b16 %v4622, %v4618
        %v4839 = vpack.c.b16 %v4623, %v4619
        %v4840 = vpack.c.b16 %v4628, %v4624
        %v4841 = vpack.c.b16 %v4629, %v4625
        %v4842 = vpack.c.b16 %v4630, %v4626
        %v4843 = vpack.c.b16 %v4631, %v4627
        %v4844 = vpack.c.b16 %v4636, %v4632
        %v4845 = vpack.c.b16 %v4637, %v4633
        %v4846 = vpack.c.b16 %v4638, %v4634
        %v4847 = vpack.c.b16 %v4639, %v4635
        %v4848 = vpack.c.b16 %v4644, %v4640
        %v4849 = vpack.c.b16 %v4645, %v4641
        %v4850 = vpack.c.b16 %v4646, %v4642
        %v4851 = vpack.c.b16 %v4647, %v4643
        %v4852 = vpack.c.b16 %v4652, %v4648
        %v4853 = vpack.c.b16 %v4653, %v4649
        %v4854 = vpack.c.b16 %v4654, %v4650
        %v4855 = vpack.c.b16 %v4655, %v4651
        %v4856 = vpack.c.b16 %v4660, %v4656
        %v4857 = vpack.c.b16 %v4661, %v4657
        %v4858 = vpack.c.b16 %v4662, %v4658
        %v4859 = vpack.c.b16 %v4663, %v4659
        %v4860 = vpack.c.b16 %v4668, %v4664
        %v4861 = vpack.c.b16 %v4669, %v4665
        %v4862 = vpack.c.b16 %v4670, %v4666
        %v4863 = vpack.c.b16 %v4671, %v4667
        %v5057 = vlaneseq
        %v5058 = vshrl.u32 %v5057, 7
        %v5059 = vsub.s32 0, %v5058
        %v5060 = vrot.slane %v1164, %v5059
        %v5061 = vlaneseq
        %v5062 = vshrl.u32 %v5061, 7
        %v5063 = vsub.s32 1, %v5062
        %v5064 = vrot.slane %v1164, %v5063
        %v5065 = vlaneseq
        %v5066 = vshrl.u32 %v5065, 7
        %v5067 = vsub.s32 2, %v5066
        %v5068 = vrot.slane %v1164, %v5067
        %v5069 = vlaneseq
        %v5070 = vshrl.u32 %v5069, 7
        %v5071 = vsub.s32 3, %v5070
        %v5072 = vrot.slane %v1164, %v5071
        %5077 = vmatprep.subr.bf16.mxu0 %v4673
        %5078 = vmatpush1.bf16.msra.mxu0 %v4672
        %5079 = vmatprep.subr.bf16.mxu0 %v4677
        %5080 = vmatpush1.bf16.msra.mxu0 %v4676
        %5081 = vmatprep.subr.bf16.mxu0 %v4681
        %5082 = vmatpush1.bf16.msra.mxu0 %v4680
        %5083 = vmatprep.subr.bf16.mxu0 %v4685
        %5084 = vmatpush1.bf16.msra.mxu0 %v4684
        %5085 = vmatprep.subr.bf16.mxu0 %v4689
        %5086 = vmatpush1.bf16.msra.mxu0 %v4688
        %5087 = vmatprep.subr.bf16.mxu0 %v4693
        %5088 = vmatpush1.bf16.msra.mxu0 %v4692
        %5089 = vmatprep.subr.bf16.mxu0 %v4697
        %5090 = vmatpush1.bf16.msra.mxu0 %v4696
        %5091 = vmatprep.subr.bf16.mxu0 %v4701
        %5092 = vmatpush1.bf16.msra.mxu0 %v4700
        %5093 = vmatprep.subr.bf16.mxu0 %v4705
        %5094 = vmatpush1.bf16.msra.mxu0 %v4704
        %5095 = vmatprep.subr.bf16.mxu0 %v4709
        %5096 = vmatpush1.bf16.msra.mxu0 %v4708
        %5097 = vmatprep.subr.bf16.mxu0 %v4713
        %5098 = vmatpush1.bf16.msra.mxu0 %v4712
        %5099 = vmatprep.subr.bf16.mxu0 %v4717
        %5100 = vmatpush1.bf16.msra.mxu0 %v4716
        %5101 = vmatprep.subr.bf16.mxu0 %v4721
        %5102 = vmatpush1.bf16.msra.mxu0 %v4720
        %5103 = vmatprep.subr.bf16.mxu0 %v4725
        %5104 = vmatpush1.bf16.msra.mxu0 %v4724
        %5105 = vmatprep.subr.bf16.mxu0 %v4729
        %5106 = vmatpush1.bf16.msra.mxu0 %v4728
        %5107 = vmatprep.subr.bf16.mxu0 %v4733
        %5108 = vmatpush1.bf16.msra.mxu0 %v4732
        %5109 = vmatprep.mubr.bf16.mxu0 %v4085
        %5110 = vmatmul.mubr.bf16.gmra.mrb[0].mxu0 %v4084
        %v5111 = vpop.f32.mrb[0].mxu0
        %v5112 = vadd.f32 %v5060, %v5111
        %v5113 = vpop.f32.mrb[0].mxu0
        %v5114 = vadd.f32 %v5064, %v5113
        %v5115 = vpop.f32.mrb[0].mxu0
        %v5116 = vpop.f32.mrb[0].mxu0
        %5117 = vdwg.mxu0
        %5118 = vmatprep.subr.bf16.mxu0 %v4737
        %5119 = vmatpush1.bf16.msra.mxu0 %v4736
        %5120 = vmatprep.subr.bf16.mxu0 %v4741
        %5121 = vmatpush1.bf16.msra.mxu0 %v4740
        %5122 = vmatprep.subr.bf16.mxu0 %v4745
        %5123 = vmatpush1.bf16.msra.mxu0 %v4744
        %5124 = vmatprep.subr.bf16.mxu0 %v4749
        %5125 = vmatpush1.bf16.msra.mxu0 %v4748
        %5126 = vmatprep.subr.bf16.mxu0 %v4753
        %5127 = vmatpush1.bf16.msra.mxu0 %v4752
        %5128 = vmatprep.subr.bf16.mxu0 %v4757
        %5129 = vmatpush1.bf16.msra.mxu0 %v4756
        %5130 = vmatprep.subr.bf16.mxu0 %v4761
        %5131 = vmatpush1.bf16.msra.mxu0 %v4760
        %5132 = vmatprep.subr.bf16.mxu0 %v4765
        %5133 = vmatpush1.bf16.msra.mxu0 %v4764
        %5134 = vmatprep.subr.bf16.mxu0 %v4769
        %5135 = vmatpush1.bf16.msra.mxu0 %v4768
        %5136 = vmatprep.subr.bf16.mxu0 %v4773
        %5137 = vmatpush1.bf16.msra.mxu0 %v4772
        %5138 = vmatprep.subr.bf16.mxu0 %v4777
        %5139 = vmatpush1.bf16.msra.mxu0 %v4776
        %5140 = vmatprep.subr.bf16.mxu0 %v4781
        %5141 = vmatpush1.bf16.msra.mxu0 %v4780
        %5142 = vmatprep.subr.bf16.mxu0 %v4785
        %5143 = vmatpush1.bf16.msra.mxu0 %v4784
        %5144 = vmatprep.subr.bf16.mxu0 %v4789
        %5145 = vmatpush1.bf16.msra.mxu0 %v4788
        %5146 = vmatprep.subr.bf16.mxu0 %v4793
        %5147 = vmatpush1.bf16.msra.mxu0 %v4792
        %5148 = vmatprep.subr.bf16.mxu0 %v4797
        %5149 = vmatpush1.bf16.msra.mxu0 %v4796
        %5150 = vmatprep.mubr.bf16.mxu0 %v4087
        %5151 = vmatmul.mubr.bf16.gmra.mrb[0].mxu0 %v4086
        %v5152 = vpop.f32.mrb[0].mxu0
        %v5153 = vadd.f32 %v5112, %v5152
        %v5154 = vpop.f32.mrb[0].mxu0
        %v5155 = vadd.f32 %v5114, %v5154
        %v5156 = vpop.f32.mrb[0].mxu0
        %v5157 = vpop.f32.mrb[0].mxu0
        %5158 = vdwg.mxu0
        %5159 = vmatprep.subr.bf16.mxu0 %v4801
        %5160 = vmatpush1.bf16.msra.mxu0 %v4800
        %5161 = vmatprep.subr.bf16.mxu0 %v4805
        %5162 = vmatpush1.bf16.msra.mxu0 %v4804
        %5163 = vmatprep.subr.bf16.mxu0 %v4809
        %5164 = vmatpush1.bf16.msra.mxu0 %v4808
        %5165 = vmatprep.subr.bf16.mxu0 %v4813
        %5166 = vmatpush1.bf16.msra.mxu0 %v4812
        %5167 = vmatprep.subr.bf16.mxu0 %v4817
        %5168 = vmatpush1.bf16.msra.mxu0 %v4816
        %5169 = vmatprep.subr.bf16.mxu0 %v4821
        %5170 = vmatpush1.bf16.msra.mxu0 %v4820
        %5171 = vmatprep.subr.bf16.mxu0 %v4825
        %5172 = vmatpush1.bf16.msra.mxu0 %v4824
        %5173 = vmatprep.subr.bf16.mxu0 %v4829
        %5174 = vmatpush1.bf16.msra.mxu0 %v4828
        %5175 = vmatprep.subr.bf16.mxu0 %v4833
        %5176 = vmatpush1.bf16.msra.mxu0 %v4832
        %5177 = vmatprep.subr.bf16.mxu0 %v4837
        %5178 = vmatpush1.bf16.msra.mxu0 %v4836
        %5179 = vmatprep.subr.bf16.mxu0 %v4841
        %5180 = vmatpush1.bf16.msra.mxu0 %v4840
        %5181 = vmatprep.subr.bf16.mxu0 %v4845
        %5182 = vmatpush1.bf16.msra.mxu0 %v4844
        %5183 = vmatprep.subr.bf16.mxu0 %v4849
        %5184 = vmatpush1.bf16.msra.mxu0 %v4848
        %5185 = vmatprep.subr.bf16.mxu0 %v4853
        %5186 = vmatpush1.bf16.msra.mxu0 %v4852
        %5187 = vmatprep.subr.bf16.mxu0 %v4857
        %5188 = vmatpush1.bf16.msra.mxu0 %v4856
        %5189 = vmatprep.subr.bf16.mxu0 %v4861
        %5190 = vmatpush1.bf16.msra.mxu0 %v4860
        %5191 = vmatprep.mubr.bf16.mxu0 %v4089
        %5192 = vmatmul.mubr.bf16.gmra.mrb[0].mxu0 %v4088
        %v5193 = vpop.f32.mrb[0].mxu0
        %v5194 = vadd.f32 %v5153, %v5193
        %v5195 = vpop.f32.mrb[0].mxu0
        %v5196 = vadd.f32 %v5155, %v5195
        %v5197 = vpop.f32.mrb[0].mxu0
        %v5198 = vpop.f32.mrb[0].mxu0
        %5199 = vdwg.mxu0
        %5200 = vmatprep.subr.bf16.mxu0 %v4675
        %5201 = vmatpush1.bf16.msra.mxu0 %v4674
        %5202 = vmatprep.subr.bf16.mxu0 %v4679
        %5203 = vmatpush1.bf16.msra.mxu0 %v4678
        %5204 = vmatprep.subr.bf16.mxu0 %v4683
        %5205 = vmatpush1.bf16.msra.mxu0 %v4682
        %5206 = vmatprep.subr.bf16.mxu0 %v4687
        %5207 = vmatpush1.bf16.msra.mxu0 %v4686
        %5208 = vmatprep.subr.bf16.mxu0 %v4691
        %5209 = vmatpush1.bf16.msra.mxu0 %v4690
        %5210 = vmatprep.subr.bf16.mxu0 %v4695
        %5211 = vmatpush1.bf16.msra.mxu0 %v4694
        %5212 = vmatprep.subr.bf16.mxu0 %v4699
        %5213 = vmatpush1.bf16.msra.mxu0 %v4698
        %5214 = vmatprep.subr.bf16.mxu0 %v4703
        %5215 = vmatpush1.bf16.msra.mxu0 %v4702
        %5216 = vmatprep.subr.bf16.mxu0 %v4707
        %5217 = vmatpush1.bf16.msra.mxu0 %v4706
        %5218 = vmatprep.subr.bf16.mxu0 %v4711
        %5219 = vmatpush1.bf16.msra.mxu0 %v4710
        %5220 = vmatprep.subr.bf16.mxu0 %v4715
        %5221 = vmatpush1.bf16.msra.mxu0 %v4714
        %5222 = vmatprep.subr.bf16.mxu0 %v4719
        %5223 = vmatpush1.bf16.msra.mxu0 %v4718
        %5224 = vmatprep.subr.bf16.mxu0 %v4723
        %5225 = vmatpush1.bf16.msra.mxu0 %v4722
        %5226 = vmatprep.subr.bf16.mxu0 %v4727
        %5227 = vmatpush1.bf16.msra.mxu0 %v4726
        %5228 = vmatprep.subr.bf16.mxu0 %v4731
        %5229 = vmatpush1.bf16.msra.mxu0 %v4730
        %5230 = vmatprep.subr.bf16.mxu0 %v4735
        %5231 = vmatpush1.bf16.msra.mxu0 %v4734
        %5232 = vmatprep.mubr.bf16.mxu0 %v4085
        %5233 = vmatmul.mubr.bf16.gmra.mrb[0].mxu0 %v4084
        %v5234 = vpop.f32.mrb[0].mxu0
        %v5235 = vadd.f32 %v5068, %v5234
        %v5236 = vpop.f32.mrb[0].mxu0
        %v5237 = vadd.f32 %v5072, %v5236
        %v5238 = vpop.f32.mrb[0].mxu0
        %v5239 = vpop.f32.mrb[0].mxu0
        %5240 = vdwg.mxu0
        %5241 = vmatprep.subr.bf16.mxu0 %v4739
        %5242 = vmatpush1.bf16.msra.mxu0 %v4738
        %5243 = vmatprep.subr.bf16.mxu0 %v4743
        %5244 = vmatpush1.bf16.msra.mxu0 %v4742
        %5245 = vmatprep.subr.bf16.mxu0 %v4747
        %5246 = vmatpush1.bf16.msra.mxu0 %v4746
        %5247 = vmatprep.subr.bf16.mxu0 %v4751
        %5248 = vmatpush1.bf16.msra.mxu0 %v4750
        %5249 = vmatprep.subr.bf16.mxu0 %v4755
        %5250 = vmatpush1.bf16.msra.mxu0 %v4754
        %5251 = vmatprep.subr.bf16.mxu0 %v4759
        %5252 = vmatpush1.bf16.msra.mxu0 %v4758
        %5253 = vmatprep.subr.bf16.mxu0 %v4763
        %5254 = vmatpush1.bf16.msra.mxu0 %v4762
        %5255 = vmatprep.subr.bf16.mxu0 %v4767
        %5256 = vmatpush1.bf16.msra.mxu0 %v4766
        %5257 = vmatprep.subr.bf16.mxu0 %v4771
        %5258 = vmatpush1.bf16.msra.mxu0 %v4770
        %5259 = vmatprep.subr.bf16.mxu0 %v4775
        %5260 = vmatpush1.bf16.msra.mxu0 %v4774
        %5261 = vmatprep.subr.bf16.mxu0 %v4779
        %5262 = vmatpush1.bf16.msra.mxu0 %v4778
        %5263 = vmatprep.subr.bf16.mxu0 %v4783
        %5264 = vmatpush1.bf16.msra.mxu0 %v4782
        %5265 = vmatprep.subr.bf16.mxu0 %v4787
        %5266 = vmatpush1.bf16.msra.mxu0 %v4786
        %5267 = vmatprep.subr.bf16.mxu0 %v4791
        %5268 = vmatpush1.bf16.msra.mxu0 %v4790
        %5269 = vmatprep.subr.bf16.mxu0 %v4795
        %5270 = vmatpush1.bf16.msra.mxu0 %v4794
        %5271 = vmatprep.subr.bf16.mxu0 %v4799
        %5272 = vmatpush1.bf16.msra.mxu0 %v4798
        %5273 = vmatprep.mubr.bf16.mxu0 %v4087
        %5274 = vmatmul.mubr.bf16.gmra.mrb[0].mxu0 %v4086
        %v5275 = vpop.f32.mrb[0].mxu0
        %v5276 = vadd.f32 %v5235, %v5275
        %v5277 = vpop.f32.mrb[0].mxu0
        %v5278 = vadd.f32 %v5237, %v5277
        %v5279 = vpop.f32.mrb[0].mxu0
        %v5280 = vpop.f32.mrb[0].mxu0
        %5281 = vdwg.mxu0
        %5282 = vmatprep.subr.bf16.mxu0 %v4803
        %5283 = vmatpush1.bf16.msra.mxu0 %v4802
        %5284 = vmatprep.subr.bf16.mxu0 %v4807
        %5285 = vmatpush1.bf16.msra.mxu0 %v4806
        %5286 = vmatprep.subr.bf16.mxu0 %v4811
        %5287 = vmatpush1.bf16.msra.mxu0 %v4810
        %5288 = vmatprep.subr.bf16.mxu0 %v4815
        %5289 = vmatpush1.bf16.msra.mxu0 %v4814
        %5290 = vmatprep.subr.bf16.mxu0 %v4819
        %5291 = vmatpush1.bf16.msra.mxu0 %v4818
        %5292 = vmatprep.subr.bf16.mxu0 %v4823
        %5293 = vmatpush1.bf16.msra.mxu0 %v4822
        %5294 = vmatprep.subr.bf16.mxu0 %v4827
        %5295 = vmatpush1.bf16.msra.mxu0 %v4826
        %5296 = vmatprep.subr.bf16.mxu0 %v4831
        %5297 = vmatpush1.bf16.msra.mxu0 %v4830
        %5298 = vmatprep.subr.bf16.mxu0 %v4835
        %5299 = vmatpush1.bf16.msra.mxu0 %v4834
        %5300 = vmatprep.subr.bf16.mxu0 %v4839
        %5301 = vmatpush1.bf16.msra.mxu0 %v4838
        %5302 = vmatprep.subr.bf16.mxu0 %v4843
        %5303 = vmatpush1.bf16.msra.mxu0 %v4842
        %5304 = vmatprep.subr.bf16.mxu0 %v4847
        %5305 = vmatpush1.bf16.msra.mxu0 %v4846
        %5306 = vmatprep.subr.bf16.mxu0 %v4851
        %5307 = vmatpush1.bf16.msra.mxu0 %v4850
        %5308 = vmatprep.subr.bf16.mxu0 %v4855
        %5309 = vmatpush1.bf16.msra.mxu0 %v4854
        %5310 = vmatprep.subr.bf16.mxu0 %v4859
        %5311 = vmatpush1.bf16.msra.mxu0 %v4858
        %5312 = vmatprep.subr.bf16.mxu0 %v4863
        %5313 = vmatpush1.bf16.msra.mxu0 %v4862
        %5314 = vmatprep.mubr.bf16.mxu0 %v4089
        %5315 = vmatmul.mubr.bf16.gmra.mrb[0].mxu0 %v4088
        %v5316 = vpop.f32.mrb[0].mxu0
        %v5317 = vadd.f32 %v5276, %v5316
        %v5318 = vpop.f32.mrb[0].mxu0
        %v5319 = vadd.f32 %v5278, %v5318
        %v5320 = vpop.f32.mrb[0].mxu0
        %v5321 = vpop.f32.mrb[0].mxu0
        %5322 = vdwg.mxu0
        %v5327 = vcombine.low %v5194, %v5196
        %v5328 = vcombine.low %v5317, %v5319
        %v5330 = vunpack.c.l.s4 1966171168
        %v5331 = vunpack.c.0.s8 %v5330
        %v5332 = vlaneseq
        %v5333 = vshrl.u32 %v5332, 7
        %v5334 = vsub.s32 %v5331, %v5333
        %v5335 = vrot.slane %v5327, %v5334
        %v5337 = vunpack.c.l.s4 1966171168
        %v5338 = vunpack.c.0.s8 %v5337
        %v5339 = vlaneseq
        %v5340 = vshrl.u32 %v5339, 7
        %v5341 = vsub.s32 %v5338, %v5340
        %v5342 = vrot.slane %v5328, %v5341
        %v5343 = vcombine.low %v5335, %v5342
        %v5345 = vunpack.c.l.s4 1966171168
        %v5346 = vunpack.c.0.s8 %v5345
        %v5347 = vlaneseq
        %v5348 = vshrl.u32 %v5347, 7
        %v5349 = vsub.s32 %v5346, %v5348
        %v5350 = vrot.slane %v5343, %v5349
        %v5352 = vlaneseq
        %vm5353 = vcmp.ge.s32.totalorder %v5352, 0
        %vm5354 = vcmp.lt.s32.totalorder %v5352, 512
        %vm5355 = vmand %vm5353, %vm5354
        %5356 = vst.msk [vmem:[%s765] ss:$8 sm:$0xf] %vm5355, %v5350
        %5357 = vst.msk [vmem:[%s765] ss:$8 sm:$0x0] %vm5355, %v5350
        %s5358 = scalar_lea.vmem %s771, 792
        %v5359 = vld [vmem:[%s5358] sm:$0xff]
        %v5360 = vld [vmem:[%s5358 + $0x8] sm:$0xff]
        %v5361 = vld [vmem:[%s5358 + $0x10] sm:$0xff]
        %v5362 = vld [vmem:[%s5358 + $0x18] sm:$0xff]
        %v5363 = vld [vmem:[%s5358 + $0x20] sm:$0xff]
        %v5364 = vld [vmem:[%s5358 + $0x28] sm:$0xff]
        %v5365 = vld [vmem:[%s5358 + $0x30] sm:$0xff]
        %v5366 = vld [vmem:[%s5358 + $0x38] sm:$0xff]
        %v5367 = vld [vmem:[%s5358 + $0x40] sm:$0xff]
        %v5368 = vld [vmem:[%s5358 + $0x48] sm:$0xff]
        %v5369 = vld [vmem:[%s5358 + $0x50] sm:$0xff]
        %v5370 = vld [vmem:[%s5358 + $0x58] sm:$0xff]
        %v5371 = vld [vmem:[%s5358 + $0x60] sm:$0xff]
        %v5372 = vld [vmem:[%s5358 + $0x68] sm:$0xff]
        %v5373 = vld [vmem:[%s5358 + $0x70] sm:$0xff]
        %v5374 = vld [vmem:[%s5358 + $0x78] sm:$0xff]
        %v5375 = vld [vmem:[%s5358 + $0x80] sm:$0xff]
        %v5376 = vld [vmem:[%s5358 + $0x88] sm:$0xff]
        %v5377 = vld [vmem:[%s5358 + $0x90] sm:$0xff]
        %v5378 = vld [vmem:[%s5358 + $0x98] sm:$0xff]
        %v5379 = vld [vmem:[%s5358 + $0xa0] sm:$0xff]
        %v5380 = vld [vmem:[%s5358 + $0xa8] sm:$0xff]
        %v5381 = vld [vmem:[%s5358 + $0xb0] sm:$0xff]
        %v5382 = vld [vmem:[%s5358 + $0xb8] sm:$0xff]
        %v5383 = vld [vmem:[%s5358 + $0xc0] sm:$0xff]
        %v5384 = vld [vmem:[%s5358 + $0xc8] sm:$0xff]
        %v5385 = vld [vmem:[%s5358 + $0xd0] sm:$0xff]
        %v5386 = vld [vmem:[%s5358 + $0xd8] sm:$0xff]
        %v5387 = vld [vmem:[%s5358 + $0xe0] sm:$0xff]
        %v5388 = vld [vmem:[%s5358 + $0xe8] sm:$0xff]
        %v5389 = vld [vmem:[%s5358 + $0xf0] sm:$0xff]
        %v5390 = vld [vmem:[%s5358 + $0xf8] sm:$0xff]
        %v5391 = vld [vmem:[%s5358 + $0x100] sm:$0xff]
        %v5392 = vld [vmem:[%s5358 + $0x108] sm:$0xff]
        %v5393 = vld [vmem:[%s5358 + $0x110] sm:$0xff]
        %v5394 = vld [vmem:[%s5358 + $0x118] sm:$0xff]
        %v5395 = vld [vmem:[%s5358 + $0x120] sm:$0xff]
        %v5396 = vld [vmem:[%s5358 + $0x128] sm:$0xff]
        %v5397 = vld [vmem:[%s5358 + $0x130] sm:$0xff]
        %v5398 = vld [vmem:[%s5358 + $0x138] sm:$0xff]
        %v5399 = vld [vmem:[%s5358 + $0x140] sm:$0xff]
        %v5400 = vld [vmem:[%s5358 + $0x148] sm:$0xff]
        %v5401 = vld [vmem:[%s5358 + $0x150] sm:$0xff]
        %v5402 = vld [vmem:[%s5358 + $0x158] sm:$0xff]
        %v5403 = vld [vmem:[%s5358 + $0x160] sm:$0xff]
        %v5404 = vld [vmem:[%s5358 + $0x168] sm:$0xff]
        %v5405 = vld [vmem:[%s5358 + $0x170] sm:$0xff]
        %v5406 = vld [vmem:[%s5358 + $0x178] sm:$0xff]
        %v5407 = vld [vmem:[%s5358 + $0x180] sm:$0xff]
        %v5408 = vld [vmem:[%s5358 + $0x188] sm:$0xff]
        %v5409 = vld [vmem:[%s5358 + $0x190] sm:$0xff]
        %v5410 = vld [vmem:[%s5358 + $0x198] sm:$0xff]
        %v5411 = vld [vmem:[%s5358 + $0x1a0] sm:$0xff]
        %v5412 = vld [vmem:[%s5358 + $0x1a8] sm:$0xff]
        %v5413 = vld [vmem:[%s5358 + $0x1b0] sm:$0xff]
        %v5414 = vld [vmem:[%s5358 + $0x1b8] sm:$0xff]
        %v5415 = vld [vmem:[%s5358 + $0x1c0] sm:$0xff]
        %v5416 = vld [vmem:[%s5358 + $0x1c8] sm:$0xff]
        %v5417 = vld [vmem:[%s5358 + $0x1d0] sm:$0xff]
        %v5418 = vld [vmem:[%s5358 + $0x1d8] sm:$0xff]
        %v5419 = vld [vmem:[%s5358 + $0x1e0] sm:$0xff]
        %v5420 = vld [vmem:[%s5358 + $0x1e8] sm:$0xff]
        %v5421 = vld [vmem:[%s5358 + $0x1f0] sm:$0xff]
        %v5422 = vld [vmem:[%s5358 + $0x1f8] sm:$0xff]
        %v5423 = vld [vmem:[%s5358 + $0x200] sm:$0xff]
        %v5424 = vld [vmem:[%s5358 + $0x208] sm:$0xff]
        %v5425 = vld [vmem:[%s5358 + $0x210] sm:$0xff]
        %v5426 = vld [vmem:[%s5358 + $0x218] sm:$0xff]
        %v5427 = vld [vmem:[%s5358 + $0x220] sm:$0xff]
        %v5428 = vld [vmem:[%s5358 + $0x228] sm:$0xff]
        %v5429 = vld [vmem:[%s5358 + $0x230] sm:$0xff]
        %v5430 = vld [vmem:[%s5358 + $0x238] sm:$0xff]
        %v5431 = vld [vmem:[%s5358 + $0x240] sm:$0xff]
        %v5432 = vld [vmem:[%s5358 + $0x248] sm:$0xff]
        %v5433 = vld [vmem:[%s5358 + $0x250] sm:$0xff]
        %v5434 = vld [vmem:[%s5358 + $0x258] sm:$0xff]
        %v5435 = vld [vmem:[%s5358 + $0x260] sm:$0xff]
        %v5436 = vld [vmem:[%s5358 + $0x268] sm:$0xff]
        %v5437 = vld [vmem:[%s5358 + $0x270] sm:$0xff]
        %v5438 = vld [vmem:[%s5358 + $0x278] sm:$0xff]
        %v5439 = vld [vmem:[%s5358 + $0x280] sm:$0xff]
        %v5440 = vld [vmem:[%s5358 + $0x288] sm:$0xff]
        %v5441 = vld [vmem:[%s5358 + $0x290] sm:$0xff]
        %v5442 = vld [vmem:[%s5358 + $0x298] sm:$0xff]
        %v5443 = vld [vmem:[%s5358 + $0x2a0] sm:$0xff]
        %v5444 = vld [vmem:[%s5358 + $0x2a8] sm:$0xff]
        %v5445 = vld [vmem:[%s5358 + $0x2b0] sm:$0xff]
        %v5446 = vld [vmem:[%s5358 + $0x2b8] sm:$0xff]
        %v5447 = vld [vmem:[%s5358 + $0x2c0] sm:$0xff]
        %v5448 = vld [vmem:[%s5358 + $0x2c8] sm:$0xff]
        %v5449 = vld [vmem:[%s5358 + $0x2d0] sm:$0xff]
        %v5450 = vld [vmem:[%s5358 + $0x2d8] sm:$0xff]
        %v5451 = vld [vmem:[%s5358 + $0x2e0] sm:$0xff]
        %v5452 = vld [vmem:[%s5358 + $0x2e8] sm:$0xff]
        %v5453 = vld [vmem:[%s5358 + $0x2f0] sm:$0xff]
        %v5454 = vld [vmem:[%s5358 + $0x2f8] sm:$0xff]
        %v5455 = vld [vmem:[%s5358 + $0x300] sm:$0x11]
        %v5456 = vld [vmem:[%s5358 + $0x308] sm:$0x11]
        %v5457 = vld [vmem:[%s5358 + $0x310] sm:$0x11]
        %v5557 = vunpack.c.l.b16 %v5359
        %v5558 = vunpack.c.h.b16 %v5359
        %v5559 = vunpack.c.l.b16 %v5360
        %v5560 = vunpack.c.h.b16 %v5360
        %v5561 = vunpack.c.l.b16 %v5361
        %v5562 = vunpack.c.h.b16 %v5361
        %v5563 = vunpack.c.l.b16 %v5362
        %v5564 = vunpack.c.h.b16 %v5362
        %v5565 = vunpack.c.l.b16 %v5363
        %v5566 = vunpack.c.h.b16 %v5363
        %v5567 = vunpack.c.l.b16 %v5364
        %v5568 = vunpack.c.h.b16 %v5364
        %v5569 = vunpack.c.l.b16 %v5365
        %v5570 = vunpack.c.h.b16 %v5365
        %v5571 = vunpack.c.l.b16 %v5366
        %v5572 = vunpack.c.h.b16 %v5366
        %v5573 = vunpack.c.l.b16 %v5367
        %v5574 = vunpack.c.h.b16 %v5367
        %v5575 = vunpack.c.l.b16 %v5368
        %v5576 = vunpack.c.h.b16 %v5368
        %v5577 = vunpack.c.l.b16 %v5369
        %v5578 = vunpack.c.h.b16 %v5369
        %v5579 = vunpack.c.l.b16 %v5370
        %v5580 = vunpack.c.h.b16 %v5370
        %v5581 = vunpack.c.l.b16 %v5371
        %v5582 = vunpack.c.h.b16 %v5371
        %v5583 = vunpack.c.l.b16 %v5372
        %v5584 = vunpack.c.h.b16 %v5372
        %v5585 = vunpack.c.l.b16 %v5373
        %v5586 = vunpack.c.h.b16 %v5373
        %v5587 = vunpack.c.l.b16 %v5374
        %v5588 = vunpack.c.h.b16 %v5374
        %v5589 = vunpack.c.l.b16 %v5375
        %v5590 = vunpack.c.h.b16 %v5375
        %v5591 = vunpack.c.l.b16 %v5376
        %v5592 = vunpack.c.h.b16 %v5376
        %v5593 = vunpack.c.l.b16 %v5377
        %v5594 = vunpack.c.h.b16 %v5377
        %v5595 = vunpack.c.l.b16 %v5378
        %v5596 = vunpack.c.h.b16 %v5378
        %v5597 = vunpack.c.l.b16 %v5379
        %v5598 = vunpack.c.h.b16 %v5379
        %v5599 = vunpack.c.l.b16 %v5380
        %v5600 = vunpack.c.h.b16 %v5380
        %v5601 = vunpack.c.l.b16 %v5381
        %v5602 = vunpack.c.h.b16 %v5381
        %v5603 = vunpack.c.l.b16 %v5382
        %v5604 = vunpack.c.h.b16 %v5382
        %v5605 = vunpack.c.l.b16 %v5383
        %v5606 = vunpack.c.h.b16 %v5383
        %v5607 = vunpack.c.l.b16 %v5384
        %v5608 = vunpack.c.h.b16 %v5384
        %v5609 = vunpack.c.l.b16 %v5385
        %v5610 = vunpack.c.h.b16 %v5385
        %v5611 = vunpack.c.l.b16 %v5386
        %v5612 = vunpack.c.h.b16 %v5386
        %v5613 = vunpack.c.l.b16 %v5387
        %v5614 = vunpack.c.h.b16 %v5387
        %v5615 = vunpack.c.l.b16 %v5388
        %v5616 = vunpack.c.h.b16 %v5388
        %v5617 = vunpack.c.l.b16 %v5389
        %v5618 = vunpack.c.h.b16 %v5389
        %v5619 = vunpack.c.l.b16 %v5390
        %v5620 = vunpack.c.h.b16 %v5390
        %v5621 = vunpack.c.l.b16 %v5391
        %v5622 = vunpack.c.h.b16 %v5391
        %v5623 = vunpack.c.l.b16 %v5392
        %v5624 = vunpack.c.h.b16 %v5392
        %v5625 = vunpack.c.l.b16 %v5393
        %v5626 = vunpack.c.h.b16 %v5393
        %v5627 = vunpack.c.l.b16 %v5394
        %v5628 = vunpack.c.h.b16 %v5394
        %v5629 = vunpack.c.l.b16 %v5395
        %v5630 = vunpack.c.h.b16 %v5395
        %v5631 = vunpack.c.l.b16 %v5396
        %v5632 = vunpack.c.h.b16 %v5396
        %v5633 = vunpack.c.l.b16 %v5397
        %v5634 = vunpack.c.h.b16 %v5397
        %v5635 = vunpack.c.l.b16 %v5398
        %v5636 = vunpack.c.h.b16 %v5398
        %v5637 = vunpack.c.l.b16 %v5399
        %v5638 = vunpack.c.h.b16 %v5399
        %v5639 = vunpack.c.l.b16 %v5400
        %v5640 = vunpack.c.h.b16 %v5400
        %v5641 = vunpack.c.l.b16 %v5401
        %v5642 = vunpack.c.h.b16 %v5401
        %v5643 = vunpack.c.l.b16 %v5402
        %v5644 = vunpack.c.h.b16 %v5402
        %v5645 = vunpack.c.l.b16 %v5403
        %v5646 = vunpack.c.h.b16 %v5403
        %v5647 = vunpack.c.l.b16 %v5404
        %v5648 = vunpack.c.h.b16 %v5404
        %v5649 = vunpack.c.l.b16 %v5405
        %v5650 = vunpack.c.h.b16 %v5405
        %v5651 = vunpack.c.l.b16 %v5406
        %v5652 = vunpack.c.h.b16 %v5406
        %v5653 = vunpack.c.l.b16 %v5407
        %v5654 = vunpack.c.h.b16 %v5407
        %v5655 = vunpack.c.l.b16 %v5408
        %v5656 = vunpack.c.h.b16 %v5408
        %v5657 = vunpack.c.l.b16 %v5409
        %v5658 = vunpack.c.h.b16 %v5409
        %v5659 = vunpack.c.l.b16 %v5410
        %v5660 = vunpack.c.h.b16 %v5410
        %v5661 = vunpack.c.l.b16 %v5411
        %v5662 = vunpack.c.h.b16 %v5411
        %v5663 = vunpack.c.l.b16 %v5412
        %v5664 = vunpack.c.h.b16 %v5412
        %v5665 = vunpack.c.l.b16 %v5413
        %v5666 = vunpack.c.h.b16 %v5413
        %v5667 = vunpack.c.l.b16 %v5414
        %v5668 = vunpack.c.h.b16 %v5414
        %v5669 = vunpack.c.l.b16 %v5415
        %v5670 = vunpack.c.h.b16 %v5415
        %v5671 = vunpack.c.l.b16 %v5416
        %v5672 = vunpack.c.h.b16 %v5416
        %v5673 = vunpack.c.l.b16 %v5417
        %v5674 = vunpack.c.h.b16 %v5417
        %v5675 = vunpack.c.l.b16 %v5418
        %v5676 = vunpack.c.h.b16 %v5418
        %v5677 = vunpack.c.l.b16 %v5419
        %v5678 = vunpack.c.h.b16 %v5419
        %v5679 = vunpack.c.l.b16 %v5420
        %v5680 = vunpack.c.h.b16 %v5420
        %v5681 = vunpack.c.l.b16 %v5421
        %v5682 = vunpack.c.h.b16 %v5421
        %v5683 = vunpack.c.l.b16 %v5422
        %v5684 = vunpack.c.h.b16 %v5422
        %v5685 = vunpack.c.l.b16 %v5423
        %v5686 = vunpack.c.h.b16 %v5423
        %v5687 = vunpack.c.l.b16 %v5424
        %v5688 = vunpack.c.h.b16 %v5424
        %v5689 = vunpack.c.l.b16 %v5425
        %v5690 = vunpack.c.h.b16 %v5425
        %v5691 = vunpack.c.l.b16 %v5426
        %v5692 = vunpack.c.h.b16 %v5426
        %v5693 = vunpack.c.l.b16 %v5427
        %v5694 = vunpack.c.h.b16 %v5427
        %v5695 = vunpack.c.l.b16 %v5428
        %v5696 = vunpack.c.h.b16 %v5428
        %v5697 = vunpack.c.l.b16 %v5429
        %v5698 = vunpack.c.h.b16 %v5429
        %v5699 = vunpack.c.l.b16 %v5430
        %v5700 = vunpack.c.h.b16 %v5430
        %v5701 = vunpack.c.l.b16 %v5431
        %v5702 = vunpack.c.h.b16 %v5431
        %v5703 = vunpack.c.l.b16 %v5432
        %v5704 = vunpack.c.h.b16 %v5432
        %v5705 = vunpack.c.l.b16 %v5433
        %v5706 = vunpack.c.h.b16 %v5433
        %v5707 = vunpack.c.l.b16 %v5434
        %v5708 = vunpack.c.h.b16 %v5434
        %v5709 = vunpack.c.l.b16 %v5435
        %v5710 = vunpack.c.h.b16 %v5435
        %v5711 = vunpack.c.l.b16 %v5436
        %v5712 = vunpack.c.h.b16 %v5436
        %v5713 = vunpack.c.l.b16 %v5437
        %v5714 = vunpack.c.h.b16 %v5437
        %v5715 = vunpack.c.l.b16 %v5438
        %v5716 = vunpack.c.h.b16 %v5438
        %v5717 = vunpack.c.l.b16 %v5439
        %v5718 = vunpack.c.h.b16 %v5439
        %v5719 = vunpack.c.l.b16 %v5440
        %v5720 = vunpack.c.h.b16 %v5440
        %v5721 = vunpack.c.l.b16 %v5441
        %v5722 = vunpack.c.h.b16 %v5441
        %v5723 = vunpack.c.l.b16 %v5442
        %v5724 = vunpack.c.h.b16 %v5442
        %v5725 = vunpack.c.l.b16 %v5443
        %v5726 = vunpack.c.h.b16 %v5443
        %v5727 = vunpack.c.l.b16 %v5444
        %v5728 = vunpack.c.h.b16 %v5444
        %v5729 = vunpack.c.l.b16 %v5445
        %v5730 = vunpack.c.h.b16 %v5445
        %v5731 = vunpack.c.l.b16 %v5446
        %v5732 = vunpack.c.h.b16 %v5446
        %v5733 = vunpack.c.l.b16 %v5447
        %v5734 = vunpack.c.h.b16 %v5447
        %v5735 = vunpack.c.l.b16 %v5448
        %v5736 = vunpack.c.h.b16 %v5448
        %v5737 = vunpack.c.l.b16 %v5449
        %v5738 = vunpack.c.h.b16 %v5449
        %v5739 = vunpack.c.l.b16 %v5450
        %v5740 = vunpack.c.h.b16 %v5450
        %v5741 = vunpack.c.l.b16 %v5451
        %v5742 = vunpack.c.h.b16 %v5451
        %v5743 = vunpack.c.l.b16 %v5452
        %v5744 = vunpack.c.h.b16 %v5452
        %v5745 = vunpack.c.l.b16 %v5453
        %v5746 = vunpack.c.h.b16 %v5453
        %v5747 = vunpack.c.l.b16 %v5454
        %v5748 = vunpack.c.h.b16 %v5454
        %v5749 = vunpack.c.l.b16 %v5455
        %v5750 = vunpack.c.h.b16 %v5455
        %v5751 = vunpack.c.l.b16 %v5456
        %v5752 = vunpack.c.h.b16 %v5456
        %v5753 = vunpack.c.l.b16 %v5457
        %v5754 = vunpack.c.h.b16 %v5457
        %v5755 = vpack.c.b16 %v5563, %v5557
        %v5756 = vpack.c.b16 %v5564, %v5558
        %v5757 = vpack.c.b16 %v5565, %v5559
        %v5758 = vpack.c.b16 %v5566, %v5560
        %v5759 = vpack.c.b16 %v5567, %v5561
        %v5760 = vpack.c.b16 %v5568, %v5562
        %v5761 = vpack.c.b16 %v5575, %v5569
        %v5762 = vpack.c.b16 %v5576, %v5570
        %v5763 = vpack.c.b16 %v5577, %v5571
        %v5764 = vpack.c.b16 %v5578, %v5572
        %v5765 = vpack.c.b16 %v5579, %v5573
        %v5766 = vpack.c.b16 %v5580, %v5574
        %v5767 = vpack.c.b16 %v5587, %v5581
        %v5768 = vpack.c.b16 %v5588, %v5582
        %v5769 = vpack.c.b16 %v5589, %v5583
        %v5770 = vpack.c.b16 %v5590, %v5584
        %v5771 = vpack.c.b16 %v5591, %v5585
        %v5772 = vpack.c.b16 %v5592, %v5586
        %v5773 = vpack.c.b16 %v5599, %v5593
        %v5774 = vpack.c.b16 %v5600, %v5594
        %v5775 = vpack.c.b16 %v5601, %v5595
        %v5776 = vpack.c.b16 %v5602, %v5596
        %v5777 = vpack.c.b16 %v5603, %v5597
        %v5778 = vpack.c.b16 %v5604, %v5598
        %v5779 = vpack.c.b16 %v5611, %v5605
        %v5780 = vpack.c.b16 %v5612, %v5606
        %v5781 = vpack.c.b16 %v5613, %v5607
        %v5782 = vpack.c.b16 %v5614, %v5608
        %v5783 = vpack.c.b16 %v5615, %v5609
        %v5784 = vpack.c.b16 %v5616, %v5610
        %v5785 = vpack.c.b16 %v5623, %v5617
        %v5786 = vpack.c.b16 %v5624, %v5618
        %v5787 = vpack.c.b16 %v5625, %v5619
        %v5788 = vpack.c.b16 %v5626, %v5620
        %v5789 = vpack.c.b16 %v5627, %v5621
        %v5790 = vpack.c.b16 %v5628, %v5622
        %v5791 = vpack.c.b16 %v5635, %v5629
        %v5792 = vpack.c.b16 %v5636, %v5630
        %v5793 = vpack.c.b16 %v5637, %v5631
        %v5794 = vpack.c.b16 %v5638, %v5632
        %v5795 = vpack.c.b16 %v5639, %v5633
        %v5796 = vpack.c.b16 %v5640, %v5634
        %v5797 = vpack.c.b16 %v5647, %v5641
        %v5798 = vpack.c.b16 %v5648, %v5642
        %v5799 = vpack.c.b16 %v5649, %v5643
        %v5800 = vpack.c.b16 %v5650, %v5644
        %v5801 = vpack.c.b16 %v5651, %v5645
        %v5802 = vpack.c.b16 %v5652, %v5646
        %v5803 = vpack.c.b16 %v5659, %v5653
        %v5804 = vpack.c.b16 %v5660, %v5654
        %v5805 = vpack.c.b16 %v5661, %v5655
        %v5806 = vpack.c.b16 %v5662, %v5656
        %v5807 = vpack.c.b16 %v5663, %v5657
        %v5808 = vpack.c.b16 %v5664, %v5658
        %v5809 = vpack.c.b16 %v5671, %v5665
        %v5810 = vpack.c.b16 %v5672, %v5666
        %v5811 = vpack.c.b16 %v5673, %v5667
        %v5812 = vpack.c.b16 %v5674, %v5668
        %v5813 = vpack.c.b16 %v5675, %v5669
        %v5814 = vpack.c.b16 %v5676, %v5670
        %v5815 = vpack.c.b16 %v5683, %v5677
        %v5816 = vpack.c.b16 %v5684, %v5678
        %v5817 = vpack.c.b16 %v5685, %v5679
        %v5818 = vpack.c.b16 %v5686, %v5680
        %v5819 = vpack.c.b16 %v5687, %v5681
        %v5820 = vpack.c.b16 %v5688, %v5682
        %v5821 = vpack.c.b16 %v5695, %v5689
        %v5822 = vpack.c.b16 %v5696, %v5690
        %v5823 = vpack.c.b16 %v5697, %v5691
        %v5824 = vpack.c.b16 %v5698, %v5692
        %v5825 = vpack.c.b16 %v5699, %v5693
        %v5826 = vpack.c.b16 %v5700, %v5694
        %v5827 = vpack.c.b16 %v5707, %v5701
        %v5828 = vpack.c.b16 %v5708, %v5702
        %v5829 = vpack.c.b16 %v5709, %v5703
        %v5830 = vpack.c.b16 %v5710, %v5704
        %v5831 = vpack.c.b16 %v5711, %v5705
        %v5832 = vpack.c.b16 %v5712, %v5706
        %v5833 = vpack.c.b16 %v5719, %v5713
        %v5834 = vpack.c.b16 %v5720, %v5714
        %v5835 = vpack.c.b16 %v5721, %v5715
        %v5836 = vpack.c.b16 %v5722, %v5716
        %v5837 = vpack.c.b16 %v5723, %v5717
        %v5838 = vpack.c.b16 %v5724, %v5718
        %v5839 = vpack.c.b16 %v5731, %v5725
        %v5840 = vpack.c.b16 %v5732, %v5726
        %v5841 = vpack.c.b16 %v5733, %v5727
        %v5842 = vpack.c.b16 %v5734, %v5728
        %v5843 = vpack.c.b16 %v5735, %v5729
        %v5844 = vpack.c.b16 %v5736, %v5730
        %v5845 = vpack.c.b16 %v5743, %v5737
        %v5846 = vpack.c.b16 %v5744, %v5738
        %v5847 = vpack.c.b16 %v5745, %v5739
        %v5848 = vpack.c.b16 %v5746, %v5740
        %v5849 = vpack.c.b16 %v5747, %v5741
        %v5850 = vpack.c.b16 %v5748, %v5742
        %v5851 = vpack.c.b16 %v5749, %v5749
        %v5852 = vpack.c.b16 %v5750, %v5750
        %v5853 = vpack.c.b16 %v5751, %v5751
        %v5854 = vpack.c.b16 %v5752, %v5752
        %v5855 = vpack.c.b16 %v5753, %v5753
        %v5856 = vpack.c.b16 %v5754, %v5754
        %5959 = vmatprep.subr.bf16.mxu0 %v2363
        %5960 = vmatpush1.bf16.msra.mxu0 %v2362
        %5961 = vmatprep.subr.bf16.mxu0 %v2367
        %5962 = vmatpush1.bf16.msra.mxu0 %v2366
        %5963 = vmatprep.subr.bf16.mxu0 %v2371
        %5964 = vmatpush1.bf16.msra.mxu0 %v2370
        %5965 = vmatprep.subr.bf16.mxu0 %v2375
        %5966 = vmatpush1.bf16.msra.mxu0 %v2374
        %5967 = vmatprep.subr.bf16.mxu0 %v2379
        %5968 = vmatpush1.bf16.msra.mxu0 %v2378
        %5969 = vmatprep.subr.bf16.mxu0 %v2383
        %5970 = vmatpush1.bf16.msra.mxu0 %v2382
        %5971 = vmatprep.subr.bf16.mxu0 %v2387
        %5972 = vmatpush1.bf16.msra.mxu0 %v2386
        %5973 = vmatprep.subr.bf16.mxu0 %v2391
        %5974 = vmatpush1.bf16.msra.mxu0 %v2390
        %5975 = vmatprep.subr.bf16.mxu0 %v2395
        %5976 = vmatpush1.bf16.msra.mxu0 %v2394
        %5977 = vmatprep.subr.bf16.mxu0 %v2399
        %5978 = vmatpush1.bf16.msra.mxu0 %v2398
        %5979 = vmatprep.subr.bf16.mxu0 %v2403
        %5980 = vmatpush1.bf16.msra.mxu0 %v2402
        %5981 = vmatprep.subr.bf16.mxu0 %v2407
        %5982 = vmatpush1.bf16.msra.mxu0 %v2406
        %5983 = vmatprep.subr.bf16.mxu0 %v2411
        %5984 = vmatpush1.bf16.msra.mxu0 %v2410
        %5985 = vmatprep.subr.bf16.mxu0 %v2415
        %5986 = vmatpush1.bf16.msra.mxu0 %v2414
        %5987 = vmatprep.subr.bf16.mxu0 %v2419
        %5988 = vmatpush1.bf16.msra.mxu0 %v2418
        %5989 = vmatprep.subr.bf16.mxu0 %v2423
        %5990 = vmatpush1.bf16.msra.mxu0 %v2422
        %5991 = vmatprep.mubr.bf16.mxu0 %v5756
        %5992 = vmatmul.mubr.bf16.gmra.mrb[0].mxu0 %v5755
        %v5993 = vpop.f32.mrb[0].mxu0
        %v5994 = vadd.f32 %v1268, %v5993
        %v5995 = vpop.f32.mrb[0].mxu0
        %v5996 = vadd.f32 %v1272, %v5995
        %v5997 = vpop.f32.mrb[0].mxu0
        %v5998 = vadd.f32 %v1268, %v5997
        %v5999 = vpop.f32.mrb[0].mxu0
        %v6000 = vadd.f32 %v1272, %v5999
        %6001 = vmatprep.mubr.bf16.mxu0 %v5762
        %6002 = vmatmul.mubr.bf16.gmra.mrb[0].mxu0 %v5761
        %v6003 = vpop.f32.mrb[0].mxu0
        %v6004 = vadd.f32 %v1268, %v6003
        %v6005 = vpop.f32.mrb[0].mxu0
        %v6006 = vadd.f32 %v1272, %v6005
        %v6007 = vpop.f32.mrb[0].mxu0
        %v6008 = vadd.f32 %v1268, %v6007
        %v6009 = vpop.f32.mrb[0].mxu0
        %v6010 = vadd.f32 %v1272, %v6009
        %6011 = vmatprep.mubr.bf16.mxu0 %v5768
        %6012 = vmatmul.mubr.bf16.gmra.mrb[0].mxu0 %v5767
        %v6013 = vpop.f32.mrb[0].mxu0
        %v6014 = vadd.f32 %v1268, %v6013
        %v6015 = vpop.f32.mrb[0].mxu0
        %v6016 = vadd.f32 %v1272, %v6015
        %v6017 = vpop.f32.mrb[0].mxu0
        %v6018 = vadd.f32 %v1268, %v6017
        %v6019 = vpop.f32.mrb[0].mxu0
        %v6020 = vadd.f32 %v1272, %v6019
        %6021 = vmatprep.mubr.bf16.mxu0 %v5774
        %6022 = vmatmul.mubr.bf16.gmra.mrb[0].mxu0 %v5773
        %v6023 = vpop.f32.mrb[0].mxu0
        %v6024 = vadd.f32 %v1268, %v6023
        %v6025 = vpop.f32.mrb[0].mxu0
        %v6026 = vadd.f32 %v1272, %v6025
        %v6027 = vpop.f32.mrb[0].mxu0
        %v6028 = vadd.f32 %v1268, %v6027
        %v6029 = vpop.f32.mrb[0].mxu0
        %v6030 = vadd.f32 %v1272, %v6029
        %6031 = vmatprep.mubr.bf16.mxu0 %v5780
        %6032 = vmatmul.mubr.bf16.gmra.mrb[0].mxu0 %v5779
        %v6033 = vpop.f32.mrb[0].mxu0
        %v6034 = vadd.f32 %v1268, %v6033
        %v6035 = vpop.f32.mrb[0].mxu0
        %v6036 = vadd.f32 %v1272, %v6035
        %v6037 = vpop.f32.mrb[0].mxu0
        %v6038 = vadd.f32 %v1268, %v6037
        %v6039 = vpop.f32.mrb[0].mxu0
        %v6040 = vadd.f32 %v1272, %v6039
        %6041 = vmatprep.mubr.bf16.mxu0 %v5786
        %6042 = vmatmul.mubr.bf16.gmra.mrb[0].mxu0 %v5785
        %v6043 = vpop.f32.mrb[0].mxu0
        %v6044 = vadd.f32 %v1268, %v6043
        %v6045 = vpop.f32.mrb[0].mxu0
        %v6046 = vadd.f32 %v1272, %v6045
        %v6047 = vpop.f32.mrb[0].mxu0
        %v6048 = vadd.f32 %v1268, %v6047
        %v6049 = vpop.f32.mrb[0].mxu0
        %v6050 = vadd.f32 %v1272, %v6049
        %6051 = vmatprep.mubr.bf16.mxu0 %v5792
        %6052 = vmatmul.mubr.bf16.gmra.mrb[0].mxu0 %v5791
        %v6053 = vpop.f32.mrb[0].mxu0
        %v6054 = vadd.f32 %v1268, %v6053
        %v6055 = vpop.f32.mrb[0].mxu0
        %v6056 = vadd.f32 %v1272, %v6055
        %v6057 = vpop.f32.mrb[0].mxu0
        %v6058 = vadd.f32 %v1268, %v6057
        %v6059 = vpop.f32.mrb[0].mxu0
        %v6060 = vadd.f32 %v1272, %v6059
        %6061 = vmatprep.mubr.bf16.mxu0 %v5798
        %6062 = vmatmul.mubr.bf16.gmra.mrb[0].mxu0 %v5797
        %v6063 = vpop.f32.mrb[0].mxu0
        %v6064 = vadd.f32 %v1268, %v6063
        %v6065 = vpop.f32.mrb[0].mxu0
        %v6066 = vadd.f32 %v1272, %v6065
        %v6067 = vpop.f32.mrb[0].mxu0
        %v6068 = vadd.f32 %v1268, %v6067
        %v6069 = vpop.f32.mrb[0].mxu0
        %v6070 = vadd.f32 %v1272, %v6069
        %6071 = vmatprep.mubr.bf16.mxu0 %v5804
        %6072 = vmatmul.mubr.bf16.gmra.mrb[0].mxu0 %v5803
        %v6073 = vpop.f32.mrb[0].mxu0
        %v6074 = vadd.f32 %v1268, %v6073
        %v6075 = vpop.f32.mrb[0].mxu0
        %v6076 = vadd.f32 %v1272, %v6075
        %v6077 = vpop.f32.mrb[0].mxu0
        %v6078 = vadd.f32 %v1268, %v6077
        %v6079 = vpop.f32.mrb[0].mxu0
        %v6080 = vadd.f32 %v1272, %v6079
        %6081 = vmatprep.mubr.bf16.mxu0 %v5810
        %6082 = vmatmul.mubr.bf16.gmra.mrb[0].mxu0 %v5809
        %v6083 = vpop.f32.mrb[0].mxu0
        %v6084 = vadd.f32 %v1268, %v6083
        %v6085 = vpop.f32.mrb[0].mxu0
        %v6086 = vadd.f32 %v1272, %v6085
        %v6087 = vpop.f32.mrb[0].mxu0
        %v6088 = vadd.f32 %v1268, %v6087
        %v6089 = vpop.f32.mrb[0].mxu0
        %v6090 = vadd.f32 %v1272, %v6089
        %6091 = vmatprep.mubr.bf16.mxu0 %v5816
        %6092 = vmatmul.mubr.bf16.gmra.mrb[0].mxu0 %v5815
        %v6093 = vpop.f32.mrb[0].mxu0
        %v6094 = vadd.f32 %v1268, %v6093
        %v6095 = vpop.f32.mrb[0].mxu0
        %v6096 = vadd.f32 %v1272, %v6095
        %v6097 = vpop.f32.mrb[0].mxu0
        %v6098 = vadd.f32 %v1268, %v6097
        %v6099 = vpop.f32.mrb[0].mxu0
        %v6100 = vadd.f32 %v1272, %v6099
        %6101 = vmatprep.mubr.bf16.mxu0 %v5822
        %6102 = vmatmul.mubr.bf16.gmra.mrb[0].mxu0 %v5821
        %v6103 = vpop.f32.mrb[0].mxu0
        %v6104 = vadd.f32 %v1268, %v6103
        %v6105 = vpop.f32.mrb[0].mxu0
        %v6106 = vadd.f32 %v1272, %v6105
        %v6107 = vpop.f32.mrb[0].mxu0
        %v6108 = vadd.f32 %v1268, %v6107
        %v6109 = vpop.f32.mrb[0].mxu0
        %v6110 = vadd.f32 %v1272, %v6109
        %6111 = vmatprep.mubr.bf16.mxu0 %v5828
        %6112 = vmatmul.mubr.bf16.gmra.mrb[0].mxu0 %v5827
        %v6113 = vpop.f32.mrb[0].mxu0
        %v6114 = vadd.f32 %v1268, %v6113
        %v6115 = vpop.f32.mrb[0].mxu0
        %v6116 = vadd.f32 %v1272, %v6115
        %v6117 = vpop.f32.mrb[0].mxu0
        %v6118 = vadd.f32 %v1268, %v6117
        %v6119 = vpop.f32.mrb[0].mxu0
        %v6120 = vadd.f32 %v1272, %v6119
        %6121 = vmatprep.mubr.bf16.mxu0 %v5834
        %6122 = vmatmul.mubr.bf16.gmra.mrb[0].mxu0 %v5833
        %v6123 = vpop.f32.mrb[0].mxu0
        %v6124 = vadd.f32 %v1268, %v6123
        %v6125 = vpop.f32.mrb[0].mxu0
        %v6126 = vadd.f32 %v1272, %v6125
        %v6127 = vpop.f32.mrb[0].mxu0
        %v6128 = vadd.f32 %v1268, %v6127
        %v6129 = vpop.f32.mrb[0].mxu0
        %v6130 = vadd.f32 %v1272, %v6129
        %6131 = vmatprep.mubr.bf16.mxu0 %v5840
        %6132 = vmatmul.mubr.bf16.gmra.mrb[0].mxu0 %v5839
        %v6133 = vpop.f32.mrb[0].mxu0
        %v6134 = vadd.f32 %v1268, %v6133
        %v6135 = vpop.f32.mrb[0].mxu0
        %v6136 = vadd.f32 %v1272, %v6135
        %v6137 = vpop.f32.mrb[0].mxu0
        %v6138 = vadd.f32 %v1268, %v6137
        %v6139 = vpop.f32.mrb[0].mxu0
        %v6140 = vadd.f32 %v1272, %v6139
        %6141 = vmatprep.mubr.bf16.mxu0 %v5846
        %6142 = vmatmul.mubr.bf16.gmra.mrb[0].mxu0 %v5845
        %v6143 = vpop.f32.mrb[0].mxu0
        %v6144 = vadd.f32 %v1268, %v6143
        %v6145 = vpop.f32.mrb[0].mxu0
        %v6146 = vadd.f32 %v1272, %v6145
        %v6147 = vpop.f32.mrb[0].mxu0
        %v6148 = vadd.f32 %v1268, %v6147
        %v6149 = vpop.f32.mrb[0].mxu0
        %v6150 = vadd.f32 %v1272, %v6149
        %6151 = vmatprep.mubr.bf16.mxu0 %v5852
        %6152 = vmatmul.mubr.bf16.gmra.mrb[0].mxu0 %v5851
        %v6153 = vpop.f32.mrb[0].mxu0
        %v6154 = vadd.f32 %v1268, %v6153
        %v6155 = vpop.f32.mrb[0].mxu0
        %v6156 = vadd.f32 %v1272, %v6155
        %v6157 = vpop.f32.mrb[0].mxu0
        %v6158 = vpop.f32.mrb[0].mxu0
        %6159 = vdwg.mxu0
        %6160 = vmatprep.subr.bf16.mxu0 %v2427
        %6161 = vmatpush1.bf16.msra.mxu0 %v2426
        %6162 = vmatprep.subr.bf16.mxu0 %v2431
        %6163 = vmatpush1.bf16.msra.mxu0 %v2430
        %6164 = vmatprep.subr.bf16.mxu0 %v2435
        %6165 = vmatpush1.bf16.msra.mxu0 %v2434
        %6166 = vmatprep.subr.bf16.mxu0 %v2439
        %6167 = vmatpush1.bf16.msra.mxu0 %v2438
        %6168 = vmatprep.subr.bf16.mxu0 %v2443
        %6169 = vmatpush1.bf16.msra.mxu0 %v2442
        %6170 = vmatprep.subr.bf16.mxu0 %v2447
        %6171 = vmatpush1.bf16.msra.mxu0 %v2446
        %6172 = vmatprep.subr.bf16.mxu0 %v2451
        %6173 = vmatpush1.bf16.msra.mxu0 %v2450
        %6174 = vmatprep.subr.bf16.mxu0 %v2455
        %6175 = vmatpush1.bf16.msra.mxu0 %v2454
        %6176 = vmatprep.subr.bf16.mxu0 %v2459
        %6177 = vmatpush1.bf16.msra.mxu0 %v2458
        %6178 = vmatprep.subr.bf16.mxu0 %v2463
        %6179 = vmatpush1.bf16.msra.mxu0 %v2462
        %6180 = vmatprep.subr.bf16.mxu0 %v2467
        %6181 = vmatpush1.bf16.msra.mxu0 %v2466
        %6182 = vmatprep.subr.bf16.mxu0 %v2471
        %6183 = vmatpush1.bf16.msra.mxu0 %v2470
        %6184 = vmatprep.subr.bf16.mxu0 %v2475
        %6185 = vmatpush1.bf16.msra.mxu0 %v2474
        %6186 = vmatprep.subr.bf16.mxu0 %v2479
        %6187 = vmatpush1.bf16.msra.mxu0 %v2478
        %6188 = vmatprep.subr.bf16.mxu0 %v2483
        %6189 = vmatpush1.bf16.msra.mxu0 %v2482
        %6190 = vmatprep.subr.bf16.mxu0 %v2487
        %6191 = vmatpush1.bf16.msra.mxu0 %v2486
        %6192 = vmatprep.mubr.bf16.mxu0 %v5758
        %6193 = vmatmul.mubr.bf16.gmra.mrb[0].mxu0 %v5757
        %v6194 = vpop.f32.mrb[0].mxu0
        %v6195 = vadd.f32 %v5994, %v6194
        %v6196 = vpop.f32.mrb[0].mxu0
        %v6197 = vadd.f32 %v5996, %v6196
        %v6198 = vpop.f32.mrb[0].mxu0
        %v6199 = vadd.f32 %v5998, %v6198
        %v6200 = vpop.f32.mrb[0].mxu0
        %v6201 = vadd.f32 %v6000, %v6200
        %6202 = vmatprep.mubr.bf16.mxu0 %v5764
        %6203 = vmatmul.mubr.bf16.gmra.mrb[0].mxu0 %v5763
        %v6204 = vpop.f32.mrb[0].mxu0
        %v6205 = vadd.f32 %v6004, %v6204
        %v6206 = vpop.f32.mrb[0].mxu0
        %v6207 = vadd.f32 %v6006, %v6206
        %v6208 = vpop.f32.mrb[0].mxu0
        %v6209 = vadd.f32 %v6008, %v6208
        %v6210 = vpop.f32.mrb[0].mxu0
        %v6211 = vadd.f32 %v6010, %v6210
        %6212 = vmatprep.mubr.bf16.mxu0 %v5770
        %6213 = vmatmul.mubr.bf16.gmra.mrb[0].mxu0 %v5769
        %v6214 = vpop.f32.mrb[0].mxu0
        %v6215 = vadd.f32 %v6014, %v6214
        %v6216 = vpop.f32.mrb[0].mxu0
        %v6217 = vadd.f32 %v6016, %v6216
        %v6218 = vpop.f32.mrb[0].mxu0
        %v6219 = vadd.f32 %v6018, %v6218
        %v6220 = vpop.f32.mrb[0].mxu0
        %v6221 = vadd.f32 %v6020, %v6220
        %6222 = vmatprep.mubr.bf16.mxu0 %v5776
        %6223 = vmatmul.mubr.bf16.gmra.mrb[0].mxu0 %v5775
        %v6224 = vpop.f32.mrb[0].mxu0
        %v6225 = vadd.f32 %v6024, %v6224
        %v6226 = vpop.f32.mrb[0].mxu0
        %v6227 = vadd.f32 %v6026, %v6226
        %v6228 = vpop.f32.mrb[0].mxu0
        %v6229 = vadd.f32 %v6028, %v6228
        %v6230 = vpop.f32.mrb[0].mxu0
        %v6231 = vadd.f32 %v6030, %v6230
        %6232 = vmatprep.mubr.bf16.mxu0 %v5782
        %6233 = vmatmul.mubr.bf16.gmra.mrb[0].mxu0 %v5781
        %v6234 = vpop.f32.mrb[0].mxu0
        %v6235 = vadd.f32 %v6034, %v6234
        %v6236 = vpop.f32.mrb[0].mxu0
        %v6237 = vadd.f32 %v6036, %v6236
        %v6238 = vpop.f32.mrb[0].mxu0
        %v6239 = vadd.f32 %v6038, %v6238
        %v6240 = vpop.f32.mrb[0].mxu0
        %v6241 = vadd.f32 %v6040, %v6240
        %6242 = vmatprep.mubr.bf16.mxu0 %v5788
        %6243 = vmatmul.mubr.bf16.gmra.mrb[0].mxu0 %v5787
        %v6244 = vpop.f32.mrb[0].mxu0
        %v6245 = vadd.f32 %v6044, %v6244
        %v6246 = vpop.f32.mrb[0].mxu0
        %v6247 = vadd.f32 %v6046, %v6246
        %v6248 = vpop.f32.mrb[0].mxu0
        %v6249 = vadd.f32 %v6048, %v6248
        %v6250 = vpop.f32.mrb[0].mxu0
        %v6251 = vadd.f32 %v6050, %v6250
        %6252 = vmatprep.mubr.bf16.mxu0 %v5794
        %6253 = vmatmul.mubr.bf16.gmra.mrb[0].mxu0 %v5793
        %v6254 = vpop.f32.mrb[0].mxu0
        %v6255 = vadd.f32 %v6054, %v6254
        %v6256 = vpop.f32.mrb[0].mxu0
        %v6257 = vadd.f32 %v6056, %v6256
        %v6258 = vpop.f32.mrb[0].mxu0
        %v6259 = vadd.f32 %v6058, %v6258
        %v6260 = vpop.f32.mrb[0].mxu0
        %v6261 = vadd.f32 %v6060, %v6260
        %6262 = vmatprep.mubr.bf16.mxu0 %v5800
        %6263 = vmatmul.mubr.bf16.gmra.mrb[0].mxu0 %v5799
        %v6264 = vpop.f32.mrb[0].mxu0
        %v6265 = vadd.f32 %v6064, %v6264
        %v6266 = vpop.f32.mrb[0].mxu0
        %v6267 = vadd.f32 %v6066, %v6266
        %v6268 = vpop.f32.mrb[0].mxu0
        %v6269 = vadd.f32 %v6068, %v6268
        %v6270 = vpop.f32.mrb[0].mxu0
        %v6271 = vadd.f32 %v6070, %v6270
        %6272 = vmatprep.mubr.bf16.mxu0 %v5806
        %6273 = vmatmul.mubr.bf16.gmra.mrb[0].mxu0 %v5805
        %v6274 = vpop.f32.mrb[0].mxu0
        %v6275 = vadd.f32 %v6074, %v6274
        %v6276 = vpop.f32.mrb[0].mxu0
        %v6277 = vadd.f32 %v6076, %v6276
        %v6278 = vpop.f32.mrb[0].mxu0
        %v6279 = vadd.f32 %v6078, %v6278
        %v6280 = vpop.f32.mrb[0].mxu0
        %v6281 = vadd.f32 %v6080, %v6280
        %6282 = vmatprep.mubr.bf16.mxu0 %v5812
        %6283 = vmatmul.mubr.bf16.gmra.mrb[0].mxu0 %v5811
        %v6284 = vpop.f32.mrb[0].mxu0
        %v6285 = vadd.f32 %v6084, %v6284
        %v6286 = vpop.f32.mrb[0].mxu0
        %v6287 = vadd.f32 %v6086, %v6286
        %v6288 = vpop.f32.mrb[0].mxu0
        %v6289 = vadd.f32 %v6088, %v6288
        %v6290 = vpop.f32.mrb[0].mxu0
        %v6291 = vadd.f32 %v6090, %v6290
        %6292 = vmatprep.mubr.bf16.mxu0 %v5818
        %6293 = vmatmul.mubr.bf16.gmra.mrb[0].mxu0 %v5817
        %v6294 = vpop.f32.mrb[0].mxu0
        %v6295 = vadd.f32 %v6094, %v6294
        %v6296 = vpop.f32.mrb[0].mxu0
        %v6297 = vadd.f32 %v6096, %v6296
        %v6298 = vpop.f32.mrb[0].mxu0
        %v6299 = vadd.f32 %v6098, %v6298
        %v6300 = vpop.f32.mrb[0].mxu0
        %v6301 = vadd.f32 %v6100, %v6300
        %6302 = vmatprep.mubr.bf16.mxu0 %v5824
        %6303 = vmatmul.mubr.bf16.gmra.mrb[0].mxu0 %v5823
        %v6304 = vpop.f32.mrb[0].mxu0
        %v6305 = vadd.f32 %v6104, %v6304
        %v6306 = vpop.f32.mrb[0].mxu0
        %v6307 = vadd.f32 %v6106, %v6306
        %v6308 = vpop.f32.mrb[0].mxu0
        %v6309 = vadd.f32 %v6108, %v6308
        %v6310 = vpop.f32.mrb[0].mxu0
        %v6311 = vadd.f32 %v6110, %v6310
        %6312 = vmatprep.mubr.bf16.mxu0 %v5830
        %6313 = vmatmul.mubr.bf16.gmra.mrb[0].mxu0 %v5829
        %v6314 = vpop.f32.mrb[0].mxu0
        %v6315 = vadd.f32 %v6114, %v6314
        %v6316 = vpop.f32.mrb[0].mxu0
        %v6317 = vadd.f32 %v6116, %v6316
        %v6318 = vpop.f32.mrb[0].mxu0
        %v6319 = vadd.f32 %v6118, %v6318
        %v6320 = vpop.f32.mrb[0].mxu0
        %v6321 = vadd.f32 %v6120, %v6320
        %6322 = vmatprep.mubr.bf16.mxu0 %v5836
        %6323 = vmatmul.mubr.bf16.gmra.mrb[0].mxu0 %v5835
        %v6324 = vpop.f32.mrb[0].mxu0
        %v6325 = vadd.f32 %v6124, %v6324
        %v6326 = vpop.f32.mrb[0].mxu0
        %v6327 = vadd.f32 %v6126, %v6326
        %v6328 = vpop.f32.mrb[0].mxu0
        %v6329 = vadd.f32 %v6128, %v6328
        %v6330 = vpop.f32.mrb[0].mxu0
        %v6331 = vadd.f32 %v6130, %v6330
        %6332 = vmatprep.mubr.bf16.mxu0 %v5842
        %6333 = vmatmul.mubr.bf16.gmra.mrb[0].mxu0 %v5841
        %v6334 = vpop.f32.mrb[0].mxu0
        %v6335 = vadd.f32 %v6134, %v6334
        %v6336 = vpop.f32.mrb[0].mxu0
        %v6337 = vadd.f32 %v6136, %v6336
        %v6338 = vpop.f32.mrb[0].mxu0
        %v6339 = vadd.f32 %v6138, %v6338
        %v6340 = vpop.f32.mrb[0].mxu0
        %v6341 = vadd.f32 %v6140, %v6340
        %6342 = vmatprep.mubr.bf16.mxu0 %v5848
        %6343 = vmatmul.mubr.bf16.gmra.mrb[0].mxu0 %v5847
        %v6344 = vpop.f32.mrb[0].mxu0
        %v6345 = vadd.f32 %v6144, %v6344
        %v6346 = vpop.f32.mrb[0].mxu0
        %v6347 = vadd.f32 %v6146, %v6346
        %v6348 = vpop.f32.mrb[0].mxu0
        %v6349 = vadd.f32 %v6148, %v6348
        %v6350 = vpop.f32.mrb[0].mxu0
        %v6351 = vadd.f32 %v6150, %v6350
        %6352 = vmatprep.mubr.bf16.mxu0 %v5854
        %6353 = vmatmul.mubr.bf16.gmra.mrb[0].mxu0 %v5853
        %v6354 = vpop.f32.mrb[0].mxu0
        %v6355 = vadd.f32 %v6154, %v6354
        %v6356 = vpop.f32.mrb[0].mxu0
        %v6357 = vadd.f32 %v6156, %v6356
        %v6358 = vpop.f32.mrb[0].mxu0
        %v6359 = vpop.f32.mrb[0].mxu0
        %6360 = vdwg.mxu0
        %6361 = vmatprep.subr.bf16.mxu0 %v2491
        %6362 = vmatpush1.bf16.msra.mxu0 %v2490
        %6363 = vmatprep.subr.bf16.mxu0 %v2495
        %6364 = vmatpush1.bf16.msra.mxu0 %v2494
        %6365 = vmatprep.subr.bf16.mxu0 %v2499
        %6366 = vmatpush1.bf16.msra.mxu0 %v2498
        %6367 = vmatprep.subr.bf16.mxu0 %v2503
        %6368 = vmatpush1.bf16.msra.mxu0 %v2502
        %6369 = vmatprep.subr.bf16.mxu0 %v2507
        %6370 = vmatpush1.bf16.msra.mxu0 %v2506
        %6371 = vmatprep.subr.bf16.mxu0 %v2511
        %6372 = vmatpush1.bf16.msra.mxu0 %v2510
        %6373 = vmatprep.subr.bf16.mxu0 %v2515
        %6374 = vmatpush1.bf16.msra.mxu0 %v2514
        %6375 = vmatprep.subr.bf16.mxu0 %v2519
        %6376 = vmatpush1.bf16.msra.mxu0 %v2518
        %6377 = vmatprep.subr.bf16.mxu0 %v2523
        %6378 = vmatpush1.bf16.msra.mxu0 %v2522
        %6379 = vmatprep.subr.bf16.mxu0 %v2527
        %6380 = vmatpush1.bf16.msra.mxu0 %v2526
        %6381 = vmatprep.subr.bf16.mxu0 %v2531
        %6382 = vmatpush1.bf16.msra.mxu0 %v2530
        %6383 = vmatprep.subr.bf16.mxu0 %v2535
        %6384 = vmatpush1.bf16.msra.mxu0 %v2534
        %6385 = vmatprep.subr.bf16.mxu0 %v2539
        %6386 = vmatpush1.bf16.msra.mxu0 %v2538
        %6387 = vmatprep.subr.bf16.mxu0 %v2543
        %6388 = vmatpush1.bf16.msra.mxu0 %v2542
        %6389 = vmatprep.subr.bf16.mxu0 %v2547
        %6390 = vmatpush1.bf16.msra.mxu0 %v2546
        %6391 = vmatprep.subr.bf16.mxu0 %v2551
        %6392 = vmatpush1.bf16.msra.mxu0 %v2550
        %6393 = vmatprep.mubr.bf16.mxu0 %v5760
        %6394 = vmatmul.mubr.bf16.gmra.mrb[0].mxu0 %v5759
        %v6395 = vpop.f32.mrb[0].mxu0
        %v6396 = vadd.f32 %v6195, %v6395
        %v6397 = vpop.f32.mrb[0].mxu0
        %v6398 = vadd.f32 %v6197, %v6397
        %v6399 = vpop.f32.mrb[0].mxu0
        %v6400 = vadd.f32 %v6199, %v6399
        %v6401 = vpop.f32.mrb[0].mxu0
        %v6402 = vadd.f32 %v6201, %v6401
        %6403 = vmatprep.mubr.bf16.mxu0 %v5766
        %6404 = vmatmul.mubr.bf16.gmra.mrb[0].mxu0 %v5765
        %v6405 = vpop.f32.mrb[0].mxu0
        %v6406 = vadd.f32 %v6205, %v6405
        %v6407 = vpop.f32.mrb[0].mxu0
        %v6408 = vadd.f32 %v6207, %v6407
        %v6409 = vpop.f32.mrb[0].mxu0
        %v6410 = vadd.f32 %v6209, %v6409
        %v6411 = vpop.f32.mrb[0].mxu0
        %v6412 = vadd.f32 %v6211, %v6411
        %6413 = vmatprep.mubr.bf16.mxu0 %v5772
        %6414 = vmatmul.mubr.bf16.gmra.mrb[0].mxu0 %v5771
        %v6415 = vpop.f32.mrb[0].mxu0
        %v6416 = vadd.f32 %v6215, %v6415
        %v6417 = vpop.f32.mrb[0].mxu0
        %v6418 = vadd.f32 %v6217, %v6417
        %v6419 = vpop.f32.mrb[0].mxu0
        %v6420 = vadd.f32 %v6219, %v6419
        %v6421 = vpop.f32.mrb[0].mxu0
        %v6422 = vadd.f32 %v6221, %v6421
        %6423 = vmatprep.mubr.bf16.mxu0 %v5778
        %6424 = vmatmul.mubr.bf16.gmra.mrb[0].mxu0 %v5777
        %v6425 = vpop.f32.mrb[0].mxu0
        %v6426 = vadd.f32 %v6225, %v6425
        %v6427 = vpop.f32.mrb[0].mxu0
        %v6428 = vadd.f32 %v6227, %v6427
        %v6429 = vpop.f32.mrb[0].mxu0
        %v6430 = vadd.f32 %v6229, %v6429
        %v6431 = vpop.f32.mrb[0].mxu0
        %v6432 = vadd.f32 %v6231, %v6431
        %6433 = vmatprep.mubr.bf16.mxu0 %v5784
        %6434 = vmatmul.mubr.bf16.gmra.mrb[0].mxu0 %v5783
        %v6435 = vpop.f32.mrb[0].mxu0
        %v6436 = vadd.f32 %v6235, %v6435
        %v6437 = vpop.f32.mrb[0].mxu0
        %v6438 = vadd.f32 %v6237, %v6437
        %v6439 = vpop.f32.mrb[0].mxu0
        %v6440 = vadd.f32 %v6239, %v6439
        %v6441 = vpop.f32.mrb[0].mxu0
        %v6442 = vadd.f32 %v6241, %v6441
        %6443 = vmatprep.mubr.bf16.mxu0 %v5790
        %6444 = vmatmul.mubr.bf16.gmra.mrb[0].mxu0 %v5789
        %v6445 = vpop.f32.mrb[0].mxu0
        %v6446 = vadd.f32 %v6245, %v6445
        %v6447 = vpop.f32.mrb[0].mxu0
        %v6448 = vadd.f32 %v6247, %v6447
        %v6449 = vpop.f32.mrb[0].mxu0
        %v6450 = vadd.f32 %v6249, %v6449
        %v6451 = vpop.f32.mrb[0].mxu0
        %v6452 = vadd.f32 %v6251, %v6451
        %6453 = vmatprep.mubr.bf16.mxu0 %v5796
        %6454 = vmatmul.mubr.bf16.gmra.mrb[0].mxu0 %v5795
        %v6455 = vpop.f32.mrb[0].mxu0
        %v6456 = vadd.f32 %v6255, %v6455
        %v6457 = vpop.f32.mrb[0].mxu0
        %v6458 = vadd.f32 %v6257, %v6457
        %v6459 = vpop.f32.mrb[0].mxu0
        %v6460 = vadd.f32 %v6259, %v6459
        %v6461 = vpop.f32.mrb[0].mxu0
        %v6462 = vadd.f32 %v6261, %v6461
        %6463 = vmatprep.mubr.bf16.mxu0 %v5802
        %6464 = vmatmul.mubr.bf16.gmra.mrb[0].mxu0 %v5801
        %v6465 = vpop.f32.mrb[0].mxu0
        %v6466 = vadd.f32 %v6265, %v6465
        %v6467 = vpop.f32.mrb[0].mxu0
        %v6468 = vadd.f32 %v6267, %v6467
        %v6469 = vpop.f32.mrb[0].mxu0
        %v6470 = vadd.f32 %v6269, %v6469
        %v6471 = vpop.f32.mrb[0].mxu0
        %v6472 = vadd.f32 %v6271, %v6471
        %6473 = vmatprep.mubr.bf16.mxu0 %v5808
        %6474 = vmatmul.mubr.bf16.gmra.mrb[0].mxu0 %v5807
        %v6475 = vpop.f32.mrb[0].mxu0
        %v6476 = vadd.f32 %v6275, %v6475
        %v6477 = vpop.f32.mrb[0].mxu0
        %v6478 = vadd.f32 %v6277, %v6477
        %v6479 = vpop.f32.mrb[0].mxu0
        %v6480 = vadd.f32 %v6279, %v6479
        %v6481 = vpop.f32.mrb[0].mxu0
        %v6482 = vadd.f32 %v6281, %v6481
        %6483 = vmatprep.mubr.bf16.mxu0 %v5814
        %6484 = vmatmul.mubr.bf16.gmra.mrb[0].mxu0 %v5813
        %v6485 = vpop.f32.mrb[0].mxu0
        %v6486 = vadd.f32 %v6285, %v6485
        %v6487 = vpop.f32.mrb[0].mxu0
        %v6488 = vadd.f32 %v6287, %v6487
        %v6489 = vpop.f32.mrb[0].mxu0
        %v6490 = vadd.f32 %v6289, %v6489
        %v6491 = vpop.f32.mrb[0].mxu0
        %v6492 = vadd.f32 %v6291, %v6491
        %6493 = vmatprep.mubr.bf16.mxu0 %v5820
        %6494 = vmatmul.mubr.bf16.gmra.mrb[0].mxu0 %v5819
        %v6495 = vpop.f32.mrb[0].mxu0
        %v6496 = vadd.f32 %v6295, %v6495
        %v6497 = vpop.f32.mrb[0].mxu0
        %v6498 = vadd.f32 %v6297, %v6497
        %v6499 = vpop.f32.mrb[0].mxu0
        %v6500 = vadd.f32 %v6299, %v6499
        %v6501 = vpop.f32.mrb[0].mxu0
        %v6502 = vadd.f32 %v6301, %v6501
        %6503 = vmatprep.mubr.bf16.mxu0 %v5826
        %6504 = vmatmul.mubr.bf16.gmra.mrb[0].mxu0 %v5825
        %v6505 = vpop.f32.mrb[0].mxu0
        %v6506 = vadd.f32 %v6305, %v6505
        %v6507 = vpop.f32.mrb[0].mxu0
        %v6508 = vadd.f32 %v6307, %v6507
        %v6509 = vpop.f32.mrb[0].mxu0
        %v6510 = vadd.f32 %v6309, %v6509
        %v6511 = vpop.f32.mrb[0].mxu0
        %v6512 = vadd.f32 %v6311, %v6511
        %6513 = vmatprep.mubr.bf16.mxu0 %v5832
        %6514 = vmatmul.mubr.bf16.gmra.mrb[0].mxu0 %v5831
        %v6515 = vpop.f32.mrb[0].mxu0
        %v6516 = vadd.f32 %v6315, %v6515
        %v6517 = vpop.f32.mrb[0].mxu0
        %v6518 = vadd.f32 %v6317, %v6517
        %v6519 = vpop.f32.mrb[0].mxu0
        %v6520 = vadd.f32 %v6319, %v6519
        %v6521 = vpop.f32.mrb[0].mxu0
        %v6522 = vadd.f32 %v6321, %v6521
        %6523 = vmatprep.mubr.bf16.mxu0 %v5838
        %6524 = vmatmul.mubr.bf16.gmra.mrb[0].mxu0 %v5837
        %v6525 = vpop.f32.mrb[0].mxu0
        %v6526 = vadd.f32 %v6325, %v6525
        %v6527 = vpop.f32.mrb[0].mxu0
        %v6528 = vadd.f32 %v6327, %v6527
        %v6529 = vpop.f32.mrb[0].mxu0
        %v6530 = vadd.f32 %v6329, %v6529
        %v6531 = vpop.f32.mrb[0].mxu0
        %v6532 = vadd.f32 %v6331, %v6531
        %6533 = vmatprep.mubr.bf16.mxu0 %v5844
        %6534 = vmatmul.mubr.bf16.gmra.mrb[0].mxu0 %v5843
        %v6535 = vpop.f32.mrb[0].mxu0
        %v6536 = vadd.f32 %v6335, %v6535
        %v6537 = vpop.f32.mrb[0].mxu0
        %v6538 = vadd.f32 %v6337, %v6537
        %v6539 = vpop.f32.mrb[0].mxu0
        %v6540 = vadd.f32 %v6339, %v6539
        %v6541 = vpop.f32.mrb[0].mxu0
        %v6542 = vadd.f32 %v6341, %v6541
        %6543 = vmatprep.mubr.bf16.mxu0 %v5850
        %6544 = vmatmul.mubr.bf16.gmra.mrb[0].mxu0 %v5849
        %v6545 = vpop.f32.mrb[0].mxu0
        %v6546 = vadd.f32 %v6345, %v6545
        %v6547 = vpop.f32.mrb[0].mxu0
        %v6548 = vadd.f32 %v6347, %v6547
        %v6549 = vpop.f32.mrb[0].mxu0
        %v6550 = vadd.f32 %v6349, %v6549
        %v6551 = vpop.f32.mrb[0].mxu0
        %v6552 = vadd.f32 %v6351, %v6551
        %6553 = vmatprep.mubr.bf16.mxu0 %v5856
        %6554 = vmatmul.mubr.bf16.gmra.mrb[0].mxu0 %v5855
        %v6555 = vpop.f32.mrb[0].mxu0
        %v6556 = vadd.f32 %v6355, %v6555
        %v6557 = vpop.f32.mrb[0].mxu0
        %v6558 = vadd.f32 %v6357, %v6557
        %v6559 = vpop.f32.mrb[0].mxu0
        %v6560 = vpop.f32.mrb[0].mxu0
        %6561 = vdwg.mxu0
        %6562 = vmatprep.subr.bf16.mxu0 %v2365
        %6563 = vmatpush1.bf16.msra.mxu0 %v2364
        %6564 = vmatprep.subr.bf16.mxu0 %v2369
        %6565 = vmatpush1.bf16.msra.mxu0 %v2368
        %6566 = vmatprep.subr.bf16.mxu0 %v2373
        %6567 = vmatpush1.bf16.msra.mxu0 %v2372
        %6568 = vmatprep.subr.bf16.mxu0 %v2377
        %6569 = vmatpush1.bf16.msra.mxu0 %v2376
        %6570 = vmatprep.subr.bf16.mxu0 %v2381
        %6571 = vmatpush1.bf16.msra.mxu0 %v2380
        %6572 = vmatprep.subr.bf16.mxu0 %v2385
        %6573 = vmatpush1.bf16.msra.mxu0 %v2384
        %6574 = vmatprep.subr.bf16.mxu0 %v2389
        %6575 = vmatpush1.bf16.msra.mxu0 %v2388
        %6576 = vmatprep.subr.bf16.mxu0 %v2393
        %6577 = vmatpush1.bf16.msra.mxu0 %v2392
        %6578 = vmatprep.subr.bf16.mxu0 %v2397
        %6579 = vmatpush1.bf16.msra.mxu0 %v2396
        %6580 = vmatprep.subr.bf16.mxu0 %v2401
        %6581 = vmatpush1.bf16.msra.mxu0 %v2400
        %6582 = vmatprep.subr.bf16.mxu0 %v2405
        %6583 = vmatpush1.bf16.msra.mxu0 %v2404
        %6584 = vmatprep.subr.bf16.mxu0 %v2409
        %6585 = vmatpush1.bf16.msra.mxu0 %v2408
        %6586 = vmatprep.subr.bf16.mxu0 %v2413
        %6587 = vmatpush1.bf16.msra.mxu0 %v2412
        %6588 = vmatprep.subr.bf16.mxu0 %v2417
        %6589 = vmatpush1.bf16.msra.mxu0 %v2416
        %6590 = vmatprep.subr.bf16.mxu0 %v2421
        %6591 = vmatpush1.bf16.msra.mxu0 %v2420
        %6592 = vmatprep.subr.bf16.mxu0 %v2425
        %6593 = vmatpush1.bf16.msra.mxu0 %v2424
        %6594 = vmatprep.mubr.bf16.mxu0 %v5756
        %6595 = vmatmul.mubr.bf16.gmra.mrb[0].mxu0 %v5755
        %v6596 = vpop.f32.mrb[0].mxu0
        %v6597 = vadd.f32 %v1276, %v6596
        %v6598 = vpop.f32.mrb[0].mxu0
        %v6599 = vadd.f32 %v1280, %v6598
        %v6600 = vpop.f32.mrb[0].mxu0
        %v6601 = vadd.f32 %v1276, %v6600
        %v6602 = vpop.f32.mrb[0].mxu0
        %v6603 = vadd.f32 %v1280, %v6602
        %6604 = vmatprep.mubr.bf16.mxu0 %v5762
        %6605 = vmatmul.mubr.bf16.gmra.mrb[0].mxu0 %v5761
        %v6606 = vpop.f32.mrb[0].mxu0
        %v6607 = vadd.f32 %v1276, %v6606
        %v6608 = vpop.f32.mrb[0].mxu0
        %v6609 = vadd.f32 %v1280, %v6608
        %v6610 = vpop.f32.mrb[0].mxu0
        %v6611 = vadd.f32 %v1276, %v6610
        %v6612 = vpop.f32.mrb[0].mxu0
        %v6613 = vadd.f32 %v1280, %v6612
        %6614 = vmatprep.mubr.bf16.mxu0 %v5768
        %6615 = vmatmul.mubr.bf16.gmra.mrb[0].mxu0 %v5767
        %v6616 = vpop.f32.mrb[0].mxu0
        %v6617 = vadd.f32 %v1276, %v6616
        %v6618 = vpop.f32.mrb[0].mxu0
        %v6619 = vadd.f32 %v1280, %v6618
        %v6620 = vpop.f32.mrb[0].mxu0
        %v6621 = vadd.f32 %v1276, %v6620
        %v6622 = vpop.f32.mrb[0].mxu0
        %v6623 = vadd.f32 %v1280, %v6622
        %6624 = vmatprep.mubr.bf16.mxu0 %v5774
        %6625 = vmatmul.mubr.bf16.gmra.mrb[0].mxu0 %v5773
        %v6626 = vpop.f32.mrb[0].mxu0
        %v6627 = vadd.f32 %v1276, %v6626
        %v6628 = vpop.f32.mrb[0].mxu0
        %v6629 = vadd.f32 %v1280, %v6628
        %v6630 = vpop.f32.mrb[0].mxu0
        %v6631 = vadd.f32 %v1276, %v6630
        %v6632 = vpop.f32.mrb[0].mxu0
        %v6633 = vadd.f32 %v1280, %v6632
        %6634 = vmatprep.mubr.bf16.mxu0 %v5780
        %6635 = vmatmul.mubr.bf16.gmra.mrb[0].mxu0 %v5779
        %v6636 = vpop.f32.mrb[0].mxu0
        %v6637 = vadd.f32 %v1276, %v6636
        %v6638 = vpop.f32.mrb[0].mxu0
        %v6639 = vadd.f32 %v1280, %v6638
        %v6640 = vpop.f32.mrb[0].mxu0
        %v6641 = vadd.f32 %v1276, %v6640
        %v6642 = vpop.f32.mrb[0].mxu0
        %v6643 = vadd.f32 %v1280, %v6642
        %6644 = vmatprep.mubr.bf16.mxu0 %v5786
        %6645 = vmatmul.mubr.bf16.gmra.mrb[0].mxu0 %v5785
        %v6646 = vpop.f32.mrb[0].mxu0
        %v6647 = vadd.f32 %v1276, %v6646
        %v6648 = vpop.f32.mrb[0].mxu0
        %v6649 = vadd.f32 %v1280, %v6648
        %v6650 = vpop.f32.mrb[0].mxu0
        %v6651 = vadd.f32 %v1276, %v6650
        %v6652 = vpop.f32.mrb[0].mxu0
        %v6653 = vadd.f32 %v1280, %v6652
        %6654 = vmatprep.mubr.bf16.mxu0 %v5792
        %6655 = vmatmul.mubr.bf16.gmra.mrb[0].mxu0 %v5791
        %v6656 = vpop.f32.mrb[0].mxu0
        %v6657 = vadd.f32 %v1276, %v6656
        %v6658 = vpop.f32.mrb[0].mxu0
        %v6659 = vadd.f32 %v1280, %v6658
        %v6660 = vpop.f32.mrb[0].mxu0
        %v6661 = vadd.f32 %v1276, %v6660
        %v6662 = vpop.f32.mrb[0].mxu0
        %v6663 = vadd.f32 %v1280, %v6662
        %6664 = vmatprep.mubr.bf16.mxu0 %v5798
        %6665 = vmatmul.mubr.bf16.gmra.mrb[0].mxu0 %v5797
        %v6666 = vpop.f32.mrb[0].mxu0
        %v6667 = vadd.f32 %v1276, %v6666
        %v6668 = vpop.f32.mrb[0].mxu0
        %v6669 = vadd.f32 %v1280, %v6668
        %v6670 = vpop.f32.mrb[0].mxu0
        %v6671 = vadd.f32 %v1276, %v6670
        %v6672 = vpop.f32.mrb[0].mxu0
        %v6673 = vadd.f32 %v1280, %v6672
        %6674 = vmatprep.mubr.bf16.mxu0 %v5804
        %6675 = vmatmul.mubr.bf16.gmra.mrb[0].mxu0 %v5803
        %v6676 = vpop.f32.mrb[0].mxu0
        %v6677 = vadd.f32 %v1276, %v6676
        %v6678 = vpop.f32.mrb[0].mxu0
        %v6679 = vadd.f32 %v1280, %v6678
        %v6680 = vpop.f32.mrb[0].mxu0
        %v6681 = vadd.f32 %v1276, %v6680
        %v6682 = vpop.f32.mrb[0].mxu0
        %v6683 = vadd.f32 %v1280, %v6682
        %6684 = vmatprep.mubr.bf16.mxu0 %v5810
        %6685 = vmatmul.mubr.bf16.gmra.mrb[0].mxu0 %v5809
        %v6686 = vpop.f32.mrb[0].mxu0
        %v6687 = vadd.f32 %v1276, %v6686
        %v6688 = vpop.f32.mrb[0].mxu0
        %v6689 = vadd.f32 %v1280, %v6688
        %v6690 = vpop.f32.mrb[0].mxu0
        %v6691 = vadd.f32 %v1276, %v6690
        %v6692 = vpop.f32.mrb[0].mxu0
        %v6693 = vadd.f32 %v1280, %v6692
        %6694 = vmatprep.mubr.bf16.mxu0 %v5816
        %6695 = vmatmul.mubr.bf16.gmra.mrb[0].mxu0 %v5815
        %v6696 = vpop.f32.mrb[0].mxu0
        %v6697 = vadd.f32 %v1276, %v6696
        %v6698 = vpop.f32.mrb[0].mxu0
        %v6699 = vadd.f32 %v1280, %v6698
        %v6700 = vpop.f32.mrb[0].mxu0
        %v6701 = vadd.f32 %v1276, %v6700
        %v6702 = vpop.f32.mrb[0].mxu0
        %v6703 = vadd.f32 %v1280, %v6702
        %6704 = vmatprep.mubr.bf16.mxu0 %v5822
        %6705 = vmatmul.mubr.bf16.gmra.mrb[0].mxu0 %v5821
        %v6706 = vpop.f32.mrb[0].mxu0
        %v6707 = vadd.f32 %v1276, %v6706
        %v6708 = vpop.f32.mrb[0].mxu0
        %v6709 = vadd.f32 %v1280, %v6708
        %v6710 = vpop.f32.mrb[0].mxu0
        %v6711 = vadd.f32 %v1276, %v6710
        %v6712 = vpop.f32.mrb[0].mxu0
        %v6713 = vadd.f32 %v1280, %v6712
        %6714 = vmatprep.mubr.bf16.mxu0 %v5828
        %6715 = vmatmul.mubr.bf16.gmra.mrb[0].mxu0 %v5827
        %v6716 = vpop.f32.mrb[0].mxu0
        %v6717 = vadd.f32 %v1276, %v6716
        %v6718 = vpop.f32.mrb[0].mxu0
        %v6719 = vadd.f32 %v1280, %v6718
        %v6720 = vpop.f32.mrb[0].mxu0
        %v6721 = vadd.f32 %v1276, %v6720
        %v6722 = vpop.f32.mrb[0].mxu0
        %v6723 = vadd.f32 %v1280, %v6722
        %6724 = vmatprep.mubr.bf16.mxu0 %v5834
        %6725 = vmatmul.mubr.bf16.gmra.mrb[0].mxu0 %v5833
        %v6726 = vpop.f32.mrb[0].mxu0
        %v6727 = vadd.f32 %v1276, %v6726
        %v6728 = vpop.f32.mrb[0].mxu0
        %v6729 = vadd.f32 %v1280, %v6728
        %v6730 = vpop.f32.mrb[0].mxu0
        %v6731 = vadd.f32 %v1276, %v6730
        %v6732 = vpop.f32.mrb[0].mxu0
        %v6733 = vadd.f32 %v1280, %v6732
        %6734 = vmatprep.mubr.bf16.mxu0 %v5840
        %6735 = vmatmul.mubr.bf16.gmra.mrb[0].mxu0 %v5839
        %v6736 = vpop.f32.mrb[0].mxu0
        %v6737 = vadd.f32 %v1276, %v6736
        %v6738 = vpop.f32.mrb[0].mxu0
        %v6739 = vadd.f32 %v1280, %v6738
        %v6740 = vpop.f32.mrb[0].mxu0
        %v6741 = vadd.f32 %v1276, %v6740
        %v6742 = vpop.f32.mrb[0].mxu0
        %v6743 = vadd.f32 %v1280, %v6742
        %6744 = vmatprep.mubr.bf16.mxu0 %v5846
        %6745 = vmatmul.mubr.bf16.gmra.mrb[0].mxu0 %v5845
        %v6746 = vpop.f32.mrb[0].mxu0
        %v6747 = vadd.f32 %v1276, %v6746
        %v6748 = vpop.f32.mrb[0].mxu0
        %v6749 = vadd.f32 %v1280, %v6748
        %v6750 = vpop.f32.mrb[0].mxu0
        %v6751 = vadd.f32 %v1276, %v6750
        %v6752 = vpop.f32.mrb[0].mxu0
        %v6753 = vadd.f32 %v1280, %v6752
        %6754 = vmatprep.mubr.bf16.mxu0 %v5852
        %6755 = vmatmul.mubr.bf16.gmra.mrb[0].mxu0 %v5851
        %v6756 = vpop.f32.mrb[0].mxu0
        %v6757 = vadd.f32 %v1276, %v6756
        %v6758 = vpop.f32.mrb[0].mxu0
        %v6759 = vadd.f32 %v1280, %v6758
        %v6760 = vpop.f32.mrb[0].mxu0
        %v6761 = vpop.f32.mrb[0].mxu0
        %6762 = vdwg.mxu0
        %6763 = vmatprep.subr.bf16.mxu0 %v2429
        %6764 = vmatpush1.bf16.msra.mxu0 %v2428
        %6765 = vmatprep.subr.bf16.mxu0 %v2433
        %6766 = vmatpush1.bf16.msra.mxu0 %v2432
        %6767 = vmatprep.subr.bf16.mxu0 %v2437
        %6768 = vmatpush1.bf16.msra.mxu0 %v2436
        %6769 = vmatprep.subr.bf16.mxu0 %v2441
        %6770 = vmatpush1.bf16.msra.mxu0 %v2440
        %6771 = vmatprep.subr.bf16.mxu0 %v2445
        %6772 = vmatpush1.bf16.msra.mxu0 %v2444
        %6773 = vmatprep.subr.bf16.mxu0 %v2449
        %6774 = vmatpush1.bf16.msra.mxu0 %v2448
        %6775 = vmatprep.subr.bf16.mxu0 %v2453
        %6776 = vmatpush1.bf16.msra.mxu0 %v2452
        %6777 = vmatprep.subr.bf16.mxu0 %v2457
        %6778 = vmatpush1.bf16.msra.mxu0 %v2456
        %6779 = vmatprep.subr.bf16.mxu0 %v2461
        %6780 = vmatpush1.bf16.msra.mxu0 %v2460
        %6781 = vmatprep.subr.bf16.mxu0 %v2465
        %6782 = vmatpush1.bf16.msra.mxu0 %v2464
        %6783 = vmatprep.subr.bf16.mxu0 %v2469
        %6784 = vmatpush1.bf16.msra.mxu0 %v2468
        %6785 = vmatprep.subr.bf16.mxu0 %v2473
        %6786 = vmatpush1.bf16.msra.mxu0 %v2472
        %6787 = vmatprep.subr.bf16.mxu0 %v2477
        %6788 = vmatpush1.bf16.msra.mxu0 %v2476
        %6789 = vmatprep.subr.bf16.mxu0 %v2481
        %6790 = vmatpush1.bf16.msra.mxu0 %v2480
        %6791 = vmatprep.subr.bf16.mxu0 %v2485
        %6792 = vmatpush1.bf16.msra.mxu0 %v2484
        %6793 = vmatprep.subr.bf16.mxu0 %v2489
        %6794 = vmatpush1.bf16.msra.mxu0 %v2488
        %6795 = vmatprep.mubr.bf16.mxu0 %v5758
        %6796 = vmatmul.mubr.bf16.gmra.mrb[0].mxu0 %v5757
        %v6797 = vpop.f32.mrb[0].mxu0
        %v6798 = vadd.f32 %v6597, %v6797
        %v6799 = vpop.f32.mrb[0].mxu0
        %v6800 = vadd.f32 %v6599, %v6799
        %v6801 = vpop.f32.mrb[0].mxu0
        %v6802 = vadd.f32 %v6601, %v6801
        %v6803 = vpop.f32.mrb[0].mxu0
        %v6804 = vadd.f32 %v6603, %v6803
        %6805 = vmatprep.mubr.bf16.mxu0 %v5764
        %6806 = vmatmul.mubr.bf16.gmra.mrb[0].mxu0 %v5763
        %v6807 = vpop.f32.mrb[0].mxu0
        %v6808 = vadd.f32 %v6607, %v6807
        %v6809 = vpop.f32.mrb[0].mxu0
        %v6810 = vadd.f32 %v6609, %v6809
        %v6811 = vpop.f32.mrb[0].mxu0
        %v6812 = vadd.f32 %v6611, %v6811
        %v6813 = vpop.f32.mrb[0].mxu0
        %v6814 = vadd.f32 %v6613, %v6813
        %6815 = vmatprep.mubr.bf16.mxu0 %v5770
        %6816 = vmatmul.mubr.bf16.gmra.mrb[0].mxu0 %v5769
        %v6817 = vpop.f32.mrb[0].mxu0
        %v6818 = vadd.f32 %v6617, %v6817
        %v6819 = vpop.f32.mrb[0].mxu0
        %v6820 = vadd.f32 %v6619, %v6819
        %v6821 = vpop.f32.mrb[0].mxu0
        %v6822 = vadd.f32 %v6621, %v6821
        %v6823 = vpop.f32.mrb[0].mxu0
        %v6824 = vadd.f32 %v6623, %v6823
        %6825 = vmatprep.mubr.bf16.mxu0 %v5776
        %6826 = vmatmul.mubr.bf16.gmra.mrb[0].mxu0 %v5775
        %v6827 = vpop.f32.mrb[0].mxu0
        %v6828 = vadd.f32 %v6627, %v6827
        %v6829 = vpop.f32.mrb[0].mxu0
        %v6830 = vadd.f32 %v6629, %v6829
        %v6831 = vpop.f32.mrb[0].mxu0
        %v6832 = vadd.f32 %v6631, %v6831
        %v6833 = vpop.f32.mrb[0].mxu0
        %v6834 = vadd.f32 %v6633, %v6833
        %6835 = vmatprep.mubr.bf16.mxu0 %v5782
        %6836 = vmatmul.mubr.bf16.gmra.mrb[0].mxu0 %v5781
        %v6837 = vpop.f32.mrb[0].mxu0
        %v6838 = vadd.f32 %v6637, %v6837
        %v6839 = vpop.f32.mrb[0].mxu0
        %v6840 = vadd.f32 %v6639, %v6839
        %v6841 = vpop.f32.mrb[0].mxu0
        %v6842 = vadd.f32 %v6641, %v6841
        %v6843 = vpop.f32.mrb[0].mxu0
        %v6844 = vadd.f32 %v6643, %v6843
        %6845 = vmatprep.mubr.bf16.mxu0 %v5788
        %6846 = vmatmul.mubr.bf16.gmra.mrb[0].mxu0 %v5787
        %v6847 = vpop.f32.mrb[0].mxu0
        %v6848 = vadd.f32 %v6647, %v6847
        %v6849 = vpop.f32.mrb[0].mxu0
        %v6850 = vadd.f32 %v6649, %v6849
        %v6851 = vpop.f32.mrb[0].mxu0
        %v6852 = vadd.f32 %v6651, %v6851
        %v6853 = vpop.f32.mrb[0].mxu0
        %v6854 = vadd.f32 %v6653, %v6853
        %6855 = vmatprep.mubr.bf16.mxu0 %v5794
        %6856 = vmatmul.mubr.bf16.gmra.mrb[0].mxu0 %v5793
        %v6857 = vpop.f32.mrb[0].mxu0
        %v6858 = vadd.f32 %v6657, %v6857
        %v6859 = vpop.f32.mrb[0].mxu0
        %v6860 = vadd.f32 %v6659, %v6859
        %v6861 = vpop.f32.mrb[0].mxu0
        %v6862 = vadd.f32 %v6661, %v6861
        %v6863 = vpop.f32.mrb[0].mxu0
        %v6864 = vadd.f32 %v6663, %v6863
        %6865 = vmatprep.mubr.bf16.mxu0 %v5800
        %6866 = vmatmul.mubr.bf16.gmra.mrb[0].mxu0 %v5799
        %v6867 = vpop.f32.mrb[0].mxu0
        %v6868 = vadd.f32 %v6667, %v6867
        %v6869 = vpop.f32.mrb[0].mxu0
        %v6870 = vadd.f32 %v6669, %v6869
        %v6871 = vpop.f32.mrb[0].mxu0
        %v6872 = vadd.f32 %v6671, %v6871
        %v6873 = vpop.f32.mrb[0].mxu0
        %v6874 = vadd.f32 %v6673, %v6873
        %6875 = vmatprep.mubr.bf16.mxu0 %v5806
        %6876 = vmatmul.mubr.bf16.gmra.mrb[0].mxu0 %v5805
        %v6877 = vpop.f32.mrb[0].mxu0
        %v6878 = vadd.f32 %v6677, %v6877
        %v6879 = vpop.f32.mrb[0].mxu0
        %v6880 = vadd.f32 %v6679, %v6879
        %v6881 = vpop.f32.mrb[0].mxu0
        %v6882 = vadd.f32 %v6681, %v6881
        %v6883 = vpop.f32.mrb[0].mxu0
        %v6884 = vadd.f32 %v6683, %v6883
        %6885 = vmatprep.mubr.bf16.mxu0 %v5812
        %6886 = vmatmul.mubr.bf16.gmra.mrb[0].mxu0 %v5811
        %v6887 = vpop.f32.mrb[0].mxu0
        %v6888 = vadd.f32 %v6687, %v6887
        %v6889 = vpop.f32.mrb[0].mxu0
        %v6890 = vadd.f32 %v6689, %v6889
        %v6891 = vpop.f32.mrb[0].mxu0
        %v6892 = vadd.f32 %v6691, %v6891
        %v6893 = vpop.f32.mrb[0].mxu0
        %v6894 = vadd.f32 %v6693, %v6893
        %6895 = vmatprep.mubr.bf16.mxu0 %v5818
        %6896 = vmatmul.mubr.bf16.gmra.mrb[0].mxu0 %v5817
        %v6897 = vpop.f32.mrb[0].mxu0
        %v6898 = vadd.f32 %v6697, %v6897
        %v6899 = vpop.f32.mrb[0].mxu0
        %v6900 = vadd.f32 %v6699, %v6899
        %v6901 = vpop.f32.mrb[0].mxu0
        %v6902 = vadd.f32 %v6701, %v6901
        %v6903 = vpop.f32.mrb[0].mxu0
        %v6904 = vadd.f32 %v6703, %v6903
        %6905 = vmatprep.mubr.bf16.mxu0 %v5824
        %6906 = vmatmul.mubr.bf16.gmra.mrb[0].mxu0 %v5823
        %v6907 = vpop.f32.mrb[0].mxu0
        %v6908 = vadd.f32 %v6707, %v6907
        %v6909 = vpop.f32.mrb[0].mxu0
        %v6910 = vadd.f32 %v6709, %v6909
        %v6911 = vpop.f32.mrb[0].mxu0
        %v6912 = vadd.f32 %v6711, %v6911
        %v6913 = vpop.f32.mrb[0].mxu0
        %v6914 = vadd.f32 %v6713, %v6913
        %6915 = vmatprep.mubr.bf16.mxu0 %v5830
        %6916 = vmatmul.mubr.bf16.gmra.mrb[0].mxu0 %v5829
        %v6917 = vpop.f32.mrb[0].mxu0
        %v6918 = vadd.f32 %v6717, %v6917
        %v6919 = vpop.f32.mrb[0].mxu0
        %v6920 = vadd.f32 %v6719, %v6919
        %v6921 = vpop.f32.mrb[0].mxu0
        %v6922 = vadd.f32 %v6721, %v6921
        %v6923 = vpop.f32.mrb[0].mxu0
        %v6924 = vadd.f32 %v6723, %v6923
        %6925 = vmatprep.mubr.bf16.mxu0 %v5836
        %6926 = vmatmul.mubr.bf16.gmra.mrb[0].mxu0 %v5835
        %v6927 = vpop.f32.mrb[0].mxu0
        %v6928 = vadd.f32 %v6727, %v6927
        %v6929 = vpop.f32.mrb[0].mxu0
        %v6930 = vadd.f32 %v6729, %v6929
        %v6931 = vpop.f32.mrb[0].mxu0
        %v6932 = vadd.f32 %v6731, %v6931
        %v6933 = vpop.f32.mrb[0].mxu0
        %v6934 = vadd.f32 %v6733, %v6933
        %6935 = vmatprep.mubr.bf16.mxu0 %v5842
        %6936 = vmatmul.mubr.bf16.gmra.mrb[0].mxu0 %v5841
        %v6937 = vpop.f32.mrb[0].mxu0
        %v6938 = vadd.f32 %v6737, %v6937
        %v6939 = vpop.f32.mrb[0].mxu0
        %v6940 = vadd.f32 %v6739, %v6939
        %v6941 = vpop.f32.mrb[0].mxu0
        %v6942 = vadd.f32 %v6741, %v6941
        %v6943 = vpop.f32.mrb[0].mxu0
        %v6944 = vadd.f32 %v6743, %v6943
        %6945 = vmatprep.mubr.bf16.mxu0 %v5848
        %6946 = vmatmul.mubr.bf16.gmra.mrb[0].mxu0 %v5847
        %v6947 = vpop.f32.mrb[0].mxu0
        %v6948 = vadd.f32 %v6747, %v6947
        %v6949 = vpop.f32.mrb[0].mxu0
        %v6950 = vadd.f32 %v6749, %v6949
        %v6951 = vpop.f32.mrb[0].mxu0
        %v6952 = vadd.f32 %v6751, %v6951
        %v6953 = vpop.f32.mrb[0].mxu0
        %v6954 = vadd.f32 %v6753, %v6953
        %6955 = vmatprep.mubr.bf16.mxu0 %v5854
        %6956 = vmatmul.mubr.bf16.gmra.mrb[0].mxu0 %v5853
        %v6957 = vpop.f32.mrb[0].mxu0
        %v6958 = vadd.f32 %v6757, %v6957
        %v6959 = vpop.f32.mrb[0].mxu0
        %v6960 = vadd.f32 %v6759, %v6959
        %v6961 = vpop.f32.mrb[0].mxu0
        %v6962 = vpop.f32.mrb[0].mxu0
        %6963 = vdwg.mxu0
        %6964 = vmatprep.subr.bf16.mxu0 %v2493
        %6965 = vmatpush1.bf16.msra.mxu0 %v2492
        %6966 = vmatprep.subr.bf16.mxu0 %v2497
        %6967 = vmatpush1.bf16.msra.mxu0 %v2496
        %6968 = vmatprep.subr.bf16.mxu0 %v2501
        %6969 = vmatpush1.bf16.msra.mxu0 %v2500
        %6970 = vmatprep.subr.bf16.mxu0 %v2505
        %6971 = vmatpush1.bf16.msra.mxu0 %v2504
        %6972 = vmatprep.subr.bf16.mxu0 %v2509
        %6973 = vmatpush1.bf16.msra.mxu0 %v2508
        %6974 = vmatprep.subr.bf16.mxu0 %v2513
        %6975 = vmatpush1.bf16.msra.mxu0 %v2512
        %6976 = vmatprep.subr.bf16.mxu0 %v2517
        %6977 = vmatpush1.bf16.msra.mxu0 %v2516
        %6978 = vmatprep.subr.bf16.mxu0 %v2521
        %6979 = vmatpush1.bf16.msra.mxu0 %v2520
        %6980 = vmatprep.subr.bf16.mxu0 %v2525
        %6981 = vmatpush1.bf16.msra.mxu0 %v2524
        %6982 = vmatprep.subr.bf16.mxu0 %v2529
        %6983 = vmatpush1.bf16.msra.mxu0 %v2528
        %6984 = vmatprep.subr.bf16.mxu0 %v2533
        %6985 = vmatpush1.bf16.msra.mxu0 %v2532
        %6986 = vmatprep.subr.bf16.mxu0 %v2537
        %6987 = vmatpush1.bf16.msra.mxu0 %v2536
        %6988 = vmatprep.subr.bf16.mxu0 %v2541
        %6989 = vmatpush1.bf16.msra.mxu0 %v2540
        %6990 = vmatprep.subr.bf16.mxu0 %v2545
        %6991 = vmatpush1.bf16.msra.mxu0 %v2544
        %6992 = vmatprep.subr.bf16.mxu0 %v2549
        %6993 = vmatpush1.bf16.msra.mxu0 %v2548
        %6994 = vmatprep.subr.bf16.mxu0 %v2553
        %6995 = vmatpush1.bf16.msra.mxu0 %v2552
        %6996 = vmatprep.mubr.bf16.mxu0 %v5760
        %6997 = vmatmul.mubr.bf16.gmra.mrb[0].mxu0 %v5759
        %v6998 = vpop.f32.mrb[0].mxu0
        %v6999 = vadd.f32 %v6798, %v6998
        %v7000 = vpop.f32.mrb[0].mxu0
        %v7001 = vadd.f32 %v6800, %v7000
        %v7002 = vpop.f32.mrb[0].mxu0
        %v7003 = vadd.f32 %v6802, %v7002
        %v7004 = vpop.f32.mrb[0].mxu0
        %v7005 = vadd.f32 %v6804, %v7004
        %7006 = vmatprep.mubr.bf16.mxu0 %v5766
        %7007 = vmatmul.mubr.bf16.gmra.mrb[0].mxu0 %v5765
        %v7008 = vpop.f32.mrb[0].mxu0
        %v7009 = vadd.f32 %v6808, %v7008
        %v7010 = vpop.f32.mrb[0].mxu0
        %v7011 = vadd.f32 %v6810, %v7010
        %v7012 = vpop.f32.mrb[0].mxu0
        %v7013 = vadd.f32 %v6812, %v7012
        %v7014 = vpop.f32.mrb[0].mxu0
        %v7015 = vadd.f32 %v6814, %v7014
        %7016 = vmatprep.mubr.bf16.mxu0 %v5772
        %7017 = vmatmul.mubr.bf16.gmra.mrb[0].mxu0 %v5771
        %v7018 = vpop.f32.mrb[0].mxu0
        %v7019 = vadd.f32 %v6818, %v7018
        %v7020 = vpop.f32.mrb[0].mxu0
        %v7021 = vadd.f32 %v6820, %v7020
        %v7022 = vpop.f32.mrb[0].mxu0
        %v7023 = vadd.f32 %v6822, %v7022
        %v7024 = vpop.f32.mrb[0].mxu0
        %v7025 = vadd.f32 %v6824, %v7024
        %7026 = vmatprep.mubr.bf16.mxu0 %v5778
        %7027 = vmatmul.mubr.bf16.gmra.mrb[0].mxu0 %v5777
        %v7028 = vpop.f32.mrb[0].mxu0
        %v7029 = vadd.f32 %v6828, %v7028
        %v7030 = vpop.f32.mrb[0].mxu0
        %v7031 = vadd.f32 %v6830, %v7030
        %v7032 = vpop.f32.mrb[0].mxu0
        %v7033 = vadd.f32 %v6832, %v7032
        %v7034 = vpop.f32.mrb[0].mxu0
        %v7035 = vadd.f32 %v6834, %v7034
        %7036 = vmatprep.mubr.bf16.mxu0 %v5784
        %7037 = vmatmul.mubr.bf16.gmra.mrb[0].mxu0 %v5783
        %v7038 = vpop.f32.mrb[0].mxu0
        %v7039 = vadd.f32 %v6838, %v7038
        %v7040 = vpop.f32.mrb[0].mxu0
        %v7041 = vadd.f32 %v6840, %v7040
        %v7042 = vpop.f32.mrb[0].mxu0
        %v7043 = vadd.f32 %v6842, %v7042
        %v7044 = vpop.f32.mrb[0].mxu0
        %v7045 = vadd.f32 %v6844, %v7044
        %7046 = vmatprep.mubr.bf16.mxu0 %v5790
        %7047 = vmatmul.mubr.bf16.gmra.mrb[0].mxu0 %v5789
        %v7048 = vpop.f32.mrb[0].mxu0
        %v7049 = vadd.f32 %v6848, %v7048
        %v7050 = vpop.f32.mrb[0].mxu0
        %v7051 = vadd.f32 %v6850, %v7050
        %v7052 = vpop.f32.mrb[0].mxu0
        %v7053 = vadd.f32 %v6852, %v7052
        %v7054 = vpop.f32.mrb[0].mxu0
        %v7055 = vadd.f32 %v6854, %v7054
        %7056 = vmatprep.mubr.bf16.mxu0 %v5796
        %7057 = vmatmul.mubr.bf16.gmra.mrb[0].mxu0 %v5795
        %v7058 = vpop.f32.mrb[0].mxu0
        %v7059 = vadd.f32 %v6858, %v7058
        %v7060 = vpop.f32.mrb[0].mxu0
        %v7061 = vadd.f32 %v6860, %v7060
        %v7062 = vpop.f32.mrb[0].mxu0
        %v7063 = vadd.f32 %v6862, %v7062
        %v7064 = vpop.f32.mrb[0].mxu0
        %v7065 = vadd.f32 %v6864, %v7064
        %7066 = vmatprep.mubr.bf16.mxu0 %v5802
        %7067 = vmatmul.mubr.bf16.gmra.mrb[0].mxu0 %v5801
        %v7068 = vpop.f32.mrb[0].mxu0
        %v7069 = vadd.f32 %v6868, %v7068
        %v7070 = vpop.f32.mrb[0].mxu0
        %v7071 = vadd.f32 %v6870, %v7070
        %v7072 = vpop.f32.mrb[0].mxu0
        %v7073 = vadd.f32 %v6872, %v7072
        %v7074 = vpop.f32.mrb[0].mxu0
        %v7075 = vadd.f32 %v6874, %v7074
        %7076 = vmatprep.mubr.bf16.mxu0 %v5808
        %7077 = vmatmul.mubr.bf16.gmra.mrb[0].mxu0 %v5807
        %v7078 = vpop.f32.mrb[0].mxu0
        %v7079 = vadd.f32 %v6878, %v7078
        %v7080 = vpop.f32.mrb[0].mxu0
        %v7081 = vadd.f32 %v6880, %v7080
        %v7082 = vpop.f32.mrb[0].mxu0
        %v7083 = vadd.f32 %v6882, %v7082
        %v7084 = vpop.f32.mrb[0].mxu0
        %v7085 = vadd.f32 %v6884, %v7084
        %7086 = vmatprep.mubr.bf16.mxu0 %v5814
        %7087 = vmatmul.mubr.bf16.gmra.mrb[0].mxu0 %v5813
        %v7088 = vpop.f32.mrb[0].mxu0
        %v7089 = vadd.f32 %v6888, %v7088
        %v7090 = vpop.f32.mrb[0].mxu0
        %v7091 = vadd.f32 %v6890, %v7090
        %v7092 = vpop.f32.mrb[0].mxu0
        %v7093 = vadd.f32 %v6892, %v7092
        %v7094 = vpop.f32.mrb[0].mxu0
        %v7095 = vadd.f32 %v6894, %v7094
        %7096 = vmatprep.mubr.bf16.mxu0 %v5820
        %7097 = vmatmul.mubr.bf16.gmra.mrb[0].mxu0 %v5819
        %v7098 = vpop.f32.mrb[0].mxu0
        %v7099 = vadd.f32 %v6898, %v7098
        %v7100 = vpop.f32.mrb[0].mxu0
        %v7101 = vadd.f32 %v6900, %v7100
        %v7102 = vpop.f32.mrb[0].mxu0
        %v7103 = vadd.f32 %v6902, %v7102
        %v7104 = vpop.f32.mrb[0].mxu0
        %v7105 = vadd.f32 %v6904, %v7104
        %7106 = vmatprep.mubr.bf16.mxu0 %v5826
        %7107 = vmatmul.mubr.bf16.gmra.mrb[0].mxu0 %v5825
        %v7108 = vpop.f32.mrb[0].mxu0
        %v7109 = vadd.f32 %v6908, %v7108
        %v7110 = vpop.f32.mrb[0].mxu0
        %v7111 = vadd.f32 %v6910, %v7110
        %v7112 = vpop.f32.mrb[0].mxu0
        %v7113 = vadd.f32 %v6912, %v7112
        %v7114 = vpop.f32.mrb[0].mxu0
        %v7115 = vadd.f32 %v6914, %v7114
        %7116 = vmatprep.mubr.bf16.mxu0 %v5832
        %7117 = vmatmul.mubr.bf16.gmra.mrb[0].mxu0 %v5831
        %v7118 = vpop.f32.mrb[0].mxu0
        %v7119 = vadd.f32 %v6918, %v7118
        %v7120 = vpop.f32.mrb[0].mxu0
        %v7121 = vadd.f32 %v6920, %v7120
        %v7122 = vpop.f32.mrb[0].mxu0
        %v7123 = vadd.f32 %v6922, %v7122
        %v7124 = vpop.f32.mrb[0].mxu0
        %v7125 = vadd.f32 %v6924, %v7124
        %7126 = vmatprep.mubr.bf16.mxu0 %v5838
        %7127 = vmatmul.mubr.bf16.gmra.mrb[0].mxu0 %v5837
        %v7128 = vpop.f32.mrb[0].mxu0
        %v7129 = vadd.f32 %v6928, %v7128
        %v7130 = vpop.f32.mrb[0].mxu0
        %v7131 = vadd.f32 %v6930, %v7130
        %v7132 = vpop.f32.mrb[0].mxu0
        %v7133 = vadd.f32 %v6932, %v7132
        %v7134 = vpop.f32.mrb[0].mxu0
        %v7135 = vadd.f32 %v6934, %v7134
        %7136 = vmatprep.mubr.bf16.mxu0 %v5844
        %7137 = vmatmul.mubr.bf16.gmra.mrb[0].mxu0 %v5843
        %v7138 = vpop.f32.mrb[0].mxu0
        %v7139 = vadd.f32 %v6938, %v7138
        %v7140 = vpop.f32.mrb[0].mxu0
        %v7141 = vadd.f32 %v6940, %v7140
        %v7142 = vpop.f32.mrb[0].mxu0
        %v7143 = vadd.f32 %v6942, %v7142
        %v7144 = vpop.f32.mrb[0].mxu0
        %v7145 = vadd.f32 %v6944, %v7144
        %7146 = vmatprep.mubr.bf16.mxu0 %v5850
        %7147 = vmatmul.mubr.bf16.gmra.mrb[0].mxu0 %v5849
        %v7148 = vpop.f32.mrb[0].mxu0
        %v7149 = vadd.f32 %v6948, %v7148
        %v7150 = vpop.f32.mrb[0].mxu0
        %v7151 = vadd.f32 %v6950, %v7150
        %v7152 = vpop.f32.mrb[0].mxu0
        %v7153 = vadd.f32 %v6952, %v7152
        %v7154 = vpop.f32.mrb[0].mxu0
        %v7155 = vadd.f32 %v6954, %v7154
        %7156 = vmatprep.mubr.bf16.mxu0 %v5856
        %7157 = vmatmul.mubr.bf16.gmra.mrb[0].mxu0 %v5855
        %v7158 = vpop.f32.mrb[0].mxu0
        %v7159 = vadd.f32 %v6958, %v7158
        %v7160 = vpop.f32.mrb[0].mxu0
        %v7161 = vadd.f32 %v6960, %v7160
        %v7162 = vpop.f32.mrb[0].mxu0
        %v7163 = vpop.f32.mrb[0].mxu0
        %7164 = vdwg.mxu0
        %s7165 = scalar_lea.vmem %s765, 1056 [#allocation8]
        %7166 = vst [vmem:[%s7165] sm:$0xff] %v6396
        %7167 = vst [vmem:[%s7165 + $0x8] sm:$0xff] %v6398
        %7168 = vst [vmem:[%s7165 + $0x10] sm:$0xff] %v6999
        %7169 = vst [vmem:[%s7165 + $0x18] sm:$0xff] %v7001
        %7170 = vst [vmem:[%s7165 + $0x20] sm:$0xff] %v6400
        %7171 = vst [vmem:[%s7165 + $0x28] sm:$0xff] %v6402
        %7172 = vst [vmem:[%s7165 + $0x30] sm:$0xff] %v7003
        %7173 = vst [vmem:[%s7165 + $0x38] sm:$0xff] %v7005
        %7174 = vst [vmem:[%s7165 + $0x40] sm:$0xff] %v6406
        %7175 = vst [vmem:[%s7165 + $0x48] sm:$0xff] %v6408
        %7176 = vst [vmem:[%s7165 + $0x50] sm:$0xff] %v7009
        %7177 = vst [vmem:[%s7165 + $0x58] sm:$0xff] %v7011
        %7178 = vst [vmem:[%s7165 + $0x60] sm:$0xff] %v6410
        %7179 = vst [vmem:[%s7165 + $0x68] sm:$0xff] %v6412
        %7180 = vst [vmem:[%s7165 + $0x70] sm:$0xff] %v7013
        %7181 = vst [vmem:[%s7165 + $0x78] sm:$0xff] %v7015
        %7182 = vst [vmem:[%s7165 + $0x80] sm:$0xff] %v6416
        %7183 = vst [vmem:[%s7165 + $0x88] sm:$0xff] %v6418
        %7184 = vst [vmem:[%s7165 + $0x90] sm:$0xff] %v7019
        %7185 = vst [vmem:[%s7165 + $0x98] sm:$0xff] %v7021
        %7186 = vst [vmem:[%s7165 + $0xa0] sm:$0xff] %v6420
        %7187 = vst [vmem:[%s7165 + $0xa8] sm:$0xff] %v6422
        %7188 = vst [vmem:[%s7165 + $0xb0] sm:$0xff] %v7023
        %7189 = vst [vmem:[%s7165 + $0xb8] sm:$0xff] %v7025
        %7190 = vst [vmem:[%s7165 + $0xc0] sm:$0xff] %v6426
        %7191 = vst [vmem:[%s7165 + $0xc8] sm:$0xff] %v6428
        %7192 = vst [vmem:[%s7165 + $0xd0] sm:$0xff] %v7029
        %7193 = vst [vmem:[%s7165 + $0xd8] sm:$0xff] %v7031
        %7194 = vst [vmem:[%s7165 + $0xe0] sm:$0xff] %v6430
        %7195 = vst [vmem:[%s7165 + $0xe8] sm:$0xff] %v6432
        %7196 = vst [vmem:[%s7165 + $0xf0] sm:$0xff] %v7033
        %7197 = vst [vmem:[%s7165 + $0xf8] sm:$0xff] %v7035
        %7198 = vst [vmem:[%s7165 + $0x100] sm:$0xff] %v6436
        %7199 = vst [vmem:[%s7165 + $0x108] sm:$0xff] %v6438
        %7200 = vst [vmem:[%s7165 + $0x110] sm:$0xff] %v7039
        %7201 = vst [vmem:[%s7165 + $0x118] sm:$0xff] %v7041
        %7202 = vst [vmem:[%s7165 + $0x120] sm:$0xff] %v6440
        %7203 = vst [vmem:[%s7165 + $0x128] sm:$0xff] %v6442
        %7204 = vst [vmem:[%s7165 + $0x130] sm:$0xff] %v7043
        %7205 = vst [vmem:[%s7165 + $0x138] sm:$0xff] %v7045
        %7206 = vst [vmem:[%s7165 + $0x140] sm:$0xff] %v6446
        %7207 = vst [vmem:[%s7165 + $0x148] sm:$0xff] %v6448
        %7208 = vst [vmem:[%s7165 + $0x150] sm:$0xff] %v7049
        %7209 = vst [vmem:[%s7165 + $0x158] sm:$0xff] %v7051
        %7210 = vst [vmem:[%s7165 + $0x160] sm:$0xff] %v6450
        %7211 = vst [vmem:[%s7165 + $0x168] sm:$0xff] %v6452
        %7212 = vst [vmem:[%s7165 + $0x170] sm:$0xff] %v7053
        %7213 = vst [vmem:[%s7165 + $0x178] sm:$0xff] %v7055
        %7214 = vst [vmem:[%s7165 + $0x180] sm:$0xff] %v6456
        %7215 = vst [vmem:[%s7165 + $0x188] sm:$0xff] %v6458
        %7216 = vst [vmem:[%s7165 + $0x190] sm:$0xff] %v7059
        %7217 = vst [vmem:[%s7165 + $0x198] sm:$0xff] %v7061
        %7218 = vst [vmem:[%s7165 + $0x1a0] sm:$0xff] %v6460
        %7219 = vst [vmem:[%s7165 + $0x1a8] sm:$0xff] %v6462
        %7220 = vst [vmem:[%s7165 + $0x1b0] sm:$0xff] %v7063
        %7221 = vst [vmem:[%s7165 + $0x1b8] sm:$0xff] %v7065
        %7222 = vst [vmem:[%s7165 + $0x1c0] sm:$0xff] %v6466
        %7223 = vst [vmem:[%s7165 + $0x1c8] sm:$0xff] %v6468
        %7224 = vst [vmem:[%s7165 + $0x1d0] sm:$0xff] %v7069
        %7225 = vst [vmem:[%s7165 + $0x1d8] sm:$0xff] %v7071
        %7226 = vst [vmem:[%s7165 + $0x1e0] sm:$0xff] %v6470
        %7227 = vst [vmem:[%s7165 + $0x1e8] sm:$0xff] %v6472
        %7228 = vst [vmem:[%s7165 + $0x1f0] sm:$0xff] %v7073
        %7229 = vst [vmem:[%s7165 + $0x1f8] sm:$0xff] %v7075
        %7230 = vst [vmem:[%s7165 + $0x200] sm:$0xff] %v6476
        %7231 = vst [vmem:[%s7165 + $0x208] sm:$0xff] %v6478
        %7232 = vst [vmem:[%s7165 + $0x210] sm:$0xff] %v7079
        %7233 = vst [vmem:[%s7165 + $0x218] sm:$0xff] %v7081
        %7234 = vst [vmem:[%s7165 + $0x220] sm:$0xff] %v6480
        %7235 = vst [vmem:[%s7165 + $0x228] sm:$0xff] %v6482
        %7236 = vst [vmem:[%s7165 + $0x230] sm:$0xff] %v7083
        %7237 = vst [vmem:[%s7165 + $0x238] sm:$0xff] %v7085
        %7238 = vst [vmem:[%s7165 + $0x240] sm:$0xff] %v6486
        %7239 = vst [vmem:[%s7165 + $0x248] sm:$0xff] %v6488
        %7240 = vst [vmem:[%s7165 + $0x250] sm:$0xff] %v7089
        %7241 = vst [vmem:[%s7165 + $0x258] sm:$0xff] %v7091
        %7242 = vst [vmem:[%s7165 + $0x260] sm:$0xff] %v6490
        %7243 = vst [vmem:[%s7165 + $0x268] sm:$0xff] %v6492
        %7244 = vst [vmem:[%s7165 + $0x270] sm:$0xff] %v7093
        %7245 = vst [vmem:[%s7165 + $0x278] sm:$0xff] %v7095
        %7246 = vst [vmem:[%s7165 + $0x280] sm:$0xff] %v6496
        %7247 = vst [vmem:[%s7165 + $0x288] sm:$0xff] %v6498
        %7248 = vst [vmem:[%s7165 + $0x290] sm:$0xff] %v7099
        %7249 = vst [vmem:[%s7165 + $0x298] sm:$0xff] %v7101
        %7250 = vst [vmem:[%s7165 + $0x2a0] sm:$0xff] %v6500
        %7251 = vst [vmem:[%s7165 + $0x2a8] sm:$0xff] %v6502
        %7252 = vst [vmem:[%s7165 + $0x2b0] sm:$0xff] %v7103
        %7253 = vst [vmem:[%s7165 + $0x2b8] sm:$0xff] %v7105
        %7254 = vst [vmem:[%s7165 + $0x2c0] sm:$0xff] %v6506
        %7255 = vst [vmem:[%s7165 + $0x2c8] sm:$0xff] %v6508
        %7256 = vst [vmem:[%s7165 + $0x2d0] sm:$0xff] %v7109
        %7257 = vst [vmem:[%s7165 + $0x2d8] sm:$0xff] %v7111
        %7258 = vst [vmem:[%s7165 + $0x2e0] sm:$0xff] %v6510
        %7259 = vst [vmem:[%s7165 + $0x2e8] sm:$0xff] %v6512
        %7260 = vst [vmem:[%s7165 + $0x2f0] sm:$0xff] %v7113
        %7261 = vst [vmem:[%s7165 + $0x2f8] sm:$0xff] %v7115
        %7262 = vst [vmem:[%s7165 + $0x300] sm:$0xff] %v6516
        %7263 = vst [vmem:[%s7165 + $0x308] sm:$0xff] %v6518
        %7264 = vst [vmem:[%s7165 + $0x310] sm:$0xff] %v7119
        %7265 = vst [vmem:[%s7165 + $0x318] sm:$0xff] %v7121
        %7266 = vst [vmem:[%s7165 + $0x320] sm:$0xff] %v6520
        %7267 = vst [vmem:[%s7165 + $0x328] sm:$0xff] %v6522
        %7268 = vst [vmem:[%s7165 + $0x330] sm:$0xff] %v7123
        %7269 = vst [vmem:[%s7165 + $0x338] sm:$0xff] %v7125
        %7270 = vst [vmem:[%s7165 + $0x340] sm:$0xff] %v6526
        %7271 = vst [vmem:[%s7165 + $0x348] sm:$0xff] %v6528
        %7272 = vst [vmem:[%s7165 + $0x350] sm:$0xff] %v7129
        %7273 = vst [vmem:[%s7165 + $0x358] sm:$0xff] %v7131
        %7274 = vst [vmem:[%s7165 + $0x360] sm:$0xff] %v6530
        %7275 = vst [vmem:[%s7165 + $0x368] sm:$0xff] %v6532
        %7276 = vst [vmem:[%s7165 + $0x370] sm:$0xff] %v7133
        %7277 = vst [vmem:[%s7165 + $0x378] sm:$0xff] %v7135
        %7278 = vst [vmem:[%s7165 + $0x380] sm:$0xff] %v6536
        %7279 = vst [vmem:[%s7165 + $0x388] sm:$0xff] %v6538
        %7280 = vst [vmem:[%s7165 + $0x390] sm:$0xff] %v7139
        %7281 = vst [vmem:[%s7165 + $0x398] sm:$0xff] %v7141
        %7282 = vst [vmem:[%s7165 + $0x3a0] sm:$0xff] %v6540
        %7283 = vst [vmem:[%s7165 + $0x3a8] sm:$0xff] %v6542
        %7284 = vst [vmem:[%s7165 + $0x3b0] sm:$0xff] %v7143
        %7285 = vst [vmem:[%s7165 + $0x3b8] sm:$0xff] %v7145
        %7286 = vst [vmem:[%s7165 + $0x3c0] sm:$0xff] %v6546
        %7287 = vst [vmem:[%s7165 + $0x3c8] sm:$0xff] %v6548
        %7288 = vst [vmem:[%s7165 + $0x3d0] sm:$0xff] %v7149
        %7289 = vst [vmem:[%s7165 + $0x3d8] sm:$0xff] %v7151
        %7290 = vst [vmem:[%s7165 + $0x3e0] sm:$0xff] %v6550
        %7291 = vst [vmem:[%s7165 + $0x3e8] sm:$0xff] %v6552
        %7292 = vst [vmem:[%s7165 + $0x3f0] sm:$0xff] %v7153
        %7293 = vst [vmem:[%s7165 + $0x3f8] sm:$0xff] %v7155
        %7294 = vst [vmem:[%s7165 + $0x400] sm:$0x1] %v6556
        %7295 = vst [vmem:[%s7165 + $0x408] sm:$0x1] %v6558
        %7296 = vst [vmem:[%s7165 + $0x410] sm:$0x1] %v7159
        %7297 = vst [vmem:[%s7165 + $0x418] sm:$0x1] %v7161
        %v7298 = vpack.c.b16 %v5557, %v5557
        %v7299 = vpack.c.b16 %v5558, %v5558
        %v7300 = vpack.c.b16 %v5559, %v5559
        %v7301 = vpack.c.b16 %v5560, %v5560
        %v7302 = vpack.c.b16 %v5561, %v5561
        %v7303 = vpack.c.b16 %v5562, %v5562
        %7310 = vmatprep.subr.bf16.mxu0 %v4673
        %7311 = vmatpush1.bf16.msra.mxu0 %v4672
        %7312 = vmatprep.subr.bf16.mxu0 %v4677
        %7313 = vmatpush1.bf16.msra.mxu0 %v4676
        %7314 = vmatprep.subr.bf16.mxu0 %v4681
        %7315 = vmatpush1.bf16.msra.mxu0 %v4680
        %7316 = vmatprep.subr.bf16.mxu0 %v4685
        %7317 = vmatpush1.bf16.msra.mxu0 %v4684
        %7318 = vmatprep.subr.bf16.mxu0 %v4689
        %7319 = vmatpush1.bf16.msra.mxu0 %v4688
        %7320 = vmatprep.subr.bf16.mxu0 %v4693
        %7321 = vmatpush1.bf16.msra.mxu0 %v4692
        %7322 = vmatprep.subr.bf16.mxu0 %v4697
        %7323 = vmatpush1.bf16.msra.mxu0 %v4696
        %7324 = vmatprep.subr.bf16.mxu0 %v4701
        %7325 = vmatpush1.bf16.msra.mxu0 %v4700
        %7326 = vmatprep.subr.bf16.mxu0 %v4705
        %7327 = vmatpush1.bf16.msra.mxu0 %v4704
        %7328 = vmatprep.subr.bf16.mxu0 %v4709
        %7329 = vmatpush1.bf16.msra.mxu0 %v4708
        %7330 = vmatprep.subr.bf16.mxu0 %v4713
        %7331 = vmatpush1.bf16.msra.mxu0 %v4712
        %7332 = vmatprep.subr.bf16.mxu0 %v4717
        %7333 = vmatpush1.bf16.msra.mxu0 %v4716
        %7334 = vmatprep.subr.bf16.mxu0 %v4721
        %7335 = vmatpush1.bf16.msra.mxu0 %v4720
        %7336 = vmatprep.subr.bf16.mxu0 %v4725
        %7337 = vmatpush1.bf16.msra.mxu0 %v4724
        %7338 = vmatprep.subr.bf16.mxu0 %v4729
        %7339 = vmatpush1.bf16.msra.mxu0 %v4728
        %7340 = vmatprep.subr.bf16.mxu0 %v4733
        %7341 = vmatpush1.bf16.msra.mxu0 %v4732
        %7342 = vmatprep.mubr.bf16.mxu0 %v7299
        %7343 = vmatmul.mubr.bf16.gmra.mrb[0].mxu0 %v7298
        %v7344 = vpop.f32.mrb[0].mxu0
        %v7345 = vadd.f32 %v5060, %v7344
        %v7346 = vpop.f32.mrb[0].mxu0
        %v7347 = vadd.f32 %v5064, %v7346
        %v7348 = vpop.f32.mrb[0].mxu0
        %v7349 = vpop.f32.mrb[0].mxu0
        %7350 = vdwg.mxu0
        %7351 = vmatprep.subr.bf16.mxu0 %v4737
        %7352 = vmatpush1.bf16.msra.mxu0 %v4736
        %7353 = vmatprep.subr.bf16.mxu0 %v4741
        %7354 = vmatpush1.bf16.msra.mxu0 %v4740
        %7355 = vmatprep.subr.bf16.mxu0 %v4745
        %7356 = vmatpush1.bf16.msra.mxu0 %v4744
        %7357 = vmatprep.subr.bf16.mxu0 %v4749
        %7358 = vmatpush1.bf16.msra.mxu0 %v4748
        %7359 = vmatprep.subr.bf16.mxu0 %v4753
        %7360 = vmatpush1.bf16.msra.mxu0 %v4752
        %7361 = vmatprep.subr.bf16.mxu0 %v4757
        %7362 = vmatpush1.bf16.msra.mxu0 %v4756
        %7363 = vmatprep.subr.bf16.mxu0 %v4761
        %7364 = vmatpush1.bf16.msra.mxu0 %v4760
        %7365 = vmatprep.subr.bf16.mxu0 %v4765
        %7366 = vmatpush1.bf16.msra.mxu0 %v4764
        %7367 = vmatprep.subr.bf16.mxu0 %v4769
        %7368 = vmatpush1.bf16.msra.mxu0 %v4768
        %7369 = vmatprep.subr.bf16.mxu0 %v4773
        %7370 = vmatpush1.bf16.msra.mxu0 %v4772
        %7371 = vmatprep.subr.bf16.mxu0 %v4777
        %7372 = vmatpush1.bf16.msra.mxu0 %v4776
        %7373 = vmatprep.subr.bf16.mxu0 %v4781
        %7374 = vmatpush1.bf16.msra.mxu0 %v4780
        %7375 = vmatprep.subr.bf16.mxu0 %v4785
        %7376 = vmatpush1.bf16.msra.mxu0 %v4784
        %7377 = vmatprep.subr.bf16.mxu0 %v4789
        %7378 = vmatpush1.bf16.msra.mxu0 %v4788
        %7379 = vmatprep.subr.bf16.mxu0 %v4793
        %7380 = vmatpush1.bf16.msra.mxu0 %v4792
        %7381 = vmatprep.subr.bf16.mxu0 %v4797
        %7382 = vmatpush1.bf16.msra.mxu0 %v4796
        %7383 = vmatprep.mubr.bf16.mxu0 %v7301
        %7384 = vmatmul.mubr.bf16.gmra.mrb[0].mxu0 %v7300
        %v7385 = vpop.f32.mrb[0].mxu0
        %v7386 = vadd.f32 %v7345, %v7385
        %v7387 = vpop.f32.mrb[0].mxu0
        %v7388 = vadd.f32 %v7347, %v7387
        %v7389 = vpop.f32.mrb[0].mxu0
        %v7390 = vpop.f32.mrb[0].mxu0
        %7391 = vdwg.mxu0
        %7392 = vmatprep.subr.bf16.mxu0 %v4801
        %7393 = vmatpush1.bf16.msra.mxu0 %v4800
        %7394 = vmatprep.subr.bf16.mxu0 %v4805
        %7395 = vmatpush1.bf16.msra.mxu0 %v4804
        %7396 = vmatprep.subr.bf16.mxu0 %v4809
        %7397 = vmatpush1.bf16.msra.mxu0 %v4808
        %7398 = vmatprep.subr.bf16.mxu0 %v4813
        %7399 = vmatpush1.bf16.msra.mxu0 %v4812
        %7400 = vmatprep.subr.bf16.mxu0 %v4817
        %7401 = vmatpush1.bf16.msra.mxu0 %v4816
        %7402 = vmatprep.subr.bf16.mxu0 %v4821
        %7403 = vmatpush1.bf16.msra.mxu0 %v4820
        %7404 = vmatprep.subr.bf16.mxu0 %v4825
        %7405 = vmatpush1.bf16.msra.mxu0 %v4824
        %7406 = vmatprep.subr.bf16.mxu0 %v4829
        %7407 = vmatpush1.bf16.msra.mxu0 %v4828
        %7408 = vmatprep.subr.bf16.mxu0 %v4833
        %7409 = vmatpush1.bf16.msra.mxu0 %v4832
        %7410 = vmatprep.subr.bf16.mxu0 %v4837
        %7411 = vmatpush1.bf16.msra.mxu0 %v4836
        %7412 = vmatprep.subr.bf16.mxu0 %v4841
        %7413 = vmatpush1.bf16.msra.mxu0 %v4840
        %7414 = vmatprep.subr.bf16.mxu0 %v4845
        %7415 = vmatpush1.bf16.msra.mxu0 %v4844
        %7416 = vmatprep.subr.bf16.mxu0 %v4849
        %7417 = vmatpush1.bf16.msra.mxu0 %v4848
        %7418 = vmatprep.subr.bf16.mxu0 %v4853
        %7419 = vmatpush1.bf16.msra.mxu0 %v4852
        %7420 = vmatprep.subr.bf16.mxu0 %v4857
        %7421 = vmatpush1.bf16.msra.mxu0 %v4856
        %7422 = vmatprep.subr.bf16.mxu0 %v4861
        %7423 = vmatpush1.bf16.msra.mxu0 %v4860
        %7424 = vmatprep.mubr.bf16.mxu0 %v7303
        %7425 = vmatmul.mubr.bf16.gmra.mrb[0].mxu0 %v7302
        %v7426 = vpop.f32.mrb[0].mxu0
        %v7427 = vadd.f32 %v7386, %v7426
        %v7428 = vpop.f32.mrb[0].mxu0
        %v7429 = vadd.f32 %v7388, %v7428
        %v7430 = vpop.f32.mrb[0].mxu0
        %v7431 = vpop.f32.mrb[0].mxu0
        %7432 = vdwg.mxu0
        %7433 = vmatprep.subr.bf16.mxu0 %v4675
        %7434 = vmatpush1.bf16.msra.mxu0 %v4674
        %7435 = vmatprep.subr.bf16.mxu0 %v4679
        %7436 = vmatpush1.bf16.msra.mxu0 %v4678
        %7437 = vmatprep.subr.bf16.mxu0 %v4683
        %7438 = vmatpush1.bf16.msra.mxu0 %v4682
        %7439 = vmatprep.subr.bf16.mxu0 %v4687
        %7440 = vmatpush1.bf16.msra.mxu0 %v4686
        %7441 = vmatprep.subr.bf16.mxu0 %v4691
        %7442 = vmatpush1.bf16.msra.mxu0 %v4690
        %7443 = vmatprep.subr.bf16.mxu0 %v4695
        %7444 = vmatpush1.bf16.msra.mxu0 %v4694
        %7445 = vmatprep.subr.bf16.mxu0 %v4699
        %7446 = vmatpush1.bf16.msra.mxu0 %v4698
        %7447 = vmatprep.subr.bf16.mxu0 %v4703
        %7448 = vmatpush1.bf16.msra.mxu0 %v4702
        %7449 = vmatprep.subr.bf16.mxu0 %v4707
        %7450 = vmatpush1.bf16.msra.mxu0 %v4706
        %7451 = vmatprep.subr.bf16.mxu0 %v4711
        %7452 = vmatpush1.bf16.msra.mxu0 %v4710
        %7453 = vmatprep.subr.bf16.mxu0 %v4715
        %7454 = vmatpush1.bf16.msra.mxu0 %v4714
        %7455 = vmatprep.subr.bf16.mxu0 %v4719
        %7456 = vmatpush1.bf16.msra.mxu0 %v4718
        %7457 = vmatprep.subr.bf16.mxu0 %v4723
        %7458 = vmatpush1.bf16.msra.mxu0 %v4722
        %7459 = vmatprep.subr.bf16.mxu0 %v4727
        %7460 = vmatpush1.bf16.msra.mxu0 %v4726
        %7461 = vmatprep.subr.bf16.mxu0 %v4731
        %7462 = vmatpush1.bf16.msra.mxu0 %v4730
        %7463 = vmatprep.subr.bf16.mxu0 %v4735
        %7464 = vmatpush1.bf16.msra.mxu0 %v4734
        %7465 = vmatprep.mubr.bf16.mxu0 %v7299
        %7466 = vmatmul.mubr.bf16.gmra.mrb[0].mxu0 %v7298
        %v7467 = vpop.f32.mrb[0].mxu0
        %v7468 = vadd.f32 %v5068, %v7467
        %v7469 = vpop.f32.mrb[0].mxu0
        %v7470 = vadd.f32 %v5072, %v7469
        %v7471 = vpop.f32.mrb[0].mxu0
        %v7472 = vpop.f32.mrb[0].mxu0
        %7473 = vdwg.mxu0
        %7474 = vmatprep.subr.bf16.mxu0 %v4739
        %7475 = vmatpush1.bf16.msra.mxu0 %v4738
        %7476 = vmatprep.subr.bf16.mxu0 %v4743
        %7477 = vmatpush1.bf16.msra.mxu0 %v4742
        %7478 = vmatprep.subr.bf16.mxu0 %v4747
        %7479 = vmatpush1.bf16.msra.mxu0 %v4746
        %7480 = vmatprep.subr.bf16.mxu0 %v4751
        %7481 = vmatpush1.bf16.msra.mxu0 %v4750
        %7482 = vmatprep.subr.bf16.mxu0 %v4755
        %7483 = vmatpush1.bf16.msra.mxu0 %v4754
        %7484 = vmatprep.subr.bf16.mxu0 %v4759
        %7485 = vmatpush1.bf16.msra.mxu0 %v4758
        %7486 = vmatprep.subr.bf16.mxu0 %v4763
        %7487 = vmatpush1.bf16.msra.mxu0 %v4762
        %7488 = vmatprep.subr.bf16.mxu0 %v4767
        %7489 = vmatpush1.bf16.msra.mxu0 %v4766
        %7490 = vmatprep.subr.bf16.mxu0 %v4771
        %7491 = vmatpush1.bf16.msra.mxu0 %v4770
        %7492 = vmatprep.subr.bf16.mxu0 %v4775
        %7493 = vmatpush1.bf16.msra.mxu0 %v4774
        %7494 = vmatprep.subr.bf16.mxu0 %v4779
        %7495 = vmatpush1.bf16.msra.mxu0 %v4778
        %7496 = vmatprep.subr.bf16.mxu0 %v4783
        %7497 = vmatpush1.bf16.msra.mxu0 %v4782
        %7498 = vmatprep.subr.bf16.mxu0 %v4787
        %7499 = vmatpush1.bf16.msra.mxu0 %v4786
        %7500 = vmatprep.subr.bf16.mxu0 %v4791
        %7501 = vmatpush1.bf16.msra.mxu0 %v4790
        %7502 = vmatprep.subr.bf16.mxu0 %v4795
        %7503 = vmatpush1.bf16.msra.mxu0 %v4794
        %7504 = vmatprep.subr.bf16.mxu0 %v4799
        %7505 = vmatpush1.bf16.msra.mxu0 %v4798
        %7506 = vmatprep.mubr.bf16.mxu0 %v7301
        %7507 = vmatmul.mubr.bf16.gmra.mrb[0].mxu0 %v7300
        %v7508 = vpop.f32.mrb[0].mxu0
        %v7509 = vadd.f32 %v7468, %v7508
        %v7510 = vpop.f32.mrb[0].mxu0
        %v7511 = vadd.f32 %v7470, %v7510
        %v7512 = vpop.f32.mrb[0].mxu0
        %v7513 = vpop.f32.mrb[0].mxu0
        %7514 = vdwg.mxu0
        %7515 = vmatprep.subr.bf16.mxu0 %v4803
        %7516 = vmatpush1.bf16.msra.mxu0 %v4802
        %7517 = vmatprep.subr.bf16.mxu0 %v4807
        %7518 = vmatpush1.bf16.msra.mxu0 %v4806
        %7519 = vmatprep.subr.bf16.mxu0 %v4811
        %7520 = vmatpush1.bf16.msra.mxu0 %v4810
        %7521 = vmatprep.subr.bf16.mxu0 %v4815
        %7522 = vmatpush1.bf16.msra.mxu0 %v4814
        %7523 = vmatprep.subr.bf16.mxu0 %v4819
        %7524 = vmatpush1.bf16.msra.mxu0 %v4818
        %7525 = vmatprep.subr.bf16.mxu0 %v4823
        %7526 = vmatpush1.bf16.msra.mxu0 %v4822
        %7527 = vmatprep.subr.bf16.mxu0 %v4827
        %7528 = vmatpush1.bf16.msra.mxu0 %v4826
        %7529 = vmatprep.subr.bf16.mxu0 %v4831
        %7530 = vmatpush1.bf16.msra.mxu0 %v4830
        %7531 = vmatprep.subr.bf16.mxu0 %v4835
        %7532 = vmatpush1.bf16.msra.mxu0 %v4834
        %7533 = vmatprep.subr.bf16.mxu0 %v4839
        %7534 = vmatpush1.bf16.msra.mxu0 %v4838
        %7535 = vmatprep.subr.bf16.mxu0 %v4843
        %7536 = vmatpush1.bf16.msra.mxu0 %v4842
        %7537 = vmatprep.subr.bf16.mxu0 %v4847
        %7538 = vmatpush1.bf16.msra.mxu0 %v4846
        %7539 = vmatprep.subr.bf16.mxu0 %v4851
        %7540 = vmatpush1.bf16.msra.mxu0 %v4850
        %7541 = vmatprep.subr.bf16.mxu0 %v4855
        %7542 = vmatpush1.bf16.msra.mxu0 %v4854
        %7543 = vmatprep.subr.bf16.mxu0 %v4859
        %7544 = vmatpush1.bf16.msra.mxu0 %v4858
        %7545 = vmatprep.subr.bf16.mxu0 %v4863
        %7546 = vmatpush1.bf16.msra.mxu0 %v4862
        %7547 = vmatprep.mubr.bf16.mxu0 %v7303
        %7548 = vmatmul.mubr.bf16.gmra.mrb[0].mxu0 %v7302
        %v7549 = vpop.f32.mrb[0].mxu0
        %v7550 = vadd.f32 %v7509, %v7549
        %v7551 = vpop.f32.mrb[0].mxu0
        %v7552 = vadd.f32 %v7511, %v7551
        %v7553 = vpop.f32.mrb[0].mxu0
        %v7554 = vpop.f32.mrb[0].mxu0
        %7555 = vdwg.mxu0
        %v7560 = vcombine.low %v7427, %v7429
        %v7561 = vcombine.low %v7550, %v7552
        %v7563 = vunpack.c.l.s4 1966171168
        %v7564 = vunpack.c.0.s8 %v7563
        %v7565 = vlaneseq
        %v7566 = vshrl.u32 %v7565, 7
        %v7567 = vsub.s32 %v7564, %v7566
        %v7568 = vrot.slane %v7560, %v7567
        %v7570 = vunpack.c.l.s4 1966171168
        %v7571 = vunpack.c.0.s8 %v7570
        %v7572 = vlaneseq
        %v7573 = vshrl.u32 %v7572, 7
        %v7574 = vsub.s32 %v7571, %v7573
        %v7575 = vrot.slane %v7561, %v7574
        %v7576 = vcombine.low %v7568, %v7575
        %v7578 = vunpack.c.l.s4 1966171168
        %v7579 = vunpack.c.0.s8 %v7578
        %v7580 = vlaneseq
        %v7581 = vshrl.u32 %v7580, 7
        %v7582 = vsub.s32 %v7579, %v7581
        %v7583 = vrot.slane %v7576, %v7582
        %7585 = vst.msk [vmem:[%s7165] ss:$8 sm:$0xf] %vm5355, %v7583
        %7586 = vst.msk [vmem:[%s7165] ss:$8 sm:$0x0] %vm5355, %v7583
        %s7587 = sand.u32 %s174, 1
        %s7588 = sand.u32 %s174, 1
        %s7589 = smul.addr %s7588, 2112
        %s7590 = scalar_lea.vmem [#allocation8], %s7589
        // Predicated region
        $region76: #{tpu_custom_call.1} parent=58 // pred_check
          %p7591 = pneg %p184
        $region77: #{tpu_custom_call.1} parent=58 // pred_check_branch
          %7593 = sbr.rel (%p7591) target = $region79
        $region78: #{tpu_custom_call.1} parent=58 // pred_region
          %s7594 = smul.u32 2, %s27
          %s7595 = smul.u32 4, %s26
          %s7596 = smul.addr %s7594, 264
          %s7597 = sadd.s32 %s7595, %s7596
          %s7598 = smul.addr %s7597, 8
          %s7599 = scalar_lea.vmem %s5, %s7598
          // Predicated region
          $region80: #{tpu_custom_call.1} parent=78 // pred_check
            _
          $region81: #{tpu_custom_call.1} parent=78 // pred_check_branch
            %7601 = sbr.rel (0) target = $region83
          $region82: #{tpu_custom_call.1} parent=78 // pred_region
            // Predicated region
            $region84: #{tpu_custom_call.1} parent=82 // pred_check
              _
            $region85: #{tpu_custom_call.1} parent=82 // pred_check_branch
              %7603 = sbr.rel (0) target = $region87
            $region86: #{tpu_custom_call.1} parent=82 // pred_region
              loop: start=0, step=1, limit=1
              $region88: #{tpu_custom_call.1} parent=86 // loop_pre_header
                _
              $region89: #{tpu_custom_call.1} parent=86 // loop_header
                %s7605 = sphi 0, %s7609
                %p7606 = scmp.ge.s32.totalorder %s7605, 1
                %s7610 = sphi %s7590, %s7590
                %s7611 = sphi %s7599, %s7599
              $region90: #{tpu_custom_call.1} parent=86 // loop_header_branch
                %7608 = sbr.rel (%p7606) target = $region94
              $region91: #{tpu_custom_call.1} parent=86 // loop_body
                %v7612 = vld [vmem:[%s7610] sm:$0xff]
                %7613 = vst [vmem:[%s7611] sm:$0xff] %v7612
                %v7614 = vld [vmem:[%s7610 + $0x8] sm:$0xff]
                %7615 = vst [vmem:[%s7611 + $0x8] sm:$0xff] %v7614
                %v7616 = vld [vmem:[%s7610 + $0x10] sm:$0xff]
                %7617 = vst [vmem:[%s7611 + $0x10] sm:$0xff] %v7616
                %v7618 = vld [vmem:[%s7610 + $0x18] sm:$0xff]
                %7619 = vst [vmem:[%s7611 + $0x18] sm:$0xff] %v7618
                %v7620 = vld [vmem:[%s7610 + $0x20] sm:$0xff]
                %7621 = vst [vmem:[%s7611 + $0x40] sm:$0xff] %v7620
                %v7622 = vld [vmem:[%s7610 + $0x28] sm:$0xff]
                %7623 = vst [vmem:[%s7611 + $0x48] sm:$0xff] %v7622
                %v7624 = vld [vmem:[%s7610 + $0x30] sm:$0xff]
                %7625 = vst [vmem:[%s7611 + $0x50] sm:$0xff] %v7624
                %v7626 = vld [vmem:[%s7610 + $0x38] sm:$0xff]
                %7627 = vst [vmem:[%s7611 + $0x58] sm:$0xff] %v7626
                %v7628 = vld [vmem:[%s7610 + $0x40] sm:$0xff]
                %7629 = vst [vmem:[%s7611 + $0x80] sm:$0xff] %v7628
                %v7630 = vld [vmem:[%s7610 + $0x48] sm:$0xff]
                %7631 = vst [vmem:[%s7611 + $0x88] sm:$0xff] %v7630
                %v7632 = vld [vmem:[%s7610 + $0x50] sm:$0xff]
                %7633 = vst [vmem:[%s7611 + $0x90] sm:$0xff] %v7632
                %v7634 = vld [vmem:[%s7610 + $0x58] sm:$0xff]
                %7635 = vst [vmem:[%s7611 + $0x98] sm:$0xff] %v7634
                %v7636 = vld [vmem:[%s7610 + $0x60] sm:$0xff]
                %7637 = vst [vmem:[%s7611 + $0xc0] sm:$0xff] %v7636
                %v7638 = vld [vmem:[%s7610 + $0x68] sm:$0xff]
                %7639 = vst [vmem:[%s7611 + $0xc8] sm:$0xff] %v7638
                %v7640 = vld [vmem:[%s7610 + $0x70] sm:$0xff]
                %7641 = vst [vmem:[%s7611 + $0xd0] sm:$0xff] %v7640
                %v7642 = vld [vmem:[%s7610 + $0x78] sm:$0xff]
                %7643 = vst [vmem:[%s7611 + $0xd8] sm:$0xff] %v7642
                %v7644 = vld [vmem:[%s7610 + $0x80] sm:$0xff]
                %7645 = vst [vmem:[%s7611 + $0x100] sm:$0xff] %v7644
                %v7646 = vld [vmem:[%s7610 + $0x88] sm:$0xff]
                %7647 = vst [vmem:[%s7611 + $0x108] sm:$0xff] %v7646
                %v7648 = vld [vmem:[%s7610 + $0x90] sm:$0xff]
                %7649 = vst [vmem:[%s7611 + $0x110] sm:$0xff] %v7648
                %v7650 = vld [vmem:[%s7610 + $0x98] sm:$0xff]
                %7651 = vst [vmem:[%s7611 + $0x118] sm:$0xff] %v7650
                %v7652 = vld [vmem:[%s7610 + $0xa0] sm:$0xff]
                %7653 = vst [vmem:[%s7611 + $0x140] sm:$0xff] %v7652
                %v7654 = vld [vmem:[%s7610 + $0xa8] sm:$0xff]
                %7655 = vst [vmem:[%s7611 + $0x148] sm:$0xff] %v7654
                %v7656 = vld [vmem:[%s7610 + $0xb0] sm:$0xff]
                %7657 = vst [vmem:[%s7611 + $0x150] sm:$0xff] %v7656
                %v7658 = vld [vmem:[%s7610 + $0xb8] sm:$0xff]
                %7659 = vst [vmem:[%s7611 + $0x158] sm:$0xff] %v7658
                %v7660 = vld [vmem:[%s7610 + $0xc0] sm:$0xff]
                %7661 = vst [vmem:[%s7611 + $0x180] sm:$0xff] %v7660
                %v7662 = vld [vmem:[%s7610 + $0xc8] sm:$0xff]
                %7663 = vst [vmem:[%s7611 + $0x188] sm:$0xff] %v7662
                %v7664 = vld [vmem:[%s7610 + $0xd0] sm:$0xff]
                %7665 = vst [vmem:[%s7611 + $0x190] sm:$0xff] %v7664
                %v7666 = vld [vmem:[%s7610 + $0xd8] sm:$0xff]
                %7667 = vst [vmem:[%s7611 + $0x198] sm:$0xff] %v7666
                %v7668 = vld [vmem:[%s7610 + $0xe0] sm:$0xff]
                %7669 = vst [vmem:[%s7611 + $0x1c0] sm:$0xff] %v7668
                %v7670 = vld [vmem:[%s7610 + $0xe8] sm:$0xff]
                %7671 = vst [vmem:[%s7611 + $0x1c8] sm:$0xff] %v7670
                %v7672 = vld [vmem:[%s7610 + $0xf0] sm:$0xff]
                %7673 = vst [vmem:[%s7611 + $0x1d0] sm:$0xff] %v7672
                %v7674 = vld [vmem:[%s7610 + $0xf8] sm:$0xff]
                %7675 = vst [vmem:[%s7611 + $0x1d8] sm:$0xff] %v7674
                %v7676 = vld [vmem:[%s7610 + $0x100] sm:$0xff]
                %7677 = vst [vmem:[%s7611 + $0x200] sm:$0xff] %v7676
                %v7678 = vld [vmem:[%s7610 + $0x108] sm:$0xff]
                %7679 = vst [vmem:[%s7611 + $0x208] sm:$0xff] %v7678
                %v7680 = vld [vmem:[%s7610 + $0x110] sm:$0xff]
                %7681 = vst [vmem:[%s7611 + $0x210] sm:$0xff] %v7680
                %v7682 = vld [vmem:[%s7610 + $0x118] sm:$0xff]
                %7683 = vst [vmem:[%s7611 + $0x218] sm:$0xff] %v7682
                %v7684 = vld [vmem:[%s7610 + $0x120] sm:$0xff]
                %7685 = vst [vmem:[%s7611 + $0x240] sm:$0xff] %v7684
                %v7686 = vld [vmem:[%s7610 + $0x128] sm:$0xff]
                %7687 = vst [vmem:[%s7611 + $0x248] sm:$0xff] %v7686
                %v7688 = vld [vmem:[%s7610 + $0x130] sm:$0xff]
                %7689 = vst [vmem:[%s7611 + $0x250] sm:$0xff] %v7688
                %v7690 = vld [vmem:[%s7610 + $0x138] sm:$0xff]
                %7691 = vst [vmem:[%s7611 + $0x258] sm:$0xff] %v7690
                %v7692 = vld [vmem:[%s7610 + $0x140] sm:$0xff]
                %7693 = vst [vmem:[%s7611 + $0x280] sm:$0xff] %v7692
                %v7694 = vld [vmem:[%s7610 + $0x148] sm:$0xff]
                %7695 = vst [vmem:[%s7611 + $0x288] sm:$0xff] %v7694
                %v7696 = vld [vmem:[%s7610 + $0x150] sm:$0xff]
                %7697 = vst [vmem:[%s7611 + $0x290] sm:$0xff] %v7696
                %v7698 = vld [vmem:[%s7610 + $0x158] sm:$0xff]
                %7699 = vst [vmem:[%s7611 + $0x298] sm:$0xff] %v7698
                %v7700 = vld [vmem:[%s7610 + $0x160] sm:$0xff]
                %7701 = vst [vmem:[%s7611 + $0x2c0] sm:$0xff] %v7700
                %v7702 = vld [vmem:[%s7610 + $0x168] sm:$0xff]
                %7703 = vst [vmem:[%s7611 + $0x2c8] sm:$0xff] %v7702
                %v7704 = vld [vmem:[%s7610 + $0x170] sm:$0xff]
                %7705 = vst [vmem:[%s7611 + $0x2d0] sm:$0xff] %v7704
                %v7706 = vld [vmem:[%s7610 + $0x178] sm:$0xff]
                %7707 = vst [vmem:[%s7611 + $0x2d8] sm:$0xff] %v7706
                %v7708 = vld [vmem:[%s7610 + $0x180] sm:$0xff]
                %7709 = vst [vmem:[%s7611 + $0x300] sm:$0xff] %v7708
                %v7710 = vld [vmem:[%s7610 + $0x188] sm:$0xff]
                %7711 = vst [vmem:[%s7611 + $0x308] sm:$0xff] %v7710
                %v7712 = vld [vmem:[%s7610 + $0x190] sm:$0xff]
                %7713 = vst [vmem:[%s7611 + $0x310] sm:$0xff] %v7712
                %v7714 = vld [vmem:[%s7610 + $0x198] sm:$0xff]
                %7715 = vst [vmem:[%s7611 + $0x318] sm:$0xff] %v7714
                %v7716 = vld [vmem:[%s7610 + $0x1a0] sm:$0xff]
                %7717 = vst [vmem:[%s7611 + $0x340] sm:$0xff] %v7716
                %v7718 = vld [vmem:[%s7610 + $0x1a8] sm:$0xff]
                %7719 = vst [vmem:[%s7611 + $0x348] sm:$0xff] %v7718
                %v7720 = vld [vmem:[%s7610 + $0x1b0] sm:$0xff]
                %7721 = vst [vmem:[%s7611 + $0x350] sm:$0xff] %v7720
                %v7722 = vld [vmem:[%s7610 + $0x1b8] sm:$0xff]
                %7723 = vst [vmem:[%s7611 + $0x358] sm:$0xff] %v7722
                %v7724 = vld [vmem:[%s7610 + $0x1c0] sm:$0xff]
                %7725 = vst [vmem:[%s7611 + $0x380] sm:$0xff] %v7724
                %v7726 = vld [vmem:[%s7610 + $0x1c8] sm:$0xff]
                %7727 = vst [vmem:[%s7611 + $0x388] sm:$0xff] %v7726
                %v7728 = vld [vmem:[%s7610 + $0x1d0] sm:$0xff]
                %7729 = vst [vmem:[%s7611 + $0x390] sm:$0xff] %v7728
                %v7730 = vld [vmem:[%s7610 + $0x1d8] sm:$0xff]
                %7731 = vst [vmem:[%s7611 + $0x398] sm:$0xff] %v7730
                %v7732 = vld [vmem:[%s7610 + $0x1e0] sm:$0xff]
                %7733 = vst [vmem:[%s7611 + $0x3c0] sm:$0xff] %v7732
                %v7734 = vld [vmem:[%s7610 + $0x1e8] sm:$0xff]
                %7735 = vst [vmem:[%s7611 + $0x3c8] sm:$0xff] %v7734
                %v7736 = vld [vmem:[%s7610 + $0x1f0] sm:$0xff]
                %7737 = vst [vmem:[%s7611 + $0x3d0] sm:$0xff] %v7736
                %v7738 = vld [vmem:[%s7610 + $0x1f8] sm:$0xff]
                %7739 = vst [vmem:[%s7611 + $0x3d8] sm:$0xff] %v7738
                %v7740 = vld [vmem:[%s7610 + $0x200] sm:$0xff]
                %7741 = vst [vmem:[%s7611 + $0x400] sm:$0xff] %v7740
                %v7742 = vld [vmem:[%s7610 + $0x208] sm:$0xff]
                %7743 = vst [vmem:[%s7611 + $0x408] sm:$0xff] %v7742
                %v7744 = vld [vmem:[%s7610 + $0x210] sm:$0xff]
                %7745 = vst [vmem:[%s7611 + $0x410] sm:$0xff] %v7744
                %v7746 = vld [vmem:[%s7610 + $0x218] sm:$0xff]
                %7747 = vst [vmem:[%s7611 + $0x418] sm:$0xff] %v7746
                %v7748 = vld [vmem:[%s7610 + $0x220] sm:$0xff]
                %7749 = vst [vmem:[%s7611 + $0x440] sm:$0xff] %v7748
                %v7750 = vld [vmem:[%s7610 + $0x228] sm:$0xff]
                %7751 = vst [vmem:[%s7611 + $0x448] sm:$0xff] %v7750
                %v7752 = vld [vmem:[%s7610 + $0x230] sm:$0xff]
                %7753 = vst [vmem:[%s7611 + $0x450] sm:$0xff] %v7752
                %v7754 = vld [vmem:[%s7610 + $0x238] sm:$0xff]
                %7755 = vst [vmem:[%s7611 + $0x458] sm:$0xff] %v7754
                %v7756 = vld [vmem:[%s7610 + $0x240] sm:$0xff]
                %7757 = vst [vmem:[%s7611 + $0x480] sm:$0xff] %v7756
                %v7758 = vld [vmem:[%s7610 + $0x248] sm:$0xff]
                %7759 = vst [vmem:[%s7611 + $0x488] sm:$0xff] %v7758
                %v7760 = vld [vmem:[%s7610 + $0x250] sm:$0xff]
                %7761 = vst [vmem:[%s7611 + $0x490] sm:$0xff] %v7760
                %v7762 = vld [vmem:[%s7610 + $0x258] sm:$0xff]
                %7763 = vst [vmem:[%s7611 + $0x498] sm:$0xff] %v7762
                %v7764 = vld [vmem:[%s7610 + $0x260] sm:$0xff]
                %7765 = vst [vmem:[%s7611 + $0x4c0] sm:$0xff] %v7764
                %v7766 = vld [vmem:[%s7610 + $0x268] sm:$0xff]
                %7767 = vst [vmem:[%s7611 + $0x4c8] sm:$0xff] %v7766
                %v7768 = vld [vmem:[%s7610 + $0x270] sm:$0xff]
                %7769 = vst [vmem:[%s7611 + $0x4d0] sm:$0xff] %v7768
                %v7770 = vld [vmem:[%s7610 + $0x278] sm:$0xff]
                %7771 = vst [vmem:[%s7611 + $0x4d8] sm:$0xff] %v7770
                %v7772 = vld [vmem:[%s7610 + $0x280] sm:$0xff]
                %7773 = vst [vmem:[%s7611 + $0x500] sm:$0xff] %v7772
                %v7774 = vld [vmem:[%s7610 + $0x288] sm:$0xff]
                %7775 = vst [vmem:[%s7611 + $0x508] sm:$0xff] %v7774
                %v7776 = vld [vmem:[%s7610 + $0x290] sm:$0xff]
                %7777 = vst [vmem:[%s7611 + $0x510] sm:$0xff] %v7776
                %v7778 = vld [vmem:[%s7610 + $0x298] sm:$0xff]
                %7779 = vst [vmem:[%s7611 + $0x518] sm:$0xff] %v7778
                %v7780 = vld [vmem:[%s7610 + $0x2a0] sm:$0xff]
                %7781 = vst [vmem:[%s7611 + $0x540] sm:$0xff] %v7780
                %v7782 = vld [vmem:[%s7610 + $0x2a8] sm:$0xff]
                %7783 = vst [vmem:[%s7611 + $0x548] sm:$0xff] %v7782
                %v7784 = vld [vmem:[%s7610 + $0x2b0] sm:$0xff]
                %7785 = vst [vmem:[%s7611 + $0x550] sm:$0xff] %v7784
                %v7786 = vld [vmem:[%s7610 + $0x2b8] sm:$0xff]
                %7787 = vst [vmem:[%s7611 + $0x558] sm:$0xff] %v7786
                %v7788 = vld [vmem:[%s7610 + $0x2c0] sm:$0xff]
                %7789 = vst [vmem:[%s7611 + $0x580] sm:$0xff] %v7788
                %v7790 = vld [vmem:[%s7610 + $0x2c8] sm:$0xff]
                %7791 = vst [vmem:[%s7611 + $0x588] sm:$0xff] %v7790
                %v7792 = vld [vmem:[%s7610 + $0x2d0] sm:$0xff]
                %7793 = vst [vmem:[%s7611 + $0x590] sm:$0xff] %v7792
                %v7794 = vld [vmem:[%s7610 + $0x2d8] sm:$0xff]
                %7795 = vst [vmem:[%s7611 + $0x598] sm:$0xff] %v7794
                %v7796 = vld [vmem:[%s7610 + $0x2e0] sm:$0xff]
                %7797 = vst [vmem:[%s7611 + $0x5c0] sm:$0xff] %v7796
                %v7798 = vld [vmem:[%s7610 + $0x2e8] sm:$0xff]
                %7799 = vst [vmem:[%s7611 + $0x5c8] sm:$0xff] %v7798
                %v7800 = vld [vmem:[%s7610 + $0x2f0] sm:$0xff]
                %7801 = vst [vmem:[%s7611 + $0x5d0] sm:$0xff] %v7800
                %v7802 = vld [vmem:[%s7610 + $0x2f8] sm:$0xff]
                %7803 = vst [vmem:[%s7611 + $0x5d8] sm:$0xff] %v7802
                %v7804 = vld [vmem:[%s7610 + $0x300] sm:$0xff]
                %7805 = vst [vmem:[%s7611 + $0x600] sm:$0xff] %v7804
                %v7806 = vld [vmem:[%s7610 + $0x308] sm:$0xff]
                %7807 = vst [vmem:[%s7611 + $0x608] sm:$0xff] %v7806
                %v7808 = vld [vmem:[%s7610 + $0x310] sm:$0xff]
                %7809 = vst [vmem:[%s7611 + $0x610] sm:$0xff] %v7808
                %v7810 = vld [vmem:[%s7610 + $0x318] sm:$0xff]
                %7811 = vst [vmem:[%s7611 + $0x618] sm:$0xff] %v7810
                %v7812 = vld [vmem:[%s7610 + $0x320] sm:$0xff]
                %7813 = vst [vmem:[%s7611 + $0x640] sm:$0xff] %v7812
                %v7814 = vld [vmem:[%s7610 + $0x328] sm:$0xff]
                %7815 = vst [vmem:[%s7611 + $0x648] sm:$0xff] %v7814
                %v7816 = vld [vmem:[%s7610 + $0x330] sm:$0xff]
                %7817 = vst [vmem:[%s7611 + $0x650] sm:$0xff] %v7816
                %v7818 = vld [vmem:[%s7610 + $0x338] sm:$0xff]
                %7819 = vst [vmem:[%s7611 + $0x658] sm:$0xff] %v7818
                %v7820 = vld [vmem:[%s7610 + $0x340] sm:$0xff]
                %7821 = vst [vmem:[%s7611 + $0x680] sm:$0xff] %v7820
                %v7822 = vld [vmem:[%s7610 + $0x348] sm:$0xff]
                %7823 = vst [vmem:[%s7611 + $0x688] sm:$0xff] %v7822
                %v7824 = vld [vmem:[%s7610 + $0x350] sm:$0xff]
                %7825 = vst [vmem:[%s7611 + $0x690] sm:$0xff] %v7824
                %v7826 = vld [vmem:[%s7610 + $0x358] sm:$0xff]
                %7827 = vst [vmem:[%s7611 + $0x698] sm:$0xff] %v7826
                %v7828 = vld [vmem:[%s7610 + $0x360] sm:$0xff]
                %7829 = vst [vmem:[%s7611 + $0x6c0] sm:$0xff] %v7828
                %v7830 = vld [vmem:[%s7610 + $0x368] sm:$0xff]
                %7831 = vst [vmem:[%s7611 + $0x6c8] sm:$0xff] %v7830
                %v7832 = vld [vmem:[%s7610 + $0x370] sm:$0xff]
                %7833 = vst [vmem:[%s7611 + $0x6d0] sm:$0xff] %v7832
                %v7834 = vld [vmem:[%s7610 + $0x378] sm:$0xff]
                %7835 = vst [vmem:[%s7611 + $0x6d8] sm:$0xff] %v7834
                %v7836 = vld [vmem:[%s7610 + $0x380] sm:$0xff]
                %7837 = vst [vmem:[%s7611 + $0x700] sm:$0xff] %v7836
                %v7838 = vld [vmem:[%s7610 + $0x388] sm:$0xff]
                %7839 = vst [vmem:[%s7611 + $0x708] sm:$0xff] %v7838
                %v7840 = vld [vmem:[%s7610 + $0x390] sm:$0xff]
                %7841 = vst [vmem:[%s7611 + $0x710] sm:$0xff] %v7840
                %v7842 = vld [vmem:[%s7610 + $0x398] sm:$0xff]
                %7843 = vst [vmem:[%s7611 + $0x718] sm:$0xff] %v7842
                %v7844 = vld [vmem:[%s7610 + $0x3a0] sm:$0xff]
                %7845 = vst [vmem:[%s7611 + $0x740] sm:$0xff] %v7844
                %v7846 = vld [vmem:[%s7610 + $0x3a8] sm:$0xff]
                %7847 = vst [vmem:[%s7611 + $0x748] sm:$0xff] %v7846
                %v7848 = vld [vmem:[%s7610 + $0x3b0] sm:$0xff]
                %7849 = vst [vmem:[%s7611 + $0x750] sm:$0xff] %v7848
                %v7850 = vld [vmem:[%s7610 + $0x3b8] sm:$0xff]
                %7851 = vst [vmem:[%s7611 + $0x758] sm:$0xff] %v7850
                %v7852 = vld [vmem:[%s7610 + $0x3c0] sm:$0xff]
                %7853 = vst [vmem:[%s7611 + $0x780] sm:$0xff] %v7852
                %v7854 = vld [vmem:[%s7610 + $0x3c8] sm:$0xff]
                %7855 = vst [vmem:[%s7611 + $0x788] sm:$0xff] %v7854
                %v7856 = vld [vmem:[%s7610 + $0x3d0] sm:$0xff]
                %7857 = vst [vmem:[%s7611 + $0x790] sm:$0xff] %v7856
                %v7858 = vld [vmem:[%s7610 + $0x3d8] sm:$0xff]
                %7859 = vst [vmem:[%s7611 + $0x798] sm:$0xff] %v7858
                %v7860 = vld [vmem:[%s7610 + $0x3e0] sm:$0xff]
                %7861 = vst [vmem:[%s7611 + $0x7c0] sm:$0xff] %v7860
                %v7862 = vld [vmem:[%s7610 + $0x3e8] sm:$0xff]
                %7863 = vst [vmem:[%s7611 + $0x7c8] sm:$0xff] %v7862
                %v7864 = vld [vmem:[%s7610 + $0x3f0] sm:$0xff]
                %7865 = vst [vmem:[%s7611 + $0x7d0] sm:$0xff] %v7864
                %v7866 = vld [vmem:[%s7610 + $0x3f8] sm:$0xff]
                %7867 = vst [vmem:[%s7611 + $0x7d8] sm:$0xff] %v7866
                %v7868 = vld [vmem:[%s7610 + $0x400] sm:$0xff]
                %7869 = vst [vmem:[%s7611 + $0x800] sm:$0xff] %v7868
                %v7870 = vld [vmem:[%s7610 + $0x408] sm:$0xff]
                %7871 = vst [vmem:[%s7611 + $0x808] sm:$0xff] %v7870
                %v7872 = vld [vmem:[%s7610 + $0x410] sm:$0xff]
                %7873 = vst [vmem:[%s7611 + $0x810] sm:$0xff] %v7872
                %v7874 = vld [vmem:[%s7610 + $0x418] sm:$0xff]
                %7875 = vst [vmem:[%s7611 + $0x818] sm:$0xff] %v7874
                %v7876 = vld [vmem:[%s7610 + $0x420] sm:$0xff]
                %7877 = vst [vmem:[%s7611 + $0x840] sm:$0xff] %v7876
                %v7878 = vld [vmem:[%s7610 + $0x428] sm:$0xff]
                %7879 = vst [vmem:[%s7611 + $0x848] sm:$0xff] %v7878
                %v7880 = vld [vmem:[%s7610 + $0x430] sm:$0xff]
                %7881 = vst [vmem:[%s7611 + $0x850] sm:$0xff] %v7880
                %v7882 = vld [vmem:[%s7610 + $0x438] sm:$0xff]
                %7883 = vst [vmem:[%s7611 + $0x858] sm:$0xff] %v7882
                %v7884 = vld [vmem:[%s7610 + $0x440] sm:$0xff]
                %7885 = vst [vmem:[%s7611 + $0x880] sm:$0xff] %v7884
                %v7886 = vld [vmem:[%s7610 + $0x448] sm:$0xff]
                %7887 = vst [vmem:[%s7611 + $0x888] sm:$0xff] %v7886
                %v7888 = vld [vmem:[%s7610 + $0x450] sm:$0xff]
                %7889 = vst [vmem:[%s7611 + $0x890] sm:$0xff] %v7888
                %v7890 = vld [vmem:[%s7610 + $0x458] sm:$0xff]
                %7891 = vst [vmem:[%s7611 + $0x898] sm:$0xff] %v7890
                %v7892 = vld [vmem:[%s7610 + $0x460] sm:$0xff]
                %7893 = vst [vmem:[%s7611 + $0x8c0] sm:$0xff] %v7892
                %v7894 = vld [vmem:[%s7610 + $0x468] sm:$0xff]
                %7895 = vst [vmem:[%s7611 + $0x8c8] sm:$0xff] %v7894
                %v7896 = vld [vmem:[%s7610 + $0x470] sm:$0xff]
                %7897 = vst [vmem:[%s7611 + $0x8d0] sm:$0xff] %v7896
                %v7898 = vld [vmem:[%s7610 + $0x478] sm:$0xff]
                %7899 = vst [vmem:[%s7611 + $0x8d8] sm:$0xff] %v7898
                %v7900 = vld [vmem:[%s7610 + $0x480] sm:$0xff]
                %7901 = vst [vmem:[%s7611 + $0x900] sm:$0xff] %v7900
                %v7902 = vld [vmem:[%s7610 + $0x488] sm:$0xff]
                %7903 = vst [vmem:[%s7611 + $0x908] sm:$0xff] %v7902
                %v7904 = vld [vmem:[%s7610 + $0x490] sm:$0xff]
                %7905 = vst [vmem:[%s7611 + $0x910] sm:$0xff] %v7904
                %v7906 = vld [vmem:[%s7610 + $0x498] sm:$0xff]
                %7907 = vst [vmem:[%s7611 + $0x918] sm:$0xff] %v7906
                %v7908 = vld [vmem:[%s7610 + $0x4a0] sm:$0xff]
                %7909 = vst [vmem:[%s7611 + $0x940] sm:$0xff] %v7908
                %v7910 = vld [vmem:[%s7610 + $0x4a8] sm:$0xff]
                %7911 = vst [vmem:[%s7611 + $0x948] sm:$0xff] %v7910
                %v7912 = vld [vmem:[%s7610 + $0x4b0] sm:$0xff]
                %7913 = vst [vmem:[%s7611 + $0x950] sm:$0xff] %v7912
                %v7914 = vld [vmem:[%s7610 + $0x4b8] sm:$0xff]
                %7915 = vst [vmem:[%s7611 + $0x958] sm:$0xff] %v7914
                %v7916 = vld [vmem:[%s7610 + $0x4c0] sm:$0xff]
                %7917 = vst [vmem:[%s7611 + $0x980] sm:$0xff] %v7916
                %v7918 = vld [vmem:[%s7610 + $0x4c8] sm:$0xff]
                %7919 = vst [vmem:[%s7611 + $0x988] sm:$0xff] %v7918
                %v7920 = vld [vmem:[%s7610 + $0x4d0] sm:$0xff]
                %7921 = vst [vmem:[%s7611 + $0x990] sm:$0xff] %v7920
                %v7922 = vld [vmem:[%s7610 + $0x4d8] sm:$0xff]
                %7923 = vst [vmem:[%s7611 + $0x998] sm:$0xff] %v7922
                %v7924 = vld [vmem:[%s7610 + $0x4e0] sm:$0xff]
                %7925 = vst [vmem:[%s7611 + $0x9c0] sm:$0xff] %v7924
                %v7926 = vld [vmem:[%s7610 + $0x4e8] sm:$0xff]
                %7927 = vst [vmem:[%s7611 + $0x9c8] sm:$0xff] %v7926
                %v7928 = vld [vmem:[%s7610 + $0x4f0] sm:$0xff]
                %7929 = vst [vmem:[%s7611 + $0x9d0] sm:$0xff] %v7928
                %v7930 = vld [vmem:[%s7610 + $0x4f8] sm:$0xff]
                %7931 = vst [vmem:[%s7611 + $0x9d8] sm:$0xff] %v7930
                %v7932 = vld [vmem:[%s7610 + $0x500] sm:$0xff]
                %7933 = vst [vmem:[%s7611 + $0xa00] sm:$0xff] %v7932
                %v7934 = vld [vmem:[%s7610 + $0x508] sm:$0xff]
                %7935 = vst [vmem:[%s7611 + $0xa08] sm:$0xff] %v7934
                %v7936 = vld [vmem:[%s7610 + $0x510] sm:$0xff]
                %7937 = vst [vmem:[%s7611 + $0xa10] sm:$0xff] %v7936
                %v7938 = vld [vmem:[%s7610 + $0x518] sm:$0xff]
                %7939 = vst [vmem:[%s7611 + $0xa18] sm:$0xff] %v7938
                %v7940 = vld [vmem:[%s7610 + $0x520] sm:$0xff]
                %7941 = vst [vmem:[%s7611 + $0xa40] sm:$0xff] %v7940
                %v7942 = vld [vmem:[%s7610 + $0x528] sm:$0xff]
                %7943 = vst [vmem:[%s7611 + $0xa48] sm:$0xff] %v7942
                %v7944 = vld [vmem:[%s7610 + $0x530] sm:$0xff]
                %7945 = vst [vmem:[%s7611 + $0xa50] sm:$0xff] %v7944
                %v7946 = vld [vmem:[%s7610 + $0x538] sm:$0xff]
                %7947 = vst [vmem:[%s7611 + $0xa58] sm:$0xff] %v7946
                %v7948 = vld [vmem:[%s7610 + $0x540] sm:$0xff]
                %7949 = vst [vmem:[%s7611 + $0xa80] sm:$0xff] %v7948
                %v7950 = vld [vmem:[%s7610 + $0x548] sm:$0xff]
                %7951 = vst [vmem:[%s7611 + $0xa88] sm:$0xff] %v7950
                %v7952 = vld [vmem:[%s7610 + $0x550] sm:$0xff]
                %7953 = vst [vmem:[%s7611 + $0xa90] sm:$0xff] %v7952
                %v7954 = vld [vmem:[%s7610 + $0x558] sm:$0xff]
                %7955 = vst [vmem:[%s7611 + $0xa98] sm:$0xff] %v7954
                %v7956 = vld [vmem:[%s7610 + $0x560] sm:$0xff]
                %7957 = vst [vmem:[%s7611 + $0xac0] sm:$0xff] %v7956
                %v7958 = vld [vmem:[%s7610 + $0x568] sm:$0xff]
                %7959 = vst [vmem:[%s7611 + $0xac8] sm:$0xff] %v7958
                %v7960 = vld [vmem:[%s7610 + $0x570] sm:$0xff]
                %7961 = vst [vmem:[%s7611 + $0xad0] sm:$0xff] %v7960
                %v7962 = vld [vmem:[%s7610 + $0x578] sm:$0xff]
                %7963 = vst [vmem:[%s7611 + $0xad8] sm:$0xff] %v7962
                %v7964 = vld [vmem:[%s7610 + $0x580] sm:$0xff]
                %7965 = vst [vmem:[%s7611 + $0xb00] sm:$0xff] %v7964
                %v7966 = vld [vmem:[%s7610 + $0x588] sm:$0xff]
                %7967 = vst [vmem:[%s7611 + $0xb08] sm:$0xff] %v7966
                %v7968 = vld [vmem:[%s7610 + $0x590] sm:$0xff]
                %7969 = vst [vmem:[%s7611 + $0xb10] sm:$0xff] %v7968
                %v7970 = vld [vmem:[%s7610 + $0x598] sm:$0xff]
                %7971 = vst [vmem:[%s7611 + $0xb18] sm:$0xff] %v7970
                %v7972 = vld [vmem:[%s7610 + $0x5a0] sm:$0xff]
                %7973 = vst [vmem:[%s7611 + $0xb40] sm:$0xff] %v7972
                %v7974 = vld [vmem:[%s7610 + $0x5a8] sm:$0xff]
                %7975 = vst [vmem:[%s7611 + $0xb48] sm:$0xff] %v7974
                %v7976 = vld [vmem:[%s7610 + $0x5b0] sm:$0xff]
                %7977 = vst [vmem:[%s7611 + $0xb50] sm:$0xff] %v7976
                %v7978 = vld [vmem:[%s7610 + $0x5b8] sm:$0xff]
                %7979 = vst [vmem:[%s7611 + $0xb58] sm:$0xff] %v7978
                %v7980 = vld [vmem:[%s7610 + $0x5c0] sm:$0xff]
                %7981 = vst [vmem:[%s7611 + $0xb80] sm:$0xff] %v7980
                %v7982 = vld [vmem:[%s7610 + $0x5c8] sm:$0xff]
                %7983 = vst [vmem:[%s7611 + $0xb88] sm:$0xff] %v7982
                %v7984 = vld [vmem:[%s7610 + $0x5d0] sm:$0xff]
                %7985 = vst [vmem:[%s7611 + $0xb90] sm:$0xff] %v7984
                %v7986 = vld [vmem:[%s7610 + $0x5d8] sm:$0xff]
                %7987 = vst [vmem:[%s7611 + $0xb98] sm:$0xff] %v7986
                %v7988 = vld [vmem:[%s7610 + $0x5e0] sm:$0xff]
                %7989 = vst [vmem:[%s7611 + $0xbc0] sm:$0xff] %v7988
                %v7990 = vld [vmem:[%s7610 + $0x5e8] sm:$0xff]
                %7991 = vst [vmem:[%s7611 + $0xbc8] sm:$0xff] %v7990
                %v7992 = vld [vmem:[%s7610 + $0x5f0] sm:$0xff]
                %7993 = vst [vmem:[%s7611 + $0xbd0] sm:$0xff] %v7992
                %v7994 = vld [vmem:[%s7610 + $0x5f8] sm:$0xff]
                %7995 = vst [vmem:[%s7611 + $0xbd8] sm:$0xff] %v7994
                %v7996 = vld [vmem:[%s7610 + $0x600] sm:$0xff]
                %7997 = vst [vmem:[%s7611 + $0xc00] sm:$0xff] %v7996
                %v7998 = vld [vmem:[%s7610 + $0x608] sm:$0xff]
                %7999 = vst [vmem:[%s7611 + $0xc08] sm:$0xff] %v7998
                %v8000 = vld [vmem:[%s7610 + $0x610] sm:$0xff]
                %8001 = vst [vmem:[%s7611 + $0xc10] sm:$0xff] %v8000
                %v8002 = vld [vmem:[%s7610 + $0x618] sm:$0xff]
                %8003 = vst [vmem:[%s7611 + $0xc18] sm:$0xff] %v8002
                %v8004 = vld [vmem:[%s7610 + $0x620] sm:$0xff]
                %8005 = vst [vmem:[%s7611 + $0xc40] sm:$0xff] %v8004
                %v8006 = vld [vmem:[%s7610 + $0x628] sm:$0xff]
                %8007 = vst [vmem:[%s7611 + $0xc48] sm:$0xff] %v8006
                %v8008 = vld [vmem:[%s7610 + $0x630] sm:$0xff]
                %8009 = vst [vmem:[%s7611 + $0xc50] sm:$0xff] %v8008
                %v8010 = vld [vmem:[%s7610 + $0x638] sm:$0xff]
                %8011 = vst [vmem:[%s7611 + $0xc58] sm:$0xff] %v8010
                %v8012 = vld [vmem:[%s7610 + $0x640] sm:$0xff]
                %8013 = vst [vmem:[%s7611 + $0xc80] sm:$0xff] %v8012
                %v8014 = vld [vmem:[%s7610 + $0x648] sm:$0xff]
                %8015 = vst [vmem:[%s7611 + $0xc88] sm:$0xff] %v8014
                %v8016 = vld [vmem:[%s7610 + $0x650] sm:$0xff]
                %8017 = vst [vmem:[%s7611 + $0xc90] sm:$0xff] %v8016
                %v8018 = vld [vmem:[%s7610 + $0x658] sm:$0xff]
                %8019 = vst [vmem:[%s7611 + $0xc98] sm:$0xff] %v8018
                %v8020 = vld [vmem:[%s7610 + $0x660] sm:$0xff]
                %8021 = vst [vmem:[%s7611 + $0xcc0] sm:$0xff] %v8020
                %v8022 = vld [vmem:[%s7610 + $0x668] sm:$0xff]
                %8023 = vst [vmem:[%s7611 + $0xcc8] sm:$0xff] %v8022
                %v8024 = vld [vmem:[%s7610 + $0x670] sm:$0xff]
                %8025 = vst [vmem:[%s7611 + $0xcd0] sm:$0xff] %v8024
                %v8026 = vld [vmem:[%s7610 + $0x678] sm:$0xff]
                %8027 = vst [vmem:[%s7611 + $0xcd8] sm:$0xff] %v8026
                %v8028 = vld [vmem:[%s7610 + $0x680] sm:$0xff]
                %8029 = vst [vmem:[%s7611 + $0xd00] sm:$0xff] %v8028
                %v8030 = vld [vmem:[%s7610 + $0x688] sm:$0xff]
                %8031 = vst [vmem:[%s7611 + $0xd08] sm:$0xff] %v8030
                %v8032 = vld [vmem:[%s7610 + $0x690] sm:$0xff]
                %8033 = vst [vmem:[%s7611 + $0xd10] sm:$0xff] %v8032
                %v8034 = vld [vmem:[%s7610 + $0x698] sm:$0xff]
                %8035 = vst [vmem:[%s7611 + $0xd18] sm:$0xff] %v8034
                %v8036 = vld [vmem:[%s7610 + $0x6a0] sm:$0xff]
                %8037 = vst [vmem:[%s7611 + $0xd40] sm:$0xff] %v8036
                %v8038 = vld [vmem:[%s7610 + $0x6a8] sm:$0xff]
                %8039 = vst [vmem:[%s7611 + $0xd48] sm:$0xff] %v8038
                %v8040 = vld [vmem:[%s7610 + $0x6b0] sm:$0xff]
                %8041 = vst [vmem:[%s7611 + $0xd50] sm:$0xff] %v8040
                %v8042 = vld [vmem:[%s7610 + $0x6b8] sm:$0xff]
                %8043 = vst [vmem:[%s7611 + $0xd58] sm:$0xff] %v8042
                %v8044 = vld [vmem:[%s7610 + $0x6c0] sm:$0xff]
                %8045 = vst [vmem:[%s7611 + $0xd80] sm:$0xff] %v8044
                %v8046 = vld [vmem:[%s7610 + $0x6c8] sm:$0xff]
                %8047 = vst [vmem:[%s7611 + $0xd88] sm:$0xff] %v8046
                %v8048 = vld [vmem:[%s7610 + $0x6d0] sm:$0xff]
                %8049 = vst [vmem:[%s7611 + $0xd90] sm:$0xff] %v8048
                %v8050 = vld [vmem:[%s7610 + $0x6d8] sm:$0xff]
                %8051 = vst [vmem:[%s7611 + $0xd98] sm:$0xff] %v8050
                %v8052 = vld [vmem:[%s7610 + $0x6e0] sm:$0xff]
                %8053 = vst [vmem:[%s7611 + $0xdc0] sm:$0xff] %v8052
                %v8054 = vld [vmem:[%s7610 + $0x6e8] sm:$0xff]
                %8055 = vst [vmem:[%s7611 + $0xdc8] sm:$0xff] %v8054
                %v8056 = vld [vmem:[%s7610 + $0x6f0] sm:$0xff]
                %8057 = vst [vmem:[%s7611 + $0xdd0] sm:$0xff] %v8056
                %v8058 = vld [vmem:[%s7610 + $0x6f8] sm:$0xff]
                %8059 = vst [vmem:[%s7611 + $0xdd8] sm:$0xff] %v8058
                %v8060 = vld [vmem:[%s7610 + $0x700] sm:$0xff]
                %8061 = vst [vmem:[%s7611 + $0xe00] sm:$0xff] %v8060
                %v8062 = vld [vmem:[%s7610 + $0x708] sm:$0xff]
                %8063 = vst [vmem:[%s7611 + $0xe08] sm:$0xff] %v8062
                %v8064 = vld [vmem:[%s7610 + $0x710] sm:$0xff]
                %8065 = vst [vmem:[%s7611 + $0xe10] sm:$0xff] %v8064
                %v8066 = vld [vmem:[%s7610 + $0x718] sm:$0xff]
                %8067 = vst [vmem:[%s7611 + $0xe18] sm:$0xff] %v8066
                %v8068 = vld [vmem:[%s7610 + $0x720] sm:$0xff]
                %8069 = vst [vmem:[%s7611 + $0xe40] sm:$0xff] %v8068
                %v8070 = vld [vmem:[%s7610 + $0x728] sm:$0xff]
                %8071 = vst [vmem:[%s7611 + $0xe48] sm:$0xff] %v8070
                %v8072 = vld [vmem:[%s7610 + $0x730] sm:$0xff]
                %8073 = vst [vmem:[%s7611 + $0xe50] sm:$0xff] %v8072
                %v8074 = vld [vmem:[%s7610 + $0x738] sm:$0xff]
                %8075 = vst [vmem:[%s7611 + $0xe58] sm:$0xff] %v8074
                %v8076 = vld [vmem:[%s7610 + $0x740] sm:$0xff]
                %8077 = vst [vmem:[%s7611 + $0xe80] sm:$0xff] %v8076
                %v8078 = vld [vmem:[%s7610 + $0x748] sm:$0xff]
                %8079 = vst [vmem:[%s7611 + $0xe88] sm:$0xff] %v8078
                %v8080 = vld [vmem:[%s7610 + $0x750] sm:$0xff]
                %8081 = vst [vmem:[%s7611 + $0xe90] sm:$0xff] %v8080
                %v8082 = vld [vmem:[%s7610 + $0x758] sm:$0xff]
                %8083 = vst [vmem:[%s7611 + $0xe98] sm:$0xff] %v8082
                %v8084 = vld [vmem:[%s7610 + $0x760] sm:$0xff]
                %8085 = vst [vmem:[%s7611 + $0xec0] sm:$0xff] %v8084
                %v8086 = vld [vmem:[%s7610 + $0x768] sm:$0xff]
                %8087 = vst [vmem:[%s7611 + $0xec8] sm:$0xff] %v8086
                %v8088 = vld [vmem:[%s7610 + $0x770] sm:$0xff]
                %8089 = vst [vmem:[%s7611 + $0xed0] sm:$0xff] %v8088
                %v8090 = vld [vmem:[%s7610 + $0x778] sm:$0xff]
                %8091 = vst [vmem:[%s7611 + $0xed8] sm:$0xff] %v8090
                %v8092 = vld [vmem:[%s7610 + $0x780] sm:$0xff]
                %8093 = vst [vmem:[%s7611 + $0xf00] sm:$0xff] %v8092
                %v8094 = vld [vmem:[%s7610 + $0x788] sm:$0xff]
                %8095 = vst [vmem:[%s7611 + $0xf08] sm:$0xff] %v8094
                %v8096 = vld [vmem:[%s7610 + $0x790] sm:$0xff]
                %8097 = vst [vmem:[%s7611 + $0xf10] sm:$0xff] %v8096
                %v8098 = vld [vmem:[%s7610 + $0x798] sm:$0xff]
                %8099 = vst [vmem:[%s7611 + $0xf18] sm:$0xff] %v8098
                %v8100 = vld [vmem:[%s7610 + $0x7a0] sm:$0xff]
                %8101 = vst [vmem:[%s7611 + $0xf40] sm:$0xff] %v8100
                %v8102 = vld [vmem:[%s7610 + $0x7a8] sm:$0xff]
                %8103 = vst [vmem:[%s7611 + $0xf48] sm:$0xff] %v8102
                %v8104 = vld [vmem:[%s7610 + $0x7b0] sm:$0xff]
                %8105 = vst [vmem:[%s7611 + $0xf50] sm:$0xff] %v8104
                %v8106 = vld [vmem:[%s7610 + $0x7b8] sm:$0xff]
                %8107 = vst [vmem:[%s7611 + $0xf58] sm:$0xff] %v8106
                %v8108 = vld [vmem:[%s7610 + $0x7c0] sm:$0xff]
                %8109 = vst [vmem:[%s7611 + $0xf80] sm:$0xff] %v8108
                %v8110 = vld [vmem:[%s7610 + $0x7c8] sm:$0xff]
                %8111 = vst [vmem:[%s7611 + $0xf88] sm:$0xff] %v8110
                %v8112 = vld [vmem:[%s7610 + $0x7d0] sm:$0xff]
                %8113 = vst [vmem:[%s7611 + $0xf90] sm:$0xff] %v8112
                %v8114 = vld [vmem:[%s7610 + $0x7d8] sm:$0xff]
                %8115 = vst [vmem:[%s7611 + $0xf98] sm:$0xff] %v8114
                %v8116 = vld [vmem:[%s7610 + $0x7e0] sm:$0xff]
                %8117 = vst [vmem:[%s7611 + $0xfc0] sm:$0xff] %v8116
                %v8118 = vld [vmem:[%s7610 + $0x7e8] sm:$0xff]
                %8119 = vst [vmem:[%s7611 + $0xfc8] sm:$0xff] %v8118
                %v8120 = vld [vmem:[%s7610 + $0x7f0] sm:$0xff]
                %8121 = vst [vmem:[%s7611 + $0xfd0] sm:$0xff] %v8120
                %v8122 = vld [vmem:[%s7610 + $0x7f8] sm:$0xff]
                %8123 = vst [vmem:[%s7611 + $0xfd8] sm:$0xff] %v8122
                %v8124 = vld [vmem:[%s7610 + $0x800] sm:$0xff]
                %8125 = vst [vmem:[%s7611 + $0x1000] sm:$0xff] %v8124
                %v8126 = vld [vmem:[%s7610 + $0x808] sm:$0xff]
                %8127 = vst [vmem:[%s7611 + $0x1008] sm:$0xff] %v8126
                %v8128 = vld [vmem:[%s7610 + $0x810] sm:$0xff]
                %8129 = vst [vmem:[%s7611 + $0x1010] sm:$0xff] %v8128
                %v8130 = vld [vmem:[%s7610 + $0x818] sm:$0xff]
                %8131 = vst [vmem:[%s7611 + $0x1018] sm:$0xff] %v8130
                %v8132 = vld [vmem:[%s7610 + $0x820] sm:$0xff]
                %8133 = vst [vmem:[%s7611 + $0x1040] sm:$0xff] %v8132
                %v8134 = vld [vmem:[%s7610 + $0x828] sm:$0xff]
                %8135 = vst [vmem:[%s7611 + $0x1048] sm:$0xff] %v8134
                %v8136 = vld [vmem:[%s7610 + $0x830] sm:$0xff]
                %8137 = vst [vmem:[%s7611 + $0x1050] sm:$0xff] %v8136
                %v8138 = vld [vmem:[%s7610 + $0x838] sm:$0xff]
                %8139 = vst [vmem:[%s7611 + $0x1058] sm:$0xff] %v8138
              $region92: #{tpu_custom_call.1} parent=86 // loop_footer
                %s7609 = sadd.s32 1, %s7605
              $region93: #{tpu_custom_call.1} parent=86 // loop_footer_branch
                %7604 = sbr.rel target = $region89
              $region94: #{tpu_custom_call.1} parent=86 // loop_exit
                _
            $region87: #{tpu_custom_call.1} parent=82 // pred_fallthru
              _
            // Predicated region
            $region95: #{tpu_custom_call.1} parent=82 // pred_check
              _
            $region96: #{tpu_custom_call.1} parent=82 // pred_check_branch
              %8141 = sbr.rel target = $region98
            $region97: #{tpu_custom_call.1} parent=82 // pred_region
              _
            $region98: #{tpu_custom_call.1} parent=82 // pred_fallthru
              _
          $region83: #{tpu_custom_call.1} parent=78 // pred_fallthru
            _
          %8142 = vnop
        $region79: #{tpu_custom_call.1} parent=58 // pred_fallthru
          _
      $region59: #{tpu_custom_call.1} parent=5 // pred_fallthru
        _
      %p8143 = scmp.le.s32.totalorder 2, %s17
      // Predicated region
      $region99: #{tpu_custom_call.1} parent=5 // pred_check
        %p8144 = pneg %p8143
      $region100: #{tpu_custom_call.1} parent=5 // pred_check_branch
        %8146 = sbr.rel (%p8144) target = $region102
      $region101: #{tpu_custom_call.1} parent=5 // pred_region
        %s8147 = ssub.s32 %s17, 2
        // Predicated region
        $region103: #{tpu_custom_call.1} parent=101 // pred_check
          %p8148 = pneg %p190
        $region104: #{tpu_custom_call.1} parent=101 // pred_check_branch
          %8150 = sbr.rel (%p8148) target = $region106
        $region105: #{tpu_custom_call.1} parent=101 // pred_region
          %s8151 = sand.u32 %s175, 1
          %s8152 = sand.u32 %s175, 1
          %s8153 = smul.addr %s8152, 2112
          %s8154 = scalar_lea.vmem [#allocation8], %s8153
        $region106: #{tpu_custom_call.1} parent=101 // pred_fallthru
          _
      $region102: #{tpu_custom_call.1} parent=5 // pred_fallthru
        _
    $region6: #{tpu_custom_call.1} parent=1 // loop_footer
      %s21 = sadd.s32 1, %s17
    $region7: #{tpu_custom_call.1} parent=1 // loop_footer_branch
      %16 = sbr.rel target = $region3
    $region8: #{tpu_custom_call.1} parent=1 // loop_exit
      _
    %8155 = vsyncpa [#allocation4], 1
    %s8156 = scalar_lea.sflag [#allocation4], 1
    %8157 = vsyncpa %s8156, 1
    %8158 = vsyncpa [#allocation6], 1
    %s8159 = scalar_lea.sflag [#allocation6], 1
    %8160 = vsyncpa %s8159, 1

</llo_original>
